<compile_context>
chip_gen: v7x
topology: tpu7x:2x2x1
jax: 0.10.0
libtpu: 0.0.40
codegen_flags: <defaults>
</compile_context>

<pallas_src>
import functools

import jax
import jax.numpy as jnp
from jax.experimental import pallas as pl
from jax.experimental.pallas import tpu as pltpu

N_FEATS = 32


# ----------------------------- fused Pallas kernel -------------------------


def _cnn5_fused_kernel(x_ref, w_ref, b_ref, smean_ref, amean_ref, o_ref,
                       pad_ref, *, H, W, C):
    """Whole CNN5Layer forward for one batch element, fully VMEM-resident.

    x_ref:     (1, H, W, C)      input, channel-padded RGB (channels 3.. are zero)
    w_ref:     (6, 9*C, C)       im2col-packed conv weights (head/tail zero-padded)
    b_ref:     (6, 1, C)         conv biases (tail zero-padded)
    smean_ref: (1, C)            sub_mean bias (zero-padded)
    amean_ref: (1, C)            add_mean bias (zero-padded)
    o_ref:     (1, H, W, 3)      output (RGB)
    pad_ref:   (1, H+2, W+2, C)  VMEM scratch: zero-padded activation buffer
    """
    HW = H * W

    # Zero the padded activation buffer once per batch element: the 1-pixel
    # border stays zero for every layer (SAME-conv semantics), the interior
    # is overwritten layer by layer.
    pad_ref[...] = jnp.zeros_like(pad_ref)

    # sub_mean (MeanShift with identity weight / unit std == channel bias add)
    # written straight into the interior of the padded buffer.
    x32 = x_ref[0]                                               # (H, W, C)
    pad_ref[0, 1:H + 1, 1:W + 1, :] = x32 + smean_ref[...].reshape(1, 1, C)

    def im2col():
        parts = []
        for dy in range(3):
            for dx in range(3):
                parts.append(
                    pad_ref[0, dy:dy + H, dx:dx + W, :].reshape(HW, C))
        return jnp.concatenate(parts, axis=-1)                   # (HW, 9*C)

    acc = None
    for layer in range(6):                            # head, b1..b4, tail
        col = im2col()
        acc = jnp.dot(col, w_ref[layer],
                      preferred_element_type=jnp.float32)        # (HW, C)
        acc = acc + b_ref[layer]
        if layer < 5:                                 # ReLU on all but tail
            acc = jnp.maximum(acc, 0.0)
            pad_ref[0, 1:H + 1, 1:W + 1, :] = acc.reshape(H, W, C)

    # add_mean + residual.  Padded channels (3..C-1) of acc / amean / x32 are
    # all zero by construction, so slicing the first 3 channels is exact.
    out32 = acc + amean_ref[...] + x32.reshape(HW, C)
    o_ref[...] = out32[:, 0:3].reshape(1, H, W, 3).astype(o_ref.dtype)


# ------------------------------ wrapper -------------------------------------


def _pack_conv(w_hwio, b, C):
    """Zero-pad Cin/Cout to C and flatten HWIO -> (9*C, C) im2col weights."""
    kh, kw, cin, cout = w_hwio.shape
    w = jnp.pad(w_hwio, ((0, 0), (0, 0), (0, C - cin), (0, C - cout)))
    w = w.reshape(kh * kw * C, C)
    b = jnp.pad(b, (0, C - cout))
    return w, b


def cnn5layer_forward(params, x_nchw):
    C = N_FEATS
    x = jnp.transpose(x_nchw, (0, 2, 3, 1)).astype(jnp.float32)   # NHWC
    N, H, W, cin = x.shape
    x32 = jnp.pad(x, ((0, 0), (0, 0), (0, 0), (0, C - cin)))      # (N, H, W, C)

    packed = [_pack_conv(*params[k], C)
              for k in ("head", "b1", "b2", "b3", "b4", "tail")]
    w_all = jnp.stack([p[0] for p in packed])                     # (6, 9C, C)
    b_all = jnp.stack([p[1] for p in packed]).reshape(6, 1, C)    # (6, 1, C)
    sub_b = jnp.pad(params["sub_mean_bias"], (0, C - 3)).reshape(1, C)
    add_b = jnp.pad(params["add_mean_bias"], (0, C - 3)).reshape(1, C)

    kernel = functools.partial(_cnn5_fused_kernel, H=H, W=W, C=C)
    out_nhwc = pl.pallas_call(
        kernel,
        out_shape=jax.ShapeDtypeStruct((N, H, W, 3), jnp.float32),
        grid=(N,),
        in_specs=[
            pl.BlockSpec((1, H, W, C), lambda n: (n, 0, 0, 0)),
            pl.BlockSpec((6, 9 * C, C), lambda n: (0, 0, 0)),   # weights: resident
            pl.BlockSpec((6, 1, C), lambda n: (0, 0, 0)),
            pl.BlockSpec((1, C), lambda n: (0, 0)),
            pl.BlockSpec((1, C), lambda n: (0, 0)),
        ],
        out_specs=pl.BlockSpec((1, H, W, 3), lambda n: (n, 0, 0, 0)),
        scratch_shapes=[pltpu.VMEM((1, H + 2, W + 2, C), jnp.float32)],
        compiler_params=pltpu.CompilerParams(
            dimension_semantics=("parallel",)),
    )(x32, w_all, b_all, sub_b, add_b)

    return jnp.transpose(out_nhwc, (0, 3, 1, 2))                  # -> NCHW


# ------------------------------ parameters ----------------------------------


def init_params(key, n_feats=N_FEATS):
    """Deterministic synthetic parameters (HWIO conv weights)."""
    def conv_init(k, cin, cout, ksize=3):
        kw, kb = jax.random.split(k)
        fan_in = cin * ksize * ksize
        w = jax.random.normal(kw, (ksize, ksize, cin, cout),
                              jnp.float32) * (1.0 / jnp.sqrt(fan_in))
        b = jax.random.normal(kb, (cout,), jnp.float32) * 0.01
        return w, b

    keys = jax.random.split(key, 6)
    params = {
        "head": conv_init(keys[0], 3, n_feats),
        "b1": conv_init(keys[1], n_feats, n_feats),
        "b2": conv_init(keys[2], n_feats, n_feats),
        "b3": conv_init(keys[3], n_feats, n_feats),
        "b4": conv_init(keys[4], n_feats, n_feats),
        "tail": conv_init(keys[5], n_feats, 3),
    }
    rgb_mean = jnp.array([0.4488, 0.4371, 0.404], jnp.float32)
    rgb_std = jnp.array([1.0, 1.0, 1.0], jnp.float32)
    rgb_range = 1.0
    # MeanShift: weight = eye(3)/std (identity here) -> pure channel bias add.
    params["sub_mean_bias"] = (-1.0 * rgb_range * rgb_mean) / rgb_std
    params["add_mean_bias"] = (+1.0 * rgb_range * rgb_mean) / rgb_std
    return params


# ------------------------- plain-JAX reference --------------------------------


def _ref_conv(x_nhwc, w_hwio, b, relu):
    y = jax.lax.conv_general_dilated(
        x_nhwc, w_hwio, window_strides=(1, 1), padding="SAME",
        dimension_numbers=("NHWC", "HWIO", "NHWC"))
    y = y + b.reshape(1, 1, 1, -1)
    return jnp.maximum(y, 0.0) if relu else y


def cnn5layer_reference(params, x_nchw):
    x = jnp.transpose(x_nchw, (0, 2, 3, 1))
    s = x + params["sub_mean_bias"].reshape(1, 1, 1, 3)
    h = _ref_conv(s, *params["head"], True)
    b1 = _ref_conv(h, *params["b1"], True)
    b2 = _ref_conv(b1, *params["b2"], True)
    b3 = _ref_conv(b2, *params["b3"], True)
    b4 = _ref_conv(b3, *params["b4"], True)
    res = _ref_conv(b4, *params["tail"], False)
    out = res + params["add_mean_bias"].reshape(1, 1, 1, 3) + x
    return jnp.transpose(out, (0, 3, 1, 2))


# ------------------------------ main ------------------------------------------


if __name__ == "__main__":
    key = jax.random.PRNGKey(0)
    k_x, k_p = jax.random.split(key)

    N, C, H, W = 2, 3, 16, 16                   # NCHW, RGB input
    x = jax.random.uniform(k_x, (N, C, H, W), jnp.float32)

    params = init_params(k_p, n_feats=N_FEATS)

    out = jax.jit(cnn5layer_forward)(params, x)
    out = jax.block_until_ready(out)
    assert out.shape == (N, C, H, W), out.shape

    ref = cnn5layer_reference(params, x)
    err = float(jnp.max(jnp.abs(out - ref)))
    assert err < 1e-4, f"max abs error vs reference: {err}"

    print("KERNEL_OK")
</pallas_src>

<mosaic_0001>
module attributes {stable_mosaic.version = 11 : i64} {
  func.func @_cnn5_fused_kernel(%arg0: i32, %arg1: memref<1x16x16x32xf32, #tpu.memory_space<vmem>>, %arg2: memref<6x288x32xf32, #tpu.memory_space<vmem>>, %arg3: memref<6x1x32xf32, #tpu.memory_space<vmem>>, %arg4: memref<1x32xf32, #tpu.memory_space<vmem>>, %arg5: memref<1x32xf32, #tpu.memory_space<vmem>>, %arg6: memref<1x16x16x3xf32, #tpu.memory_space<vmem>>, %arg7: memref<1x18x18x32xf32, #tpu.memory_space<vmem>>) attributes {dimension_semantics = [#tpu.dimension_semantics<parallel>], iteration_bounds = array<i64: 2>, scalar_prefetch = 0 : i64, scratch_operands = 1 : i64, tpu.core_type = #tpu.core_type<tc>, window_params = [{transform_indices = @transform_0, window_bounds = array<i64: 1, 16, 16, 32>}, {pipeline_mode = #tpu.pipeline_mode<synchronous>, transform_indices = @transform_1, window_bounds = array<i64: 6, 288, 32>}, {pipeline_mode = #tpu.pipeline_mode<synchronous>, transform_indices = @transform_2, window_bounds = array<i64: 6, 1, 32>}, {pipeline_mode = #tpu.pipeline_mode<synchronous>, transform_indices = @transform_3, window_bounds = array<i64: 1, 32>}, {pipeline_mode = #tpu.pipeline_mode<synchronous>, transform_indices = @transform_4, window_bounds = array<i64: 1, 32>}, {transform_indices = @transform_5, window_bounds = array<i64: 1, 16, 16, 3>}]} {
    %cst = arith.constant 0.000000e+00 : f32
    %0 = vector.broadcast %cst : f32 to vector<1x18x18x32xf32>
    %c0 = arith.constant 0 : index
    %c0_0 = arith.constant 0 : index
    %c0_1 = arith.constant 0 : index
    %c0_2 = arith.constant 0 : index
    %1 = vector.load %arg7[%c0, %c0_0, %c0_1, %c0_2] : memref<1x18x18x32xf32, #tpu.memory_space<vmem>>, vector<1x18x18x32xf32>
    tpu.vector_store %arg7[%c0, %c0_0, %c0_1, %c0_2], %0 {strides = array<i32>} : memref<1x18x18x32xf32, #tpu.memory_space<vmem>>, vector<1x18x18x32xf32>,
    %c0_3 = arith.constant 0 : index
    %c0_4 = arith.constant 0 : index
    %c0_5 = arith.constant 0 : index
    %c0_6 = arith.constant 0 : index
    %2 = vector.load %arg1[%c0_3, %c0_4, %c0_5, %c0_6] : memref<1x16x16x32xf32, #tpu.memory_space<vmem>>, vector<1x16x16x32xf32>
    %3 = vector.shape_cast %2 : vector<1x16x16x32xf32> to vector<16x16x32xf32>
    %c0_7 = arith.constant 0 : index
    %c0_8 = arith.constant 0 : index
    %4 = vector.load %arg4[%c0_7, %c0_8] : memref<1x32xf32, #tpu.memory_space<vmem>>, vector<1x32xf32>
    %5 = vector.shape_cast %4 : vector<1x32xf32> to vector<1x1x32xf32>
    %6 = vector.broadcast %5 : vector<1x1x32xf32> to vector<16x16x32xf32>
    %7 = arith.addf %3, %6 : vector<16x16x32xf32>
    %c0_9 = arith.constant 0 : index
    %c1 = arith.constant 1 : index
    %c1_10 = arith.constant 1 : index
    %c0_11 = arith.constant 0 : index
    %8 = vector.load %arg7[%c0_9, %c1, %c1_10, %c0_11] : memref<1x18x18x32xf32, #tpu.memory_space<vmem>>, vector<1x16x16x32xf32>
    %9 = vector.shape_cast %8 : vector<1x16x16x32xf32> to vector<16x16x32xf32>
    %10 = vector.shape_cast %7 : vector<16x16x32xf32> to vector<1x16x16x32xf32>
    tpu.vector_store %arg7[%c0_9, %c1, %c1_10, %c0_11], %10 {strides = array<i32>} : memref<1x18x18x32xf32, #tpu.memory_space<vmem>>, vector<1x16x16x32xf32>,
    %c0_12 = arith.constant 0 : index
    %c0_13 = arith.constant 0 : index
    %c0_14 = arith.constant 0 : index
    %c0_15 = arith.constant 0 : index
    %11 = vector.load %arg7[%c0_12, %c0_13, %c0_14, %c0_15] : memref<1x18x18x32xf32, #tpu.memory_space<vmem>>, vector<1x16x16x32xf32>
    %12 = vector.shape_cast %11 : vector<1x16x16x32xf32> to vector<16x16x32xf32>
    %13 = vector.shape_cast %12 : vector<16x16x32xf32> to vector<256x32xf32>
    %c0_16 = arith.constant 0 : index
    %c0_17 = arith.constant 0 : index
    %c1_18 = arith.constant 1 : index
    %c0_19 = arith.constant 0 : index
    %14 = vector.load %arg7[%c0_16, %c0_17, %c1_18, %c0_19] : memref<1x18x18x32xf32, #tpu.memory_space<vmem>>, vector<1x16x16x32xf32>
    %15 = vector.shape_cast %14 : vector<1x16x16x32xf32> to vector<16x16x32xf32>
    %16 = vector.shape_cast %15 : vector<16x16x32xf32> to vector<256x32xf32>
    %c0_20 = arith.constant 0 : index
    %c0_21 = arith.constant 0 : index
    %c2 = arith.constant 2 : index
    %c0_22 = arith.constant 0 : index
    %17 = vector.load %arg7[%c0_20, %c0_21, %c2, %c0_22] : memref<1x18x18x32xf32, #tpu.memory_space<vmem>>, vector<1x16x16x32xf32>
    %18 = vector.shape_cast %17 : vector<1x16x16x32xf32> to vector<16x16x32xf32>
    %19 = vector.shape_cast %18 : vector<16x16x32xf32> to vector<256x32xf32>
    %c0_23 = arith.constant 0 : index
    %c1_24 = arith.constant 1 : index
    %c0_25 = arith.constant 0 : index
    %c0_26 = arith.constant 0 : index
    %20 = vector.load %arg7[%c0_23, %c1_24, %c0_25, %c0_26] : memref<1x18x18x32xf32, #tpu.memory_space<vmem>>, vector<1x16x16x32xf32>
    %21 = vector.shape_cast %20 : vector<1x16x16x32xf32> to vector<16x16x32xf32>
    %22 = vector.shape_cast %21 : vector<16x16x32xf32> to vector<256x32xf32>
    %c0_27 = arith.constant 0 : index
    %c1_28 = arith.constant 1 : index
    %c1_29 = arith.constant 1 : index
    %c0_30 = arith.constant 0 : index
    %23 = vector.load %arg7[%c0_27, %c1_28, %c1_29, %c0_30] : memref<1x18x18x32xf32, #tpu.memory_space<vmem>>, vector<1x16x16x32xf32>
    %24 = vector.shape_cast %23 : vector<1x16x16x32xf32> to vector<16x16x32xf32>
    %25 = vector.shape_cast %24 : vector<16x16x32xf32> to vector<256x32xf32>
    %c0_31 = arith.constant 0 : index
    %c1_32 = arith.constant 1 : index
    %c2_33 = arith.constant 2 : index
    %c0_34 = arith.constant 0 : index
    %26 = vector.load %arg7[%c0_31, %c1_32, %c2_33, %c0_34] : memref<1x18x18x32xf32, #tpu.memory_space<vmem>>, vector<1x16x16x32xf32>
    %27 = vector.shape_cast %26 : vector<1x16x16x32xf32> to vector<16x16x32xf32>
    %28 = vector.shape_cast %27 : vector<16x16x32xf32> to vector<256x32xf32>
    %c0_35 = arith.constant 0 : index
    %c2_36 = arith.constant 2 : index
    %c0_37 = arith.constant 0 : index
    %c0_38 = arith.constant 0 : index
    %29 = vector.load %arg7[%c0_35, %c2_36, %c0_37, %c0_38] : memref<1x18x18x32xf32, #tpu.memory_space<vmem>>, vector<1x16x16x32xf32>
    %30 = vector.shape_cast %29 : vector<1x16x16x32xf32> to vector<16x16x32xf32>
    %31 = vector.shape_cast %30 : vector<16x16x32xf32> to vector<256x32xf32>
    %c0_39 = arith.constant 0 : index
    %c2_40 = arith.constant 2 : index
    %c1_41 = arith.constant 1 : index
    %c0_42 = arith.constant 0 : index
    %32 = vector.load %arg7[%c0_39, %c2_40, %c1_41, %c0_42] : memref<1x18x18x32xf32, #tpu.memory_space<vmem>>, vector<1x16x16x32xf32>
    %33 = vector.shape_cast %32 : vector<1x16x16x32xf32> to vector<16x16x32xf32>
    %34 = vector.shape_cast %33 : vector<16x16x32xf32> to vector<256x32xf32>
    %c0_43 = arith.constant 0 : index
    %c2_44 = arith.constant 2 : index
    %c2_45 = arith.constant 2 : index
    %c0_46 = arith.constant 0 : index
    %35 = vector.load %arg7[%c0_43, %c2_44, %c2_45, %c0_46] : memref<1x18x18x32xf32, #tpu.memory_space<vmem>>, vector<1x16x16x32xf32>
    %36 = vector.shape_cast %35 : vector<1x16x16x32xf32> to vector<16x16x32xf32>
    %37 = vector.shape_cast %36 : vector<16x16x32xf32> to vector<256x32xf32>
    %38 = tpu.concatenate %13, %16, %19, %22, %25, %28, %31, %34, %37 in 1 : vector<256x32xf32>, vector<256x32xf32>, vector<256x32xf32>, vector<256x32xf32>, vector<256x32xf32>, vector<256x32xf32>, vector<256x32xf32>, vector<256x32xf32>, vector<256x32xf32> -> vector<256x288xf32>
    %c0_47 = arith.constant 0 : index
    %c0_48 = arith.constant 0 : index
    %c0_49 = arith.constant 0 : index
    %39 = vector.load %arg2[%c0_47, %c0_48, %c0_49] : memref<6x288x32xf32, #tpu.memory_space<vmem>>, vector<1x288x32xf32>
    %40 = vector.shape_cast %39 : vector<1x288x32xf32> to vector<288x32xf32>
    %cst_50 = arith.constant dense<0.000000e+00> : vector<256x32xf32>
    %41 = tpu.matmul %38, %40, %cst_50 {dimension_numbers = #tpu.dot_dimension_numbers<[1], [0], [0], [1], [0, 0, 1, 1], [], []>} : vector<256x288xf32>, vector<288x32xf32>, vector<256x32xf32> -> vector<256x32xf32>
    %c0_51 = arith.constant 0 : index
    %c0_52 = arith.constant 0 : index
    %c0_53 = arith.constant 0 : index
    %42 = vector.load %arg3[%c0_51, %c0_52, %c0_53] : memref<6x1x32xf32, #tpu.memory_space<vmem>>, vector<1x1x32xf32>
    %43 = vector.shape_cast %42 : vector<1x1x32xf32> to vector<1x32xf32>
    %44 = vector.broadcast %43 : vector<1x32xf32> to vector<256x32xf32>
    %45 = arith.addf %41, %44 : vector<256x32xf32>
    %cst_54 = arith.constant 0.000000e+00 : f32
    %46 = vector.broadcast %cst_54 : f32 to vector<256x32xf32>
    %47 = arith.maximumf %45, %46 : vector<256x32xf32>
    %48 = vector.shape_cast %47 : vector<256x32xf32> to vector<16x16x32xf32>
    %c0_55 = arith.constant 0 : index
    %c1_56 = arith.constant 1 : index
    %c1_57 = arith.constant 1 : index
    %c0_58 = arith.constant 0 : index
    %49 = vector.load %arg7[%c0_55, %c1_56, %c1_57, %c0_58] : memref<1x18x18x32xf32, #tpu.memory_space<vmem>>, vector<1x16x16x32xf32>
    %50 = vector.shape_cast %49 : vector<1x16x16x32xf32> to vector<16x16x32xf32>
    %51 = vector.shape_cast %48 : vector<16x16x32xf32> to vector<1x16x16x32xf32>
    tpu.vector_store %arg7[%c0_55, %c1_56, %c1_57, %c0_58], %51 {strides = array<i32>} : memref<1x18x18x32xf32, #tpu.memory_space<vmem>>, vector<1x16x16x32xf32>,
    %c0_59 = arith.constant 0 : index
    %c0_60 = arith.constant 0 : index
    %c0_61 = arith.constant 0 : index
    %c0_62 = arith.constant 0 : index
    %52 = vector.load %arg7[%c0_59, %c0_60, %c0_61, %c0_62] : memref<1x18x18x32xf32, #tpu.memory_space<vmem>>, vector<1x16x16x32xf32>
    %53 = vector.shape_cast %52 : vector<1x16x16x32xf32> to vector<16x16x32xf32>
    %54 = vector.shape_cast %53 : vector<16x16x32xf32> to vector<256x32xf32>
    %c0_63 = arith.constant 0 : index
    %c0_64 = arith.constant 0 : index
    %c1_65 = arith.constant 1 : index
    %c0_66 = arith.constant 0 : index
    %55 = vector.load %arg7[%c0_63, %c0_64, %c1_65, %c0_66] : memref<1x18x18x32xf32, #tpu.memory_space<vmem>>, vector<1x16x16x32xf32>
    %56 = vector.shape_cast %55 : vector<1x16x16x32xf32> to vector<16x16x32xf32>
    %57 = vector.shape_cast %56 : vector<16x16x32xf32> to vector<256x32xf32>
    %c0_67 = arith.constant 0 : index
    %c0_68 = arith.constant 0 : index
    %c2_69 = arith.constant 2 : index
    %c0_70 = arith.constant 0 : index
    %58 = vector.load %arg7[%c0_67, %c0_68, %c2_69, %c0_70] : memref<1x18x18x32xf32, #tpu.memory_space<vmem>>, vector<1x16x16x32xf32>
    %59 = vector.shape_cast %58 : vector<1x16x16x32xf32> to vector<16x16x32xf32>
    %60 = vector.shape_cast %59 : vector<16x16x32xf32> to vector<256x32xf32>
    %c0_71 = arith.constant 0 : index
    %c1_72 = arith.constant 1 : index
    %c0_73 = arith.constant 0 : index
    %c0_74 = arith.constant 0 : index
    %61 = vector.load %arg7[%c0_71, %c1_72, %c0_73, %c0_74] : memref<1x18x18x32xf32, #tpu.memory_space<vmem>>, vector<1x16x16x32xf32>
    %62 = vector.shape_cast %61 : vector<1x16x16x32xf32> to vector<16x16x32xf32>
    %63 = vector.shape_cast %62 : vector<16x16x32xf32> to vector<256x32xf32>
    %c0_75 = arith.constant 0 : index
    %c1_76 = arith.constant 1 : index
    %c1_77 = arith.constant 1 : index
    %c0_78 = arith.constant 0 : index
    %64 = vector.load %arg7[%c0_75, %c1_76, %c1_77, %c0_78] : memref<1x18x18x32xf32, #tpu.memory_space<vmem>>, vector<1x16x16x32xf32>
    %65 = vector.shape_cast %64 : vector<1x16x16x32xf32> to vector<16x16x32xf32>
    %66 = vector.shape_cast %65 : vector<16x16x32xf32> to vector<256x32xf32>
    %c0_79 = arith.constant 0 : index
    %c1_80 = arith.constant 1 : index
    %c2_81 = arith.constant 2 : index
    %c0_82 = arith.constant 0 : index
    %67 = vector.load %arg7[%c0_79, %c1_80, %c2_81, %c0_82] : memref<1x18x18x32xf32, #tpu.memory_space<vmem>>, vector<1x16x16x32xf32>
    %68 = vector.shape_cast %67 : vector<1x16x16x32xf32> to vector<16x16x32xf32>
    %69 = vector.shape_cast %68 : vector<16x16x32xf32> to vector<256x32xf32>
    %c0_83 = arith.constant 0 : index
    %c2_84 = arith.constant 2 : index
    %c0_85 = arith.constant 0 : index
    %c0_86 = arith.constant 0 : index
    %70 = vector.load %arg7[%c0_83, %c2_84, %c0_85, %c0_86] : memref<1x18x18x32xf32, #tpu.memory_space<vmem>>, vector<1x16x16x32xf32>
    %71 = vector.shape_cast %70 : vector<1x16x16x32xf32> to vector<16x16x32xf32>
    %72 = vector.shape_cast %71 : vector<16x16x32xf32> to vector<256x32xf32>
    %c0_87 = arith.constant 0 : index
    %c2_88 = arith.constant 2 : index
    %c1_89 = arith.constant 1 : index
    %c0_90 = arith.constant 0 : index
    %73 = vector.load %arg7[%c0_87, %c2_88, %c1_89, %c0_90] : memref<1x18x18x32xf32, #tpu.memory_space<vmem>>, vector<1x16x16x32xf32>
    %74 = vector.shape_cast %73 : vector<1x16x16x32xf32> to vector<16x16x32xf32>
    %75 = vector.shape_cast %74 : vector<16x16x32xf32> to vector<256x32xf32>
    %c0_91 = arith.constant 0 : index
    %c2_92 = arith.constant 2 : index
    %c2_93 = arith.constant 2 : index
    %c0_94 = arith.constant 0 : index
    %76 = vector.load %arg7[%c0_91, %c2_92, %c2_93, %c0_94] : memref<1x18x18x32xf32, #tpu.memory_space<vmem>>, vector<1x16x16x32xf32>
    %77 = vector.shape_cast %76 : vector<1x16x16x32xf32> to vector<16x16x32xf32>
    %78 = vector.shape_cast %77 : vector<16x16x32xf32> to vector<256x32xf32>
    %79 = tpu.concatenate %54, %57, %60, %63, %66, %69, %72, %75, %78 in 1 : vector<256x32xf32>, vector<256x32xf32>, vector<256x32xf32>, vector<256x32xf32>, vector<256x32xf32>, vector<256x32xf32>, vector<256x32xf32>, vector<256x32xf32>, vector<256x32xf32> -> vector<256x288xf32>
    %c1_95 = arith.constant 1 : index
    %c0_96 = arith.constant 0 : index
    %c0_97 = arith.constant 0 : index
    %80 = vector.load %arg2[%c1_95, %c0_96, %c0_97] : memref<6x288x32xf32, #tpu.memory_space<vmem>>, vector<1x288x32xf32>
    %81 = vector.shape_cast %80 : vector<1x288x32xf32> to vector<288x32xf32>
    %cst_98 = arith.constant dense<0.000000e+00> : vector<256x32xf32>
    %82 = tpu.matmul %79, %81, %cst_98 {dimension_numbers = #tpu.dot_dimension_numbers<[1], [0], [0], [1], [0, 0, 1, 1], [], []>} : vector<256x288xf32>, vector<288x32xf32>, vector<256x32xf32> -> vector<256x32xf32>
    %c1_99 = arith.constant 1 : index
    %c0_100 = arith.constant 0 : index
    %c0_101 = arith.constant 0 : index
    %83 = vector.load %arg3[%c1_99, %c0_100, %c0_101] : memref<6x1x32xf32, #tpu.memory_space<vmem>>, vector<1x1x32xf32>
    %84 = vector.shape_cast %83 : vector<1x1x32xf32> to vector<1x32xf32>
    %85 = vector.broadcast %84 : vector<1x32xf32> to vector<256x32xf32>
    %86 = arith.addf %82, %85 : vector<256x32xf32>
    %cst_102 = arith.constant 0.000000e+00 : f32
    %87 = vector.broadcast %cst_102 : f32 to vector<256x32xf32>
    %88 = arith.maximumf %86, %87 : vector<256x32xf32>
    %89 = vector.shape_cast %88 : vector<256x32xf32> to vector<16x16x32xf32>
    %c0_103 = arith.constant 0 : index
    %c1_104 = arith.constant 1 : index
    %c1_105 = arith.constant 1 : index
    %c0_106 = arith.constant 0 : index
    %90 = vector.load %arg7[%c0_103, %c1_104, %c1_105, %c0_106] : memref<1x18x18x32xf32, #tpu.memory_space<vmem>>, vector<1x16x16x32xf32>
    %91 = vector.shape_cast %90 : vector<1x16x16x32xf32> to vector<16x16x32xf32>
    %92 = vector.shape_cast %89 : vector<16x16x32xf32> to vector<1x16x16x32xf32>
    tpu.vector_store %arg7[%c0_103, %c1_104, %c1_105, %c0_106], %92 {strides = array<i32>} : memref<1x18x18x32xf32, #tpu.memory_space<vmem>>, vector<1x16x16x32xf32>,
    %c0_107 = arith.constant 0 : index
    %c0_108 = arith.constant 0 : index
    %c0_109 = arith.constant 0 : index
    %c0_110 = arith.constant 0 : index
    %93 = vector.load %arg7[%c0_107, %c0_108, %c0_109, %c0_110] : memref<1x18x18x32xf32, #tpu.memory_space<vmem>>, vector<1x16x16x32xf32>
    %94 = vector.shape_cast %93 : vector<1x16x16x32xf32> to vector<16x16x32xf32>
    %95 = vector.shape_cast %94 : vector<16x16x32xf32> to vector<256x32xf32>
    %c0_111 = arith.constant 0 : index
    %c0_112 = arith.constant 0 : index
    %c1_113 = arith.constant 1 : index
    %c0_114 = arith.constant 0 : index
    %96 = vector.load %arg7[%c0_111, %c0_112, %c1_113, %c0_114] : memref<1x18x18x32xf32, #tpu.memory_space<vmem>>, vector<1x16x16x32xf32>
    %97 = vector.shape_cast %96 : vector<1x16x16x32xf32> to vector<16x16x32xf32>
    %98 = vector.shape_cast %97 : vector<16x16x32xf32> to vector<256x32xf32>
    %c0_115 = arith.constant 0 : index
    %c0_116 = arith.constant 0 : index
    %c2_117 = arith.constant 2 : index
    %c0_118 = arith.constant 0 : index
    %99 = vector.load %arg7[%c0_115, %c0_116, %c2_117, %c0_118] : memref<1x18x18x32xf32, #tpu.memory_space<vmem>>, vector<1x16x16x32xf32>
    %100 = vector.shape_cast %99 : vector<1x16x16x32xf32> to vector<16x16x32xf32>
    %101 = vector.shape_cast %100 : vector<16x16x32xf32> to vector<256x32xf32>
    %c0_119 = arith.constant 0 : index
    %c1_120 = arith.constant 1 : index
    %c0_121 = arith.constant 0 : index
    %c0_122 = arith.constant 0 : index
    %102 = vector.load %arg7[%c0_119, %c1_120, %c0_121, %c0_122] : memref<1x18x18x32xf32, #tpu.memory_space<vmem>>, vector<1x16x16x32xf32>
    %103 = vector.shape_cast %102 : vector<1x16x16x32xf32> to vector<16x16x32xf32>
    %104 = vector.shape_cast %103 : vector<16x16x32xf32> to vector<256x32xf32>
    %c0_123 = arith.constant 0 : index
    %c1_124 = arith.constant 1 : index
    %c1_125 = arith.constant 1 : index
    %c0_126 = arith.constant 0 : index
    %105 = vector.load %arg7[%c0_123, %c1_124, %c1_125, %c0_126] : memref<1x18x18x32xf32, #tpu.memory_space<vmem>>, vector<1x16x16x32xf32>
    %106 = vector.shape_cast %105 : vector<1x16x16x32xf32> to vector<16x16x32xf32>
    %107 = vector.shape_cast %106 : vector<16x16x32xf32> to vector<256x32xf32>
    %c0_127 = arith.constant 0 : index
    %c1_128 = arith.constant 1 : index
    %c2_129 = arith.constant 2 : index
    %c0_130 = arith.constant 0 : index
    %108 = vector.load %arg7[%c0_127, %c1_128, %c2_129, %c0_130] : memref<1x18x18x32xf32, #tpu.memory_space<vmem>>, vector<1x16x16x32xf32>
    %109 = vector.shape_cast %108 : vector<1x16x16x32xf32> to vector<16x16x32xf32>
    %110 = vector.shape_cast %109 : vector<16x16x32xf32> to vector<256x32xf32>
    %c0_131 = arith.constant 0 : index
    %c2_132 = arith.constant 2 : index
    %c0_133 = arith.constant 0 : index
    %c0_134 = arith.constant 0 : index
    %111 = vector.load %arg7[%c0_131, %c2_132, %c0_133, %c0_134] : memref<1x18x18x32xf32, #tpu.memory_space<vmem>>, vector<1x16x16x32xf32>
    %112 = vector.shape_cast %111 : vector<1x16x16x32xf32> to vector<16x16x32xf32>
    %113 = vector.shape_cast %112 : vector<16x16x32xf32> to vector<256x32xf32>
    %c0_135 = arith.constant 0 : index
    %c2_136 = arith.constant 2 : index
    %c1_137 = arith.constant 1 : index
    %c0_138 = arith.constant 0 : index
    %114 = vector.load %arg7[%c0_135, %c2_136, %c1_137, %c0_138] : memref<1x18x18x32xf32, #tpu.memory_space<vmem>>, vector<1x16x16x32xf32>
    %115 = vector.shape_cast %114 : vector<1x16x16x32xf32> to vector<16x16x32xf32>
    %116 = vector.shape_cast %115 : vector<16x16x32xf32> to vector<256x32xf32>
    %c0_139 = arith.constant 0 : index
    %c2_140 = arith.constant 2 : index
    %c2_141 = arith.constant 2 : index
    %c0_142 = arith.constant 0 : index
    %117 = vector.load %arg7[%c0_139, %c2_140, %c2_141, %c0_142] : memref<1x18x18x32xf32, #tpu.memory_space<vmem>>, vector<1x16x16x32xf32>
    %118 = vector.shape_cast %117 : vector<1x16x16x32xf32> to vector<16x16x32xf32>
    %119 = vector.shape_cast %118 : vector<16x16x32xf32> to vector<256x32xf32>
    %120 = tpu.concatenate %95, %98, %101, %104, %107, %110, %113, %116, %119 in 1 : vector<256x32xf32>, vector<256x32xf32>, vector<256x32xf32>, vector<256x32xf32>, vector<256x32xf32>, vector<256x32xf32>, vector<256x32xf32>, vector<256x32xf32>, vector<256x32xf32> -> vector<256x288xf32>
    %c2_143 = arith.constant 2 : index
    %c0_144 = arith.constant 0 : index
    %c0_145 = arith.constant 0 : index
    %121 = vector.load %arg2[%c2_143, %c0_144, %c0_145] : memref<6x288x32xf32, #tpu.memory_space<vmem>>, vector<1x288x32xf32>
    %122 = vector.shape_cast %121 : vector<1x288x32xf32> to vector<288x32xf32>
    %cst_146 = arith.constant dense<0.000000e+00> : vector<256x32xf32>
    %123 = tpu.matmul %120, %122, %cst_146 {dimension_numbers = #tpu.dot_dimension_numbers<[1], [0], [0], [1], [0, 0, 1, 1], [], []>} : vector<256x288xf32>, vector<288x32xf32>, vector<256x32xf32> -> vector<256x32xf32>
    %c2_147 = arith.constant 2 : index
    %c0_148 = arith.constant 0 : index
    %c0_149 = arith.constant 0 : index
    %124 = vector.load %arg3[%c2_147, %c0_148, %c0_149] : memref<6x1x32xf32, #tpu.memory_space<vmem>>, vector<1x1x32xf32>
    %125 = vector.shape_cast %124 : vector<1x1x32xf32> to vector<1x32xf32>
    %126 = vector.broadcast %125 : vector<1x32xf32> to vector<256x32xf32>
    %127 = arith.addf %123, %126 : vector<256x32xf32>
    %cst_150 = arith.constant 0.000000e+00 : f32
    %128 = vector.broadcast %cst_150 : f32 to vector<256x32xf32>
    %129 = arith.maximumf %127, %128 : vector<256x32xf32>
    %130 = vector.shape_cast %129 : vector<256x32xf32> to vector<16x16x32xf32>
    %c0_151 = arith.constant 0 : index
    %c1_152 = arith.constant 1 : index
    %c1_153 = arith.constant 1 : index
    %c0_154 = arith.constant 0 : index
    %131 = vector.load %arg7[%c0_151, %c1_152, %c1_153, %c0_154] : memref<1x18x18x32xf32, #tpu.memory_space<vmem>>, vector<1x16x16x32xf32>
    %132 = vector.shape_cast %131 : vector<1x16x16x32xf32> to vector<16x16x32xf32>
    %133 = vector.shape_cast %130 : vector<16x16x32xf32> to vector<1x16x16x32xf32>
    tpu.vector_store %arg7[%c0_151, %c1_152, %c1_153, %c0_154], %133 {strides = array<i32>} : memref<1x18x18x32xf32, #tpu.memory_space<vmem>>, vector<1x16x16x32xf32>,
    %c0_155 = arith.constant 0 : index
    %c0_156 = arith.constant 0 : index
    %c0_157 = arith.constant 0 : index
    %c0_158 = arith.constant 0 : index
    %134 = vector.load %arg7[%c0_155, %c0_156, %c0_157, %c0_158] : memref<1x18x18x32xf32, #tpu.memory_space<vmem>>, vector<1x16x16x32xf32>
    %135 = vector.shape_cast %134 : vector<1x16x16x32xf32> to vector<16x16x32xf32>
    %136 = vector.shape_cast %135 : vector<16x16x32xf32> to vector<256x32xf32>
    %c0_159 = arith.constant 0 : index
    %c0_160 = arith.constant 0 : index
    %c1_161 = arith.constant 1 : index
    %c0_162 = arith.constant 0 : index
    %137 = vector.load %arg7[%c0_159, %c0_160, %c1_161, %c0_162] : memref<1x18x18x32xf32, #tpu.memory_space<vmem>>, vector<1x16x16x32xf32>
    %138 = vector.shape_cast %137 : vector<1x16x16x32xf32> to vector<16x16x32xf32>
    %139 = vector.shape_cast %138 : vector<16x16x32xf32> to vector<256x32xf32>
    %c0_163 = arith.constant 0 : index
    %c0_164 = arith.constant 0 : index
    %c2_165 = arith.constant 2 : index
    %c0_166 = arith.constant 0 : index
    %140 = vector.load %arg7[%c0_163, %c0_164, %c2_165, %c0_166] : memref<1x18x18x32xf32, #tpu.memory_space<vmem>>, vector<1x16x16x32xf32>
    %141 = vector.shape_cast %140 : vector<1x16x16x32xf32> to vector<16x16x32xf32>
    %142 = vector.shape_cast %141 : vector<16x16x32xf32> to vector<256x32xf32>
    %c0_167 = arith.constant 0 : index
    %c1_168 = arith.constant 1 : index
    %c0_169 = arith.constant 0 : index
    %c0_170 = arith.constant 0 : index
    %143 = vector.load %arg7[%c0_167, %c1_168, %c0_169, %c0_170] : memref<1x18x18x32xf32, #tpu.memory_space<vmem>>, vector<1x16x16x32xf32>
    %144 = vector.shape_cast %143 : vector<1x16x16x32xf32> to vector<16x16x32xf32>
    %145 = vector.shape_cast %144 : vector<16x16x32xf32> to vector<256x32xf32>
    %c0_171 = arith.constant 0 : index
    %c1_172 = arith.constant 1 : index
    %c1_173 = arith.constant 1 : index
    %c0_174 = arith.constant 0 : index
    %146 = vector.load %arg7[%c0_171, %c1_172, %c1_173, %c0_174] : memref<1x18x18x32xf32, #tpu.memory_space<vmem>>, vector<1x16x16x32xf32>
    %147 = vector.shape_cast %146 : vector<1x16x16x32xf32> to vector<16x16x32xf32>
    %148 = vector.shape_cast %147 : vector<16x16x32xf32> to vector<256x32xf32>
    %c0_175 = arith.constant 0 : index
    %c1_176 = arith.constant 1 : index
    %c2_177 = arith.constant 2 : index
    %c0_178 = arith.constant 0 : index
    %149 = vector.load %arg7[%c0_175, %c1_176, %c2_177, %c0_178] : memref<1x18x18x32xf32, #tpu.memory_space<vmem>>, vector<1x16x16x32xf32>
    %150 = vector.shape_cast %149 : vector<1x16x16x32xf32> to vector<16x16x32xf32>
    %151 = vector.shape_cast %150 : vector<16x16x32xf32> to vector<256x32xf32>
    %c0_179 = arith.constant 0 : index
    %c2_180 = arith.constant 2 : index
    %c0_181 = arith.constant 0 : index
    %c0_182 = arith.constant 0 : index
    %152 = vector.load %arg7[%c0_179, %c2_180, %c0_181, %c0_182] : memref<1x18x18x32xf32, #tpu.memory_space<vmem>>, vector<1x16x16x32xf32>
    %153 = vector.shape_cast %152 : vector<1x16x16x32xf32> to vector<16x16x32xf32>
    %154 = vector.shape_cast %153 : vector<16x16x32xf32> to vector<256x32xf32>
    %c0_183 = arith.constant 0 : index
    %c2_184 = arith.constant 2 : index
    %c1_185 = arith.constant 1 : index
    %c0_186 = arith.constant 0 : index
    %155 = vector.load %arg7[%c0_183, %c2_184, %c1_185, %c0_186] : memref<1x18x18x32xf32, #tpu.memory_space<vmem>>, vector<1x16x16x32xf32>
    %156 = vector.shape_cast %155 : vector<1x16x16x32xf32> to vector<16x16x32xf32>
    %157 = vector.shape_cast %156 : vector<16x16x32xf32> to vector<256x32xf32>
    %c0_187 = arith.constant 0 : index
    %c2_188 = arith.constant 2 : index
    %c2_189 = arith.constant 2 : index
    %c0_190 = arith.constant 0 : index
    %158 = vector.load %arg7[%c0_187, %c2_188, %c2_189, %c0_190] : memref<1x18x18x32xf32, #tpu.memory_space<vmem>>, vector<1x16x16x32xf32>
    %159 = vector.shape_cast %158 : vector<1x16x16x32xf32> to vector<16x16x32xf32>
    %160 = vector.shape_cast %159 : vector<16x16x32xf32> to vector<256x32xf32>
    %161 = tpu.concatenate %136, %139, %142, %145, %148, %151, %154, %157, %160 in 1 : vector<256x32xf32>, vector<256x32xf32>, vector<256x32xf32>, vector<256x32xf32>, vector<256x32xf32>, vector<256x32xf32>, vector<256x32xf32>, vector<256x32xf32>, vector<256x32xf32> -> vector<256x288xf32>
    %c3 = arith.constant 3 : index
    %c0_191 = arith.constant 0 : index
    %c0_192 = arith.constant 0 : index
    %162 = vector.load %arg2[%c3, %c0_191, %c0_192] : memref<6x288x32xf32, #tpu.memory_space<vmem>>, vector<1x288x32xf32>
    %163 = vector.shape_cast %162 : vector<1x288x32xf32> to vector<288x32xf32>
    %cst_193 = arith.constant dense<0.000000e+00> : vector<256x32xf32>
    %164 = tpu.matmul %161, %163, %cst_193 {dimension_numbers = #tpu.dot_dimension_numbers<[1], [0], [0], [1], [0, 0, 1, 1], [], []>} : vector<256x288xf32>, vector<288x32xf32>, vector<256x32xf32> -> vector<256x32xf32>
    %c3_194 = arith.constant 3 : index
    %c0_195 = arith.constant 0 : index
    %c0_196 = arith.constant 0 : index
    %165 = vector.load %arg3[%c3_194, %c0_195, %c0_196] : memref<6x1x32xf32, #tpu.memory_space<vmem>>, vector<1x1x32xf32>
    %166 = vector.shape_cast %165 : vector<1x1x32xf32> to vector<1x32xf32>
    %167 = vector.broadcast %166 : vector<1x32xf32> to vector<256x32xf32>
    %168 = arith.addf %164, %167 : vector<256x32xf32>
    %cst_197 = arith.constant 0.000000e+00 : f32
    %169 = vector.broadcast %cst_197 : f32 to vector<256x32xf32>
    %170 = arith.maximumf %168, %169 : vector<256x32xf32>
    %171 = vector.shape_cast %170 : vector<256x32xf32> to vector<16x16x32xf32>
    %c0_198 = arith.constant 0 : index
    %c1_199 = arith.constant 1 : index
    %c1_200 = arith.constant 1 : index
    %c0_201 = arith.constant 0 : index
    %172 = vector.load %arg7[%c0_198, %c1_199, %c1_200, %c0_201] : memref<1x18x18x32xf32, #tpu.memory_space<vmem>>, vector<1x16x16x32xf32>
    %173 = vector.shape_cast %172 : vector<1x16x16x32xf32> to vector<16x16x32xf32>
    %174 = vector.shape_cast %171 : vector<16x16x32xf32> to vector<1x16x16x32xf32>
    tpu.vector_store %arg7[%c0_198, %c1_199, %c1_200, %c0_201], %174 {strides = array<i32>} : memref<1x18x18x32xf32, #tpu.memory_space<vmem>>, vector<1x16x16x32xf32>,
    %c0_202 = arith.constant 0 : index
    %c0_203 = arith.constant 0 : index
    %c0_204 = arith.constant 0 : index
    %c0_205 = arith.constant 0 : index
    %175 = vector.load %arg7[%c0_202, %c0_203, %c0_204, %c0_205] : memref<1x18x18x32xf32, #tpu.memory_space<vmem>>, vector<1x16x16x32xf32>
    %176 = vector.shape_cast %175 : vector<1x16x16x32xf32> to vector<16x16x32xf32>
    %177 = vector.shape_cast %176 : vector<16x16x32xf32> to vector<256x32xf32>
    %c0_206 = arith.constant 0 : index
    %c0_207 = arith.constant 0 : index
    %c1_208 = arith.constant 1 : index
    %c0_209 = arith.constant 0 : index
    %178 = vector.load %arg7[%c0_206, %c0_207, %c1_208, %c0_209] : memref<1x18x18x32xf32, #tpu.memory_space<vmem>>, vector<1x16x16x32xf32>
    %179 = vector.shape_cast %178 : vector<1x16x16x32xf32> to vector<16x16x32xf32>
    %180 = vector.shape_cast %179 : vector<16x16x32xf32> to vector<256x32xf32>
    %c0_210 = arith.constant 0 : index
    %c0_211 = arith.constant 0 : index
    %c2_212 = arith.constant 2 : index
    %c0_213 = arith.constant 0 : index
    %181 = vector.load %arg7[%c0_210, %c0_211, %c2_212, %c0_213] : memref<1x18x18x32xf32, #tpu.memory_space<vmem>>, vector<1x16x16x32xf32>
    %182 = vector.shape_cast %181 : vector<1x16x16x32xf32> to vector<16x16x32xf32>
    %183 = vector.shape_cast %182 : vector<16x16x32xf32> to vector<256x32xf32>
    %c0_214 = arith.constant 0 : index
    %c1_215 = arith.constant 1 : index
    %c0_216 = arith.constant 0 : index
    %c0_217 = arith.constant 0 : index
    %184 = vector.load %arg7[%c0_214, %c1_215, %c0_216, %c0_217] : memref<1x18x18x32xf32, #tpu.memory_space<vmem>>, vector<1x16x16x32xf32>
    %185 = vector.shape_cast %184 : vector<1x16x16x32xf32> to vector<16x16x32xf32>
    %186 = vector.shape_cast %185 : vector<16x16x32xf32> to vector<256x32xf32>
    %c0_218 = arith.constant 0 : index
    %c1_219 = arith.constant 1 : index
    %c1_220 = arith.constant 1 : index
    %c0_221 = arith.constant 0 : index
    %187 = vector.load %arg7[%c0_218, %c1_219, %c1_220, %c0_221] : memref<1x18x18x32xf32, #tpu.memory_space<vmem>>, vector<1x16x16x32xf32>
    %188 = vector.shape_cast %187 : vector<1x16x16x32xf32> to vector<16x16x32xf32>
    %189 = vector.shape_cast %188 : vector<16x16x32xf32> to vector<256x32xf32>
    %c0_222 = arith.constant 0 : index
    %c1_223 = arith.constant 1 : index
    %c2_224 = arith.constant 2 : index
    %c0_225 = arith.constant 0 : index
    %190 = vector.load %arg7[%c0_222, %c1_223, %c2_224, %c0_225] : memref<1x18x18x32xf32, #tpu.memory_space<vmem>>, vector<1x16x16x32xf32>
    %191 = vector.shape_cast %190 : vector<1x16x16x32xf32> to vector<16x16x32xf32>
    %192 = vector.shape_cast %191 : vector<16x16x32xf32> to vector<256x32xf32>
    %c0_226 = arith.constant 0 : index
    %c2_227 = arith.constant 2 : index
    %c0_228 = arith.constant 0 : index
    %c0_229 = arith.constant 0 : index
    %193 = vector.load %arg7[%c0_226, %c2_227, %c0_228, %c0_229] : memref<1x18x18x32xf32, #tpu.memory_space<vmem>>, vector<1x16x16x32xf32>
    %194 = vector.shape_cast %193 : vector<1x16x16x32xf32> to vector<16x16x32xf32>
    %195 = vector.shape_cast %194 : vector<16x16x32xf32> to vector<256x32xf32>
    %c0_230 = arith.constant 0 : index
    %c2_231 = arith.constant 2 : index
    %c1_232 = arith.constant 1 : index
    %c0_233 = arith.constant 0 : index
    %196 = vector.load %arg7[%c0_230, %c2_231, %c1_232, %c0_233] : memref<1x18x18x32xf32, #tpu.memory_space<vmem>>, vector<1x16x16x32xf32>
    %197 = vector.shape_cast %196 : vector<1x16x16x32xf32> to vector<16x16x32xf32>
    %198 = vector.shape_cast %197 : vector<16x16x32xf32> to vector<256x32xf32>
    %c0_234 = arith.constant 0 : index
    %c2_235 = arith.constant 2 : index
    %c2_236 = arith.constant 2 : index
    %c0_237 = arith.constant 0 : index
    %199 = vector.load %arg7[%c0_234, %c2_235, %c2_236, %c0_237] : memref<1x18x18x32xf32, #tpu.memory_space<vmem>>, vector<1x16x16x32xf32>
    %200 = vector.shape_cast %199 : vector<1x16x16x32xf32> to vector<16x16x32xf32>
    %201 = vector.shape_cast %200 : vector<16x16x32xf32> to vector<256x32xf32>
    %202 = tpu.concatenate %177, %180, %183, %186, %189, %192, %195, %198, %201 in 1 : vector<256x32xf32>, vector<256x32xf32>, vector<256x32xf32>, vector<256x32xf32>, vector<256x32xf32>, vector<256x32xf32>, vector<256x32xf32>, vector<256x32xf32>, vector<256x32xf32> -> vector<256x288xf32>
    %c4 = arith.constant 4 : index
    %c0_238 = arith.constant 0 : index
    %c0_239 = arith.constant 0 : index
    %203 = vector.load %arg2[%c4, %c0_238, %c0_239] : memref<6x288x32xf32, #tpu.memory_space<vmem>>, vector<1x288x32xf32>
    %204 = vector.shape_cast %203 : vector<1x288x32xf32> to vector<288x32xf32>
    %cst_240 = arith.constant dense<0.000000e+00> : vector<256x32xf32>
    %205 = tpu.matmul %202, %204, %cst_240 {dimension_numbers = #tpu.dot_dimension_numbers<[1], [0], [0], [1], [0, 0, 1, 1], [], []>} : vector<256x288xf32>, vector<288x32xf32>, vector<256x32xf32> -> vector<256x32xf32>
    %c4_241 = arith.constant 4 : index
    %c0_242 = arith.constant 0 : index
    %c0_243 = arith.constant 0 : index
    %206 = vector.load %arg3[%c4_241, %c0_242, %c0_243] : memref<6x1x32xf32, #tpu.memory_space<vmem>>, vector<1x1x32xf32>
    %207 = vector.shape_cast %206 : vector<1x1x32xf32> to vector<1x32xf32>
    %208 = vector.broadcast %207 : vector<1x32xf32> to vector<256x32xf32>
    %209 = arith.addf %205, %208 : vector<256x32xf32>
    %cst_244 = arith.constant 0.000000e+00 : f32
    %210 = vector.broadcast %cst_244 : f32 to vector<256x32xf32>
    %211 = arith.maximumf %209, %210 : vector<256x32xf32>
    %212 = vector.shape_cast %211 : vector<256x32xf32> to vector<16x16x32xf32>
    %c0_245 = arith.constant 0 : index
    %c1_246 = arith.constant 1 : index
    %c1_247 = arith.constant 1 : index
    %c0_248 = arith.constant 0 : index
    %213 = vector.load %arg7[%c0_245, %c1_246, %c1_247, %c0_248] : memref<1x18x18x32xf32, #tpu.memory_space<vmem>>, vector<1x16x16x32xf32>
    %214 = vector.shape_cast %213 : vector<1x16x16x32xf32> to vector<16x16x32xf32>
    %215 = vector.shape_cast %212 : vector<16x16x32xf32> to vector<1x16x16x32xf32>
    tpu.vector_store %arg7[%c0_245, %c1_246, %c1_247, %c0_248], %215 {strides = array<i32>} : memref<1x18x18x32xf32, #tpu.memory_space<vmem>>, vector<1x16x16x32xf32>,
    %c0_249 = arith.constant 0 : index
    %c0_250 = arith.constant 0 : index
    %c0_251 = arith.constant 0 : index
    %c0_252 = arith.constant 0 : index
    %216 = vector.load %arg7[%c0_249, %c0_250, %c0_251, %c0_252] : memref<1x18x18x32xf32, #tpu.memory_space<vmem>>, vector<1x16x16x32xf32>
    %217 = vector.shape_cast %216 : vector<1x16x16x32xf32> to vector<16x16x32xf32>
    %218 = vector.shape_cast %217 : vector<16x16x32xf32> to vector<256x32xf32>
    %c0_253 = arith.constant 0 : index
    %c0_254 = arith.constant 0 : index
    %c1_255 = arith.constant 1 : index
    %c0_256 = arith.constant 0 : index
    %219 = vector.load %arg7[%c0_253, %c0_254, %c1_255, %c0_256] : memref<1x18x18x32xf32, #tpu.memory_space<vmem>>, vector<1x16x16x32xf32>
    %220 = vector.shape_cast %219 : vector<1x16x16x32xf32> to vector<16x16x32xf32>
    %221 = vector.shape_cast %220 : vector<16x16x32xf32> to vector<256x32xf32>
    %c0_257 = arith.constant 0 : index
    %c0_258 = arith.constant 0 : index
    %c2_259 = arith.constant 2 : index
    %c0_260 = arith.constant 0 : index
    %222 = vector.load %arg7[%c0_257, %c0_258, %c2_259, %c0_260] : memref<1x18x18x32xf32, #tpu.memory_space<vmem>>, vector<1x16x16x32xf32>
    %223 = vector.shape_cast %222 : vector<1x16x16x32xf32> to vector<16x16x32xf32>
    %224 = vector.shape_cast %223 : vector<16x16x32xf32> to vector<256x32xf32>
    %c0_261 = arith.constant 0 : index
    %c1_262 = arith.constant 1 : index
    %c0_263 = arith.constant 0 : index
    %c0_264 = arith.constant 0 : index
    %225 = vector.load %arg7[%c0_261, %c1_262, %c0_263, %c0_264] : memref<1x18x18x32xf32, #tpu.memory_space<vmem>>, vector<1x16x16x32xf32>
    %226 = vector.shape_cast %225 : vector<1x16x16x32xf32> to vector<16x16x32xf32>
    %227 = vector.shape_cast %226 : vector<16x16x32xf32> to vector<256x32xf32>
    %c0_265 = arith.constant 0 : index
    %c1_266 = arith.constant 1 : index
    %c1_267 = arith.constant 1 : index
    %c0_268 = arith.constant 0 : index
    %228 = vector.load %arg7[%c0_265, %c1_266, %c1_267, %c0_268] : memref<1x18x18x32xf32, #tpu.memory_space<vmem>>, vector<1x16x16x32xf32>
    %229 = vector.shape_cast %228 : vector<1x16x16x32xf32> to vector<16x16x32xf32>
    %230 = vector.shape_cast %229 : vector<16x16x32xf32> to vector<256x32xf32>
    %c0_269 = arith.constant 0 : index
    %c1_270 = arith.constant 1 : index
    %c2_271 = arith.constant 2 : index
    %c0_272 = arith.constant 0 : index
    %231 = vector.load %arg7[%c0_269, %c1_270, %c2_271, %c0_272] : memref<1x18x18x32xf32, #tpu.memory_space<vmem>>, vector<1x16x16x32xf32>
    %232 = vector.shape_cast %231 : vector<1x16x16x32xf32> to vector<16x16x32xf32>
    %233 = vector.shape_cast %232 : vector<16x16x32xf32> to vector<256x32xf32>
    %c0_273 = arith.constant 0 : index
    %c2_274 = arith.constant 2 : index
    %c0_275 = arith.constant 0 : index
    %c0_276 = arith.constant 0 : index
    %234 = vector.load %arg7[%c0_273, %c2_274, %c0_275, %c0_276] : memref<1x18x18x32xf32, #tpu.memory_space<vmem>>, vector<1x16x16x32xf32>
    %235 = vector.shape_cast %234 : vector<1x16x16x32xf32> to vector<16x16x32xf32>
    %236 = vector.shape_cast %235 : vector<16x16x32xf32> to vector<256x32xf32>
    %c0_277 = arith.constant 0 : index
    %c2_278 = arith.constant 2 : index
    %c1_279 = arith.constant 1 : index
    %c0_280 = arith.constant 0 : index
    %237 = vector.load %arg7[%c0_277, %c2_278, %c1_279, %c0_280] : memref<1x18x18x32xf32, #tpu.memory_space<vmem>>, vector<1x16x16x32xf32>
    %238 = vector.shape_cast %237 : vector<1x16x16x32xf32> to vector<16x16x32xf32>
    %239 = vector.shape_cast %238 : vector<16x16x32xf32> to vector<256x32xf32>
    %c0_281 = arith.constant 0 : index
    %c2_282 = arith.constant 2 : index
    %c2_283 = arith.constant 2 : index
    %c0_284 = arith.constant 0 : index
    %240 = vector.load %arg7[%c0_281, %c2_282, %c2_283, %c0_284] : memref<1x18x18x32xf32, #tpu.memory_space<vmem>>, vector<1x16x16x32xf32>
    %241 = vector.shape_cast %240 : vector<1x16x16x32xf32> to vector<16x16x32xf32>
    %242 = vector.shape_cast %241 : vector<16x16x32xf32> to vector<256x32xf32>
    %243 = tpu.concatenate %218, %221, %224, %227, %230, %233, %236, %239, %242 in 1 : vector<256x32xf32>, vector<256x32xf32>, vector<256x32xf32>, vector<256x32xf32>, vector<256x32xf32>, vector<256x32xf32>, vector<256x32xf32>, vector<256x32xf32>, vector<256x32xf32> -> vector<256x288xf32>
    %c5 = arith.constant 5 : index
    %c0_285 = arith.constant 0 : index
    %c0_286 = arith.constant 0 : index
    %244 = vector.load %arg2[%c5, %c0_285, %c0_286] : memref<6x288x32xf32, #tpu.memory_space<vmem>>, vector<1x288x32xf32>
    %245 = vector.shape_cast %244 : vector<1x288x32xf32> to vector<288x32xf32>
    %cst_287 = arith.constant dense<0.000000e+00> : vector<256x32xf32>
    %246 = tpu.matmul %243, %245, %cst_287 {dimension_numbers = #tpu.dot_dimension_numbers<[1], [0], [0], [1], [0, 0, 1, 1], [], []>} : vector<256x288xf32>, vector<288x32xf32>, vector<256x32xf32> -> vector<256x32xf32>
    %c5_288 = arith.constant 5 : index
    %c0_289 = arith.constant 0 : index
    %c0_290 = arith.constant 0 : index
    %247 = vector.load %arg3[%c5_288, %c0_289, %c0_290] : memref<6x1x32xf32, #tpu.memory_space<vmem>>, vector<1x1x32xf32>
    %248 = vector.shape_cast %247 : vector<1x1x32xf32> to vector<1x32xf32>
    %249 = vector.broadcast %248 : vector<1x32xf32> to vector<256x32xf32>
    %250 = arith.addf %246, %249 : vector<256x32xf32>
    %c0_291 = arith.constant 0 : index
    %c0_292 = arith.constant 0 : index
    %251 = vector.load %arg5[%c0_291, %c0_292] : memref<1x32xf32, #tpu.memory_space<vmem>>, vector<1x32xf32>
    %252 = vector.broadcast %251 : vector<1x32xf32> to vector<256x32xf32>
    %253 = arith.addf %250, %252 : vector<256x32xf32>
    %254 = vector.shape_cast %3 : vector<16x16x32xf32> to vector<256x32xf32>
    %255 = arith.addf %253, %254 : vector<256x32xf32>
    %256 = vector.extract_strided_slice %255 {offsets = [0, 0], sizes = [256, 3], strides = [1, 1]} : vector<256x32xf32> to vector<256x3xf32>
    %257 = vector.shape_cast %256 : vector<256x3xf32> to vector<1x16x16x3xf32>
    %c0_293 = arith.constant 0 : index
    %c0_294 = arith.constant 0 : index
    %c0_295 = arith.constant 0 : index
    %c0_296 = arith.constant 0 : index
    %258 = vector.load %arg6[%c0_293, %c0_294, %c0_295, %c0_296] : memref<1x16x16x3xf32, #tpu.memory_space<vmem>>, vector<1x16x16x3xf32>
    tpu.vector_store %arg6[%c0_293, %c0_294, %c0_295, %c0_296], %257 {strides = array<i32>} : memref<1x16x16x3xf32, #tpu.memory_space<vmem>>, vector<1x16x16x3xf32>,
    return
  }
  func.func @transform_0(%arg0: i32) -> (i32, i32, i32, i32) {
    %c0_i32 = arith.constant 0 : i32
    %c0_i32_0 = arith.constant 0 : i32
    %c0_i32_1 = arith.constant 0 : i32
    %c0_i32_2 = arith.constant 0 : i32
    return %arg0, %c0_i32, %c0_i32_0, %c0_i32_1 : i32, i32, i32, i32
  }
  func.func @transform_1(%arg0: i32) -> (i32, i32, i32) {
    %c0_i32 = arith.constant 0 : i32
    %c0_i32_0 = arith.constant 0 : i32
    %c0_i32_1 = arith.constant 0 : i32
    %c0_i32_2 = arith.constant 0 : i32
    return %c0_i32, %c0_i32_0, %c0_i32_1 : i32, i32, i32
  }
  func.func @transform_2(%arg0: i32) -> (i32, i32, i32) {
    %c0_i32 = arith.constant 0 : i32
    %c0_i32_0 = arith.constant 0 : i32
    %c0_i32_1 = arith.constant 0 : i32
    %c0_i32_2 = arith.constant 0 : i32
    return %c0_i32, %c0_i32_0, %c0_i32_1 : i32, i32, i32
  }
  func.func @transform_3(%arg0: i32) -> (i32, i32) {
    %c0_i32 = arith.constant 0 : i32
    %c0_i32_0 = arith.constant 0 : i32
    %c0_i32_1 = arith.constant 0 : i32
    return %c0_i32, %c0_i32_0 : i32, i32
  }
  func.func @transform_4(%arg0: i32) -> (i32, i32) {
    %c0_i32 = arith.constant 0 : i32
    %c0_i32_0 = arith.constant 0 : i32
    %c0_i32_1 = arith.constant 0 : i32
    return %c0_i32, %c0_i32_0 : i32, i32
  }
  func.func @transform_5(%arg0: i32) -> (i32, i32, i32, i32) {
    %c0_i32 = arith.constant 0 : i32
    %c0_i32_0 = arith.constant 0 : i32
    %c0_i32_1 = arith.constant 0 : i32
    %c0_i32_2 = arith.constant 0 : i32
    return %arg0, %c0_i32, %c0_i32_0, %c0_i32_1 : i32, i32, i32, i32
  }
}

</mosaic_0001>

<llo_original>
// kernel: cnn5layer_forward.1
$region0: #{cnn5layer_forward.1}
  #allocation0 [shape = 'u32[]', space=smem, size = 0x4, offset = 0x4, fixed_abs, tag = 'smem constant byte address 0x4 - core index']
  #allocation1 [shape = 'u32[144,128]{1,0:T(1,128)}', space=vmem, size = 0x12000, scoped, tag = 'internal scratch']
  #allocation2 [shape = 'f32[1,18,18,32]{3,2,1,0:T(8,128)}', space=vmem, size = 0x36000, scoped, tag = 'scratch operand']
  %s0 = inlined_call_operand.vmem [shape: f32[2,16,16,32], index: 0, kind: input, shape index: {}]
  %s1 = inlined_call_operand.vmem [shape: f32[6,288,32], index: 1, kind: input, shape index: {}]
  %s2 = inlined_call_operand.vmem [shape: f32[6,1,32], index: 2, kind: input, shape index: {}]
  %s3 = inlined_call_operand.vmem [shape: f32[1,32], index: 3, kind: input, shape index: {}]
  %s4 = inlined_call_operand.vmem [shape: f32[1,32], index: 4, kind: input, shape index: {}]
  %s5 = inlined_call_operand.vmem [shape: f32[2,16,16,3], index: 5, kind: output, shape index: {}]
  %s6 = sld [smem:[#allocation0]]
  $region53: #{cnn5layer_forward.1} parent=0
    _
  %s8 = ssub.s32 1, %s6
  %s9 = scalar_select 0, %s8, %s6
  loop: start=0, step=1, limit=4
  $region2: #{cnn5layer_forward.1} parent=0 // loop_pre_header
    _
  $region3: #{cnn5layer_forward.1} parent=0 // loop_header
    %s11 = sphi 0, %s15
    %p12 = scmp.ge.s32.totalorder %s11, 4
    %s21 = sphi 0, %s23
    %s24 = sphi 0, %s21
    %s25 = sphi 0, %s24
    %s41 = sphi 0, %s25
    %s45 = sphi 0, %s45
    %s47 = sphi 0, %s45
    %s48 = sphi 0, %s47
    %s62 = sphi 0, %s48
    %s66 = sphi 0, %s66
    %s68 = sphi 0, %s66
    %s69 = sphi 0, %s68
    %s83 = sphi 0, %s69
    %s87 = sphi 0, %s87
    %s89 = sphi 0, %s87
    %s90 = sphi 0, %s89
    %s104 = sphi 0, %s90
    %s108 = sphi 0, %s108
    %s110 = sphi 0, %s108
    %s111 = sphi 0, %s110
    %s125 = sphi 0, %s111
    %s131 = sphi 0, %s133
    %s134 = sphi 0, %s131
    %s135 = sphi 0, %s134
    %s151 = sphi 0, %s135
  $region4: #{cnn5layer_forward.1} parent=0 // loop_header_branch
    %14 = sbr.rel (%p12) target = $region8
  $region5: #{cnn5layer_forward.1} parent=0 // loop_body
    %s16 = ssub.s32 %s11, 1
    %s17 = ssub.s32 %s11, 2
    %s18 = sadd.s32 %s11, 1
    %s19 = ssub.s32 %s11, %s18
    %p20 = scmp.eq.s32.totalorder %s19, 0
    %s22 = sadd.s32 %s21, 1
    %s23 = scalar_select %p20, %s21, %s22
    %p26 = pneg %p20
    %p27 = scmp.eq.s32.totalorder %s11, 1
    %p28 = por %p26, %p27
    %p29 = scmp.ne.s32.totalorder %s21, %s24
    %p30 = scmp.eq.s32.totalorder %s11, 0
    %p31 = por %p29, %p30
    %p32 = scmp.ne.s32.totalorder %s21, %s24
    %p33 = scmp.eq.s32.totalorder %s16, 1
    %p34 = por %p32, %p33
    %p35 = scmp.ne.s32.totalorder %s24, %s25
    %p36 = scmp.eq.s32.totalorder %s16, 0
    %p37 = por %p35, %p36
    %p38 = scmp.ne.s32.totalorder %s24, %s25
    %p39 = scmp.eq.s32.totalorder %s17, 1
    %p40 = por %p38, %p39
    %p42 = scmp.ne.s32.totalorder %s25, %s41
    %p43 = scmp.eq.s32.totalorder %s17, 0
    %p44 = por %p42, %p43
    %s46 = sadd.s32 %s45, 1
    %p49 = scmp.eq.s32.totalorder %s11, 1
    %p50 = scmp.ne.s32.totalorder %s45, %s47
    %p51 = scmp.eq.s32.totalorder %s11, 0
    %p52 = por %p50, %p51
    %p53 = scmp.ne.s32.totalorder %s45, %s47
    %p54 = scmp.eq.s32.totalorder %s16, 1
    %p55 = por %p53, %p54
    %p56 = scmp.ne.s32.totalorder %s47, %s48
    %p57 = scmp.eq.s32.totalorder %s16, 0
    %p58 = por %p56, %p57
    %p59 = scmp.ne.s32.totalorder %s47, %s48
    %p60 = scmp.eq.s32.totalorder %s17, 1
    %p61 = por %p59, %p60
    %p63 = scmp.ne.s32.totalorder %s48, %s62
    %p64 = scmp.eq.s32.totalorder %s17, 0
    %p65 = por %p63, %p64
    %s67 = sadd.s32 %s66, 1
    %p70 = scmp.eq.s32.totalorder %s11, 1
    %p71 = scmp.ne.s32.totalorder %s66, %s68
    %p72 = scmp.eq.s32.totalorder %s11, 0
    %p73 = por %p71, %p72
    %p74 = scmp.ne.s32.totalorder %s66, %s68
    %p75 = scmp.eq.s32.totalorder %s16, 1
    %p76 = por %p74, %p75
    %p77 = scmp.ne.s32.totalorder %s68, %s69
    %p78 = scmp.eq.s32.totalorder %s16, 0
    %p79 = por %p77, %p78
    %p80 = scmp.ne.s32.totalorder %s68, %s69
    %p81 = scmp.eq.s32.totalorder %s17, 1
    %p82 = por %p80, %p81
    %p84 = scmp.ne.s32.totalorder %s69, %s83
    %p85 = scmp.eq.s32.totalorder %s17, 0
    %p86 = por %p84, %p85
    %s88 = sadd.s32 %s87, 1
    %p91 = scmp.eq.s32.totalorder %s11, 1
    %p92 = scmp.ne.s32.totalorder %s87, %s89
    %p93 = scmp.eq.s32.totalorder %s11, 0
    %p94 = por %p92, %p93
    %p95 = scmp.ne.s32.totalorder %s87, %s89
    %p96 = scmp.eq.s32.totalorder %s16, 1
    %p97 = por %p95, %p96
    %p98 = scmp.ne.s32.totalorder %s89, %s90
    %p99 = scmp.eq.s32.totalorder %s16, 0
    %p100 = por %p98, %p99
    %p101 = scmp.ne.s32.totalorder %s89, %s90
    %p102 = scmp.eq.s32.totalorder %s17, 1
    %p103 = por %p101, %p102
    %p105 = scmp.ne.s32.totalorder %s90, %s104
    %p106 = scmp.eq.s32.totalorder %s17, 0
    %p107 = por %p105, %p106
    %s109 = sadd.s32 %s108, 1
    %p112 = scmp.eq.s32.totalorder %s11, 1
    %p113 = scmp.ne.s32.totalorder %s108, %s110
    %p114 = scmp.eq.s32.totalorder %s11, 0
    %p115 = por %p113, %p114
    %p116 = scmp.ne.s32.totalorder %s108, %s110
    %p117 = scmp.eq.s32.totalorder %s16, 1
    %p118 = por %p116, %p117
    %p119 = scmp.ne.s32.totalorder %s110, %s111
    %p120 = scmp.eq.s32.totalorder %s16, 0
    %p121 = por %p119, %p120
    %p122 = scmp.ne.s32.totalorder %s110, %s111
    %p123 = scmp.eq.s32.totalorder %s17, 1
    %p124 = por %p122, %p123
    %p126 = scmp.ne.s32.totalorder %s111, %s125
    %p127 = scmp.eq.s32.totalorder %s17, 0
    %p128 = por %p126, %p127
    %s129 = ssub.s32 %s11, %s18
    %p130 = scmp.eq.s32.totalorder %s129, 0
    %s132 = sadd.s32 %s131, 1
    %s133 = scalar_select %p130, %s131, %s132
    %p136 = pneg %p130
    %p137 = scmp.eq.s32.totalorder %s11, 1
    %p138 = por %p136, %p137
    %p139 = scmp.ne.s32.totalorder %s131, %s134
    %p140 = scmp.eq.s32.totalorder %s11, 0
    %p141 = por %p139, %p140
    %p142 = scmp.ne.s32.totalorder %s131, %s134
    %p143 = scmp.eq.s32.totalorder %s16, 1
    %p144 = por %p142, %p143
    %p145 = scmp.ne.s32.totalorder %s134, %s135
    %p146 = scmp.eq.s32.totalorder %s16, 0
    %p147 = por %p145, %p146
    %p148 = scmp.ne.s32.totalorder %s134, %s135
    %p149 = scmp.eq.s32.totalorder %s17, 1
    %p150 = por %p148, %p149
    %p152 = scmp.ne.s32.totalorder %s135, %s151
    %p153 = scmp.eq.s32.totalorder %s17, 0
    %p154 = por %p152, %p153
    %p155 = scmp.le.s32.totalorder 1, %s11
    %p156 = scmp.lt.s32.totalorder %s11, 3
    %p157 = pnand %p155, %p156
    %p158 = pneg %p157
    // Predicated region
    $region9: #{cnn5layer_forward.1} parent=5 // pred_check
      _
    $region10: #{cnn5layer_forward.1} parent=5 // pred_check_branch
      %160 = sbr.rel (%p157) target = $region12
    $region11: #{cnn5layer_forward.1} parent=5 // pred_region
      %s161 = ssub.s32 %s11, 1
      // Predicated region
      $region13: #{cnn5layer_forward.1} parent=11 // pred_check
        %p162 = pneg %p58
      $region14: #{cnn5layer_forward.1} parent=11 // pred_check_branch
        %164 = sbr.rel (%p162) target = $region16
      $region15: #{cnn5layer_forward.1} parent=11 // pred_region
        _
      $region16: #{cnn5layer_forward.1} parent=11 // pred_fallthru
        _
      // Predicated region
      $region17: #{cnn5layer_forward.1} parent=11 // pred_check
        %p165 = pneg %p79
      $region18: #{cnn5layer_forward.1} parent=11 // pred_check_branch
        %167 = sbr.rel (%p165) target = $region20
      $region19: #{cnn5layer_forward.1} parent=11 // pred_region
        _
      $region20: #{cnn5layer_forward.1} parent=11 // pred_fallthru
        _
      // Predicated region
      $region21: #{cnn5layer_forward.1} parent=11 // pred_check
        %p168 = pneg %p100
      $region22: #{cnn5layer_forward.1} parent=11 // pred_check_branch
        %170 = sbr.rel (%p168) target = $region24
      $region23: #{cnn5layer_forward.1} parent=11 // pred_region
        _
      $region24: #{cnn5layer_forward.1} parent=11 // pred_fallthru
        _
      // Predicated region
      $region25: #{cnn5layer_forward.1} parent=11 // pred_check
        %p171 = pneg %p121
      $region26: #{cnn5layer_forward.1} parent=11 // pred_check_branch
        %173 = sbr.rel (%p171) target = $region28
      $region27: #{cnn5layer_forward.1} parent=11 // pred_region
        _
      $region28: #{cnn5layer_forward.1} parent=11 // pred_fallthru
        _
    $region12: #{cnn5layer_forward.1} parent=5 // pred_fallthru
      _
    %p174 = scmp.lt.s32.totalorder %s11, 2
    // Predicated region
    $region29: #{cnn5layer_forward.1} parent=5 // pred_check
      %p175 = pneg %p174
    $region30: #{cnn5layer_forward.1} parent=5 // pred_check_branch
      %177 = sbr.rel (%p175) target = $region32
    $region31: #{cnn5layer_forward.1} parent=5 // pred_region
      // Predicated region
      $region33: #{cnn5layer_forward.1} parent=31 // pred_check
        %p178 = pneg %p31
      $region34: #{cnn5layer_forward.1} parent=31 // pred_check_branch
        %180 = sbr.rel (%p178) target = $region36
      $region35: #{cnn5layer_forward.1} parent=31 // pred_region
        %p181 = scmp.lt.s32.totalorder %s11, 1
        %s182 = scalar_select %p181, %s11, 1
        %s183 = smul.addr %s182, 32
        %s184 = smul.addr %s183, 8
        %s185 = scalar_lea.vmem %s0, %s184
      $region36: #{cnn5layer_forward.1} parent=31 // pred_fallthru
        _
    $region32: #{cnn5layer_forward.1} parent=5 // pred_fallthru
      _
    %p186 = scmp.le.s32.totalorder 1, %s11
    %p187 = scmp.lt.s32.totalorder %s11, 3
    %p188 = pnand %p186, %p187
    %p189 = pneg %p188
    // Predicated region
    $region37: #{cnn5layer_forward.1} parent=5 // pred_check
      _
    $region38: #{cnn5layer_forward.1} parent=5 // pred_check_branch
      %191 = sbr.rel (%p188) target = $region40
    $region39: #{cnn5layer_forward.1} parent=5 // pred_region
      %s192 = ssub.s32 %s11, 1
      %p193 = scmp.lt.s32.totalorder %s16, 1
      %s194 = scalar_select %p193, %s16, 1
      %s195 = smul.addr %s194, 32
      %s196 = smul.addr %s195, 8
      %s197 = scalar_lea.vmem %s0, %s196
      %p198 = pneg %p37
      %p199 = pneg %p34
      %p200 = pneg %p58
      %p201 = pneg %p55
      %p202 = pneg %p79
      %p203 = pneg %p76
      %p204 = pneg %p100
      %p205 = pneg %p97
      %p206 = pneg %p121
      %p207 = pneg %p118
      %p208 = pneg %p147
      %p209 = pneg %p144
      %p210 = scmp.lt.s32.totalorder %s16, 1
      %s211 = scalar_select %p210, %s16, 1
      %s212 = smul.addr %s211, 32
      %s213 = smul.addr %s212, 8
      %s214 = scalar_lea.vmem %s5, %s213
      %p215 = scmp.lt.s32.totalorder %s16, 1
      %s216 = scalar_select %p215, %s16, 1
      %s217 = smul.addr %s216, 32
      %s218 = smul.addr %s217, 8
      %s219 = scalar_lea.vmem %s0, %s218
      %p220 = scmp.lt.s32.totalorder %s16, 1
      %s221 = scalar_select %p220, %s16, 1
      %s222 = smul.addr %s221, 32
      %s223 = smul.addr %s222, 8
      %s224 = scalar_lea.vmem %s5, %s223
      %vm225 = vcmask 261120
      %226 = vst.msk [vmem:[#allocation2] sm:$0xff] %vm225, 0.0
      %227 = vst.msk [vmem:[#allocation2 + $0x8] sm:$0xff] %vm225, 0.0
      %vm228 = vcmask 254976
      %229 = vst.msk [vmem:[#allocation2 + $0x10] sm:$0x3] %vm228, 0.0
      %230 = vst.msk [vmem:[#allocation2 + $0x18] sm:$0xff] %vm225, 0.0
      %231 = vst.msk [vmem:[#allocation2 + $0x20] sm:$0xff] %vm225, 0.0
      %232 = vst.msk [vmem:[#allocation2 + $0x28] sm:$0x3] %vm228, 0.0
      %233 = vst.msk [vmem:[#allocation2 + $0x30] sm:$0xff] %vm225, 0.0
      %234 = vst.msk [vmem:[#allocation2 + $0x38] sm:$0xff] %vm225, 0.0
      %235 = vst.msk [vmem:[#allocation2 + $0x40] sm:$0x3] %vm228, 0.0
      %236 = vst.msk [vmem:[#allocation2 + $0x48] sm:$0xff] %vm225, 0.0
      %237 = vst.msk [vmem:[#allocation2 + $0x50] sm:$0xff] %vm225, 0.0
      %238 = vst.msk [vmem:[#allocation2 + $0x58] sm:$0x3] %vm228, 0.0
      %239 = vst.msk [vmem:[#allocation2 + $0x60] sm:$0xff] %vm225, 0.0
      %240 = vst.msk [vmem:[#allocation2 + $0x68] sm:$0xff] %vm225, 0.0
      %241 = vst.msk [vmem:[#allocation2 + $0x70] sm:$0x3] %vm228, 0.0
      %242 = vst.msk [vmem:[#allocation2 + $0x78] sm:$0xff] %vm225, 0.0
      %243 = vst.msk [vmem:[#allocation2 + $0x80] sm:$0xff] %vm225, 0.0
      %244 = vst.msk [vmem:[#allocation2 + $0x88] sm:$0x3] %vm228, 0.0
      %245 = vst.msk [vmem:[#allocation2 + $0x90] sm:$0xff] %vm225, 0.0
      %246 = vst.msk [vmem:[#allocation2 + $0x98] sm:$0xff] %vm225, 0.0
      %247 = vst.msk [vmem:[#allocation2 + $0xa0] sm:$0x3] %vm228, 0.0
      %248 = vst.msk [vmem:[#allocation2 + $0xa8] sm:$0xff] %vm225, 0.0
      %249 = vst.msk [vmem:[#allocation2 + $0xb0] sm:$0xff] %vm225, 0.0
      %250 = vst.msk [vmem:[#allocation2 + $0xb8] sm:$0x3] %vm228, 0.0
      %251 = vst.msk [vmem:[#allocation2 + $0xc0] sm:$0xff] %vm225, 0.0
      %252 = vst.msk [vmem:[#allocation2 + $0xc8] sm:$0xff] %vm225, 0.0
      %253 = vst.msk [vmem:[#allocation2 + $0xd0] sm:$0x3] %vm228, 0.0
      %254 = vst.msk [vmem:[#allocation2 + $0xd8] sm:$0xff] %vm225, 0.0
      %255 = vst.msk [vmem:[#allocation2 + $0xe0] sm:$0xff] %vm225, 0.0
      %256 = vst.msk [vmem:[#allocation2 + $0xe8] sm:$0x3] %vm228, 0.0
      %257 = vst.msk [vmem:[#allocation2 + $0xf0] sm:$0xff] %vm225, 0.0
      %258 = vst.msk [vmem:[#allocation2 + $0xf8] sm:$0xff] %vm225, 0.0
      %259 = vst.msk [vmem:[#allocation2 + $0x100] sm:$0x3] %vm228, 0.0
      %260 = vst.msk [vmem:[#allocation2 + $0x108] sm:$0xff] %vm225, 0.0
      %261 = vst.msk [vmem:[#allocation2 + $0x110] sm:$0xff] %vm225, 0.0
      %262 = vst.msk [vmem:[#allocation2 + $0x118] sm:$0x3] %vm228, 0.0
      %263 = vst.msk [vmem:[#allocation2 + $0x120] sm:$0xff] %vm225, 0.0
      %264 = vst.msk [vmem:[#allocation2 + $0x128] sm:$0xff] %vm225, 0.0
      %265 = vst.msk [vmem:[#allocation2 + $0x130] sm:$0x3] %vm228, 0.0
      %266 = vst.msk [vmem:[#allocation2 + $0x138] sm:$0xff] %vm225, 0.0
      %267 = vst.msk [vmem:[#allocation2 + $0x140] sm:$0xff] %vm225, 0.0
      %268 = vst.msk [vmem:[#allocation2 + $0x148] sm:$0x3] %vm228, 0.0
      %269 = vst.msk [vmem:[#allocation2 + $0x150] sm:$0xff] %vm225, 0.0
      %270 = vst.msk [vmem:[#allocation2 + $0x158] sm:$0xff] %vm225, 0.0
      %271 = vst.msk [vmem:[#allocation2 + $0x160] sm:$0x3] %vm228, 0.0
      %272 = vst.msk [vmem:[#allocation2 + $0x168] sm:$0xff] %vm225, 0.0
      %273 = vst.msk [vmem:[#allocation2 + $0x170] sm:$0xff] %vm225, 0.0
      %274 = vst.msk [vmem:[#allocation2 + $0x178] sm:$0x3] %vm228, 0.0
      %275 = vst.msk [vmem:[#allocation2 + $0x180] sm:$0xff] %vm225, 0.0
      %276 = vst.msk [vmem:[#allocation2 + $0x188] sm:$0xff] %vm225, 0.0
      %277 = vst.msk [vmem:[#allocation2 + $0x190] sm:$0x3] %vm228, 0.0
      %278 = vst.msk [vmem:[#allocation2 + $0x198] sm:$0xff] %vm225, 0.0
      %279 = vst.msk [vmem:[#allocation2 + $0x1a0] sm:$0xff] %vm225, 0.0
      %280 = vst.msk [vmem:[#allocation2 + $0x1a8] sm:$0x3] %vm228, 0.0
      %v281 = vld [vmem:[%s219] sm:$0xff]
      %v282 = vld [vmem:[%s219 + $0x8] sm:$0xff]
      %v283 = vld [vmem:[%s219 + $0x10] sm:$0xff]
      %v284 = vld [vmem:[%s219 + $0x18] sm:$0xff]
      %v285 = vld [vmem:[%s219 + $0x20] sm:$0xff]
      %v286 = vld [vmem:[%s219 + $0x28] sm:$0xff]
      %v287 = vld [vmem:[%s219 + $0x30] sm:$0xff]
      %v288 = vld [vmem:[%s219 + $0x38] sm:$0xff]
      %v289 = vld [vmem:[%s219 + $0x40] sm:$0xff]
      %v290 = vld [vmem:[%s219 + $0x48] sm:$0xff]
      %v291 = vld [vmem:[%s219 + $0x50] sm:$0xff]
      %v292 = vld [vmem:[%s219 + $0x58] sm:$0xff]
      %v293 = vld [vmem:[%s219 + $0x60] sm:$0xff]
      %v294 = vld [vmem:[%s219 + $0x68] sm:$0xff]
      %v295 = vld [vmem:[%s219 + $0x70] sm:$0xff]
      %v296 = vld [vmem:[%s219 + $0x78] sm:$0xff]
      %v297 = vld [vmem:[%s219 + $0x80] sm:$0xff]
      %v298 = vld [vmem:[%s219 + $0x88] sm:$0xff]
      %v299 = vld [vmem:[%s219 + $0x90] sm:$0xff]
      %v300 = vld [vmem:[%s219 + $0x98] sm:$0xff]
      %v301 = vld [vmem:[%s219 + $0xa0] sm:$0xff]
      %v302 = vld [vmem:[%s219 + $0xa8] sm:$0xff]
      %v303 = vld [vmem:[%s219 + $0xb0] sm:$0xff]
      %v304 = vld [vmem:[%s219 + $0xb8] sm:$0xff]
      %v305 = vld [vmem:[%s219 + $0xc0] sm:$0xff]
      %v306 = vld [vmem:[%s219 + $0xc8] sm:$0xff]
      %v307 = vld [vmem:[%s219 + $0xd0] sm:$0xff]
      %v308 = vld [vmem:[%s219 + $0xd8] sm:$0xff]
      %v309 = vld [vmem:[%s219 + $0xe0] sm:$0xff]
      %v310 = vld [vmem:[%s219 + $0xe8] sm:$0xff]
      %v311 = vld [vmem:[%s219 + $0xf0] sm:$0xff]
      %v312 = vld [vmem:[%s219 + $0xf8] sm:$0xff]
      %v313 = vld [vmem:[%s3] sm:$0x1]
      %v315 = vlaneseq
      %v316 = vshrl.u32 %v315, 7
      %v317 = vsub.s32 0, %v316
      %v318 = vrot.slane %v313, %v317
      %v320 = vadd.f32 %v281, %v318
      %v321 = vadd.f32 %v282, %v318
      %v322 = vadd.f32 %v283, %v318
      %v323 = vadd.f32 %v284, %v318
      %v324 = vadd.f32 %v285, %v318
      %v325 = vadd.f32 %v286, %v318
      %v326 = vadd.f32 %v287, %v318
      %v327 = vadd.f32 %v288, %v318
      %v328 = vadd.f32 %v289, %v318
      %v329 = vadd.f32 %v290, %v318
      %v330 = vadd.f32 %v291, %v318
      %v331 = vadd.f32 %v292, %v318
      %v332 = vadd.f32 %v293, %v318
      %v333 = vadd.f32 %v294, %v318
      %v334 = vadd.f32 %v295, %v318
      %v335 = vadd.f32 %v296, %v318
      %v336 = vadd.f32 %v297, %v318
      %v337 = vadd.f32 %v298, %v318
      %v338 = vadd.f32 %v299, %v318
      %v339 = vadd.f32 %v300, %v318
      %v340 = vadd.f32 %v301, %v318
      %v341 = vadd.f32 %v302, %v318
      %v342 = vadd.f32 %v303, %v318
      %v343 = vadd.f32 %v304, %v318
      %v344 = vadd.f32 %v305, %v318
      %v345 = vadd.f32 %v306, %v318
      %v346 = vadd.f32 %v307, %v318
      %v347 = vadd.f32 %v308, %v318
      %v348 = vadd.f32 %v309, %v318
      %v349 = vadd.f32 %v310, %v318
      %v350 = vadd.f32 %v311, %v318
      %v351 = vadd.f32 %v312, %v318
      %s352 = scalar_lea.vmem [#allocation2], 24
      %353 = vst.msk [vmem:[%s352 + $0x1] sm:$0xff] %vm225, %v320
      %354 = vst.msk [vmem:[%s352 + $0x9] sm:$0xff] %vm225, %v321
      %355 = vst.msk [vmem:[%s352 + $0x19] sm:$0xff] %vm225, %v322
      %356 = vst.msk [vmem:[%s352 + $0x21] sm:$0xff] %vm225, %v323
      %357 = vst.msk [vmem:[%s352 + $0x31] sm:$0xff] %vm225, %v324
      %358 = vst.msk [vmem:[%s352 + $0x39] sm:$0xff] %vm225, %v325
      %359 = vst.msk [vmem:[%s352 + $0x49] sm:$0xff] %vm225, %v326
      %360 = vst.msk [vmem:[%s352 + $0x51] sm:$0xff] %vm225, %v327
      %361 = vst.msk [vmem:[%s352 + $0x61] sm:$0xff] %vm225, %v328
      %362 = vst.msk [vmem:[%s352 + $0x69] sm:$0xff] %vm225, %v329
      %363 = vst.msk [vmem:[%s352 + $0x79] sm:$0xff] %vm225, %v330
      %364 = vst.msk [vmem:[%s352 + $0x81] sm:$0xff] %vm225, %v331
      %365 = vst.msk [vmem:[%s352 + $0x91] sm:$0xff] %vm225, %v332
      %366 = vst.msk [vmem:[%s352 + $0x99] sm:$0xff] %vm225, %v333
      %367 = vst.msk [vmem:[%s352 + $0xa9] sm:$0xff] %vm225, %v334
      %368 = vst.msk [vmem:[%s352 + $0xb1] sm:$0xff] %vm225, %v335
      %369 = vst.msk [vmem:[%s352 + $0xc1] sm:$0xff] %vm225, %v336
      %370 = vst.msk [vmem:[%s352 + $0xc9] sm:$0xff] %vm225, %v337
      %371 = vst.msk [vmem:[%s352 + $0xd9] sm:$0xff] %vm225, %v338
      %372 = vst.msk [vmem:[%s352 + $0xe1] sm:$0xff] %vm225, %v339
      %373 = vst.msk [vmem:[%s352 + $0xf1] sm:$0xff] %vm225, %v340
      %374 = vst.msk [vmem:[%s352 + $0xf9] sm:$0xff] %vm225, %v341
      %375 = vst.msk [vmem:[%s352 + $0x109] sm:$0xff] %vm225, %v342
      %376 = vst.msk [vmem:[%s352 + $0x111] sm:$0xff] %vm225, %v343
      %377 = vst.msk [vmem:[%s352 + $0x121] sm:$0xff] %vm225, %v344
      %378 = vst.msk [vmem:[%s352 + $0x129] sm:$0xff] %vm225, %v345
      %379 = vst.msk [vmem:[%s352 + $0x139] sm:$0xff] %vm225, %v346
      %380 = vst.msk [vmem:[%s352 + $0x141] sm:$0xff] %vm225, %v347
      %381 = vst.msk [vmem:[%s352 + $0x151] sm:$0xff] %vm225, %v348
      %382 = vst.msk [vmem:[%s352 + $0x159] sm:$0xff] %vm225, %v349
      %383 = vst.msk [vmem:[%s352 + $0x169] sm:$0xff] %vm225, %v350
      %384 = vst.msk [vmem:[%s352 + $0x171] sm:$0xff] %vm225, %v351
      %v385 = vld [vmem:[#allocation2] sm:$0xff]
      %v386 = vld [vmem:[#allocation2 + $0x8] sm:$0xff]
      %v387 = vld [vmem:[#allocation2 + $0x18] sm:$0xff]
      %v388 = vld [vmem:[#allocation2 + $0x20] sm:$0xff]
      %v389 = vld [vmem:[#allocation2 + $0x30] sm:$0xff]
      %v390 = vld [vmem:[#allocation2 + $0x38] sm:$0xff]
      %v391 = vld [vmem:[#allocation2 + $0x48] sm:$0xff]
      %v392 = vld [vmem:[#allocation2 + $0x50] sm:$0xff]
      %v393 = vld [vmem:[#allocation2 + $0x60] sm:$0xff]
      %v394 = vld [vmem:[#allocation2 + $0x68] sm:$0xff]
      %v395 = vld [vmem:[#allocation2 + $0x78] sm:$0xff]
      %v396 = vld [vmem:[#allocation2 + $0x80] sm:$0xff]
      %v397 = vld [vmem:[#allocation2 + $0x90] sm:$0xff]
      %v398 = vld [vmem:[#allocation2 + $0x98] sm:$0xff]
      %v399 = vld [vmem:[#allocation2 + $0xa8] sm:$0xff]
      %v400 = vld [vmem:[#allocation2 + $0xb0] sm:$0xff]
      %v401 = vld [vmem:[#allocation2 + $0xc0] sm:$0xff]
      %v402 = vld [vmem:[#allocation2 + $0xc8] sm:$0xff]
      %v403 = vld [vmem:[#allocation2 + $0xd8] sm:$0xff]
      %v404 = vld [vmem:[#allocation2 + $0xe0] sm:$0xff]
      %v405 = vld [vmem:[#allocation2 + $0xf0] sm:$0xff]
      %v406 = vld [vmem:[#allocation2 + $0xf8] sm:$0xff]
      %v407 = vld [vmem:[#allocation2 + $0x108] sm:$0xff]
      %v408 = vld [vmem:[#allocation2 + $0x110] sm:$0xff]
      %v409 = vld [vmem:[#allocation2 + $0x120] sm:$0xff]
      %v410 = vld [vmem:[#allocation2 + $0x128] sm:$0xff]
      %v411 = vld [vmem:[#allocation2 + $0x138] sm:$0xff]
      %v412 = vld [vmem:[#allocation2 + $0x140] sm:$0xff]
      %v413 = vld [vmem:[#allocation2 + $0x150] sm:$0xff]
      %v414 = vld [vmem:[#allocation2 + $0x158] sm:$0xff]
      %v415 = vld [vmem:[#allocation2 + $0x168] sm:$0xff]
      %v416 = vld [vmem:[#allocation2 + $0x170] sm:$0xff]
      %v417 = vld [vmem:[#allocation2 + $0x1] sm:$0xff]
      %v418 = vld [vmem:[#allocation2 + $0x9] sm:$0xff]
      %v419 = vld [vmem:[#allocation2 + $0x19] sm:$0xff]
      %v420 = vld [vmem:[#allocation2 + $0x21] sm:$0xff]
      %v421 = vld [vmem:[#allocation2 + $0x31] sm:$0xff]
      %v422 = vld [vmem:[#allocation2 + $0x39] sm:$0xff]
      %v423 = vld [vmem:[#allocation2 + $0x49] sm:$0xff]
      %v424 = vld [vmem:[#allocation2 + $0x51] sm:$0xff]
      %v425 = vld [vmem:[#allocation2 + $0x61] sm:$0xff]
      %v426 = vld [vmem:[#allocation2 + $0x69] sm:$0xff]
      %v427 = vld [vmem:[#allocation2 + $0x79] sm:$0xff]
      %v428 = vld [vmem:[#allocation2 + $0x81] sm:$0xff]
      %v429 = vld [vmem:[#allocation2 + $0x91] sm:$0xff]
      %v430 = vld [vmem:[#allocation2 + $0x99] sm:$0xff]
      %v431 = vld [vmem:[#allocation2 + $0xa9] sm:$0xff]
      %v432 = vld [vmem:[#allocation2 + $0xb1] sm:$0xff]
      %v433 = vld [vmem:[#allocation2 + $0xc1] sm:$0xff]
      %v434 = vld [vmem:[#allocation2 + $0xc9] sm:$0xff]
      %v435 = vld [vmem:[#allocation2 + $0xd9] sm:$0xff]
      %v436 = vld [vmem:[#allocation2 + $0xe1] sm:$0xff]
      %v437 = vld [vmem:[#allocation2 + $0xf1] sm:$0xff]
      %v438 = vld [vmem:[#allocation2 + $0xf9] sm:$0xff]
      %v439 = vld [vmem:[#allocation2 + $0x109] sm:$0xff]
      %v440 = vld [vmem:[#allocation2 + $0x111] sm:$0xff]
      %v441 = vld [vmem:[#allocation2 + $0x121] sm:$0xff]
      %v442 = vld [vmem:[#allocation2 + $0x129] sm:$0xff]
      %v443 = vld [vmem:[#allocation2 + $0x139] sm:$0xff]
      %v444 = vld [vmem:[#allocation2 + $0x141] sm:$0xff]
      %v445 = vld [vmem:[#allocation2 + $0x151] sm:$0xff]
      %v446 = vld [vmem:[#allocation2 + $0x159] sm:$0xff]
      %v447 = vld [vmem:[#allocation2 + $0x169] sm:$0xff]
      %v448 = vld [vmem:[#allocation2 + $0x171] sm:$0xff]
      %v449 = vld [vmem:[#allocation2 + $0x2] sm:$0xff]
      %v450 = vld [vmem:[#allocation2 + $0xa] sm:$0xff]
      %v451 = vld [vmem:[#allocation2 + $0x1a] sm:$0xff]
      %v452 = vld [vmem:[#allocation2 + $0x22] sm:$0xff]
      %v453 = vld [vmem:[#allocation2 + $0x32] sm:$0xff]
      %v454 = vld [vmem:[#allocation2 + $0x3a] sm:$0xff]
      %v455 = vld [vmem:[#allocation2 + $0x4a] sm:$0xff]
      %v456 = vld [vmem:[#allocation2 + $0x52] sm:$0xff]
      %v457 = vld [vmem:[#allocation2 + $0x62] sm:$0xff]
      %v458 = vld [vmem:[#allocation2 + $0x6a] sm:$0xff]
      %v459 = vld [vmem:[#allocation2 + $0x7a] sm:$0xff]
      %v460 = vld [vmem:[#allocation2 + $0x82] sm:$0xff]
      %v461 = vld [vmem:[#allocation2 + $0x92] sm:$0xff]
      %v462 = vld [vmem:[#allocation2 + $0x9a] sm:$0xff]
      %v463 = vld [vmem:[#allocation2 + $0xaa] sm:$0xff]
      %v464 = vld [vmem:[#allocation2 + $0xb2] sm:$0xff]
      %v465 = vld [vmem:[#allocation2 + $0xc2] sm:$0xff]
      %v466 = vld [vmem:[#allocation2 + $0xca] sm:$0xff]
      %v467 = vld [vmem:[#allocation2 + $0xda] sm:$0xff]
      %v468 = vld [vmem:[#allocation2 + $0xe2] sm:$0xff]
      %v469 = vld [vmem:[#allocation2 + $0xf2] sm:$0xff]
      %v470 = vld [vmem:[#allocation2 + $0xfa] sm:$0xff]
      %v471 = vld [vmem:[#allocation2 + $0x10a] sm:$0xff]
      %v472 = vld [vmem:[#allocation2 + $0x112] sm:$0xff]
      %v473 = vld [vmem:[#allocation2 + $0x122] sm:$0xff]
      %v474 = vld [vmem:[#allocation2 + $0x12a] sm:$0xff]
      %v475 = vld [vmem:[#allocation2 + $0x13a] sm:$0xff]
      %v476 = vld [vmem:[#allocation2 + $0x142] sm:$0xff]
      %v477 = vld [vmem:[#allocation2 + $0x152] sm:$0xff]
      %v478 = vld [vmem:[#allocation2 + $0x15a] sm:$0xff]
      %v479 = vld [vmem:[#allocation2 + $0x16a] sm:$0xff]
      %v480 = vld [vmem:[#allocation2 + $0x172] sm:$0xff]
      %v481 = vld [vmem:[%s352] sm:$0xff]
      %v482 = vld [vmem:[%s352 + $0x8] sm:$0xff]
      %v483 = vld [vmem:[%s352 + $0x18] sm:$0xff]
      %v484 = vld [vmem:[%s352 + $0x20] sm:$0xff]
      %v485 = vld [vmem:[%s352 + $0x30] sm:$0xff]
      %v486 = vld [vmem:[%s352 + $0x38] sm:$0xff]
      %v487 = vld [vmem:[%s352 + $0x48] sm:$0xff]
      %v488 = vld [vmem:[%s352 + $0x50] sm:$0xff]
      %v489 = vld [vmem:[%s352 + $0x60] sm:$0xff]
      %v490 = vld [vmem:[%s352 + $0x68] sm:$0xff]
      %v491 = vld [vmem:[%s352 + $0x78] sm:$0xff]
      %v492 = vld [vmem:[%s352 + $0x80] sm:$0xff]
      %v493 = vld [vmem:[%s352 + $0x90] sm:$0xff]
      %v494 = vld [vmem:[%s352 + $0x98] sm:$0xff]
      %v495 = vld [vmem:[%s352 + $0xa8] sm:$0xff]
      %v496 = vld [vmem:[%s352 + $0xb0] sm:$0xff]
      %v497 = vld [vmem:[%s352 + $0xc0] sm:$0xff]
      %v498 = vld [vmem:[%s352 + $0xc8] sm:$0xff]
      %v499 = vld [vmem:[%s352 + $0xd8] sm:$0xff]
      %v500 = vld [vmem:[%s352 + $0xe0] sm:$0xff]
      %v501 = vld [vmem:[%s352 + $0xf0] sm:$0xff]
      %v502 = vld [vmem:[%s352 + $0xf8] sm:$0xff]
      %v503 = vld [vmem:[%s352 + $0x108] sm:$0xff]
      %v504 = vld [vmem:[%s352 + $0x110] sm:$0xff]
      %v505 = vld [vmem:[%s352 + $0x120] sm:$0xff]
      %v506 = vld [vmem:[%s352 + $0x128] sm:$0xff]
      %v507 = vld [vmem:[%s352 + $0x138] sm:$0xff]
      %v508 = vld [vmem:[%s352 + $0x140] sm:$0xff]
      %v509 = vld [vmem:[%s352 + $0x150] sm:$0xff]
      %v510 = vld [vmem:[%s352 + $0x158] sm:$0xff]
      %v511 = vld [vmem:[%s352 + $0x168] sm:$0xff]
      %v512 = vld [vmem:[%s352 + $0x170] sm:$0xff]
      %v513 = vld [vmem:[%s352 + $0x1] sm:$0xff]
      %v514 = vld [vmem:[%s352 + $0x9] sm:$0xff]
      %v515 = vld [vmem:[%s352 + $0x19] sm:$0xff]
      %v516 = vld [vmem:[%s352 + $0x21] sm:$0xff]
      %v517 = vld [vmem:[%s352 + $0x31] sm:$0xff]
      %v518 = vld [vmem:[%s352 + $0x39] sm:$0xff]
      %v519 = vld [vmem:[%s352 + $0x49] sm:$0xff]
      %v520 = vld [vmem:[%s352 + $0x51] sm:$0xff]
      %v521 = vld [vmem:[%s352 + $0x61] sm:$0xff]
      %v522 = vld [vmem:[%s352 + $0x69] sm:$0xff]
      %v523 = vld [vmem:[%s352 + $0x79] sm:$0xff]
      %v524 = vld [vmem:[%s352 + $0x81] sm:$0xff]
      %v525 = vld [vmem:[%s352 + $0x91] sm:$0xff]
      %v526 = vld [vmem:[%s352 + $0x99] sm:$0xff]
      %v527 = vld [vmem:[%s352 + $0xa9] sm:$0xff]
      %v528 = vld [vmem:[%s352 + $0xb1] sm:$0xff]
      %v529 = vld [vmem:[%s352 + $0xc1] sm:$0xff]
      %v530 = vld [vmem:[%s352 + $0xc9] sm:$0xff]
      %v531 = vld [vmem:[%s352 + $0xd9] sm:$0xff]
      %v532 = vld [vmem:[%s352 + $0xe1] sm:$0xff]
      %v533 = vld [vmem:[%s352 + $0xf1] sm:$0xff]
      %v534 = vld [vmem:[%s352 + $0xf9] sm:$0xff]
      %v535 = vld [vmem:[%s352 + $0x109] sm:$0xff]
      %v536 = vld [vmem:[%s352 + $0x111] sm:$0xff]
      %v537 = vld [vmem:[%s352 + $0x121] sm:$0xff]
      %v538 = vld [vmem:[%s352 + $0x129] sm:$0xff]
      %v539 = vld [vmem:[%s352 + $0x139] sm:$0xff]
      %v540 = vld [vmem:[%s352 + $0x141] sm:$0xff]
      %v541 = vld [vmem:[%s352 + $0x151] sm:$0xff]
      %v542 = vld [vmem:[%s352 + $0x159] sm:$0xff]
      %v543 = vld [vmem:[%s352 + $0x169] sm:$0xff]
      %v544 = vld [vmem:[%s352 + $0x171] sm:$0xff]
      %v545 = vld [vmem:[%s352 + $0x2] sm:$0xff]
      %v546 = vld [vmem:[%s352 + $0xa] sm:$0xff]
      %v547 = vld [vmem:[%s352 + $0x1a] sm:$0xff]
      %v548 = vld [vmem:[%s352 + $0x22] sm:$0xff]
      %v549 = vld [vmem:[%s352 + $0x32] sm:$0xff]
      %v550 = vld [vmem:[%s352 + $0x3a] sm:$0xff]
      %v551 = vld [vmem:[%s352 + $0x4a] sm:$0xff]
      %v552 = vld [vmem:[%s352 + $0x52] sm:$0xff]
      %v553 = vld [vmem:[%s352 + $0x62] sm:$0xff]
      %v554 = vld [vmem:[%s352 + $0x6a] sm:$0xff]
      %v555 = vld [vmem:[%s352 + $0x7a] sm:$0xff]
      %v556 = vld [vmem:[%s352 + $0x82] sm:$0xff]
      %v557 = vld [vmem:[%s352 + $0x92] sm:$0xff]
      %v558 = vld [vmem:[%s352 + $0x9a] sm:$0xff]
      %v559 = vld [vmem:[%s352 + $0xaa] sm:$0xff]
      %v560 = vld [vmem:[%s352 + $0xb2] sm:$0xff]
      %v561 = vld [vmem:[%s352 + $0xc2] sm:$0xff]
      %v562 = vld [vmem:[%s352 + $0xca] sm:$0xff]
      %v563 = vld [vmem:[%s352 + $0xda] sm:$0xff]
      %v564 = vld [vmem:[%s352 + $0xe2] sm:$0xff]
      %v565 = vld [vmem:[%s352 + $0xf2] sm:$0xff]
      %v566 = vld [vmem:[%s352 + $0xfa] sm:$0xff]
      %v567 = vld [vmem:[%s352 + $0x10a] sm:$0xff]
      %v568 = vld [vmem:[%s352 + $0x112] sm:$0xff]
      %v569 = vld [vmem:[%s352 + $0x122] sm:$0xff]
      %v570 = vld [vmem:[%s352 + $0x12a] sm:$0xff]
      %v571 = vld [vmem:[%s352 + $0x13a] sm:$0xff]
      %v572 = vld [vmem:[%s352 + $0x142] sm:$0xff]
      %v573 = vld [vmem:[%s352 + $0x152] sm:$0xff]
      %v574 = vld [vmem:[%s352 + $0x15a] sm:$0xff]
      %v575 = vld [vmem:[%s352 + $0x16a] sm:$0xff]
      %v576 = vld [vmem:[%s352 + $0x172] sm:$0xff]
      %s577 = scalar_lea.vmem [#allocation2], 48
      %v578 = vld [vmem:[%s577] sm:$0xff]
      %v579 = vld [vmem:[%s577 + $0x8] sm:$0xff]
      %v580 = vld [vmem:[%s577 + $0x18] sm:$0xff]
      %v581 = vld [vmem:[%s577 + $0x20] sm:$0xff]
      %v582 = vld [vmem:[%s577 + $0x30] sm:$0xff]
      %v583 = vld [vmem:[%s577 + $0x38] sm:$0xff]
      %v584 = vld [vmem:[%s577 + $0x48] sm:$0xff]
      %v585 = vld [vmem:[%s577 + $0x50] sm:$0xff]
      %v586 = vld [vmem:[%s577 + $0x60] sm:$0xff]
      %v587 = vld [vmem:[%s577 + $0x68] sm:$0xff]
      %v588 = vld [vmem:[%s577 + $0x78] sm:$0xff]
      %v589 = vld [vmem:[%s577 + $0x80] sm:$0xff]
      %v590 = vld [vmem:[%s577 + $0x90] sm:$0xff]
      %v591 = vld [vmem:[%s577 + $0x98] sm:$0xff]
      %v592 = vld [vmem:[%s577 + $0xa8] sm:$0xff]
      %v593 = vld [vmem:[%s577 + $0xb0] sm:$0xff]
      %v594 = vld [vmem:[%s577 + $0xc0] sm:$0xff]
      %v595 = vld [vmem:[%s577 + $0xc8] sm:$0xff]
      %v596 = vld [vmem:[%s577 + $0xd8] sm:$0xff]
      %v597 = vld [vmem:[%s577 + $0xe0] sm:$0xff]
      %v598 = vld [vmem:[%s577 + $0xf0] sm:$0xff]
      %v599 = vld [vmem:[%s577 + $0xf8] sm:$0xff]
      %v600 = vld [vmem:[%s577 + $0x108] sm:$0xff]
      %v601 = vld [vmem:[%s577 + $0x110] sm:$0xff]
      %v602 = vld [vmem:[%s577 + $0x120] sm:$0xff]
      %v603 = vld [vmem:[%s577 + $0x128] sm:$0xff]
      %v604 = vld [vmem:[%s577 + $0x138] sm:$0xff]
      %v605 = vld [vmem:[%s577 + $0x140] sm:$0xff]
      %v606 = vld [vmem:[%s577 + $0x150] sm:$0xff]
      %v607 = vld [vmem:[%s577 + $0x158] sm:$0xff]
      %v608 = vld [vmem:[%s577 + $0x168] sm:$0xff]
      %v609 = vld [vmem:[%s577 + $0x170] sm:$0xff]
      %v610 = vld [vmem:[%s577 + $0x1] sm:$0xff]
      %v611 = vld [vmem:[%s577 + $0x9] sm:$0xff]
      %v612 = vld [vmem:[%s577 + $0x19] sm:$0xff]
      %v613 = vld [vmem:[%s577 + $0x21] sm:$0xff]
      %v614 = vld [vmem:[%s577 + $0x31] sm:$0xff]
      %v615 = vld [vmem:[%s577 + $0x39] sm:$0xff]
      %v616 = vld [vmem:[%s577 + $0x49] sm:$0xff]
      %v617 = vld [vmem:[%s577 + $0x51] sm:$0xff]
      %v618 = vld [vmem:[%s577 + $0x61] sm:$0xff]
      %v619 = vld [vmem:[%s577 + $0x69] sm:$0xff]
      %v620 = vld [vmem:[%s577 + $0x79] sm:$0xff]
      %v621 = vld [vmem:[%s577 + $0x81] sm:$0xff]
      %v622 = vld [vmem:[%s577 + $0x91] sm:$0xff]
      %v623 = vld [vmem:[%s577 + $0x99] sm:$0xff]
      %v624 = vld [vmem:[%s577 + $0xa9] sm:$0xff]
      %v625 = vld [vmem:[%s577 + $0xb1] sm:$0xff]
      %v626 = vld [vmem:[%s577 + $0xc1] sm:$0xff]
      %v627 = vld [vmem:[%s577 + $0xc9] sm:$0xff]
      %v628 = vld [vmem:[%s577 + $0xd9] sm:$0xff]
      %v629 = vld [vmem:[%s577 + $0xe1] sm:$0xff]
      %v630 = vld [vmem:[%s577 + $0xf1] sm:$0xff]
      %v631 = vld [vmem:[%s577 + $0xf9] sm:$0xff]
      %v632 = vld [vmem:[%s577 + $0x109] sm:$0xff]
      %v633 = vld [vmem:[%s577 + $0x111] sm:$0xff]
      %v634 = vld [vmem:[%s577 + $0x121] sm:$0xff]
      %v635 = vld [vmem:[%s577 + $0x129] sm:$0xff]
      %v636 = vld [vmem:[%s577 + $0x139] sm:$0xff]
      %v637 = vld [vmem:[%s577 + $0x141] sm:$0xff]
      %v638 = vld [vmem:[%s577 + $0x151] sm:$0xff]
      %v639 = vld [vmem:[%s577 + $0x159] sm:$0xff]
      %v640 = vld [vmem:[%s577 + $0x169] sm:$0xff]
      %v641 = vld [vmem:[%s577 + $0x171] sm:$0xff]
      %v642 = vld [vmem:[%s577 + $0x2] sm:$0xff]
      %v643 = vld [vmem:[%s577 + $0xa] sm:$0xff]
      %v644 = vld [vmem:[%s577 + $0x1a] sm:$0xff]
      %v645 = vld [vmem:[%s577 + $0x22] sm:$0xff]
      %v646 = vld [vmem:[%s577 + $0x32] sm:$0xff]
      %v647 = vld [vmem:[%s577 + $0x3a] sm:$0xff]
      %v648 = vld [vmem:[%s577 + $0x4a] sm:$0xff]
      %v649 = vld [vmem:[%s577 + $0x52] sm:$0xff]
      %v650 = vld [vmem:[%s577 + $0x62] sm:$0xff]
      %v651 = vld [vmem:[%s577 + $0x6a] sm:$0xff]
      %v652 = vld [vmem:[%s577 + $0x7a] sm:$0xff]
      %v653 = vld [vmem:[%s577 + $0x82] sm:$0xff]
      %v654 = vld [vmem:[%s577 + $0x92] sm:$0xff]
      %v655 = vld [vmem:[%s577 + $0x9a] sm:$0xff]
      %v656 = vld [vmem:[%s577 + $0xaa] sm:$0xff]
      %v657 = vld [vmem:[%s577 + $0xb2] sm:$0xff]
      %v658 = vld [vmem:[%s577 + $0xc2] sm:$0xff]
      %v659 = vld [vmem:[%s577 + $0xca] sm:$0xff]
      %v660 = vld [vmem:[%s577 + $0xda] sm:$0xff]
      %v661 = vld [vmem:[%s577 + $0xe2] sm:$0xff]
      %v662 = vld [vmem:[%s577 + $0xf2] sm:$0xff]
      %v663 = vld [vmem:[%s577 + $0xfa] sm:$0xff]
      %v664 = vld [vmem:[%s577 + $0x10a] sm:$0xff]
      %v665 = vld [vmem:[%s577 + $0x112] sm:$0xff]
      %v666 = vld [vmem:[%s577 + $0x122] sm:$0xff]
      %v667 = vld [vmem:[%s577 + $0x12a] sm:$0xff]
      %v668 = vld [vmem:[%s577 + $0x13a] sm:$0xff]
      %v669 = vld [vmem:[%s577 + $0x142] sm:$0xff]
      %v670 = vld [vmem:[%s577 + $0x152] sm:$0xff]
      %v671 = vld [vmem:[%s577 + $0x15a] sm:$0xff]
      %v672 = vld [vmem:[%s577 + $0x16a] sm:$0xff]
      %v673 = vld [vmem:[%s577 + $0x172] sm:$0xff]
      %706 = vrot.lane.b32.xlu0 %v417, 32
      %v707 = vpop.permute.xlu0 %706
      %708 = vrot.lane.b32.xlu0 %v418, 32
      %v709 = vpop.permute.xlu0 %708
      %710 = vrot.lane.b32.xlu0 %v419, 32
      %v711 = vpop.permute.xlu0 %710
      %712 = vrot.lane.b32.xlu0 %v420, 32
      %v713 = vpop.permute.xlu0 %712
      %714 = vrot.lane.b32.xlu0 %v421, 32
      %v715 = vpop.permute.xlu0 %714
      %716 = vrot.lane.b32.xlu0 %v422, 32
      %v717 = vpop.permute.xlu0 %716
      %718 = vrot.lane.b32.xlu0 %v423, 32
      %v719 = vpop.permute.xlu0 %718
      %720 = vrot.lane.b32.xlu0 %v424, 32
      %v721 = vpop.permute.xlu0 %720
      %722 = vrot.lane.b32.xlu0 %v425, 32
      %v723 = vpop.permute.xlu0 %722
      %724 = vrot.lane.b32.xlu0 %v426, 32
      %v725 = vpop.permute.xlu0 %724
      %726 = vrot.lane.b32.xlu0 %v427, 32
      %v727 = vpop.permute.xlu0 %726
      %728 = vrot.lane.b32.xlu0 %v428, 32
      %v729 = vpop.permute.xlu0 %728
      %730 = vrot.lane.b32.xlu0 %v429, 32
      %v731 = vpop.permute.xlu0 %730
      %732 = vrot.lane.b32.xlu0 %v430, 32
      %v733 = vpop.permute.xlu0 %732
      %734 = vrot.lane.b32.xlu0 %v431, 32
      %v735 = vpop.permute.xlu0 %734
      %736 = vrot.lane.b32.xlu0 %v432, 32
      %v737 = vpop.permute.xlu0 %736
      %738 = vrot.lane.b32.xlu0 %v433, 32
      %v739 = vpop.permute.xlu0 %738
      %740 = vrot.lane.b32.xlu0 %v434, 32
      %v741 = vpop.permute.xlu0 %740
      %742 = vrot.lane.b32.xlu0 %v435, 32
      %v743 = vpop.permute.xlu0 %742
      %744 = vrot.lane.b32.xlu0 %v436, 32
      %v745 = vpop.permute.xlu0 %744
      %746 = vrot.lane.b32.xlu0 %v437, 32
      %v747 = vpop.permute.xlu0 %746
      %748 = vrot.lane.b32.xlu0 %v438, 32
      %v749 = vpop.permute.xlu0 %748
      %750 = vrot.lane.b32.xlu0 %v439, 32
      %v751 = vpop.permute.xlu0 %750
      %752 = vrot.lane.b32.xlu0 %v440, 32
      %v753 = vpop.permute.xlu0 %752
      %754 = vrot.lane.b32.xlu0 %v441, 32
      %v755 = vpop.permute.xlu0 %754
      %756 = vrot.lane.b32.xlu0 %v442, 32
      %v757 = vpop.permute.xlu0 %756
      %758 = vrot.lane.b32.xlu0 %v443, 32
      %v759 = vpop.permute.xlu0 %758
      %760 = vrot.lane.b32.xlu0 %v444, 32
      %v761 = vpop.permute.xlu0 %760
      %762 = vrot.lane.b32.xlu0 %v445, 32
      %v763 = vpop.permute.xlu0 %762
      %764 = vrot.lane.b32.xlu0 %v446, 32
      %v765 = vpop.permute.xlu0 %764
      %766 = vrot.lane.b32.xlu0 %v447, 32
      %v767 = vpop.permute.xlu0 %766
      %768 = vrot.lane.b32.xlu0 %v448, 32
      %v769 = vpop.permute.xlu0 %768
      %834 = vrot.lane.b32.xlu0 %v449, 64
      %v835 = vpop.permute.xlu0 %834
      %836 = vrot.lane.b32.xlu0 %v450, 64
      %v837 = vpop.permute.xlu0 %836
      %838 = vrot.lane.b32.xlu0 %v451, 64
      %v839 = vpop.permute.xlu0 %838
      %840 = vrot.lane.b32.xlu0 %v452, 64
      %v841 = vpop.permute.xlu0 %840
      %842 = vrot.lane.b32.xlu0 %v453, 64
      %v843 = vpop.permute.xlu0 %842
      %844 = vrot.lane.b32.xlu0 %v454, 64
      %v845 = vpop.permute.xlu0 %844
      %846 = vrot.lane.b32.xlu0 %v455, 64
      %v847 = vpop.permute.xlu0 %846
      %848 = vrot.lane.b32.xlu0 %v456, 64
      %v849 = vpop.permute.xlu0 %848
      %850 = vrot.lane.b32.xlu0 %v457, 64
      %v851 = vpop.permute.xlu0 %850
      %852 = vrot.lane.b32.xlu0 %v458, 64
      %v853 = vpop.permute.xlu0 %852
      %854 = vrot.lane.b32.xlu0 %v459, 64
      %v855 = vpop.permute.xlu0 %854
      %856 = vrot.lane.b32.xlu0 %v460, 64
      %v857 = vpop.permute.xlu0 %856
      %858 = vrot.lane.b32.xlu0 %v461, 64
      %v859 = vpop.permute.xlu0 %858
      %860 = vrot.lane.b32.xlu0 %v462, 64
      %v861 = vpop.permute.xlu0 %860
      %862 = vrot.lane.b32.xlu0 %v463, 64
      %v863 = vpop.permute.xlu0 %862
      %864 = vrot.lane.b32.xlu0 %v464, 64
      %v865 = vpop.permute.xlu0 %864
      %866 = vrot.lane.b32.xlu0 %v465, 64
      %v867 = vpop.permute.xlu0 %866
      %868 = vrot.lane.b32.xlu0 %v466, 64
      %v869 = vpop.permute.xlu0 %868
      %870 = vrot.lane.b32.xlu0 %v467, 64
      %v871 = vpop.permute.xlu0 %870
      %872 = vrot.lane.b32.xlu0 %v468, 64
      %v873 = vpop.permute.xlu0 %872
      %874 = vrot.lane.b32.xlu0 %v469, 64
      %v875 = vpop.permute.xlu0 %874
      %876 = vrot.lane.b32.xlu0 %v470, 64
      %v877 = vpop.permute.xlu0 %876
      %878 = vrot.lane.b32.xlu0 %v471, 64
      %v879 = vpop.permute.xlu0 %878
      %880 = vrot.lane.b32.xlu0 %v472, 64
      %v881 = vpop.permute.xlu0 %880
      %882 = vrot.lane.b32.xlu0 %v473, 64
      %v883 = vpop.permute.xlu0 %882
      %884 = vrot.lane.b32.xlu0 %v474, 64
      %v885 = vpop.permute.xlu0 %884
      %886 = vrot.lane.b32.xlu0 %v475, 64
      %v887 = vpop.permute.xlu0 %886
      %888 = vrot.lane.b32.xlu0 %v476, 64
      %v889 = vpop.permute.xlu0 %888
      %890 = vrot.lane.b32.xlu0 %v477, 64
      %v891 = vpop.permute.xlu0 %890
      %892 = vrot.lane.b32.xlu0 %v478, 64
      %v893 = vpop.permute.xlu0 %892
      %894 = vrot.lane.b32.xlu0 %v479, 64
      %v895 = vpop.permute.xlu0 %894
      %896 = vrot.lane.b32.xlu0 %v480, 64
      %v897 = vpop.permute.xlu0 %896
      %962 = vrot.lane.b32.xlu0 %v481, 96
      %v963 = vpop.permute.xlu0 %962
      %964 = vrot.lane.b32.xlu0 %v482, 96
      %v965 = vpop.permute.xlu0 %964
      %966 = vrot.lane.b32.xlu0 %v483, 96
      %v967 = vpop.permute.xlu0 %966
      %968 = vrot.lane.b32.xlu0 %v484, 96
      %v969 = vpop.permute.xlu0 %968
      %970 = vrot.lane.b32.xlu0 %v485, 96
      %v971 = vpop.permute.xlu0 %970
      %972 = vrot.lane.b32.xlu0 %v486, 96
      %v973 = vpop.permute.xlu0 %972
      %974 = vrot.lane.b32.xlu0 %v487, 96
      %v975 = vpop.permute.xlu0 %974
      %976 = vrot.lane.b32.xlu0 %v488, 96
      %v977 = vpop.permute.xlu0 %976
      %978 = vrot.lane.b32.xlu0 %v489, 96
      %v979 = vpop.permute.xlu0 %978
      %980 = vrot.lane.b32.xlu0 %v490, 96
      %v981 = vpop.permute.xlu0 %980
      %982 = vrot.lane.b32.xlu0 %v491, 96
      %v983 = vpop.permute.xlu0 %982
      %984 = vrot.lane.b32.xlu0 %v492, 96
      %v985 = vpop.permute.xlu0 %984
      %986 = vrot.lane.b32.xlu0 %v493, 96
      %v987 = vpop.permute.xlu0 %986
      %988 = vrot.lane.b32.xlu0 %v494, 96
      %v989 = vpop.permute.xlu0 %988
      %990 = vrot.lane.b32.xlu0 %v495, 96
      %v991 = vpop.permute.xlu0 %990
      %992 = vrot.lane.b32.xlu0 %v496, 96
      %v993 = vpop.permute.xlu0 %992
      %994 = vrot.lane.b32.xlu0 %v497, 96
      %v995 = vpop.permute.xlu0 %994
      %996 = vrot.lane.b32.xlu0 %v498, 96
      %v997 = vpop.permute.xlu0 %996
      %998 = vrot.lane.b32.xlu0 %v499, 96
      %v999 = vpop.permute.xlu0 %998
      %1000 = vrot.lane.b32.xlu0 %v500, 96
      %v1001 = vpop.permute.xlu0 %1000
      %1002 = vrot.lane.b32.xlu0 %v501, 96
      %v1003 = vpop.permute.xlu0 %1002
      %1004 = vrot.lane.b32.xlu0 %v502, 96
      %v1005 = vpop.permute.xlu0 %1004
      %1006 = vrot.lane.b32.xlu0 %v503, 96
      %v1007 = vpop.permute.xlu0 %1006
      %1008 = vrot.lane.b32.xlu0 %v504, 96
      %v1009 = vpop.permute.xlu0 %1008
      %1010 = vrot.lane.b32.xlu0 %v505, 96
      %v1011 = vpop.permute.xlu0 %1010
      %1012 = vrot.lane.b32.xlu0 %v506, 96
      %v1013 = vpop.permute.xlu0 %1012
      %1014 = vrot.lane.b32.xlu0 %v507, 96
      %v1015 = vpop.permute.xlu0 %1014
      %1016 = vrot.lane.b32.xlu0 %v508, 96
      %v1017 = vpop.permute.xlu0 %1016
      %1018 = vrot.lane.b32.xlu0 %v509, 96
      %v1019 = vpop.permute.xlu0 %1018
      %1020 = vrot.lane.b32.xlu0 %v510, 96
      %v1021 = vpop.permute.xlu0 %1020
      %1022 = vrot.lane.b32.xlu0 %v511, 96
      %v1023 = vpop.permute.xlu0 %1022
      %1024 = vrot.lane.b32.xlu0 %v512, 96
      %v1025 = vpop.permute.xlu0 %1024
      %1090 = vrot.lane.b32.xlu0 %v545, 32
      %v1091 = vpop.permute.xlu0 %1090
      %1092 = vrot.lane.b32.xlu0 %v546, 32
      %v1093 = vpop.permute.xlu0 %1092
      %1094 = vrot.lane.b32.xlu0 %v547, 32
      %v1095 = vpop.permute.xlu0 %1094
      %1096 = vrot.lane.b32.xlu0 %v548, 32
      %v1097 = vpop.permute.xlu0 %1096
      %1098 = vrot.lane.b32.xlu0 %v549, 32
      %v1099 = vpop.permute.xlu0 %1098
      %1100 = vrot.lane.b32.xlu0 %v550, 32
      %v1101 = vpop.permute.xlu0 %1100
      %1102 = vrot.lane.b32.xlu0 %v551, 32
      %v1103 = vpop.permute.xlu0 %1102
      %1104 = vrot.lane.b32.xlu0 %v552, 32
      %v1105 = vpop.permute.xlu0 %1104
      %1106 = vrot.lane.b32.xlu0 %v553, 32
      %v1107 = vpop.permute.xlu0 %1106
      %1108 = vrot.lane.b32.xlu0 %v554, 32
      %v1109 = vpop.permute.xlu0 %1108
      %1110 = vrot.lane.b32.xlu0 %v555, 32
      %v1111 = vpop.permute.xlu0 %1110
      %1112 = vrot.lane.b32.xlu0 %v556, 32
      %v1113 = vpop.permute.xlu0 %1112
      %1114 = vrot.lane.b32.xlu0 %v557, 32
      %v1115 = vpop.permute.xlu0 %1114
      %1116 = vrot.lane.b32.xlu0 %v558, 32
      %v1117 = vpop.permute.xlu0 %1116
      %1118 = vrot.lane.b32.xlu0 %v559, 32
      %v1119 = vpop.permute.xlu0 %1118
      %1120 = vrot.lane.b32.xlu0 %v560, 32
      %v1121 = vpop.permute.xlu0 %1120
      %1122 = vrot.lane.b32.xlu0 %v561, 32
      %v1123 = vpop.permute.xlu0 %1122
      %1124 = vrot.lane.b32.xlu0 %v562, 32
      %v1125 = vpop.permute.xlu0 %1124
      %1126 = vrot.lane.b32.xlu0 %v563, 32
      %v1127 = vpop.permute.xlu0 %1126
      %1128 = vrot.lane.b32.xlu0 %v564, 32
      %v1129 = vpop.permute.xlu0 %1128
      %1130 = vrot.lane.b32.xlu0 %v565, 32
      %v1131 = vpop.permute.xlu0 %1130
      %1132 = vrot.lane.b32.xlu0 %v566, 32
      %v1133 = vpop.permute.xlu0 %1132
      %1134 = vrot.lane.b32.xlu0 %v567, 32
      %v1135 = vpop.permute.xlu0 %1134
      %1136 = vrot.lane.b32.xlu0 %v568, 32
      %v1137 = vpop.permute.xlu0 %1136
      %1138 = vrot.lane.b32.xlu0 %v569, 32
      %v1139 = vpop.permute.xlu0 %1138
      %1140 = vrot.lane.b32.xlu0 %v570, 32
      %v1141 = vpop.permute.xlu0 %1140
      %1142 = vrot.lane.b32.xlu0 %v571, 32
      %v1143 = vpop.permute.xlu0 %1142
      %1144 = vrot.lane.b32.xlu0 %v572, 32
      %v1145 = vpop.permute.xlu0 %1144
      %1146 = vrot.lane.b32.xlu0 %v573, 32
      %v1147 = vpop.permute.xlu0 %1146
      %1148 = vrot.lane.b32.xlu0 %v574, 32
      %v1149 = vpop.permute.xlu0 %1148
      %1150 = vrot.lane.b32.xlu0 %v575, 32
      %v1151 = vpop.permute.xlu0 %1150
      %1152 = vrot.lane.b32.xlu0 %v576, 32
      %v1153 = vpop.permute.xlu0 %1152
      %1218 = vrot.lane.b32.xlu0 %v578, 64
      %v1219 = vpop.permute.xlu0 %1218
      %1220 = vrot.lane.b32.xlu0 %v579, 64
      %v1221 = vpop.permute.xlu0 %1220
      %1222 = vrot.lane.b32.xlu0 %v580, 64
      %v1223 = vpop.permute.xlu0 %1222
      %1224 = vrot.lane.b32.xlu0 %v581, 64
      %v1225 = vpop.permute.xlu0 %1224
      %1226 = vrot.lane.b32.xlu0 %v582, 64
      %v1227 = vpop.permute.xlu0 %1226
      %1228 = vrot.lane.b32.xlu0 %v583, 64
      %v1229 = vpop.permute.xlu0 %1228
      %1230 = vrot.lane.b32.xlu0 %v584, 64
      %v1231 = vpop.permute.xlu0 %1230
      %1232 = vrot.lane.b32.xlu0 %v585, 64
      %v1233 = vpop.permute.xlu0 %1232
      %1234 = vrot.lane.b32.xlu0 %v586, 64
      %v1235 = vpop.permute.xlu0 %1234
      %1236 = vrot.lane.b32.xlu0 %v587, 64
      %v1237 = vpop.permute.xlu0 %1236
      %1238 = vrot.lane.b32.xlu0 %v588, 64
      %v1239 = vpop.permute.xlu0 %1238
      %1240 = vrot.lane.b32.xlu0 %v589, 64
      %v1241 = vpop.permute.xlu0 %1240
      %1242 = vrot.lane.b32.xlu0 %v590, 64
      %v1243 = vpop.permute.xlu0 %1242
      %1244 = vrot.lane.b32.xlu0 %v591, 64
      %v1245 = vpop.permute.xlu0 %1244
      %1246 = vrot.lane.b32.xlu0 %v592, 64
      %v1247 = vpop.permute.xlu0 %1246
      %1248 = vrot.lane.b32.xlu0 %v593, 64
      %v1249 = vpop.permute.xlu0 %1248
      %1250 = vrot.lane.b32.xlu0 %v594, 64
      %v1251 = vpop.permute.xlu0 %1250
      %1252 = vrot.lane.b32.xlu0 %v595, 64
      %v1253 = vpop.permute.xlu0 %1252
      %1254 = vrot.lane.b32.xlu0 %v596, 64
      %v1255 = vpop.permute.xlu0 %1254
      %1256 = vrot.lane.b32.xlu0 %v597, 64
      %v1257 = vpop.permute.xlu0 %1256
      %1258 = vrot.lane.b32.xlu0 %v598, 64
      %v1259 = vpop.permute.xlu0 %1258
      %1260 = vrot.lane.b32.xlu0 %v599, 64
      %v1261 = vpop.permute.xlu0 %1260
      %1262 = vrot.lane.b32.xlu0 %v600, 64
      %v1263 = vpop.permute.xlu0 %1262
      %1264 = vrot.lane.b32.xlu0 %v601, 64
      %v1265 = vpop.permute.xlu0 %1264
      %1266 = vrot.lane.b32.xlu0 %v602, 64
      %v1267 = vpop.permute.xlu0 %1266
      %1268 = vrot.lane.b32.xlu0 %v603, 64
      %v1269 = vpop.permute.xlu0 %1268
      %1270 = vrot.lane.b32.xlu0 %v604, 64
      %v1271 = vpop.permute.xlu0 %1270
      %1272 = vrot.lane.b32.xlu0 %v605, 64
      %v1273 = vpop.permute.xlu0 %1272
      %1274 = vrot.lane.b32.xlu0 %v606, 64
      %v1275 = vpop.permute.xlu0 %1274
      %1276 = vrot.lane.b32.xlu0 %v607, 64
      %v1277 = vpop.permute.xlu0 %1276
      %1278 = vrot.lane.b32.xlu0 %v608, 64
      %v1279 = vpop.permute.xlu0 %1278
      %1280 = vrot.lane.b32.xlu0 %v609, 64
      %v1281 = vpop.permute.xlu0 %1280
      %1346 = vrot.lane.b32.xlu0 %v610, 96
      %v1347 = vpop.permute.xlu0 %1346
      %1348 = vrot.lane.b32.xlu0 %v611, 96
      %v1349 = vpop.permute.xlu0 %1348
      %1350 = vrot.lane.b32.xlu0 %v612, 96
      %v1351 = vpop.permute.xlu0 %1350
      %1352 = vrot.lane.b32.xlu0 %v613, 96
      %v1353 = vpop.permute.xlu0 %1352
      %1354 = vrot.lane.b32.xlu0 %v614, 96
      %v1355 = vpop.permute.xlu0 %1354
      %1356 = vrot.lane.b32.xlu0 %v615, 96
      %v1357 = vpop.permute.xlu0 %1356
      %1358 = vrot.lane.b32.xlu0 %v616, 96
      %v1359 = vpop.permute.xlu0 %1358
      %1360 = vrot.lane.b32.xlu0 %v617, 96
      %v1361 = vpop.permute.xlu0 %1360
      %1362 = vrot.lane.b32.xlu0 %v618, 96
      %v1363 = vpop.permute.xlu0 %1362
      %1364 = vrot.lane.b32.xlu0 %v619, 96
      %v1365 = vpop.permute.xlu0 %1364
      %1366 = vrot.lane.b32.xlu0 %v620, 96
      %v1367 = vpop.permute.xlu0 %1366
      %1368 = vrot.lane.b32.xlu0 %v621, 96
      %v1369 = vpop.permute.xlu0 %1368
      %1370 = vrot.lane.b32.xlu0 %v622, 96
      %v1371 = vpop.permute.xlu0 %1370
      %1372 = vrot.lane.b32.xlu0 %v623, 96
      %v1373 = vpop.permute.xlu0 %1372
      %1374 = vrot.lane.b32.xlu0 %v624, 96
      %v1375 = vpop.permute.xlu0 %1374
      %1376 = vrot.lane.b32.xlu0 %v625, 96
      %v1377 = vpop.permute.xlu0 %1376
      %1378 = vrot.lane.b32.xlu0 %v626, 96
      %v1379 = vpop.permute.xlu0 %1378
      %1380 = vrot.lane.b32.xlu0 %v627, 96
      %v1381 = vpop.permute.xlu0 %1380
      %1382 = vrot.lane.b32.xlu0 %v628, 96
      %v1383 = vpop.permute.xlu0 %1382
      %1384 = vrot.lane.b32.xlu0 %v629, 96
      %v1385 = vpop.permute.xlu0 %1384
      %1386 = vrot.lane.b32.xlu0 %v630, 96
      %v1387 = vpop.permute.xlu0 %1386
      %1388 = vrot.lane.b32.xlu0 %v631, 96
      %v1389 = vpop.permute.xlu0 %1388
      %1390 = vrot.lane.b32.xlu0 %v632, 96
      %v1391 = vpop.permute.xlu0 %1390
      %1392 = vrot.lane.b32.xlu0 %v633, 96
      %v1393 = vpop.permute.xlu0 %1392
      %1394 = vrot.lane.b32.xlu0 %v634, 96
      %v1395 = vpop.permute.xlu0 %1394
      %1396 = vrot.lane.b32.xlu0 %v635, 96
      %v1397 = vpop.permute.xlu0 %1396
      %1398 = vrot.lane.b32.xlu0 %v636, 96
      %v1399 = vpop.permute.xlu0 %1398
      %1400 = vrot.lane.b32.xlu0 %v637, 96
      %v1401 = vpop.permute.xlu0 %1400
      %1402 = vrot.lane.b32.xlu0 %v638, 96
      %v1403 = vpop.permute.xlu0 %1402
      %1404 = vrot.lane.b32.xlu0 %v639, 96
      %v1405 = vpop.permute.xlu0 %1404
      %1406 = vrot.lane.b32.xlu0 %v640, 96
      %v1407 = vpop.permute.xlu0 %1406
      %1408 = vrot.lane.b32.xlu0 %v641, 96
      %v1409 = vpop.permute.xlu0 %1408
      %v1442 = vsel %vm225, %v385, %v707
      %v1443 = vsel %vm225, %v386, %v709
      %v1444 = vsel %vm225, %v387, %v711
      %v1445 = vsel %vm225, %v388, %v713
      %v1446 = vsel %vm225, %v389, %v715
      %v1447 = vsel %vm225, %v390, %v717
      %v1448 = vsel %vm225, %v391, %v719
      %v1449 = vsel %vm225, %v392, %v721
      %v1450 = vsel %vm225, %v393, %v723
      %v1451 = vsel %vm225, %v394, %v725
      %v1452 = vsel %vm225, %v395, %v727
      %v1453 = vsel %vm225, %v396, %v729
      %v1454 = vsel %vm225, %v397, %v731
      %v1455 = vsel %vm225, %v398, %v733
      %v1456 = vsel %vm225, %v399, %v735
      %v1457 = vsel %vm225, %v400, %v737
      %v1458 = vsel %vm225, %v401, %v739
      %v1459 = vsel %vm225, %v402, %v741
      %v1460 = vsel %vm225, %v403, %v743
      %v1461 = vsel %vm225, %v404, %v745
      %v1462 = vsel %vm225, %v405, %v747
      %v1463 = vsel %vm225, %v406, %v749
      %v1464 = vsel %vm225, %v407, %v751
      %v1465 = vsel %vm225, %v408, %v753
      %v1466 = vsel %vm225, %v409, %v755
      %v1467 = vsel %vm225, %v410, %v757
      %v1468 = vsel %vm225, %v411, %v759
      %v1469 = vsel %vm225, %v412, %v761
      %v1470 = vsel %vm225, %v413, %v763
      %v1471 = vsel %vm225, %v414, %v765
      %v1472 = vsel %vm225, %v415, %v767
      %v1473 = vsel %vm225, %v416, %v769
      %vm1474 = vcmask 523264
      %v1475 = vsel %vm1474, %v1442, %v835
      %v1476 = vsel %vm1474, %v1443, %v837
      %v1477 = vsel %vm1474, %v1444, %v839
      %v1478 = vsel %vm1474, %v1445, %v841
      %v1479 = vsel %vm1474, %v1446, %v843
      %v1480 = vsel %vm1474, %v1447, %v845
      %v1481 = vsel %vm1474, %v1448, %v847
      %v1482 = vsel %vm1474, %v1449, %v849
      %v1483 = vsel %vm1474, %v1450, %v851
      %v1484 = vsel %vm1474, %v1451, %v853
      %v1485 = vsel %vm1474, %v1452, %v855
      %v1486 = vsel %vm1474, %v1453, %v857
      %v1487 = vsel %vm1474, %v1454, %v859
      %v1488 = vsel %vm1474, %v1455, %v861
      %v1489 = vsel %vm1474, %v1456, %v863
      %v1490 = vsel %vm1474, %v1457, %v865
      %v1491 = vsel %vm1474, %v1458, %v867
      %v1492 = vsel %vm1474, %v1459, %v869
      %v1493 = vsel %vm1474, %v1460, %v871
      %v1494 = vsel %vm1474, %v1461, %v873
      %v1495 = vsel %vm1474, %v1462, %v875
      %v1496 = vsel %vm1474, %v1463, %v877
      %v1497 = vsel %vm1474, %v1464, %v879
      %v1498 = vsel %vm1474, %v1465, %v881
      %v1499 = vsel %vm1474, %v1466, %v883
      %v1500 = vsel %vm1474, %v1467, %v885
      %v1501 = vsel %vm1474, %v1468, %v887
      %v1502 = vsel %vm1474, %v1469, %v889
      %v1503 = vsel %vm1474, %v1470, %v891
      %v1504 = vsel %vm1474, %v1471, %v893
      %v1505 = vsel %vm1474, %v1472, %v895
      %v1506 = vsel %vm1474, %v1473, %v897
      %vm1507 = vcmask 785408
      %v1508 = vsel %vm1507, %v1475, %v963
      %v1509 = vsel %vm1507, %v1476, %v965
      %v1510 = vsel %vm1507, %v1477, %v967
      %v1511 = vsel %vm1507, %v1478, %v969
      %v1512 = vsel %vm1507, %v1479, %v971
      %v1513 = vsel %vm1507, %v1480, %v973
      %v1514 = vsel %vm1507, %v1481, %v975
      %v1515 = vsel %vm1507, %v1482, %v977
      %v1516 = vsel %vm1507, %v1483, %v979
      %v1517 = vsel %vm1507, %v1484, %v981
      %v1518 = vsel %vm1507, %v1485, %v983
      %v1519 = vsel %vm1507, %v1486, %v985
      %v1520 = vsel %vm1507, %v1487, %v987
      %v1521 = vsel %vm1507, %v1488, %v989
      %v1522 = vsel %vm1507, %v1489, %v991
      %v1523 = vsel %vm1507, %v1490, %v993
      %v1524 = vsel %vm1507, %v1491, %v995
      %v1525 = vsel %vm1507, %v1492, %v997
      %v1526 = vsel %vm1507, %v1493, %v999
      %v1527 = vsel %vm1507, %v1494, %v1001
      %v1528 = vsel %vm1507, %v1495, %v1003
      %v1529 = vsel %vm1507, %v1496, %v1005
      %v1530 = vsel %vm1507, %v1497, %v1007
      %v1531 = vsel %vm1507, %v1498, %v1009
      %v1532 = vsel %vm1507, %v1499, %v1011
      %v1533 = vsel %vm1507, %v1500, %v1013
      %v1534 = vsel %vm1507, %v1501, %v1015
      %v1535 = vsel %vm1507, %v1502, %v1017
      %v1536 = vsel %vm1507, %v1503, %v1019
      %v1537 = vsel %vm1507, %v1504, %v1021
      %v1538 = vsel %vm1507, %v1505, %v1023
      %v1539 = vsel %vm1507, %v1506, %v1025
      %v1540 = vsel %vm225, %v513, %v1091
      %v1541 = vsel %vm225, %v514, %v1093
      %v1542 = vsel %vm225, %v515, %v1095
      %v1543 = vsel %vm225, %v516, %v1097
      %v1544 = vsel %vm225, %v517, %v1099
      %v1545 = vsel %vm225, %v518, %v1101
      %v1546 = vsel %vm225, %v519, %v1103
      %v1547 = vsel %vm225, %v520, %v1105
      %v1548 = vsel %vm225, %v521, %v1107
      %v1549 = vsel %vm225, %v522, %v1109
      %v1550 = vsel %vm225, %v523, %v1111
      %v1551 = vsel %vm225, %v524, %v1113
      %v1552 = vsel %vm225, %v525, %v1115
      %v1553 = vsel %vm225, %v526, %v1117
      %v1554 = vsel %vm225, %v527, %v1119
      %v1555 = vsel %vm225, %v528, %v1121
      %v1556 = vsel %vm225, %v529, %v1123
      %v1557 = vsel %vm225, %v530, %v1125
      %v1558 = vsel %vm225, %v531, %v1127
      %v1559 = vsel %vm225, %v532, %v1129
      %v1560 = vsel %vm225, %v533, %v1131
      %v1561 = vsel %vm225, %v534, %v1133
      %v1562 = vsel %vm225, %v535, %v1135
      %v1563 = vsel %vm225, %v536, %v1137
      %v1564 = vsel %vm225, %v537, %v1139
      %v1565 = vsel %vm225, %v538, %v1141
      %v1566 = vsel %vm225, %v539, %v1143
      %v1567 = vsel %vm225, %v540, %v1145
      %v1568 = vsel %vm225, %v541, %v1147
      %v1569 = vsel %vm225, %v542, %v1149
      %v1570 = vsel %vm225, %v543, %v1151
      %v1571 = vsel %vm225, %v544, %v1153
      %v1572 = vsel %vm1474, %v1540, %v1219
      %v1573 = vsel %vm1474, %v1541, %v1221
      %v1574 = vsel %vm1474, %v1542, %v1223
      %v1575 = vsel %vm1474, %v1543, %v1225
      %v1576 = vsel %vm1474, %v1544, %v1227
      %v1577 = vsel %vm1474, %v1545, %v1229
      %v1578 = vsel %vm1474, %v1546, %v1231
      %v1579 = vsel %vm1474, %v1547, %v1233
      %v1580 = vsel %vm1474, %v1548, %v1235
      %v1581 = vsel %vm1474, %v1549, %v1237
      %v1582 = vsel %vm1474, %v1550, %v1239
      %v1583 = vsel %vm1474, %v1551, %v1241
      %v1584 = vsel %vm1474, %v1552, %v1243
      %v1585 = vsel %vm1474, %v1553, %v1245
      %v1586 = vsel %vm1474, %v1554, %v1247
      %v1587 = vsel %vm1474, %v1555, %v1249
      %v1588 = vsel %vm1474, %v1556, %v1251
      %v1589 = vsel %vm1474, %v1557, %v1253
      %v1590 = vsel %vm1474, %v1558, %v1255
      %v1591 = vsel %vm1474, %v1559, %v1257
      %v1592 = vsel %vm1474, %v1560, %v1259
      %v1593 = vsel %vm1474, %v1561, %v1261
      %v1594 = vsel %vm1474, %v1562, %v1263
      %v1595 = vsel %vm1474, %v1563, %v1265
      %v1596 = vsel %vm1474, %v1564, %v1267
      %v1597 = vsel %vm1474, %v1565, %v1269
      %v1598 = vsel %vm1474, %v1566, %v1271
      %v1599 = vsel %vm1474, %v1567, %v1273
      %v1600 = vsel %vm1474, %v1568, %v1275
      %v1601 = vsel %vm1474, %v1569, %v1277
      %v1602 = vsel %vm1474, %v1570, %v1279
      %v1603 = vsel %vm1474, %v1571, %v1281
      %v1604 = vsel %vm1507, %v1572, %v1347
      %v1605 = vsel %vm1507, %v1573, %v1349
      %v1606 = vsel %vm1507, %v1574, %v1351
      %v1607 = vsel %vm1507, %v1575, %v1353
      %v1608 = vsel %vm1507, %v1576, %v1355
      %v1609 = vsel %vm1507, %v1577, %v1357
      %v1610 = vsel %vm1507, %v1578, %v1359
      %v1611 = vsel %vm1507, %v1579, %v1361
      %v1612 = vsel %vm1507, %v1580, %v1363
      %v1613 = vsel %vm1507, %v1581, %v1365
      %v1614 = vsel %vm1507, %v1582, %v1367
      %v1615 = vsel %vm1507, %v1583, %v1369
      %v1616 = vsel %vm1507, %v1584, %v1371
      %v1617 = vsel %vm1507, %v1585, %v1373
      %v1618 = vsel %vm1507, %v1586, %v1375
      %v1619 = vsel %vm1507, %v1587, %v1377
      %v1620 = vsel %vm1507, %v1588, %v1379
      %v1621 = vsel %vm1507, %v1589, %v1381
      %v1622 = vsel %vm1507, %v1590, %v1383
      %v1623 = vsel %vm1507, %v1591, %v1385
      %v1624 = vsel %vm1507, %v1592, %v1387
      %v1625 = vsel %vm1507, %v1593, %v1389
      %v1626 = vsel %vm1507, %v1594, %v1391
      %v1627 = vsel %vm1507, %v1595, %v1393
      %v1628 = vsel %vm1507, %v1596, %v1395
      %v1629 = vsel %vm1507, %v1597, %v1397
      %v1630 = vsel %vm1507, %v1598, %v1399
      %v1631 = vsel %vm1507, %v1599, %v1401
      %v1632 = vsel %vm1507, %v1600, %v1403
      %v1633 = vsel %vm1507, %v1601, %v1405
      %v1634 = vsel %vm1507, %v1602, %v1407
      %v1635 = vsel %vm1507, %v1603, %v1409
      %v1636 = vld [vmem:[%s1] sm:$0xff]
      %v1637 = vld [vmem:[%s1 + $0x8] sm:$0xff]
      %v1638 = vld [vmem:[%s1 + $0x10] sm:$0xff]
      %v1639 = vld [vmem:[%s1 + $0x18] sm:$0xff]
      %v1640 = vld [vmem:[%s1 + $0x20] sm:$0xff]
      %v1641 = vld [vmem:[%s1 + $0x28] sm:$0xff]
      %v1642 = vld [vmem:[%s1 + $0x30] sm:$0xff]
      %v1643 = vld [vmem:[%s1 + $0x38] sm:$0xff]
      %v1644 = vld [vmem:[%s1 + $0x40] sm:$0xff]
      %v1645 = vld [vmem:[%s1 + $0x48] sm:$0xff]
      %v1646 = vld [vmem:[%s1 + $0x50] sm:$0xff]
      %v1647 = vld [vmem:[%s1 + $0x58] sm:$0xff]
      %v1648 = vld [vmem:[%s1 + $0x60] sm:$0xff]
      %v1649 = vld [vmem:[%s1 + $0x68] sm:$0xff]
      %v1650 = vld [vmem:[%s1 + $0x70] sm:$0xff]
      %v1651 = vld [vmem:[%s1 + $0x78] sm:$0xff]
      %v1652 = vld [vmem:[%s1 + $0x80] sm:$0xff]
      %v1653 = vld [vmem:[%s1 + $0x88] sm:$0xff]
      %v1654 = vld [vmem:[%s1 + $0x90] sm:$0xff]
      %v1655 = vld [vmem:[%s1 + $0x98] sm:$0xff]
      %v1656 = vld [vmem:[%s1 + $0xa0] sm:$0xff]
      %v1657 = vld [vmem:[%s1 + $0xa8] sm:$0xff]
      %v1658 = vld [vmem:[%s1 + $0xb0] sm:$0xff]
      %v1659 = vld [vmem:[%s1 + $0xb8] sm:$0xff]
      %v1660 = vld [vmem:[%s1 + $0xc0] sm:$0xff]
      %v1661 = vld [vmem:[%s1 + $0xc8] sm:$0xff]
      %v1662 = vld [vmem:[%s1 + $0xd0] sm:$0xff]
      %v1663 = vld [vmem:[%s1 + $0xd8] sm:$0xff]
      %v1664 = vld [vmem:[%s1 + $0xe0] sm:$0xff]
      %v1665 = vld [vmem:[%s1 + $0xe8] sm:$0xff]
      %v1666 = vld [vmem:[%s1 + $0xf0] sm:$0xff]
      %v1667 = vld [vmem:[%s1 + $0xf8] sm:$0xff]
      %v1668 = vld [vmem:[%s1 + $0x100] sm:$0xff]
      %v1669 = vld [vmem:[%s1 + $0x108] sm:$0xff]
      %v1670 = vld [vmem:[%s1 + $0x110] sm:$0xff]
      %v1671 = vld [vmem:[%s1 + $0x118] sm:$0xff]
      %v1672 = vld [vmem:[%s2] sm:$0x1]
      %v1674 = vlaneseq
      %v1675 = vshrl.u32 %v1674, 7
      %v1676 = vsub.s32 0, %v1675
      %v1677 = vrot.slane %v1672, %v1676
      %v1680 = vsel %vm225, %v642, 0
      %v1683 = vsel %vm225, %v643, 0
      %v1686 = vsel %vm225, %v644, 0
      %v1689 = vsel %vm225, %v645, 0
      %v1692 = vsel %vm225, %v646, 0
      %v1695 = vsel %vm225, %v647, 0
      %v1698 = vsel %vm225, %v648, 0
      %v1701 = vsel %vm225, %v649, 0
      %v1704 = vsel %vm225, %v650, 0
      %v1707 = vsel %vm225, %v651, 0
      %v1710 = vsel %vm225, %v652, 0
      %v1713 = vsel %vm225, %v653, 0
      %v1716 = vsel %vm225, %v654, 0
      %v1719 = vsel %vm225, %v655, 0
      %v1722 = vsel %vm225, %v656, 0
      %v1725 = vsel %vm225, %v657, 0
      %v1728 = vsel %vm225, %v658, 0
      %v1731 = vsel %vm225, %v659, 0
      %v1734 = vsel %vm225, %v660, 0
      %v1737 = vsel %vm225, %v661, 0
      %v1740 = vsel %vm225, %v662, 0
      %v1743 = vsel %vm225, %v663, 0
      %v1746 = vsel %vm225, %v664, 0
      %v1749 = vsel %vm225, %v665, 0
      %v1752 = vsel %vm225, %v666, 0
      %v1755 = vsel %vm225, %v667, 0
      %v1758 = vsel %vm225, %v668, 0
      %v1761 = vsel %vm225, %v669, 0
      %v1764 = vsel %vm225, %v670, 0
      %v1767 = vsel %vm225, %v671, 0
      %v1770 = vsel %vm225, %v672, 0
      %v1773 = vsel %vm225, %v673, 0
      %1775 = vmatprep.subr.mxu0 0.0
      %1776 = vmatpush1.msra.mxu0 %v1636
      %1777 = vmatprep.subr.mxu0 0.0
      %1778 = vmatpush1.msra.mxu0 %v1637
      %1779 = vmatprep.subr.mxu0 0.0
      %1780 = vmatpush1.msra.mxu0 %v1638
      %1781 = vmatprep.subr.mxu0 0.0
      %1782 = vmatpush1.msra.mxu0 %v1639
      %1783 = vmatprep.subr.mxu0 0.0
      %1784 = vmatpush1.msra.mxu0 %v1640
      %1785 = vmatprep.subr.mxu0 0.0
      %1786 = vmatpush1.msra.mxu0 %v1641
      %1787 = vmatprep.subr.mxu0 0.0
      %1788 = vmatpush1.msra.mxu0 %v1642
      %1789 = vmatprep.subr.mxu0 0.0
      %1790 = vmatpush1.msra.mxu0 %v1643
      %1791 = vmatprep.subr.mxu0 0.0
      %1792 = vmatpush1.msra.mxu0 %v1644
      %1793 = vmatprep.subr.mxu0 0.0
      %1794 = vmatpush1.msra.mxu0 %v1645
      %1795 = vmatprep.subr.mxu0 0.0
      %1796 = vmatpush1.msra.mxu0 %v1646
      %1797 = vmatprep.subr.mxu0 0.0
      %1798 = vmatpush1.msra.mxu0 %v1647
      %1799 = vmatprep.subr.mxu0 0.0
      %1800 = vmatpush1.msra.mxu0 %v1648
      %1801 = vmatprep.subr.mxu0 0.0
      %1802 = vmatpush1.msra.mxu0 %v1649
      %1803 = vmatprep.subr.mxu0 0.0
      %1804 = vmatpush1.msra.mxu0 %v1650
      %1805 = vmatprep.subr.mxu0 0.0
      %1806 = vmatpush1.msra.mxu0 %v1651
      %1807 = vmatprep.subr.mxu0 0.0
      %1808 = vmatpush1.msra.mxu0 %v1652
      %1809 = vmatprep.subr.mxu0 0.0
      %1810 = vmatpush1.msra.mxu0 %v1653
      %1811 = vmatprep.subr.mxu0 0.0
      %1812 = vmatpush1.msra.mxu0 %v1654
      %1813 = vmatprep.subr.mxu0 0.0
      %1814 = vmatpush1.msra.mxu0 %v1655
      %1815 = vmatprep.subr.mxu0 0.0
      %1816 = vmatpush1.msra.mxu0 %v1656
      %1817 = vmatprep.subr.mxu0 0.0
      %1818 = vmatpush1.msra.mxu0 %v1657
      %1819 = vmatprep.subr.mxu0 0.0
      %1820 = vmatpush1.msra.mxu0 %v1658
      %1821 = vmatprep.subr.mxu0 0.0
      %1822 = vmatpush1.msra.mxu0 %v1659
      %1823 = vmatprep.subr.mxu0 0.0
      %1824 = vmatpush1.msra.mxu0 %v1660
      %1825 = vmatprep.subr.mxu0 0.0
      %1826 = vmatpush1.msra.mxu0 %v1661
      %1827 = vmatprep.subr.mxu0 0.0
      %1828 = vmatpush1.msra.mxu0 %v1662
      %1829 = vmatprep.subr.mxu0 0.0
      %1830 = vmatpush1.msra.mxu0 %v1663
      %1831 = vmatprep.subr.mxu0 0.0
      %1832 = vmatpush1.msra.mxu0 %v1664
      %1833 = vmatprep.subr.mxu0 0.0
      %1834 = vmatpush1.msra.mxu0 %v1665
      %1835 = vmatprep.subr.mxu0 0.0
      %1836 = vmatpush1.msra.mxu0 %v1666
      %1837 = vmatprep.subr.mxu0 0.0
      %1838 = vmatpush1.msra.mxu0 %v1667
      %1839 = vmatprep.mubr.f32.mxu0 %v1604
      %1840 = vmatmul.mubr.f32.gmra.mrb[0].mxu0 %v1508
      %v1841 = vpop.f32.mrb[0].mxu0
      %v1842 = vadd.f32 %v1677, %v1841
      %v1843 = vpop.f32.mrb[0].mxu0
      %1844 = vmatprep.mubr.f32.mxu0 %v1605
      %1845 = vmatmul.mubr.f32.gmra.mrb[0].mxu0 %v1509
      %v1846 = vpop.f32.mrb[0].mxu0
      %v1847 = vadd.f32 %v1677, %v1846
      %v1848 = vpop.f32.mrb[0].mxu0
      %1849 = vmatprep.mubr.f32.mxu0 %v1606
      %1850 = vmatmul.mubr.f32.gmra.mrb[0].mxu0 %v1510
      %v1851 = vpop.f32.mrb[0].mxu0
      %v1852 = vadd.f32 %v1677, %v1851
      %v1853 = vpop.f32.mrb[0].mxu0
      %1854 = vmatprep.mubr.f32.mxu0 %v1607
      %1855 = vmatmul.mubr.f32.gmra.mrb[0].mxu0 %v1511
      %v1856 = vpop.f32.mrb[0].mxu0
      %v1857 = vadd.f32 %v1677, %v1856
      %v1858 = vpop.f32.mrb[0].mxu0
      %1859 = vmatprep.mubr.f32.mxu0 %v1608
      %1860 = vmatmul.mubr.f32.gmra.mrb[0].mxu0 %v1512
      %v1861 = vpop.f32.mrb[0].mxu0
      %v1862 = vadd.f32 %v1677, %v1861
      %v1863 = vpop.f32.mrb[0].mxu0
      %1864 = vmatprep.mubr.f32.mxu0 %v1609
      %1865 = vmatmul.mubr.f32.gmra.mrb[0].mxu0 %v1513
      %v1866 = vpop.f32.mrb[0].mxu0
      %v1867 = vadd.f32 %v1677, %v1866
      %v1868 = vpop.f32.mrb[0].mxu0
      %1869 = vmatprep.mubr.f32.mxu0 %v1610
      %1870 = vmatmul.mubr.f32.gmra.mrb[0].mxu0 %v1514
      %v1871 = vpop.f32.mrb[0].mxu0
      %v1872 = vadd.f32 %v1677, %v1871
      %v1873 = vpop.f32.mrb[0].mxu0
      %1874 = vmatprep.mubr.f32.mxu0 %v1611
      %1875 = vmatmul.mubr.f32.gmra.mrb[0].mxu0 %v1515
      %v1876 = vpop.f32.mrb[0].mxu0
      %v1877 = vadd.f32 %v1677, %v1876
      %v1878 = vpop.f32.mrb[0].mxu0
      %1879 = vmatprep.mubr.f32.mxu0 %v1612
      %1880 = vmatmul.mubr.f32.gmra.mrb[0].mxu0 %v1516
      %v1881 = vpop.f32.mrb[0].mxu0
      %v1882 = vadd.f32 %v1677, %v1881
      %v1883 = vpop.f32.mrb[0].mxu0
      %1884 = vmatprep.mubr.f32.mxu0 %v1613
      %1885 = vmatmul.mubr.f32.gmra.mrb[0].mxu0 %v1517
      %v1886 = vpop.f32.mrb[0].mxu0
      %v1887 = vadd.f32 %v1677, %v1886
      %v1888 = vpop.f32.mrb[0].mxu0
      %1889 = vmatprep.mubr.f32.mxu0 %v1614
      %1890 = vmatmul.mubr.f32.gmra.mrb[0].mxu0 %v1518
      %v1891 = vpop.f32.mrb[0].mxu0
      %v1892 = vadd.f32 %v1677, %v1891
      %v1893 = vpop.f32.mrb[0].mxu0
      %1894 = vmatprep.mubr.f32.mxu0 %v1615
      %1895 = vmatmul.mubr.f32.gmra.mrb[0].mxu0 %v1519
      %v1896 = vpop.f32.mrb[0].mxu0
      %v1897 = vadd.f32 %v1677, %v1896
      %v1898 = vpop.f32.mrb[0].mxu0
      %1899 = vmatprep.mubr.f32.mxu0 %v1616
      %1900 = vmatmul.mubr.f32.gmra.mrb[0].mxu0 %v1520
      %v1901 = vpop.f32.mrb[0].mxu0
      %v1902 = vadd.f32 %v1677, %v1901
      %v1903 = vpop.f32.mrb[0].mxu0
      %1904 = vmatprep.mubr.f32.mxu0 %v1617
      %1905 = vmatmul.mubr.f32.gmra.mrb[0].mxu0 %v1521
      %v1906 = vpop.f32.mrb[0].mxu0
      %v1907 = vadd.f32 %v1677, %v1906
      %v1908 = vpop.f32.mrb[0].mxu0
      %1909 = vmatprep.mubr.f32.mxu0 %v1618
      %1910 = vmatmul.mubr.f32.gmra.mrb[0].mxu0 %v1522
      %v1911 = vpop.f32.mrb[0].mxu0
      %v1912 = vadd.f32 %v1677, %v1911
      %v1913 = vpop.f32.mrb[0].mxu0
      %1914 = vmatprep.mubr.f32.mxu0 %v1619
      %1915 = vmatmul.mubr.f32.gmra.mrb[0].mxu0 %v1523
      %v1916 = vpop.f32.mrb[0].mxu0
      %v1917 = vadd.f32 %v1677, %v1916
      %v1918 = vpop.f32.mrb[0].mxu0
      %1919 = vmatprep.mubr.f32.mxu0 %v1620
      %1920 = vmatmul.mubr.f32.gmra.mrb[0].mxu0 %v1524
      %v1921 = vpop.f32.mrb[0].mxu0
      %v1922 = vadd.f32 %v1677, %v1921
      %v1923 = vpop.f32.mrb[0].mxu0
      %1924 = vmatprep.mubr.f32.mxu0 %v1621
      %1925 = vmatmul.mubr.f32.gmra.mrb[0].mxu0 %v1525
      %v1926 = vpop.f32.mrb[0].mxu0
      %v1927 = vadd.f32 %v1677, %v1926
      %v1928 = vpop.f32.mrb[0].mxu0
      %1929 = vmatprep.mubr.f32.mxu0 %v1622
      %1930 = vmatmul.mubr.f32.gmra.mrb[0].mxu0 %v1526
      %v1931 = vpop.f32.mrb[0].mxu0
      %v1932 = vadd.f32 %v1677, %v1931
      %v1933 = vpop.f32.mrb[0].mxu0
      %1934 = vmatprep.mubr.f32.mxu0 %v1623
      %1935 = vmatmul.mubr.f32.gmra.mrb[0].mxu0 %v1527
      %v1936 = vpop.f32.mrb[0].mxu0
      %v1937 = vadd.f32 %v1677, %v1936
      %v1938 = vpop.f32.mrb[0].mxu0
      %1939 = vmatprep.mubr.f32.mxu0 %v1624
      %1940 = vmatmul.mubr.f32.gmra.mrb[0].mxu0 %v1528
      %v1941 = vpop.f32.mrb[0].mxu0
      %v1942 = vadd.f32 %v1677, %v1941
      %v1943 = vpop.f32.mrb[0].mxu0
      %1944 = vmatprep.mubr.f32.mxu0 %v1625
      %1945 = vmatmul.mubr.f32.gmra.mrb[0].mxu0 %v1529
      %v1946 = vpop.f32.mrb[0].mxu0
      %v1947 = vadd.f32 %v1677, %v1946
      %v1948 = vpop.f32.mrb[0].mxu0
      %1949 = vmatprep.mubr.f32.mxu0 %v1626
      %1950 = vmatmul.mubr.f32.gmra.mrb[0].mxu0 %v1530
      %v1951 = vpop.f32.mrb[0].mxu0
      %v1952 = vadd.f32 %v1677, %v1951
      %v1953 = vpop.f32.mrb[0].mxu0
      %1954 = vmatprep.mubr.f32.mxu0 %v1627
      %1955 = vmatmul.mubr.f32.gmra.mrb[0].mxu0 %v1531
      %v1956 = vpop.f32.mrb[0].mxu0
      %v1957 = vadd.f32 %v1677, %v1956
      %v1958 = vpop.f32.mrb[0].mxu0
      %1959 = vmatprep.mubr.f32.mxu0 %v1628
      %1960 = vmatmul.mubr.f32.gmra.mrb[0].mxu0 %v1532
      %v1961 = vpop.f32.mrb[0].mxu0
      %v1962 = vadd.f32 %v1677, %v1961
      %v1963 = vpop.f32.mrb[0].mxu0
      %1964 = vmatprep.mubr.f32.mxu0 %v1629
      %1965 = vmatmul.mubr.f32.gmra.mrb[0].mxu0 %v1533
      %v1966 = vpop.f32.mrb[0].mxu0
      %v1967 = vadd.f32 %v1677, %v1966
      %v1968 = vpop.f32.mrb[0].mxu0
      %1969 = vmatprep.mubr.f32.mxu0 %v1630
      %1970 = vmatmul.mubr.f32.gmra.mrb[0].mxu0 %v1534
      %v1971 = vpop.f32.mrb[0].mxu0
      %v1972 = vadd.f32 %v1677, %v1971
      %v1973 = vpop.f32.mrb[0].mxu0
      %1974 = vmatprep.mubr.f32.mxu0 %v1631
      %1975 = vmatmul.mubr.f32.gmra.mrb[0].mxu0 %v1535
      %v1976 = vpop.f32.mrb[0].mxu0
      %v1977 = vadd.f32 %v1677, %v1976
      %v1978 = vpop.f32.mrb[0].mxu0
      %1979 = vmatprep.mubr.f32.mxu0 %v1632
      %1980 = vmatmul.mubr.f32.gmra.mrb[0].mxu0 %v1536
      %v1981 = vpop.f32.mrb[0].mxu0
      %v1982 = vadd.f32 %v1677, %v1981
      %v1983 = vpop.f32.mrb[0].mxu0
      %1984 = vmatprep.mubr.f32.mxu0 %v1633
      %1985 = vmatmul.mubr.f32.gmra.mrb[0].mxu0 %v1537
      %v1986 = vpop.f32.mrb[0].mxu0
      %v1987 = vadd.f32 %v1677, %v1986
      %v1988 = vpop.f32.mrb[0].mxu0
      %1989 = vmatprep.mubr.f32.mxu0 %v1634
      %1990 = vmatmul.mubr.f32.gmra.mrb[0].mxu0 %v1538
      %v1991 = vpop.f32.mrb[0].mxu0
      %v1992 = vadd.f32 %v1677, %v1991
      %v1993 = vpop.f32.mrb[0].mxu0
      %1994 = vmatprep.mubr.f32.mxu0 %v1635
      %1995 = vmatmul.mubr.f32.gmra.mrb[0].mxu0 %v1539
      %v1996 = vpop.f32.mrb[0].mxu0
      %v1997 = vadd.f32 %v1677, %v1996
      %v1998 = vpop.f32.mrb[0].mxu0
      %1999 = vdwg.mxu0
      %2000 = vmatprep.subr.mxu0 0.0
      %2001 = vmatpush1.msra.mxu0 %v1668
      %2002 = vmatprep.subr.mxu0 0.0
      %2003 = vmatpush1.msra.mxu0 %v1669
      %2004 = vmatprep.subr.mxu0 0.0
      %2005 = vmatpush1.msra.mxu0 %v1670
      %2006 = vmatprep.subr.mxu0 0.0
      %2007 = vmatpush1.msra.mxu0 %v1671
      %2008 = vmatprep.subr.mxu0 0.0
      %2009 = vmatpush1.msra.mxu0 0.0
      %2010 = vmatprep.subr.mxu0 0.0
      %2011 = vmatpush1.msra.mxu0 0.0
      %2012 = vmatprep.subr.mxu0 0.0
      %2013 = vmatpush1.msra.mxu0 0.0
      %2014 = vmatprep.subr.mxu0 0.0
      %2015 = vmatpush1.msra.mxu0 0.0
      %2016 = vmatprep.subr.mxu0 0.0
      %2017 = vmatpush1.msra.mxu0 0.0
      %2018 = vmatprep.subr.mxu0 0.0
      %2019 = vmatpush1.msra.mxu0 0.0
      %2020 = vmatprep.subr.mxu0 0.0
      %2021 = vmatpush1.msra.mxu0 0.0
      %2022 = vmatprep.subr.mxu0 0.0
      %2023 = vmatpush1.msra.mxu0 0.0
      %2024 = vmatprep.subr.mxu0 0.0
      %2025 = vmatpush1.msra.mxu0 0.0
      %2026 = vmatprep.subr.mxu0 0.0
      %2027 = vmatpush1.msra.mxu0 0.0
      %2028 = vmatprep.subr.mxu0 0.0
      %2029 = vmatpush1.msra.mxu0 0.0
      %2030 = vmatprep.subr.mxu0 0.0
      %2031 = vmatpush1.msra.mxu0 0.0
      %2032 = vmatprep.subr.mxu0 0.0
      %2033 = vmatpush1.msra.mxu0 0.0
      %2034 = vmatprep.subr.mxu0 0.0
      %2035 = vmatpush1.msra.mxu0 0.0
      %2036 = vmatprep.subr.mxu0 0.0
      %2037 = vmatpush1.msra.mxu0 0.0
      %2038 = vmatprep.subr.mxu0 0.0
      %2039 = vmatpush1.msra.mxu0 0.0
      %2040 = vmatprep.subr.mxu0 0.0
      %2041 = vmatpush1.msra.mxu0 0.0
      %2042 = vmatprep.subr.mxu0 0.0
      %2043 = vmatpush1.msra.mxu0 0.0
      %2044 = vmatprep.subr.mxu0 0.0
      %2045 = vmatpush1.msra.mxu0 0.0
      %2046 = vmatprep.subr.mxu0 0.0
      %2047 = vmatpush1.msra.mxu0 0.0
      %2048 = vmatprep.subr.mxu0 0.0
      %2049 = vmatpush1.msra.mxu0 0.0
      %2050 = vmatprep.subr.mxu0 0.0
      %2051 = vmatpush1.msra.mxu0 0.0
      %2052 = vmatprep.subr.mxu0 0.0
      %2053 = vmatpush1.msra.mxu0 0.0
      %2054 = vmatprep.subr.mxu0 0.0
      %2055 = vmatpush1.msra.mxu0 0.0
      %2056 = vmatprep.subr.mxu0 0.0
      %2057 = vmatpush1.msra.mxu0 0.0
      %2058 = vmatprep.subr.mxu0 0.0
      %2059 = vmatpush1.msra.mxu0 0.0
      %2060 = vmatprep.subr.mxu0 0.0
      %2061 = vmatpush1.msra.mxu0 0.0
      %2062 = vmatprep.subr.mxu0 0.0
      %2063 = vmatpush1.msra.mxu0 0.0
      %2064 = vmatprep.mubr.f32.mxu0 0.0
      %2065 = vmatmul.mubr.f32.gmra.mrb[0].mxu0 %v1680
      %v2066 = vpop.f32.mrb[0].mxu0
      %v2067 = vadd.f32 %v1842, %v2066
      %v2068 = vpop.f32.mrb[0].mxu0
      %2069 = vmatprep.mubr.f32.mxu0 0.0
      %2070 = vmatmul.mubr.f32.gmra.mrb[0].mxu0 %v1683
      %v2071 = vpop.f32.mrb[0].mxu0
      %v2072 = vadd.f32 %v1847, %v2071
      %v2073 = vpop.f32.mrb[0].mxu0
      %2074 = vmatprep.mubr.f32.mxu0 0.0
      %2075 = vmatmul.mubr.f32.gmra.mrb[0].mxu0 %v1686
      %v2076 = vpop.f32.mrb[0].mxu0
      %v2077 = vadd.f32 %v1852, %v2076
      %v2078 = vpop.f32.mrb[0].mxu0
      %2079 = vmatprep.mubr.f32.mxu0 0.0
      %2080 = vmatmul.mubr.f32.gmra.mrb[0].mxu0 %v1689
      %v2081 = vpop.f32.mrb[0].mxu0
      %v2082 = vadd.f32 %v1857, %v2081
      %v2083 = vpop.f32.mrb[0].mxu0
      %2084 = vmatprep.mubr.f32.mxu0 0.0
      %2085 = vmatmul.mubr.f32.gmra.mrb[0].mxu0 %v1692
      %v2086 = vpop.f32.mrb[0].mxu0
      %v2087 = vadd.f32 %v1862, %v2086
      %v2088 = vpop.f32.mrb[0].mxu0
      %2089 = vmatprep.mubr.f32.mxu0 0.0
      %2090 = vmatmul.mubr.f32.gmra.mrb[0].mxu0 %v1695
      %v2091 = vpop.f32.mrb[0].mxu0
      %v2092 = vadd.f32 %v1867, %v2091
      %v2093 = vpop.f32.mrb[0].mxu0
      %2094 = vmatprep.mubr.f32.mxu0 0.0
      %2095 = vmatmul.mubr.f32.gmra.mrb[0].mxu0 %v1698
      %v2096 = vpop.f32.mrb[0].mxu0
      %v2097 = vadd.f32 %v1872, %v2096
      %v2098 = vpop.f32.mrb[0].mxu0
      %2099 = vmatprep.mubr.f32.mxu0 0.0
      %2100 = vmatmul.mubr.f32.gmra.mrb[0].mxu0 %v1701
      %v2101 = vpop.f32.mrb[0].mxu0
      %v2102 = vadd.f32 %v1877, %v2101
      %v2103 = vpop.f32.mrb[0].mxu0
      %2104 = vmatprep.mubr.f32.mxu0 0.0
      %2105 = vmatmul.mubr.f32.gmra.mrb[0].mxu0 %v1704
      %v2106 = vpop.f32.mrb[0].mxu0
      %v2107 = vadd.f32 %v1882, %v2106
      %v2108 = vpop.f32.mrb[0].mxu0
      %2109 = vmatprep.mubr.f32.mxu0 0.0
      %2110 = vmatmul.mubr.f32.gmra.mrb[0].mxu0 %v1707
      %v2111 = vpop.f32.mrb[0].mxu0
      %v2112 = vadd.f32 %v1887, %v2111
      %v2113 = vpop.f32.mrb[0].mxu0
      %2114 = vmatprep.mubr.f32.mxu0 0.0
      %2115 = vmatmul.mubr.f32.gmra.mrb[0].mxu0 %v1710
      %v2116 = vpop.f32.mrb[0].mxu0
      %v2117 = vadd.f32 %v1892, %v2116
      %v2118 = vpop.f32.mrb[0].mxu0
      %2119 = vmatprep.mubr.f32.mxu0 0.0
      %2120 = vmatmul.mubr.f32.gmra.mrb[0].mxu0 %v1713
      %v2121 = vpop.f32.mrb[0].mxu0
      %v2122 = vadd.f32 %v1897, %v2121
      %v2123 = vpop.f32.mrb[0].mxu0
      %2124 = vmatprep.mubr.f32.mxu0 0.0
      %2125 = vmatmul.mubr.f32.gmra.mrb[0].mxu0 %v1716
      %v2126 = vpop.f32.mrb[0].mxu0
      %v2127 = vadd.f32 %v1902, %v2126
      %v2128 = vpop.f32.mrb[0].mxu0
      %2129 = vmatprep.mubr.f32.mxu0 0.0
      %2130 = vmatmul.mubr.f32.gmra.mrb[0].mxu0 %v1719
      %v2131 = vpop.f32.mrb[0].mxu0
      %v2132 = vadd.f32 %v1907, %v2131
      %v2133 = vpop.f32.mrb[0].mxu0
      %2134 = vmatprep.mubr.f32.mxu0 0.0
      %2135 = vmatmul.mubr.f32.gmra.mrb[0].mxu0 %v1722
      %v2136 = vpop.f32.mrb[0].mxu0
      %v2137 = vadd.f32 %v1912, %v2136
      %v2138 = vpop.f32.mrb[0].mxu0
      %2139 = vmatprep.mubr.f32.mxu0 0.0
      %2140 = vmatmul.mubr.f32.gmra.mrb[0].mxu0 %v1725
      %v2141 = vpop.f32.mrb[0].mxu0
      %v2142 = vadd.f32 %v1917, %v2141
      %v2143 = vpop.f32.mrb[0].mxu0
      %2144 = vmatprep.mubr.f32.mxu0 0.0
      %2145 = vmatmul.mubr.f32.gmra.mrb[0].mxu0 %v1728
      %v2146 = vpop.f32.mrb[0].mxu0
      %v2147 = vadd.f32 %v1922, %v2146
      %v2148 = vpop.f32.mrb[0].mxu0
      %2149 = vmatprep.mubr.f32.mxu0 0.0
      %2150 = vmatmul.mubr.f32.gmra.mrb[0].mxu0 %v1731
      %v2151 = vpop.f32.mrb[0].mxu0
      %v2152 = vadd.f32 %v1927, %v2151
      %v2153 = vpop.f32.mrb[0].mxu0
      %2154 = vmatprep.mubr.f32.mxu0 0.0
      %2155 = vmatmul.mubr.f32.gmra.mrb[0].mxu0 %v1734
      %v2156 = vpop.f32.mrb[0].mxu0
      %v2157 = vadd.f32 %v1932, %v2156
      %v2158 = vpop.f32.mrb[0].mxu0
      %2159 = vmatprep.mubr.f32.mxu0 0.0
      %2160 = vmatmul.mubr.f32.gmra.mrb[0].mxu0 %v1737
      %v2161 = vpop.f32.mrb[0].mxu0
      %v2162 = vadd.f32 %v1937, %v2161
      %v2163 = vpop.f32.mrb[0].mxu0
      %2164 = vmatprep.mubr.f32.mxu0 0.0
      %2165 = vmatmul.mubr.f32.gmra.mrb[0].mxu0 %v1740
      %v2166 = vpop.f32.mrb[0].mxu0
      %v2167 = vadd.f32 %v1942, %v2166
      %v2168 = vpop.f32.mrb[0].mxu0
      %2169 = vmatprep.mubr.f32.mxu0 0.0
      %2170 = vmatmul.mubr.f32.gmra.mrb[0].mxu0 %v1743
      %v2171 = vpop.f32.mrb[0].mxu0
      %v2172 = vadd.f32 %v1947, %v2171
      %v2173 = vpop.f32.mrb[0].mxu0
      %2174 = vmatprep.mubr.f32.mxu0 0.0
      %2175 = vmatmul.mubr.f32.gmra.mrb[0].mxu0 %v1746
      %v2176 = vpop.f32.mrb[0].mxu0
      %v2177 = vadd.f32 %v1952, %v2176
      %v2178 = vpop.f32.mrb[0].mxu0
      %2179 = vmatprep.mubr.f32.mxu0 0.0
      %2180 = vmatmul.mubr.f32.gmra.mrb[0].mxu0 %v1749
      %v2181 = vpop.f32.mrb[0].mxu0
      %v2182 = vadd.f32 %v1957, %v2181
      %v2183 = vpop.f32.mrb[0].mxu0
      %2184 = vmatprep.mubr.f32.mxu0 0.0
      %2185 = vmatmul.mubr.f32.gmra.mrb[0].mxu0 %v1752
      %v2186 = vpop.f32.mrb[0].mxu0
      %v2187 = vadd.f32 %v1962, %v2186
      %v2188 = vpop.f32.mrb[0].mxu0
      %2189 = vmatprep.mubr.f32.mxu0 0.0
      %2190 = vmatmul.mubr.f32.gmra.mrb[0].mxu0 %v1755
      %v2191 = vpop.f32.mrb[0].mxu0
      %v2192 = vadd.f32 %v1967, %v2191
      %v2193 = vpop.f32.mrb[0].mxu0
      %2194 = vmatprep.mubr.f32.mxu0 0.0
      %2195 = vmatmul.mubr.f32.gmra.mrb[0].mxu0 %v1758
      %v2196 = vpop.f32.mrb[0].mxu0
      %v2197 = vadd.f32 %v1972, %v2196
      %v2198 = vpop.f32.mrb[0].mxu0
      %2199 = vmatprep.mubr.f32.mxu0 0.0
      %2200 = vmatmul.mubr.f32.gmra.mrb[0].mxu0 %v1761
      %v2201 = vpop.f32.mrb[0].mxu0
      %v2202 = vadd.f32 %v1977, %v2201
      %v2203 = vpop.f32.mrb[0].mxu0
      %2204 = vmatprep.mubr.f32.mxu0 0.0
      %2205 = vmatmul.mubr.f32.gmra.mrb[0].mxu0 %v1764
      %v2206 = vpop.f32.mrb[0].mxu0
      %v2207 = vadd.f32 %v1982, %v2206
      %v2208 = vpop.f32.mrb[0].mxu0
      %2209 = vmatprep.mubr.f32.mxu0 0.0
      %2210 = vmatmul.mubr.f32.gmra.mrb[0].mxu0 %v1767
      %v2211 = vpop.f32.mrb[0].mxu0
      %v2212 = vadd.f32 %v1987, %v2211
      %v2213 = vpop.f32.mrb[0].mxu0
      %2214 = vmatprep.mubr.f32.mxu0 0.0
      %2215 = vmatmul.mubr.f32.gmra.mrb[0].mxu0 %v1770
      %v2216 = vpop.f32.mrb[0].mxu0
      %v2217 = vadd.f32 %v1992, %v2216
      %v2218 = vpop.f32.mrb[0].mxu0
      %2219 = vmatprep.mubr.f32.mxu0 0.0
      %2220 = vmatmul.mubr.f32.gmra.mrb[0].mxu0 %v1773
      %v2221 = vpop.f32.mrb[0].mxu0
      %v2222 = vadd.f32 %v1997, %v2221
      %v2223 = vpop.f32.mrb[0].mxu0
      %2224 = vdwg.mxu0
      %v2225 = vmax.f32 %v2067, 0.0
      %v2226 = vmax.f32 %v2072, 0.0
      %v2227 = vmax.f32 %v2077, 0.0
      %v2228 = vmax.f32 %v2082, 0.0
      %v2229 = vmax.f32 %v2087, 0.0
      %v2230 = vmax.f32 %v2092, 0.0
      %v2231 = vmax.f32 %v2097, 0.0
      %v2232 = vmax.f32 %v2102, 0.0
      %v2233 = vmax.f32 %v2107, 0.0
      %v2234 = vmax.f32 %v2112, 0.0
      %v2235 = vmax.f32 %v2117, 0.0
      %v2236 = vmax.f32 %v2122, 0.0
      %v2237 = vmax.f32 %v2127, 0.0
      %v2238 = vmax.f32 %v2132, 0.0
      %v2239 = vmax.f32 %v2137, 0.0
      %v2240 = vmax.f32 %v2142, 0.0
      %v2241 = vmax.f32 %v2147, 0.0
      %v2242 = vmax.f32 %v2152, 0.0
      %v2243 = vmax.f32 %v2157, 0.0
      %v2244 = vmax.f32 %v2162, 0.0
      %v2245 = vmax.f32 %v2167, 0.0
      %v2246 = vmax.f32 %v2172, 0.0
      %v2247 = vmax.f32 %v2177, 0.0
      %v2248 = vmax.f32 %v2182, 0.0
      %v2249 = vmax.f32 %v2187, 0.0
      %v2250 = vmax.f32 %v2192, 0.0
      %v2251 = vmax.f32 %v2197, 0.0
      %v2252 = vmax.f32 %v2202, 0.0
      %v2253 = vmax.f32 %v2207, 0.0
      %v2254 = vmax.f32 %v2212, 0.0
      %v2255 = vmax.f32 %v2217, 0.0
      %v2256 = vmax.f32 %v2222, 0.0
      %2257 = vst.msk [vmem:[%s352 + $0x1] sm:$0xff] %vm225, %v2225
      %2258 = vst.msk [vmem:[%s352 + $0x9] sm:$0xff] %vm225, %v2226
      %2259 = vst.msk [vmem:[%s352 + $0x19] sm:$0xff] %vm225, %v2227
      %2260 = vst.msk [vmem:[%s352 + $0x21] sm:$0xff] %vm225, %v2228
      %2261 = vst.msk [vmem:[%s352 + $0x31] sm:$0xff] %vm225, %v2229
      %2262 = vst.msk [vmem:[%s352 + $0x39] sm:$0xff] %vm225, %v2230
      %2263 = vst.msk [vmem:[%s352 + $0x49] sm:$0xff] %vm225, %v2231
      %2264 = vst.msk [vmem:[%s352 + $0x51] sm:$0xff] %vm225, %v2232
      %2265 = vst.msk [vmem:[%s352 + $0x61] sm:$0xff] %vm225, %v2233
      %2266 = vst.msk [vmem:[%s352 + $0x69] sm:$0xff] %vm225, %v2234
      %2267 = vst.msk [vmem:[%s352 + $0x79] sm:$0xff] %vm225, %v2235
      %2268 = vst.msk [vmem:[%s352 + $0x81] sm:$0xff] %vm225, %v2236
      %2269 = vst.msk [vmem:[%s352 + $0x91] sm:$0xff] %vm225, %v2237
      %2270 = vst.msk [vmem:[%s352 + $0x99] sm:$0xff] %vm225, %v2238
      %2271 = vst.msk [vmem:[%s352 + $0xa9] sm:$0xff] %vm225, %v2239
      %2272 = vst.msk [vmem:[%s352 + $0xb1] sm:$0xff] %vm225, %v2240
      %2273 = vst.msk [vmem:[%s352 + $0xc1] sm:$0xff] %vm225, %v2241
      %2274 = vst.msk [vmem:[%s352 + $0xc9] sm:$0xff] %vm225, %v2242
      %2275 = vst.msk [vmem:[%s352 + $0xd9] sm:$0xff] %vm225, %v2243
      %2276 = vst.msk [vmem:[%s352 + $0xe1] sm:$0xff] %vm225, %v2244
      %2277 = vst.msk [vmem:[%s352 + $0xf1] sm:$0xff] %vm225, %v2245
      %2278 = vst.msk [vmem:[%s352 + $0xf9] sm:$0xff] %vm225, %v2246
      %2279 = vst.msk [vmem:[%s352 + $0x109] sm:$0xff] %vm225, %v2247
      %2280 = vst.msk [vmem:[%s352 + $0x111] sm:$0xff] %vm225, %v2248
      %2281 = vst.msk [vmem:[%s352 + $0x121] sm:$0xff] %vm225, %v2249
      %2282 = vst.msk [vmem:[%s352 + $0x129] sm:$0xff] %vm225, %v2250
      %2283 = vst.msk [vmem:[%s352 + $0x139] sm:$0xff] %vm225, %v2251
      %2284 = vst.msk [vmem:[%s352 + $0x141] sm:$0xff] %vm225, %v2252
      %2285 = vst.msk [vmem:[%s352 + $0x151] sm:$0xff] %vm225, %v2253
      %2286 = vst.msk [vmem:[%s352 + $0x159] sm:$0xff] %vm225, %v2254
      %2287 = vst.msk [vmem:[%s352 + $0x169] sm:$0xff] %vm225, %v2255
      %2288 = vst.msk [vmem:[%s352 + $0x171] sm:$0xff] %vm225, %v2256
      %v2289 = vld [vmem:[#allocation2] sm:$0xff]
      %v2290 = vld [vmem:[#allocation2 + $0x8] sm:$0xff]
      %v2291 = vld [vmem:[#allocation2 + $0x18] sm:$0xff]
      %v2292 = vld [vmem:[#allocation2 + $0x20] sm:$0xff]
      %v2293 = vld [vmem:[#allocation2 + $0x30] sm:$0xff]
      %v2294 = vld [vmem:[#allocation2 + $0x38] sm:$0xff]
      %v2295 = vld [vmem:[#allocation2 + $0x48] sm:$0xff]
      %v2296 = vld [vmem:[#allocation2 + $0x50] sm:$0xff]
      %v2297 = vld [vmem:[#allocation2 + $0x60] sm:$0xff]
      %v2298 = vld [vmem:[#allocation2 + $0x68] sm:$0xff]
      %v2299 = vld [vmem:[#allocation2 + $0x78] sm:$0xff]
      %v2300 = vld [vmem:[#allocation2 + $0x80] sm:$0xff]
      %v2301 = vld [vmem:[#allocation2 + $0x90] sm:$0xff]
      %v2302 = vld [vmem:[#allocation2 + $0x98] sm:$0xff]
      %v2303 = vld [vmem:[#allocation2 + $0xa8] sm:$0xff]
      %v2304 = vld [vmem:[#allocation2 + $0xb0] sm:$0xff]
      %v2305 = vld [vmem:[#allocation2 + $0xc0] sm:$0xff]
      %v2306 = vld [vmem:[#allocation2 + $0xc8] sm:$0xff]
      %v2307 = vld [vmem:[#allocation2 + $0xd8] sm:$0xff]
      %v2308 = vld [vmem:[#allocation2 + $0xe0] sm:$0xff]
      %v2309 = vld [vmem:[#allocation2 + $0xf0] sm:$0xff]
      %v2310 = vld [vmem:[#allocation2 + $0xf8] sm:$0xff]
      %v2311 = vld [vmem:[#allocation2 + $0x108] sm:$0xff]
      %v2312 = vld [vmem:[#allocation2 + $0x110] sm:$0xff]
      %v2313 = vld [vmem:[#allocation2 + $0x120] sm:$0xff]
      %v2314 = vld [vmem:[#allocation2 + $0x128] sm:$0xff]
      %v2315 = vld [vmem:[#allocation2 + $0x138] sm:$0xff]
      %v2316 = vld [vmem:[#allocation2 + $0x140] sm:$0xff]
      %v2317 = vld [vmem:[#allocation2 + $0x150] sm:$0xff]
      %v2318 = vld [vmem:[#allocation2 + $0x158] sm:$0xff]
      %v2319 = vld [vmem:[#allocation2 + $0x168] sm:$0xff]
      %v2320 = vld [vmem:[#allocation2 + $0x170] sm:$0xff]
      %v2321 = vld [vmem:[#allocation2 + $0x1] sm:$0xff]
      %v2322 = vld [vmem:[#allocation2 + $0x9] sm:$0xff]
      %v2323 = vld [vmem:[#allocation2 + $0x19] sm:$0xff]
      %v2324 = vld [vmem:[#allocation2 + $0x21] sm:$0xff]
      %v2325 = vld [vmem:[#allocation2 + $0x31] sm:$0xff]
      %v2326 = vld [vmem:[#allocation2 + $0x39] sm:$0xff]
      %v2327 = vld [vmem:[#allocation2 + $0x49] sm:$0xff]
      %v2328 = vld [vmem:[#allocation2 + $0x51] sm:$0xff]
      %v2329 = vld [vmem:[#allocation2 + $0x61] sm:$0xff]
      %v2330 = vld [vmem:[#allocation2 + $0x69] sm:$0xff]
      %v2331 = vld [vmem:[#allocation2 + $0x79] sm:$0xff]
      %v2332 = vld [vmem:[#allocation2 + $0x81] sm:$0xff]
      %v2333 = vld [vmem:[#allocation2 + $0x91] sm:$0xff]
      %v2334 = vld [vmem:[#allocation2 + $0x99] sm:$0xff]
      %v2335 = vld [vmem:[#allocation2 + $0xa9] sm:$0xff]
      %v2336 = vld [vmem:[#allocation2 + $0xb1] sm:$0xff]
      %v2337 = vld [vmem:[#allocation2 + $0xc1] sm:$0xff]
      %v2338 = vld [vmem:[#allocation2 + $0xc9] sm:$0xff]
      %v2339 = vld [vmem:[#allocation2 + $0xd9] sm:$0xff]
      %v2340 = vld [vmem:[#allocation2 + $0xe1] sm:$0xff]
      %v2341 = vld [vmem:[#allocation2 + $0xf1] sm:$0xff]
      %v2342 = vld [vmem:[#allocation2 + $0xf9] sm:$0xff]
      %v2343 = vld [vmem:[#allocation2 + $0x109] sm:$0xff]
      %v2344 = vld [vmem:[#allocation2 + $0x111] sm:$0xff]
      %v2345 = vld [vmem:[#allocation2 + $0x121] sm:$0xff]
      %v2346 = vld [vmem:[#allocation2 + $0x129] sm:$0xff]
      %v2347 = vld [vmem:[#allocation2 + $0x139] sm:$0xff]
      %v2348 = vld [vmem:[#allocation2 + $0x141] sm:$0xff]
      %v2349 = vld [vmem:[#allocation2 + $0x151] sm:$0xff]
      %v2350 = vld [vmem:[#allocation2 + $0x159] sm:$0xff]
      %v2351 = vld [vmem:[#allocation2 + $0x169] sm:$0xff]
      %v2352 = vld [vmem:[#allocation2 + $0x171] sm:$0xff]
      %v2353 = vld [vmem:[#allocation2 + $0x2] sm:$0xff]
      %v2354 = vld [vmem:[#allocation2 + $0xa] sm:$0xff]
      %v2355 = vld [vmem:[#allocation2 + $0x1a] sm:$0xff]
      %v2356 = vld [vmem:[#allocation2 + $0x22] sm:$0xff]
      %v2357 = vld [vmem:[#allocation2 + $0x32] sm:$0xff]
      %v2358 = vld [vmem:[#allocation2 + $0x3a] sm:$0xff]
      %v2359 = vld [vmem:[#allocation2 + $0x4a] sm:$0xff]
      %v2360 = vld [vmem:[#allocation2 + $0x52] sm:$0xff]
      %v2361 = vld [vmem:[#allocation2 + $0x62] sm:$0xff]
      %v2362 = vld [vmem:[#allocation2 + $0x6a] sm:$0xff]
      %v2363 = vld [vmem:[#allocation2 + $0x7a] sm:$0xff]
      %v2364 = vld [vmem:[#allocation2 + $0x82] sm:$0xff]
      %v2365 = vld [vmem:[#allocation2 + $0x92] sm:$0xff]
      %v2366 = vld [vmem:[#allocation2 + $0x9a] sm:$0xff]
      %v2367 = vld [vmem:[#allocation2 + $0xaa] sm:$0xff]
      %v2368 = vld [vmem:[#allocation2 + $0xb2] sm:$0xff]
      %v2369 = vld [vmem:[#allocation2 + $0xc2] sm:$0xff]
      %v2370 = vld [vmem:[#allocation2 + $0xca] sm:$0xff]
      %v2371 = vld [vmem:[#allocation2 + $0xda] sm:$0xff]
      %v2372 = vld [vmem:[#allocation2 + $0xe2] sm:$0xff]
      %v2373 = vld [vmem:[#allocation2 + $0xf2] sm:$0xff]
      %v2374 = vld [vmem:[#allocation2 + $0xfa] sm:$0xff]
      %v2375 = vld [vmem:[#allocation2 + $0x10a] sm:$0xff]
      %v2376 = vld [vmem:[#allocation2 + $0x112] sm:$0xff]
      %v2377 = vld [vmem:[#allocation2 + $0x122] sm:$0xff]
      %v2378 = vld [vmem:[#allocation2 + $0x12a] sm:$0xff]
      %v2379 = vld [vmem:[#allocation2 + $0x13a] sm:$0xff]
      %v2380 = vld [vmem:[#allocation2 + $0x142] sm:$0xff]
      %v2381 = vld [vmem:[#allocation2 + $0x152] sm:$0xff]
      %v2382 = vld [vmem:[#allocation2 + $0x15a] sm:$0xff]
      %v2383 = vld [vmem:[#allocation2 + $0x16a] sm:$0xff]
      %v2384 = vld [vmem:[#allocation2 + $0x172] sm:$0xff]
      %v2385 = vld [vmem:[%s352] sm:$0xff]
      %v2386 = vld [vmem:[%s352 + $0x8] sm:$0xff]
      %v2387 = vld [vmem:[%s352 + $0x18] sm:$0xff]
      %v2388 = vld [vmem:[%s352 + $0x20] sm:$0xff]
      %v2389 = vld [vmem:[%s352 + $0x30] sm:$0xff]
      %v2390 = vld [vmem:[%s352 + $0x38] sm:$0xff]
      %v2391 = vld [vmem:[%s352 + $0x48] sm:$0xff]
      %v2392 = vld [vmem:[%s352 + $0x50] sm:$0xff]
      %v2393 = vld [vmem:[%s352 + $0x60] sm:$0xff]
      %v2394 = vld [vmem:[%s352 + $0x68] sm:$0xff]
      %v2395 = vld [vmem:[%s352 + $0x78] sm:$0xff]
      %v2396 = vld [vmem:[%s352 + $0x80] sm:$0xff]
      %v2397 = vld [vmem:[%s352 + $0x90] sm:$0xff]
      %v2398 = vld [vmem:[%s352 + $0x98] sm:$0xff]
      %v2399 = vld [vmem:[%s352 + $0xa8] sm:$0xff]
      %v2400 = vld [vmem:[%s352 + $0xb0] sm:$0xff]
      %v2401 = vld [vmem:[%s352 + $0xc0] sm:$0xff]
      %v2402 = vld [vmem:[%s352 + $0xc8] sm:$0xff]
      %v2403 = vld [vmem:[%s352 + $0xd8] sm:$0xff]
      %v2404 = vld [vmem:[%s352 + $0xe0] sm:$0xff]
      %v2405 = vld [vmem:[%s352 + $0xf0] sm:$0xff]
      %v2406 = vld [vmem:[%s352 + $0xf8] sm:$0xff]
      %v2407 = vld [vmem:[%s352 + $0x108] sm:$0xff]
      %v2408 = vld [vmem:[%s352 + $0x110] sm:$0xff]
      %v2409 = vld [vmem:[%s352 + $0x120] sm:$0xff]
      %v2410 = vld [vmem:[%s352 + $0x128] sm:$0xff]
      %v2411 = vld [vmem:[%s352 + $0x138] sm:$0xff]
      %v2412 = vld [vmem:[%s352 + $0x140] sm:$0xff]
      %v2413 = vld [vmem:[%s352 + $0x150] sm:$0xff]
      %v2414 = vld [vmem:[%s352 + $0x158] sm:$0xff]
      %v2415 = vld [vmem:[%s352 + $0x168] sm:$0xff]
      %v2416 = vld [vmem:[%s352 + $0x170] sm:$0xff]
      %v2417 = vld [vmem:[%s352 + $0x1] sm:$0xff]
      %v2418 = vld [vmem:[%s352 + $0x9] sm:$0xff]
      %v2419 = vld [vmem:[%s352 + $0x19] sm:$0xff]
      %v2420 = vld [vmem:[%s352 + $0x21] sm:$0xff]
      %v2421 = vld [vmem:[%s352 + $0x31] sm:$0xff]
      %v2422 = vld [vmem:[%s352 + $0x39] sm:$0xff]
      %v2423 = vld [vmem:[%s352 + $0x49] sm:$0xff]
      %v2424 = vld [vmem:[%s352 + $0x51] sm:$0xff]
      %v2425 = vld [vmem:[%s352 + $0x61] sm:$0xff]
      %v2426 = vld [vmem:[%s352 + $0x69] sm:$0xff]
      %v2427 = vld [vmem:[%s352 + $0x79] sm:$0xff]
      %v2428 = vld [vmem:[%s352 + $0x81] sm:$0xff]
      %v2429 = vld [vmem:[%s352 + $0x91] sm:$0xff]
      %v2430 = vld [vmem:[%s352 + $0x99] sm:$0xff]
      %v2431 = vld [vmem:[%s352 + $0xa9] sm:$0xff]
      %v2432 = vld [vmem:[%s352 + $0xb1] sm:$0xff]
      %v2433 = vld [vmem:[%s352 + $0xc1] sm:$0xff]
      %v2434 = vld [vmem:[%s352 + $0xc9] sm:$0xff]
      %v2435 = vld [vmem:[%s352 + $0xd9] sm:$0xff]
      %v2436 = vld [vmem:[%s352 + $0xe1] sm:$0xff]
      %v2437 = vld [vmem:[%s352 + $0xf1] sm:$0xff]
      %v2438 = vld [vmem:[%s352 + $0xf9] sm:$0xff]
      %v2439 = vld [vmem:[%s352 + $0x109] sm:$0xff]
      %v2440 = vld [vmem:[%s352 + $0x111] sm:$0xff]
      %v2441 = vld [vmem:[%s352 + $0x121] sm:$0xff]
      %v2442 = vld [vmem:[%s352 + $0x129] sm:$0xff]
      %v2443 = vld [vmem:[%s352 + $0x139] sm:$0xff]
      %v2444 = vld [vmem:[%s352 + $0x141] sm:$0xff]
      %v2445 = vld [vmem:[%s352 + $0x151] sm:$0xff]
      %v2446 = vld [vmem:[%s352 + $0x159] sm:$0xff]
      %v2447 = vld [vmem:[%s352 + $0x169] sm:$0xff]
      %v2448 = vld [vmem:[%s352 + $0x171] sm:$0xff]
      %v2449 = vld [vmem:[%s352 + $0x2] sm:$0xff]
      %v2450 = vld [vmem:[%s352 + $0xa] sm:$0xff]
      %v2451 = vld [vmem:[%s352 + $0x1a] sm:$0xff]
      %v2452 = vld [vmem:[%s352 + $0x22] sm:$0xff]
      %v2453 = vld [vmem:[%s352 + $0x32] sm:$0xff]
      %v2454 = vld [vmem:[%s352 + $0x3a] sm:$0xff]
      %v2455 = vld [vmem:[%s352 + $0x4a] sm:$0xff]
      %v2456 = vld [vmem:[%s352 + $0x52] sm:$0xff]
      %v2457 = vld [vmem:[%s352 + $0x62] sm:$0xff]
      %v2458 = vld [vmem:[%s352 + $0x6a] sm:$0xff]
      %v2459 = vld [vmem:[%s352 + $0x7a] sm:$0xff]
      %v2460 = vld [vmem:[%s352 + $0x82] sm:$0xff]
      %v2461 = vld [vmem:[%s352 + $0x92] sm:$0xff]
      %v2462 = vld [vmem:[%s352 + $0x9a] sm:$0xff]
      %v2463 = vld [vmem:[%s352 + $0xaa] sm:$0xff]
      %v2464 = vld [vmem:[%s352 + $0xb2] sm:$0xff]
      %v2465 = vld [vmem:[%s352 + $0xc2] sm:$0xff]
      %v2466 = vld [vmem:[%s352 + $0xca] sm:$0xff]
      %v2467 = vld [vmem:[%s352 + $0xda] sm:$0xff]
      %v2468 = vld [vmem:[%s352 + $0xe2] sm:$0xff]
      %v2469 = vld [vmem:[%s352 + $0xf2] sm:$0xff]
      %v2470 = vld [vmem:[%s352 + $0xfa] sm:$0xff]
      %v2471 = vld [vmem:[%s352 + $0x10a] sm:$0xff]
      %v2472 = vld [vmem:[%s352 + $0x112] sm:$0xff]
      %v2473 = vld [vmem:[%s352 + $0x122] sm:$0xff]
      %v2474 = vld [vmem:[%s352 + $0x12a] sm:$0xff]
      %v2475 = vld [vmem:[%s352 + $0x13a] sm:$0xff]
      %v2476 = vld [vmem:[%s352 + $0x142] sm:$0xff]
      %v2477 = vld [vmem:[%s352 + $0x152] sm:$0xff]
      %v2478 = vld [vmem:[%s352 + $0x15a] sm:$0xff]
      %v2479 = vld [vmem:[%s352 + $0x16a] sm:$0xff]
      %v2480 = vld [vmem:[%s352 + $0x172] sm:$0xff]
      %v2481 = vld [vmem:[%s577] sm:$0xff]
      %v2482 = vld [vmem:[%s577 + $0x8] sm:$0xff]
      %v2483 = vld [vmem:[%s577 + $0x18] sm:$0xff]
      %v2484 = vld [vmem:[%s577 + $0x20] sm:$0xff]
      %v2485 = vld [vmem:[%s577 + $0x30] sm:$0xff]
      %v2486 = vld [vmem:[%s577 + $0x38] sm:$0xff]
      %v2487 = vld [vmem:[%s577 + $0x48] sm:$0xff]
      %v2488 = vld [vmem:[%s577 + $0x50] sm:$0xff]
      %v2489 = vld [vmem:[%s577 + $0x60] sm:$0xff]
      %v2490 = vld [vmem:[%s577 + $0x68] sm:$0xff]
      %v2491 = vld [vmem:[%s577 + $0x78] sm:$0xff]
      %v2492 = vld [vmem:[%s577 + $0x80] sm:$0xff]
      %v2493 = vld [vmem:[%s577 + $0x90] sm:$0xff]
      %v2494 = vld [vmem:[%s577 + $0x98] sm:$0xff]
      %v2495 = vld [vmem:[%s577 + $0xa8] sm:$0xff]
      %v2496 = vld [vmem:[%s577 + $0xb0] sm:$0xff]
      %v2497 = vld [vmem:[%s577 + $0xc0] sm:$0xff]
      %v2498 = vld [vmem:[%s577 + $0xc8] sm:$0xff]
      %v2499 = vld [vmem:[%s577 + $0xd8] sm:$0xff]
      %v2500 = vld [vmem:[%s577 + $0xe0] sm:$0xff]
      %v2501 = vld [vmem:[%s577 + $0xf0] sm:$0xff]
      %v2502 = vld [vmem:[%s577 + $0xf8] sm:$0xff]
      %v2503 = vld [vmem:[%s577 + $0x108] sm:$0xff]
      %v2504 = vld [vmem:[%s577 + $0x110] sm:$0xff]
      %v2505 = vld [vmem:[%s577 + $0x120] sm:$0xff]
      %v2506 = vld [vmem:[%s577 + $0x128] sm:$0xff]
      %v2507 = vld [vmem:[%s577 + $0x138] sm:$0xff]
      %v2508 = vld [vmem:[%s577 + $0x140] sm:$0xff]
      %v2509 = vld [vmem:[%s577 + $0x150] sm:$0xff]
      %v2510 = vld [vmem:[%s577 + $0x158] sm:$0xff]
      %v2511 = vld [vmem:[%s577 + $0x168] sm:$0xff]
      %v2512 = vld [vmem:[%s577 + $0x170] sm:$0xff]
      %v2513 = vld [vmem:[%s577 + $0x1] sm:$0xff]
      %v2514 = vld [vmem:[%s577 + $0x9] sm:$0xff]
      %v2515 = vld [vmem:[%s577 + $0x19] sm:$0xff]
      %v2516 = vld [vmem:[%s577 + $0x21] sm:$0xff]
      %v2517 = vld [vmem:[%s577 + $0x31] sm:$0xff]
      %v2518 = vld [vmem:[%s577 + $0x39] sm:$0xff]
      %v2519 = vld [vmem:[%s577 + $0x49] sm:$0xff]
      %v2520 = vld [vmem:[%s577 + $0x51] sm:$0xff]
      %v2521 = vld [vmem:[%s577 + $0x61] sm:$0xff]
      %v2522 = vld [vmem:[%s577 + $0x69] sm:$0xff]
      %v2523 = vld [vmem:[%s577 + $0x79] sm:$0xff]
      %v2524 = vld [vmem:[%s577 + $0x81] sm:$0xff]
      %v2525 = vld [vmem:[%s577 + $0x91] sm:$0xff]
      %v2526 = vld [vmem:[%s577 + $0x99] sm:$0xff]
      %v2527 = vld [vmem:[%s577 + $0xa9] sm:$0xff]
      %v2528 = vld [vmem:[%s577 + $0xb1] sm:$0xff]
      %v2529 = vld [vmem:[%s577 + $0xc1] sm:$0xff]
      %v2530 = vld [vmem:[%s577 + $0xc9] sm:$0xff]
      %v2531 = vld [vmem:[%s577 + $0xd9] sm:$0xff]
      %v2532 = vld [vmem:[%s577 + $0xe1] sm:$0xff]
      %v2533 = vld [vmem:[%s577 + $0xf1] sm:$0xff]
      %v2534 = vld [vmem:[%s577 + $0xf9] sm:$0xff]
      %v2535 = vld [vmem:[%s577 + $0x109] sm:$0xff]
      %v2536 = vld [vmem:[%s577 + $0x111] sm:$0xff]
      %v2537 = vld [vmem:[%s577 + $0x121] sm:$0xff]
      %v2538 = vld [vmem:[%s577 + $0x129] sm:$0xff]
      %v2539 = vld [vmem:[%s577 + $0x139] sm:$0xff]
      %v2540 = vld [vmem:[%s577 + $0x141] sm:$0xff]
      %v2541 = vld [vmem:[%s577 + $0x151] sm:$0xff]
      %v2542 = vld [vmem:[%s577 + $0x159] sm:$0xff]
      %v2543 = vld [vmem:[%s577 + $0x169] sm:$0xff]
      %v2544 = vld [vmem:[%s577 + $0x171] sm:$0xff]
      %v2545 = vld [vmem:[%s577 + $0x2] sm:$0xff]
      %v2546 = vld [vmem:[%s577 + $0xa] sm:$0xff]
      %v2547 = vld [vmem:[%s577 + $0x1a] sm:$0xff]
      %v2548 = vld [vmem:[%s577 + $0x22] sm:$0xff]
      %v2549 = vld [vmem:[%s577 + $0x32] sm:$0xff]
      %v2550 = vld [vmem:[%s577 + $0x3a] sm:$0xff]
      %v2551 = vld [vmem:[%s577 + $0x4a] sm:$0xff]
      %v2552 = vld [vmem:[%s577 + $0x52] sm:$0xff]
      %v2553 = vld [vmem:[%s577 + $0x62] sm:$0xff]
      %v2554 = vld [vmem:[%s577 + $0x6a] sm:$0xff]
      %v2555 = vld [vmem:[%s577 + $0x7a] sm:$0xff]
      %v2556 = vld [vmem:[%s577 + $0x82] sm:$0xff]
      %v2557 = vld [vmem:[%s577 + $0x92] sm:$0xff]
      %v2558 = vld [vmem:[%s577 + $0x9a] sm:$0xff]
      %v2559 = vld [vmem:[%s577 + $0xaa] sm:$0xff]
      %v2560 = vld [vmem:[%s577 + $0xb2] sm:$0xff]
      %v2561 = vld [vmem:[%s577 + $0xc2] sm:$0xff]
      %v2562 = vld [vmem:[%s577 + $0xca] sm:$0xff]
      %v2563 = vld [vmem:[%s577 + $0xda] sm:$0xff]
      %v2564 = vld [vmem:[%s577 + $0xe2] sm:$0xff]
      %v2565 = vld [vmem:[%s577 + $0xf2] sm:$0xff]
      %v2566 = vld [vmem:[%s577 + $0xfa] sm:$0xff]
      %v2567 = vld [vmem:[%s577 + $0x10a] sm:$0xff]
      %v2568 = vld [vmem:[%s577 + $0x112] sm:$0xff]
      %v2569 = vld [vmem:[%s577 + $0x122] sm:$0xff]
      %v2570 = vld [vmem:[%s577 + $0x12a] sm:$0xff]
      %v2571 = vld [vmem:[%s577 + $0x13a] sm:$0xff]
      %v2572 = vld [vmem:[%s577 + $0x142] sm:$0xff]
      %v2573 = vld [vmem:[%s577 + $0x152] sm:$0xff]
      %v2574 = vld [vmem:[%s577 + $0x15a] sm:$0xff]
      %v2575 = vld [vmem:[%s577 + $0x16a] sm:$0xff]
      %v2576 = vld [vmem:[%s577 + $0x172] sm:$0xff]
      %2609 = vrot.lane.b32.xlu0 %v2321, 32
      %v2610 = vpop.permute.xlu0 %2609
      %2611 = vrot.lane.b32.xlu0 %v2322, 32
      %v2612 = vpop.permute.xlu0 %2611
      %2613 = vrot.lane.b32.xlu0 %v2323, 32
      %v2614 = vpop.permute.xlu0 %2613
      %2615 = vrot.lane.b32.xlu0 %v2324, 32
      %v2616 = vpop.permute.xlu0 %2615
      %2617 = vrot.lane.b32.xlu0 %v2325, 32
      %v2618 = vpop.permute.xlu0 %2617
      %2619 = vrot.lane.b32.xlu0 %v2326, 32
      %v2620 = vpop.permute.xlu0 %2619
      %2621 = vrot.lane.b32.xlu0 %v2327, 32
      %v2622 = vpop.permute.xlu0 %2621
      %2623 = vrot.lane.b32.xlu0 %v2328, 32
      %v2624 = vpop.permute.xlu0 %2623
      %2625 = vrot.lane.b32.xlu0 %v2329, 32
      %v2626 = vpop.permute.xlu0 %2625
      %2627 = vrot.lane.b32.xlu0 %v2330, 32
      %v2628 = vpop.permute.xlu0 %2627
      %2629 = vrot.lane.b32.xlu0 %v2331, 32
      %v2630 = vpop.permute.xlu0 %2629
      %2631 = vrot.lane.b32.xlu0 %v2332, 32
      %v2632 = vpop.permute.xlu0 %2631
      %2633 = vrot.lane.b32.xlu0 %v2333, 32
      %v2634 = vpop.permute.xlu0 %2633
      %2635 = vrot.lane.b32.xlu0 %v2334, 32
      %v2636 = vpop.permute.xlu0 %2635
      %2637 = vrot.lane.b32.xlu0 %v2335, 32
      %v2638 = vpop.permute.xlu0 %2637
      %2639 = vrot.lane.b32.xlu0 %v2336, 32
      %v2640 = vpop.permute.xlu0 %2639
      %2641 = vrot.lane.b32.xlu0 %v2337, 32
      %v2642 = vpop.permute.xlu0 %2641
      %2643 = vrot.lane.b32.xlu0 %v2338, 32
      %v2644 = vpop.permute.xlu0 %2643
      %2645 = vrot.lane.b32.xlu0 %v2339, 32
      %v2646 = vpop.permute.xlu0 %2645
      %2647 = vrot.lane.b32.xlu0 %v2340, 32
      %v2648 = vpop.permute.xlu0 %2647
      %2649 = vrot.lane.b32.xlu0 %v2341, 32
      %v2650 = vpop.permute.xlu0 %2649
      %2651 = vrot.lane.b32.xlu0 %v2342, 32
      %v2652 = vpop.permute.xlu0 %2651
      %2653 = vrot.lane.b32.xlu0 %v2343, 32
      %v2654 = vpop.permute.xlu0 %2653
      %2655 = vrot.lane.b32.xlu0 %v2344, 32
      %v2656 = vpop.permute.xlu0 %2655
      %2657 = vrot.lane.b32.xlu0 %v2345, 32
      %v2658 = vpop.permute.xlu0 %2657
      %2659 = vrot.lane.b32.xlu0 %v2346, 32
      %v2660 = vpop.permute.xlu0 %2659
      %2661 = vrot.lane.b32.xlu0 %v2347, 32
      %v2662 = vpop.permute.xlu0 %2661
      %2663 = vrot.lane.b32.xlu0 %v2348, 32
      %v2664 = vpop.permute.xlu0 %2663
      %2665 = vrot.lane.b32.xlu0 %v2349, 32
      %v2666 = vpop.permute.xlu0 %2665
      %2667 = vrot.lane.b32.xlu0 %v2350, 32
      %v2668 = vpop.permute.xlu0 %2667
      %2669 = vrot.lane.b32.xlu0 %v2351, 32
      %v2670 = vpop.permute.xlu0 %2669
      %2671 = vrot.lane.b32.xlu0 %v2352, 32
      %v2672 = vpop.permute.xlu0 %2671
      %2737 = vrot.lane.b32.xlu0 %v2353, 64
      %v2738 = vpop.permute.xlu0 %2737
      %2739 = vrot.lane.b32.xlu0 %v2354, 64
      %v2740 = vpop.permute.xlu0 %2739
      %2741 = vrot.lane.b32.xlu0 %v2355, 64
      %v2742 = vpop.permute.xlu0 %2741
      %2743 = vrot.lane.b32.xlu0 %v2356, 64
      %v2744 = vpop.permute.xlu0 %2743
      %2745 = vrot.lane.b32.xlu0 %v2357, 64
      %v2746 = vpop.permute.xlu0 %2745
      %2747 = vrot.lane.b32.xlu0 %v2358, 64
      %v2748 = vpop.permute.xlu0 %2747
      %2749 = vrot.lane.b32.xlu0 %v2359, 64
      %v2750 = vpop.permute.xlu0 %2749
      %2751 = vrot.lane.b32.xlu0 %v2360, 64
      %v2752 = vpop.permute.xlu0 %2751
      %2753 = vrot.lane.b32.xlu0 %v2361, 64
      %v2754 = vpop.permute.xlu0 %2753
      %2755 = vrot.lane.b32.xlu0 %v2362, 64
      %v2756 = vpop.permute.xlu0 %2755
      %2757 = vrot.lane.b32.xlu0 %v2363, 64
      %v2758 = vpop.permute.xlu0 %2757
      %2759 = vrot.lane.b32.xlu0 %v2364, 64
      %v2760 = vpop.permute.xlu0 %2759
      %2761 = vrot.lane.b32.xlu0 %v2365, 64
      %v2762 = vpop.permute.xlu0 %2761
      %2763 = vrot.lane.b32.xlu0 %v2366, 64
      %v2764 = vpop.permute.xlu0 %2763
      %2765 = vrot.lane.b32.xlu0 %v2367, 64
      %v2766 = vpop.permute.xlu0 %2765
      %2767 = vrot.lane.b32.xlu0 %v2368, 64
      %v2768 = vpop.permute.xlu0 %2767
      %2769 = vrot.lane.b32.xlu0 %v2369, 64
      %v2770 = vpop.permute.xlu0 %2769
      %2771 = vrot.lane.b32.xlu0 %v2370, 64
      %v2772 = vpop.permute.xlu0 %2771
      %2773 = vrot.lane.b32.xlu0 %v2371, 64
      %v2774 = vpop.permute.xlu0 %2773
      %2775 = vrot.lane.b32.xlu0 %v2372, 64
      %v2776 = vpop.permute.xlu0 %2775
      %2777 = vrot.lane.b32.xlu0 %v2373, 64
      %v2778 = vpop.permute.xlu0 %2777
      %2779 = vrot.lane.b32.xlu0 %v2374, 64
      %v2780 = vpop.permute.xlu0 %2779
      %2781 = vrot.lane.b32.xlu0 %v2375, 64
      %v2782 = vpop.permute.xlu0 %2781
      %2783 = vrot.lane.b32.xlu0 %v2376, 64
      %v2784 = vpop.permute.xlu0 %2783
      %2785 = vrot.lane.b32.xlu0 %v2377, 64
      %v2786 = vpop.permute.xlu0 %2785
      %2787 = vrot.lane.b32.xlu0 %v2378, 64
      %v2788 = vpop.permute.xlu0 %2787
      %2789 = vrot.lane.b32.xlu0 %v2379, 64
      %v2790 = vpop.permute.xlu0 %2789
      %2791 = vrot.lane.b32.xlu0 %v2380, 64
      %v2792 = vpop.permute.xlu0 %2791
      %2793 = vrot.lane.b32.xlu0 %v2381, 64
      %v2794 = vpop.permute.xlu0 %2793
      %2795 = vrot.lane.b32.xlu0 %v2382, 64
      %v2796 = vpop.permute.xlu0 %2795
      %2797 = vrot.lane.b32.xlu0 %v2383, 64
      %v2798 = vpop.permute.xlu0 %2797
      %2799 = vrot.lane.b32.xlu0 %v2384, 64
      %v2800 = vpop.permute.xlu0 %2799
      %2865 = vrot.lane.b32.xlu0 %v2385, 96
      %v2866 = vpop.permute.xlu0 %2865
      %2867 = vrot.lane.b32.xlu0 %v2386, 96
      %v2868 = vpop.permute.xlu0 %2867
      %2869 = vrot.lane.b32.xlu0 %v2387, 96
      %v2870 = vpop.permute.xlu0 %2869
      %2871 = vrot.lane.b32.xlu0 %v2388, 96
      %v2872 = vpop.permute.xlu0 %2871
      %2873 = vrot.lane.b32.xlu0 %v2389, 96
      %v2874 = vpop.permute.xlu0 %2873
      %2875 = vrot.lane.b32.xlu0 %v2390, 96
      %v2876 = vpop.permute.xlu0 %2875
      %2877 = vrot.lane.b32.xlu0 %v2391, 96
      %v2878 = vpop.permute.xlu0 %2877
      %2879 = vrot.lane.b32.xlu0 %v2392, 96
      %v2880 = vpop.permute.xlu0 %2879
      %2881 = vrot.lane.b32.xlu0 %v2393, 96
      %v2882 = vpop.permute.xlu0 %2881
      %2883 = vrot.lane.b32.xlu0 %v2394, 96
      %v2884 = vpop.permute.xlu0 %2883
      %2885 = vrot.lane.b32.xlu0 %v2395, 96
      %v2886 = vpop.permute.xlu0 %2885
      %2887 = vrot.lane.b32.xlu0 %v2396, 96
      %v2888 = vpop.permute.xlu0 %2887
      %2889 = vrot.lane.b32.xlu0 %v2397, 96
      %v2890 = vpop.permute.xlu0 %2889
      %2891 = vrot.lane.b32.xlu0 %v2398, 96
      %v2892 = vpop.permute.xlu0 %2891
      %2893 = vrot.lane.b32.xlu0 %v2399, 96
      %v2894 = vpop.permute.xlu0 %2893
      %2895 = vrot.lane.b32.xlu0 %v2400, 96
      %v2896 = vpop.permute.xlu0 %2895
      %2897 = vrot.lane.b32.xlu0 %v2401, 96
      %v2898 = vpop.permute.xlu0 %2897
      %2899 = vrot.lane.b32.xlu0 %v2402, 96
      %v2900 = vpop.permute.xlu0 %2899
      %2901 = vrot.lane.b32.xlu0 %v2403, 96
      %v2902 = vpop.permute.xlu0 %2901
      %2903 = vrot.lane.b32.xlu0 %v2404, 96
      %v2904 = vpop.permute.xlu0 %2903
      %2905 = vrot.lane.b32.xlu0 %v2405, 96
      %v2906 = vpop.permute.xlu0 %2905
      %2907 = vrot.lane.b32.xlu0 %v2406, 96
      %v2908 = vpop.permute.xlu0 %2907
      %2909 = vrot.lane.b32.xlu0 %v2407, 96
      %v2910 = vpop.permute.xlu0 %2909
      %2911 = vrot.lane.b32.xlu0 %v2408, 96
      %v2912 = vpop.permute.xlu0 %2911
      %2913 = vrot.lane.b32.xlu0 %v2409, 96
      %v2914 = vpop.permute.xlu0 %2913
      %2915 = vrot.lane.b32.xlu0 %v2410, 96
      %v2916 = vpop.permute.xlu0 %2915
      %2917 = vrot.lane.b32.xlu0 %v2411, 96
      %v2918 = vpop.permute.xlu0 %2917
      %2919 = vrot.lane.b32.xlu0 %v2412, 96
      %v2920 = vpop.permute.xlu0 %2919
      %2921 = vrot.lane.b32.xlu0 %v2413, 96
      %v2922 = vpop.permute.xlu0 %2921
      %2923 = vrot.lane.b32.xlu0 %v2414, 96
      %v2924 = vpop.permute.xlu0 %2923
      %2925 = vrot.lane.b32.xlu0 %v2415, 96
      %v2926 = vpop.permute.xlu0 %2925
      %2927 = vrot.lane.b32.xlu0 %v2416, 96
      %v2928 = vpop.permute.xlu0 %2927
      %2993 = vrot.lane.b32.xlu0 %v2449, 32
      %v2994 = vpop.permute.xlu0 %2993
      %2995 = vrot.lane.b32.xlu0 %v2450, 32
      %v2996 = vpop.permute.xlu0 %2995
      %2997 = vrot.lane.b32.xlu0 %v2451, 32
      %v2998 = vpop.permute.xlu0 %2997
      %2999 = vrot.lane.b32.xlu0 %v2452, 32
      %v3000 = vpop.permute.xlu0 %2999
      %3001 = vrot.lane.b32.xlu0 %v2453, 32
      %v3002 = vpop.permute.xlu0 %3001
      %3003 = vrot.lane.b32.xlu0 %v2454, 32
      %v3004 = vpop.permute.xlu0 %3003
      %3005 = vrot.lane.b32.xlu0 %v2455, 32
      %v3006 = vpop.permute.xlu0 %3005
      %3007 = vrot.lane.b32.xlu0 %v2456, 32
      %v3008 = vpop.permute.xlu0 %3007
      %3009 = vrot.lane.b32.xlu0 %v2457, 32
      %v3010 = vpop.permute.xlu0 %3009
      %3011 = vrot.lane.b32.xlu0 %v2458, 32
      %v3012 = vpop.permute.xlu0 %3011
      %3013 = vrot.lane.b32.xlu0 %v2459, 32
      %v3014 = vpop.permute.xlu0 %3013
      %3015 = vrot.lane.b32.xlu0 %v2460, 32
      %v3016 = vpop.permute.xlu0 %3015
      %3017 = vrot.lane.b32.xlu0 %v2461, 32
      %v3018 = vpop.permute.xlu0 %3017
      %3019 = vrot.lane.b32.xlu0 %v2462, 32
      %v3020 = vpop.permute.xlu0 %3019
      %3021 = vrot.lane.b32.xlu0 %v2463, 32
      %v3022 = vpop.permute.xlu0 %3021
      %3023 = vrot.lane.b32.xlu0 %v2464, 32
      %v3024 = vpop.permute.xlu0 %3023
      %3025 = vrot.lane.b32.xlu0 %v2465, 32
      %v3026 = vpop.permute.xlu0 %3025
      %3027 = vrot.lane.b32.xlu0 %v2466, 32
      %v3028 = vpop.permute.xlu0 %3027
      %3029 = vrot.lane.b32.xlu0 %v2467, 32
      %v3030 = vpop.permute.xlu0 %3029
      %3031 = vrot.lane.b32.xlu0 %v2468, 32
      %v3032 = vpop.permute.xlu0 %3031
      %3033 = vrot.lane.b32.xlu0 %v2469, 32
      %v3034 = vpop.permute.xlu0 %3033
      %3035 = vrot.lane.b32.xlu0 %v2470, 32
      %v3036 = vpop.permute.xlu0 %3035
      %3037 = vrot.lane.b32.xlu0 %v2471, 32
      %v3038 = vpop.permute.xlu0 %3037
      %3039 = vrot.lane.b32.xlu0 %v2472, 32
      %v3040 = vpop.permute.xlu0 %3039
      %3041 = vrot.lane.b32.xlu0 %v2473, 32
      %v3042 = vpop.permute.xlu0 %3041
      %3043 = vrot.lane.b32.xlu0 %v2474, 32
      %v3044 = vpop.permute.xlu0 %3043
      %3045 = vrot.lane.b32.xlu0 %v2475, 32
      %v3046 = vpop.permute.xlu0 %3045
      %3047 = vrot.lane.b32.xlu0 %v2476, 32
      %v3048 = vpop.permute.xlu0 %3047
      %3049 = vrot.lane.b32.xlu0 %v2477, 32
      %v3050 = vpop.permute.xlu0 %3049
      %3051 = vrot.lane.b32.xlu0 %v2478, 32
      %v3052 = vpop.permute.xlu0 %3051
      %3053 = vrot.lane.b32.xlu0 %v2479, 32
      %v3054 = vpop.permute.xlu0 %3053
      %3055 = vrot.lane.b32.xlu0 %v2480, 32
      %v3056 = vpop.permute.xlu0 %3055
      %3121 = vrot.lane.b32.xlu0 %v2481, 64
      %v3122 = vpop.permute.xlu0 %3121
      %3123 = vrot.lane.b32.xlu0 %v2482, 64
      %v3124 = vpop.permute.xlu0 %3123
      %3125 = vrot.lane.b32.xlu0 %v2483, 64
      %v3126 = vpop.permute.xlu0 %3125
      %3127 = vrot.lane.b32.xlu0 %v2484, 64
      %v3128 = vpop.permute.xlu0 %3127
      %3129 = vrot.lane.b32.xlu0 %v2485, 64
      %v3130 = vpop.permute.xlu0 %3129
      %3131 = vrot.lane.b32.xlu0 %v2486, 64
      %v3132 = vpop.permute.xlu0 %3131
      %3133 = vrot.lane.b32.xlu0 %v2487, 64
      %v3134 = vpop.permute.xlu0 %3133
      %3135 = vrot.lane.b32.xlu0 %v2488, 64
      %v3136 = vpop.permute.xlu0 %3135
      %3137 = vrot.lane.b32.xlu0 %v2489, 64
      %v3138 = vpop.permute.xlu0 %3137
      %3139 = vrot.lane.b32.xlu0 %v2490, 64
      %v3140 = vpop.permute.xlu0 %3139
      %3141 = vrot.lane.b32.xlu0 %v2491, 64
      %v3142 = vpop.permute.xlu0 %3141
      %3143 = vrot.lane.b32.xlu0 %v2492, 64
      %v3144 = vpop.permute.xlu0 %3143
      %3145 = vrot.lane.b32.xlu0 %v2493, 64
      %v3146 = vpop.permute.xlu0 %3145
      %3147 = vrot.lane.b32.xlu0 %v2494, 64
      %v3148 = vpop.permute.xlu0 %3147
      %3149 = vrot.lane.b32.xlu0 %v2495, 64
      %v3150 = vpop.permute.xlu0 %3149
      %3151 = vrot.lane.b32.xlu0 %v2496, 64
      %v3152 = vpop.permute.xlu0 %3151
      %3153 = vrot.lane.b32.xlu0 %v2497, 64
      %v3154 = vpop.permute.xlu0 %3153
      %3155 = vrot.lane.b32.xlu0 %v2498, 64
      %v3156 = vpop.permute.xlu0 %3155
      %3157 = vrot.lane.b32.xlu0 %v2499, 64
      %v3158 = vpop.permute.xlu0 %3157
      %3159 = vrot.lane.b32.xlu0 %v2500, 64
      %v3160 = vpop.permute.xlu0 %3159
      %3161 = vrot.lane.b32.xlu0 %v2501, 64
      %v3162 = vpop.permute.xlu0 %3161
      %3163 = vrot.lane.b32.xlu0 %v2502, 64
      %v3164 = vpop.permute.xlu0 %3163
      %3165 = vrot.lane.b32.xlu0 %v2503, 64
      %v3166 = vpop.permute.xlu0 %3165
      %3167 = vrot.lane.b32.xlu0 %v2504, 64
      %v3168 = vpop.permute.xlu0 %3167
      %3169 = vrot.lane.b32.xlu0 %v2505, 64
      %v3170 = vpop.permute.xlu0 %3169
      %3171 = vrot.lane.b32.xlu0 %v2506, 64
      %v3172 = vpop.permute.xlu0 %3171
      %3173 = vrot.lane.b32.xlu0 %v2507, 64
      %v3174 = vpop.permute.xlu0 %3173
      %3175 = vrot.lane.b32.xlu0 %v2508, 64
      %v3176 = vpop.permute.xlu0 %3175
      %3177 = vrot.lane.b32.xlu0 %v2509, 64
      %v3178 = vpop.permute.xlu0 %3177
      %3179 = vrot.lane.b32.xlu0 %v2510, 64
      %v3180 = vpop.permute.xlu0 %3179
      %3181 = vrot.lane.b32.xlu0 %v2511, 64
      %v3182 = vpop.permute.xlu0 %3181
      %3183 = vrot.lane.b32.xlu0 %v2512, 64
      %v3184 = vpop.permute.xlu0 %3183
      %3249 = vrot.lane.b32.xlu0 %v2513, 96
      %v3250 = vpop.permute.xlu0 %3249
      %3251 = vrot.lane.b32.xlu0 %v2514, 96
      %v3252 = vpop.permute.xlu0 %3251
      %3253 = vrot.lane.b32.xlu0 %v2515, 96
      %v3254 = vpop.permute.xlu0 %3253
      %3255 = vrot.lane.b32.xlu0 %v2516, 96
      %v3256 = vpop.permute.xlu0 %3255
      %3257 = vrot.lane.b32.xlu0 %v2517, 96
      %v3258 = vpop.permute.xlu0 %3257
      %3259 = vrot.lane.b32.xlu0 %v2518, 96
      %v3260 = vpop.permute.xlu0 %3259
      %3261 = vrot.lane.b32.xlu0 %v2519, 96
      %v3262 = vpop.permute.xlu0 %3261
      %3263 = vrot.lane.b32.xlu0 %v2520, 96
      %v3264 = vpop.permute.xlu0 %3263
      %3265 = vrot.lane.b32.xlu0 %v2521, 96
      %v3266 = vpop.permute.xlu0 %3265
      %3267 = vrot.lane.b32.xlu0 %v2522, 96
      %v3268 = vpop.permute.xlu0 %3267
      %3269 = vrot.lane.b32.xlu0 %v2523, 96
      %v3270 = vpop.permute.xlu0 %3269
      %3271 = vrot.lane.b32.xlu0 %v2524, 96
      %v3272 = vpop.permute.xlu0 %3271
      %3273 = vrot.lane.b32.xlu0 %v2525, 96
      %v3274 = vpop.permute.xlu0 %3273
      %3275 = vrot.lane.b32.xlu0 %v2526, 96
      %v3276 = vpop.permute.xlu0 %3275
      %3277 = vrot.lane.b32.xlu0 %v2527, 96
      %v3278 = vpop.permute.xlu0 %3277
      %3279 = vrot.lane.b32.xlu0 %v2528, 96
      %v3280 = vpop.permute.xlu0 %3279
      %3281 = vrot.lane.b32.xlu0 %v2529, 96
      %v3282 = vpop.permute.xlu0 %3281
      %3283 = vrot.lane.b32.xlu0 %v2530, 96
      %v3284 = vpop.permute.xlu0 %3283
      %3285 = vrot.lane.b32.xlu0 %v2531, 96
      %v3286 = vpop.permute.xlu0 %3285
      %3287 = vrot.lane.b32.xlu0 %v2532, 96
      %v3288 = vpop.permute.xlu0 %3287
      %3289 = vrot.lane.b32.xlu0 %v2533, 96
      %v3290 = vpop.permute.xlu0 %3289
      %3291 = vrot.lane.b32.xlu0 %v2534, 96
      %v3292 = vpop.permute.xlu0 %3291
      %3293 = vrot.lane.b32.xlu0 %v2535, 96
      %v3294 = vpop.permute.xlu0 %3293
      %3295 = vrot.lane.b32.xlu0 %v2536, 96
      %v3296 = vpop.permute.xlu0 %3295
      %3297 = vrot.lane.b32.xlu0 %v2537, 96
      %v3298 = vpop.permute.xlu0 %3297
      %3299 = vrot.lane.b32.xlu0 %v2538, 96
      %v3300 = vpop.permute.xlu0 %3299
      %3301 = vrot.lane.b32.xlu0 %v2539, 96
      %v3302 = vpop.permute.xlu0 %3301
      %3303 = vrot.lane.b32.xlu0 %v2540, 96
      %v3304 = vpop.permute.xlu0 %3303
      %3305 = vrot.lane.b32.xlu0 %v2541, 96
      %v3306 = vpop.permute.xlu0 %3305
      %3307 = vrot.lane.b32.xlu0 %v2542, 96
      %v3308 = vpop.permute.xlu0 %3307
      %3309 = vrot.lane.b32.xlu0 %v2543, 96
      %v3310 = vpop.permute.xlu0 %3309
      %3311 = vrot.lane.b32.xlu0 %v2544, 96
      %v3312 = vpop.permute.xlu0 %3311
      %v3345 = vsel %vm225, %v2289, %v2610
      %v3346 = vsel %vm225, %v2290, %v2612
      %v3347 = vsel %vm225, %v2291, %v2614
      %v3348 = vsel %vm225, %v2292, %v2616
      %v3349 = vsel %vm225, %v2293, %v2618
      %v3350 = vsel %vm225, %v2294, %v2620
      %v3351 = vsel %vm225, %v2295, %v2622
      %v3352 = vsel %vm225, %v2296, %v2624
      %v3353 = vsel %vm225, %v2297, %v2626
      %v3354 = vsel %vm225, %v2298, %v2628
      %v3355 = vsel %vm225, %v2299, %v2630
      %v3356 = vsel %vm225, %v2300, %v2632
      %v3357 = vsel %vm225, %v2301, %v2634
      %v3358 = vsel %vm225, %v2302, %v2636
      %v3359 = vsel %vm225, %v2303, %v2638
      %v3360 = vsel %vm225, %v2304, %v2640
      %v3361 = vsel %vm225, %v2305, %v2642
      %v3362 = vsel %vm225, %v2306, %v2644
      %v3363 = vsel %vm225, %v2307, %v2646
      %v3364 = vsel %vm225, %v2308, %v2648
      %v3365 = vsel %vm225, %v2309, %v2650
      %v3366 = vsel %vm225, %v2310, %v2652
      %v3367 = vsel %vm225, %v2311, %v2654
      %v3368 = vsel %vm225, %v2312, %v2656
      %v3369 = vsel %vm225, %v2313, %v2658
      %v3370 = vsel %vm225, %v2314, %v2660
      %v3371 = vsel %vm225, %v2315, %v2662
      %v3372 = vsel %vm225, %v2316, %v2664
      %v3373 = vsel %vm225, %v2317, %v2666
      %v3374 = vsel %vm225, %v2318, %v2668
      %v3375 = vsel %vm225, %v2319, %v2670
      %v3376 = vsel %vm225, %v2320, %v2672
      %v3377 = vsel %vm1474, %v3345, %v2738
      %v3378 = vsel %vm1474, %v3346, %v2740
      %v3379 = vsel %vm1474, %v3347, %v2742
      %v3380 = vsel %vm1474, %v3348, %v2744
      %v3381 = vsel %vm1474, %v3349, %v2746
      %v3382 = vsel %vm1474, %v3350, %v2748
      %v3383 = vsel %vm1474, %v3351, %v2750
      %v3384 = vsel %vm1474, %v3352, %v2752
      %v3385 = vsel %vm1474, %v3353, %v2754
      %v3386 = vsel %vm1474, %v3354, %v2756
      %v3387 = vsel %vm1474, %v3355, %v2758
      %v3388 = vsel %vm1474, %v3356, %v2760
      %v3389 = vsel %vm1474, %v3357, %v2762
      %v3390 = vsel %vm1474, %v3358, %v2764
      %v3391 = vsel %vm1474, %v3359, %v2766
      %v3392 = vsel %vm1474, %v3360, %v2768
      %v3393 = vsel %vm1474, %v3361, %v2770
      %v3394 = vsel %vm1474, %v3362, %v2772
      %v3395 = vsel %vm1474, %v3363, %v2774
      %v3396 = vsel %vm1474, %v3364, %v2776
      %v3397 = vsel %vm1474, %v3365, %v2778
      %v3398 = vsel %vm1474, %v3366, %v2780
      %v3399 = vsel %vm1474, %v3367, %v2782
      %v3400 = vsel %vm1474, %v3368, %v2784
      %v3401 = vsel %vm1474, %v3369, %v2786
      %v3402 = vsel %vm1474, %v3370, %v2788
      %v3403 = vsel %vm1474, %v3371, %v2790
      %v3404 = vsel %vm1474, %v3372, %v2792
      %v3405 = vsel %vm1474, %v3373, %v2794
      %v3406 = vsel %vm1474, %v3374, %v2796
      %v3407 = vsel %vm1474, %v3375, %v2798
      %v3408 = vsel %vm1474, %v3376, %v2800
      %v3409 = vsel %vm1507, %v3377, %v2866
      %v3410 = vsel %vm1507, %v3378, %v2868
      %v3411 = vsel %vm1507, %v3379, %v2870
      %v3412 = vsel %vm1507, %v3380, %v2872
      %v3413 = vsel %vm1507, %v3381, %v2874
      %v3414 = vsel %vm1507, %v3382, %v2876
      %v3415 = vsel %vm1507, %v3383, %v2878
      %v3416 = vsel %vm1507, %v3384, %v2880
      %v3417 = vsel %vm1507, %v3385, %v2882
      %v3418 = vsel %vm1507, %v3386, %v2884
      %v3419 = vsel %vm1507, %v3387, %v2886
      %v3420 = vsel %vm1507, %v3388, %v2888
      %v3421 = vsel %vm1507, %v3389, %v2890
      %v3422 = vsel %vm1507, %v3390, %v2892
      %v3423 = vsel %vm1507, %v3391, %v2894
      %v3424 = vsel %vm1507, %v3392, %v2896
      %v3425 = vsel %vm1507, %v3393, %v2898
      %v3426 = vsel %vm1507, %v3394, %v2900
      %v3427 = vsel %vm1507, %v3395, %v2902
      %v3428 = vsel %vm1507, %v3396, %v2904
      %v3429 = vsel %vm1507, %v3397, %v2906
      %v3430 = vsel %vm1507, %v3398, %v2908
      %v3431 = vsel %vm1507, %v3399, %v2910
      %v3432 = vsel %vm1507, %v3400, %v2912
      %v3433 = vsel %vm1507, %v3401, %v2914
      %v3434 = vsel %vm1507, %v3402, %v2916
      %v3435 = vsel %vm1507, %v3403, %v2918
      %v3436 = vsel %vm1507, %v3404, %v2920
      %v3437 = vsel %vm1507, %v3405, %v2922
      %v3438 = vsel %vm1507, %v3406, %v2924
      %v3439 = vsel %vm1507, %v3407, %v2926
      %v3440 = vsel %vm1507, %v3408, %v2928
      %v3441 = vsel %vm225, %v2417, %v2994
      %v3442 = vsel %vm225, %v2418, %v2996
      %v3443 = vsel %vm225, %v2419, %v2998
      %v3444 = vsel %vm225, %v2420, %v3000
      %v3445 = vsel %vm225, %v2421, %v3002
      %v3446 = vsel %vm225, %v2422, %v3004
      %v3447 = vsel %vm225, %v2423, %v3006
      %v3448 = vsel %vm225, %v2424, %v3008
      %v3449 = vsel %vm225, %v2425, %v3010
      %v3450 = vsel %vm225, %v2426, %v3012
      %v3451 = vsel %vm225, %v2427, %v3014
      %v3452 = vsel %vm225, %v2428, %v3016
      %v3453 = vsel %vm225, %v2429, %v3018
      %v3454 = vsel %vm225, %v2430, %v3020
      %v3455 = vsel %vm225, %v2431, %v3022
      %v3456 = vsel %vm225, %v2432, %v3024
      %v3457 = vsel %vm225, %v2433, %v3026
      %v3458 = vsel %vm225, %v2434, %v3028
      %v3459 = vsel %vm225, %v2435, %v3030
      %v3460 = vsel %vm225, %v2436, %v3032
      %v3461 = vsel %vm225, %v2437, %v3034
      %v3462 = vsel %vm225, %v2438, %v3036
      %v3463 = vsel %vm225, %v2439, %v3038
      %v3464 = vsel %vm225, %v2440, %v3040
      %v3465 = vsel %vm225, %v2441, %v3042
      %v3466 = vsel %vm225, %v2442, %v3044
      %v3467 = vsel %vm225, %v2443, %v3046
      %v3468 = vsel %vm225, %v2444, %v3048
      %v3469 = vsel %vm225, %v2445, %v3050
      %v3470 = vsel %vm225, %v2446, %v3052
      %v3471 = vsel %vm225, %v2447, %v3054
      %v3472 = vsel %vm225, %v2448, %v3056
      %v3473 = vsel %vm1474, %v3441, %v3122
      %v3474 = vsel %vm1474, %v3442, %v3124
      %v3475 = vsel %vm1474, %v3443, %v3126
      %v3476 = vsel %vm1474, %v3444, %v3128
      %v3477 = vsel %vm1474, %v3445, %v3130
      %v3478 = vsel %vm1474, %v3446, %v3132
      %v3479 = vsel %vm1474, %v3447, %v3134
      %v3480 = vsel %vm1474, %v3448, %v3136
      %v3481 = vsel %vm1474, %v3449, %v3138
      %v3482 = vsel %vm1474, %v3450, %v3140
      %v3483 = vsel %vm1474, %v3451, %v3142
      %v3484 = vsel %vm1474, %v3452, %v3144
      %v3485 = vsel %vm1474, %v3453, %v3146
      %v3486 = vsel %vm1474, %v3454, %v3148
      %v3487 = vsel %vm1474, %v3455, %v3150
      %v3488 = vsel %vm1474, %v3456, %v3152
      %v3489 = vsel %vm1474, %v3457, %v3154
      %v3490 = vsel %vm1474, %v3458, %v3156
      %v3491 = vsel %vm1474, %v3459, %v3158
      %v3492 = vsel %vm1474, %v3460, %v3160
      %v3493 = vsel %vm1474, %v3461, %v3162
      %v3494 = vsel %vm1474, %v3462, %v3164
      %v3495 = vsel %vm1474, %v3463, %v3166
      %v3496 = vsel %vm1474, %v3464, %v3168
      %v3497 = vsel %vm1474, %v3465, %v3170
      %v3498 = vsel %vm1474, %v3466, %v3172
      %v3499 = vsel %vm1474, %v3467, %v3174
      %v3500 = vsel %vm1474, %v3468, %v3176
      %v3501 = vsel %vm1474, %v3469, %v3178
      %v3502 = vsel %vm1474, %v3470, %v3180
      %v3503 = vsel %vm1474, %v3471, %v3182
      %v3504 = vsel %vm1474, %v3472, %v3184
      %v3505 = vsel %vm1507, %v3473, %v3250
      %v3506 = vsel %vm1507, %v3474, %v3252
      %v3507 = vsel %vm1507, %v3475, %v3254
      %v3508 = vsel %vm1507, %v3476, %v3256
      %v3509 = vsel %vm1507, %v3477, %v3258
      %v3510 = vsel %vm1507, %v3478, %v3260
      %v3511 = vsel %vm1507, %v3479, %v3262
      %v3512 = vsel %vm1507, %v3480, %v3264
      %v3513 = vsel %vm1507, %v3481, %v3266
      %v3514 = vsel %vm1507, %v3482, %v3268
      %v3515 = vsel %vm1507, %v3483, %v3270
      %v3516 = vsel %vm1507, %v3484, %v3272
      %v3517 = vsel %vm1507, %v3485, %v3274
      %v3518 = vsel %vm1507, %v3486, %v3276
      %v3519 = vsel %vm1507, %v3487, %v3278
      %v3520 = vsel %vm1507, %v3488, %v3280
      %v3521 = vsel %vm1507, %v3489, %v3282
      %v3522 = vsel %vm1507, %v3490, %v3284
      %v3523 = vsel %vm1507, %v3491, %v3286
      %v3524 = vsel %vm1507, %v3492, %v3288
      %v3525 = vsel %vm1507, %v3493, %v3290
      %v3526 = vsel %vm1507, %v3494, %v3292
      %v3527 = vsel %vm1507, %v3495, %v3294
      %v3528 = vsel %vm1507, %v3496, %v3296
      %v3529 = vsel %vm1507, %v3497, %v3298
      %v3530 = vsel %vm1507, %v3498, %v3300
      %v3531 = vsel %vm1507, %v3499, %v3302
      %v3532 = vsel %vm1507, %v3500, %v3304
      %v3533 = vsel %vm1507, %v3501, %v3306
      %v3534 = vsel %vm1507, %v3502, %v3308
      %v3535 = vsel %vm1507, %v3503, %v3310
      %v3536 = vsel %vm1507, %v3504, %v3312
      %s3537 = scalar_lea.vmem %s1, 288
      %v3538 = vld [vmem:[%s3537] sm:$0xff]
      %v3539 = vld [vmem:[%s3537 + $0x8] sm:$0xff]
      %v3540 = vld [vmem:[%s3537 + $0x10] sm:$0xff]
      %v3541 = vld [vmem:[%s3537 + $0x18] sm:$0xff]
      %v3542 = vld [vmem:[%s3537 + $0x20] sm:$0xff]
      %v3543 = vld [vmem:[%s3537 + $0x28] sm:$0xff]
      %v3544 = vld [vmem:[%s3537 + $0x30] sm:$0xff]
      %v3545 = vld [vmem:[%s3537 + $0x38] sm:$0xff]
      %v3546 = vld [vmem:[%s3537 + $0x40] sm:$0xff]
      %v3547 = vld [vmem:[%s3537 + $0x48] sm:$0xff]
      %v3548 = vld [vmem:[%s3537 + $0x50] sm:$0xff]
      %v3549 = vld [vmem:[%s3537 + $0x58] sm:$0xff]
      %v3550 = vld [vmem:[%s3537 + $0x60] sm:$0xff]
      %v3551 = vld [vmem:[%s3537 + $0x68] sm:$0xff]
      %v3552 = vld [vmem:[%s3537 + $0x70] sm:$0xff]
      %v3553 = vld [vmem:[%s3537 + $0x78] sm:$0xff]
      %v3554 = vld [vmem:[%s3537 + $0x80] sm:$0xff]
      %v3555 = vld [vmem:[%s3537 + $0x88] sm:$0xff]
      %v3556 = vld [vmem:[%s3537 + $0x90] sm:$0xff]
      %v3557 = vld [vmem:[%s3537 + $0x98] sm:$0xff]
      %v3558 = vld [vmem:[%s3537 + $0xa0] sm:$0xff]
      %v3559 = vld [vmem:[%s3537 + $0xa8] sm:$0xff]
      %v3560 = vld [vmem:[%s3537 + $0xb0] sm:$0xff]
      %v3561 = vld [vmem:[%s3537 + $0xb8] sm:$0xff]
      %v3562 = vld [vmem:[%s3537 + $0xc0] sm:$0xff]
      %v3563 = vld [vmem:[%s3537 + $0xc8] sm:$0xff]
      %v3564 = vld [vmem:[%s3537 + $0xd0] sm:$0xff]
      %v3565 = vld [vmem:[%s3537 + $0xd8] sm:$0xff]
      %v3566 = vld [vmem:[%s3537 + $0xe0] sm:$0xff]
      %v3567 = vld [vmem:[%s3537 + $0xe8] sm:$0xff]
      %v3568 = vld [vmem:[%s3537 + $0xf0] sm:$0xff]
      %v3569 = vld [vmem:[%s3537 + $0xf8] sm:$0xff]
      %v3570 = vld [vmem:[%s3537 + $0x100] sm:$0xff]
      %v3571 = vld [vmem:[%s3537 + $0x108] sm:$0xff]
      %v3572 = vld [vmem:[%s3537 + $0x110] sm:$0xff]
      %v3573 = vld [vmem:[%s3537 + $0x118] sm:$0xff]
      %s3574 = scalar_lea.vmem %s2, 1
      %v3575 = vld [vmem:[%s3574] sm:$0x1]
      %v3577 = vlaneseq
      %v3578 = vshrl.u32 %v3577, 7
      %v3579 = vsub.s32 0, %v3578
      %v3580 = vrot.slane %v3575, %v3579
      %v3583 = vsel %vm225, %v2545, 0
      %v3586 = vsel %vm225, %v2546, 0
      %v3589 = vsel %vm225, %v2547, 0
      %v3592 = vsel %vm225, %v2548, 0
      %v3595 = vsel %vm225, %v2549, 0
      %v3598 = vsel %vm225, %v2550, 0
      %v3601 = vsel %vm225, %v2551, 0
      %v3604 = vsel %vm225, %v2552, 0
      %v3607 = vsel %vm225, %v2553, 0
      %v3610 = vsel %vm225, %v2554, 0
      %v3613 = vsel %vm225, %v2555, 0
      %v3616 = vsel %vm225, %v2556, 0
      %v3619 = vsel %vm225, %v2557, 0
      %v3622 = vsel %vm225, %v2558, 0
      %v3625 = vsel %vm225, %v2559, 0
      %v3628 = vsel %vm225, %v2560, 0
      %v3631 = vsel %vm225, %v2561, 0
      %v3634 = vsel %vm225, %v2562, 0
      %v3637 = vsel %vm225, %v2563, 0
      %v3640 = vsel %vm225, %v2564, 0
      %v3643 = vsel %vm225, %v2565, 0
      %v3646 = vsel %vm225, %v2566, 0
      %v3649 = vsel %vm225, %v2567, 0
      %v3652 = vsel %vm225, %v2568, 0
      %v3655 = vsel %vm225, %v2569, 0
      %v3658 = vsel %vm225, %v2570, 0
      %v3661 = vsel %vm225, %v2571, 0
      %v3664 = vsel %vm225, %v2572, 0
      %v3667 = vsel %vm225, %v2573, 0
      %v3670 = vsel %vm225, %v2574, 0
      %v3673 = vsel %vm225, %v2575, 0
      %v3676 = vsel %vm225, %v2576, 0
      %3678 = vmatprep.subr.mxu0 0.0
      %3679 = vmatpush1.msra.mxu0 %v3538
      %3680 = vmatprep.subr.mxu0 0.0
      %3681 = vmatpush1.msra.mxu0 %v3539
      %3682 = vmatprep.subr.mxu0 0.0
      %3683 = vmatpush1.msra.mxu0 %v3540
      %3684 = vmatprep.subr.mxu0 0.0
      %3685 = vmatpush1.msra.mxu0 %v3541
      %3686 = vmatprep.subr.mxu0 0.0
      %3687 = vmatpush1.msra.mxu0 %v3542
      %3688 = vmatprep.subr.mxu0 0.0
      %3689 = vmatpush1.msra.mxu0 %v3543
      %3690 = vmatprep.subr.mxu0 0.0
      %3691 = vmatpush1.msra.mxu0 %v3544
      %3692 = vmatprep.subr.mxu0 0.0
      %3693 = vmatpush1.msra.mxu0 %v3545
      %3694 = vmatprep.subr.mxu0 0.0
      %3695 = vmatpush1.msra.mxu0 %v3546
      %3696 = vmatprep.subr.mxu0 0.0
      %3697 = vmatpush1.msra.mxu0 %v3547
      %3698 = vmatprep.subr.mxu0 0.0
      %3699 = vmatpush1.msra.mxu0 %v3548
      %3700 = vmatprep.subr.mxu0 0.0
      %3701 = vmatpush1.msra.mxu0 %v3549
      %3702 = vmatprep.subr.mxu0 0.0
      %3703 = vmatpush1.msra.mxu0 %v3550
      %3704 = vmatprep.subr.mxu0 0.0
      %3705 = vmatpush1.msra.mxu0 %v3551
      %3706 = vmatprep.subr.mxu0 0.0
      %3707 = vmatpush1.msra.mxu0 %v3552
      %3708 = vmatprep.subr.mxu0 0.0
      %3709 = vmatpush1.msra.mxu0 %v3553
      %3710 = vmatprep.subr.mxu0 0.0
      %3711 = vmatpush1.msra.mxu0 %v3554
      %3712 = vmatprep.subr.mxu0 0.0
      %3713 = vmatpush1.msra.mxu0 %v3555
      %3714 = vmatprep.subr.mxu0 0.0
      %3715 = vmatpush1.msra.mxu0 %v3556
      %3716 = vmatprep.subr.mxu0 0.0
      %3717 = vmatpush1.msra.mxu0 %v3557
      %3718 = vmatprep.subr.mxu0 0.0
      %3719 = vmatpush1.msra.mxu0 %v3558
      %3720 = vmatprep.subr.mxu0 0.0
      %3721 = vmatpush1.msra.mxu0 %v3559
      %3722 = vmatprep.subr.mxu0 0.0
      %3723 = vmatpush1.msra.mxu0 %v3560
      %3724 = vmatprep.subr.mxu0 0.0
      %3725 = vmatpush1.msra.mxu0 %v3561
      %3726 = vmatprep.subr.mxu0 0.0
      %3727 = vmatpush1.msra.mxu0 %v3562
      %3728 = vmatprep.subr.mxu0 0.0
      %3729 = vmatpush1.msra.mxu0 %v3563
      %3730 = vmatprep.subr.mxu0 0.0
      %3731 = vmatpush1.msra.mxu0 %v3564
      %3732 = vmatprep.subr.mxu0 0.0
      %3733 = vmatpush1.msra.mxu0 %v3565
      %3734 = vmatprep.subr.mxu0 0.0
      %3735 = vmatpush1.msra.mxu0 %v3566
      %3736 = vmatprep.subr.mxu0 0.0
      %3737 = vmatpush1.msra.mxu0 %v3567
      %3738 = vmatprep.subr.mxu0 0.0
      %3739 = vmatpush1.msra.mxu0 %v3568
      %3740 = vmatprep.subr.mxu0 0.0
      %3741 = vmatpush1.msra.mxu0 %v3569
      %3742 = vmatprep.mubr.f32.mxu0 %v3505
      %3743 = vmatmul.mubr.f32.gmra.mrb[0].mxu0 %v3409
      %v3744 = vpop.f32.mrb[0].mxu0
      %v3745 = vadd.f32 %v3580, %v3744
      %v3746 = vpop.f32.mrb[0].mxu0
      %3747 = vmatprep.mubr.f32.mxu0 %v3506
      %3748 = vmatmul.mubr.f32.gmra.mrb[0].mxu0 %v3410
      %v3749 = vpop.f32.mrb[0].mxu0
      %v3750 = vadd.f32 %v3580, %v3749
      %v3751 = vpop.f32.mrb[0].mxu0
      %3752 = vmatprep.mubr.f32.mxu0 %v3507
      %3753 = vmatmul.mubr.f32.gmra.mrb[0].mxu0 %v3411
      %v3754 = vpop.f32.mrb[0].mxu0
      %v3755 = vadd.f32 %v3580, %v3754
      %v3756 = vpop.f32.mrb[0].mxu0
      %3757 = vmatprep.mubr.f32.mxu0 %v3508
      %3758 = vmatmul.mubr.f32.gmra.mrb[0].mxu0 %v3412
      %v3759 = vpop.f32.mrb[0].mxu0
      %v3760 = vadd.f32 %v3580, %v3759
      %v3761 = vpop.f32.mrb[0].mxu0
      %3762 = vmatprep.mubr.f32.mxu0 %v3509
      %3763 = vmatmul.mubr.f32.gmra.mrb[0].mxu0 %v3413
      %v3764 = vpop.f32.mrb[0].mxu0
      %v3765 = vadd.f32 %v3580, %v3764
      %v3766 = vpop.f32.mrb[0].mxu0
      %3767 = vmatprep.mubr.f32.mxu0 %v3510
      %3768 = vmatmul.mubr.f32.gmra.mrb[0].mxu0 %v3414
      %v3769 = vpop.f32.mrb[0].mxu0
      %v3770 = vadd.f32 %v3580, %v3769
      %v3771 = vpop.f32.mrb[0].mxu0
      %3772 = vmatprep.mubr.f32.mxu0 %v3511
      %3773 = vmatmul.mubr.f32.gmra.mrb[0].mxu0 %v3415
      %v3774 = vpop.f32.mrb[0].mxu0
      %v3775 = vadd.f32 %v3580, %v3774
      %v3776 = vpop.f32.mrb[0].mxu0
      %3777 = vmatprep.mubr.f32.mxu0 %v3512
      %3778 = vmatmul.mubr.f32.gmra.mrb[0].mxu0 %v3416
      %v3779 = vpop.f32.mrb[0].mxu0
      %v3780 = vadd.f32 %v3580, %v3779
      %v3781 = vpop.f32.mrb[0].mxu0
      %3782 = vmatprep.mubr.f32.mxu0 %v3513
      %3783 = vmatmul.mubr.f32.gmra.mrb[0].mxu0 %v3417
      %v3784 = vpop.f32.mrb[0].mxu0
      %v3785 = vadd.f32 %v3580, %v3784
      %v3786 = vpop.f32.mrb[0].mxu0
      %3787 = vmatprep.mubr.f32.mxu0 %v3514
      %3788 = vmatmul.mubr.f32.gmra.mrb[0].mxu0 %v3418
      %v3789 = vpop.f32.mrb[0].mxu0
      %v3790 = vadd.f32 %v3580, %v3789
      %v3791 = vpop.f32.mrb[0].mxu0
      %3792 = vmatprep.mubr.f32.mxu0 %v3515
      %3793 = vmatmul.mubr.f32.gmra.mrb[0].mxu0 %v3419
      %v3794 = vpop.f32.mrb[0].mxu0
      %v3795 = vadd.f32 %v3580, %v3794
      %v3796 = vpop.f32.mrb[0].mxu0
      %3797 = vmatprep.mubr.f32.mxu0 %v3516
      %3798 = vmatmul.mubr.f32.gmra.mrb[0].mxu0 %v3420
      %v3799 = vpop.f32.mrb[0].mxu0
      %v3800 = vadd.f32 %v3580, %v3799
      %v3801 = vpop.f32.mrb[0].mxu0
      %3802 = vmatprep.mubr.f32.mxu0 %v3517
      %3803 = vmatmul.mubr.f32.gmra.mrb[0].mxu0 %v3421
      %v3804 = vpop.f32.mrb[0].mxu0
      %v3805 = vadd.f32 %v3580, %v3804
      %v3806 = vpop.f32.mrb[0].mxu0
      %3807 = vmatprep.mubr.f32.mxu0 %v3518
      %3808 = vmatmul.mubr.f32.gmra.mrb[0].mxu0 %v3422
      %v3809 = vpop.f32.mrb[0].mxu0
      %v3810 = vadd.f32 %v3580, %v3809
      %v3811 = vpop.f32.mrb[0].mxu0
      %3812 = vmatprep.mubr.f32.mxu0 %v3519
      %3813 = vmatmul.mubr.f32.gmra.mrb[0].mxu0 %v3423
      %v3814 = vpop.f32.mrb[0].mxu0
      %v3815 = vadd.f32 %v3580, %v3814
      %v3816 = vpop.f32.mrb[0].mxu0
      %3817 = vmatprep.mubr.f32.mxu0 %v3520
      %3818 = vmatmul.mubr.f32.gmra.mrb[0].mxu0 %v3424
      %v3819 = vpop.f32.mrb[0].mxu0
      %v3820 = vadd.f32 %v3580, %v3819
      %v3821 = vpop.f32.mrb[0].mxu0
      %3822 = vmatprep.mubr.f32.mxu0 %v3521
      %3823 = vmatmul.mubr.f32.gmra.mrb[0].mxu0 %v3425
      %v3824 = vpop.f32.mrb[0].mxu0
      %v3825 = vadd.f32 %v3580, %v3824
      %v3826 = vpop.f32.mrb[0].mxu0
      %3827 = vmatprep.mubr.f32.mxu0 %v3522
      %3828 = vmatmul.mubr.f32.gmra.mrb[0].mxu0 %v3426
      %v3829 = vpop.f32.mrb[0].mxu0
      %v3830 = vadd.f32 %v3580, %v3829
      %v3831 = vpop.f32.mrb[0].mxu0
      %3832 = vmatprep.mubr.f32.mxu0 %v3523
      %3833 = vmatmul.mubr.f32.gmra.mrb[0].mxu0 %v3427
      %v3834 = vpop.f32.mrb[0].mxu0
      %v3835 = vadd.f32 %v3580, %v3834
      %v3836 = vpop.f32.mrb[0].mxu0
      %3837 = vmatprep.mubr.f32.mxu0 %v3524
      %3838 = vmatmul.mubr.f32.gmra.mrb[0].mxu0 %v3428
      %v3839 = vpop.f32.mrb[0].mxu0
      %v3840 = vadd.f32 %v3580, %v3839
      %v3841 = vpop.f32.mrb[0].mxu0
      %3842 = vmatprep.mubr.f32.mxu0 %v3525
      %3843 = vmatmul.mubr.f32.gmra.mrb[0].mxu0 %v3429
      %v3844 = vpop.f32.mrb[0].mxu0
      %v3845 = vadd.f32 %v3580, %v3844
      %v3846 = vpop.f32.mrb[0].mxu0
      %3847 = vmatprep.mubr.f32.mxu0 %v3526
      %3848 = vmatmul.mubr.f32.gmra.mrb[0].mxu0 %v3430
      %v3849 = vpop.f32.mrb[0].mxu0
      %v3850 = vadd.f32 %v3580, %v3849
      %v3851 = vpop.f32.mrb[0].mxu0
      %3852 = vmatprep.mubr.f32.mxu0 %v3527
      %3853 = vmatmul.mubr.f32.gmra.mrb[0].mxu0 %v3431
      %v3854 = vpop.f32.mrb[0].mxu0
      %v3855 = vadd.f32 %v3580, %v3854
      %v3856 = vpop.f32.mrb[0].mxu0
      %3857 = vmatprep.mubr.f32.mxu0 %v3528
      %3858 = vmatmul.mubr.f32.gmra.mrb[0].mxu0 %v3432
      %v3859 = vpop.f32.mrb[0].mxu0
      %v3860 = vadd.f32 %v3580, %v3859
      %v3861 = vpop.f32.mrb[0].mxu0
      %3862 = vmatprep.mubr.f32.mxu0 %v3529
      %3863 = vmatmul.mubr.f32.gmra.mrb[0].mxu0 %v3433
      %v3864 = vpop.f32.mrb[0].mxu0
      %v3865 = vadd.f32 %v3580, %v3864
      %v3866 = vpop.f32.mrb[0].mxu0
      %3867 = vmatprep.mubr.f32.mxu0 %v3530
      %3868 = vmatmul.mubr.f32.gmra.mrb[0].mxu0 %v3434
      %v3869 = vpop.f32.mrb[0].mxu0
      %v3870 = vadd.f32 %v3580, %v3869
      %v3871 = vpop.f32.mrb[0].mxu0
      %3872 = vmatprep.mubr.f32.mxu0 %v3531
      %3873 = vmatmul.mubr.f32.gmra.mrb[0].mxu0 %v3435
      %v3874 = vpop.f32.mrb[0].mxu0
      %v3875 = vadd.f32 %v3580, %v3874
      %v3876 = vpop.f32.mrb[0].mxu0
      %3877 = vmatprep.mubr.f32.mxu0 %v3532
      %3878 = vmatmul.mubr.f32.gmra.mrb[0].mxu0 %v3436
      %v3879 = vpop.f32.mrb[0].mxu0
      %v3880 = vadd.f32 %v3580, %v3879
      %v3881 = vpop.f32.mrb[0].mxu0
      %3882 = vmatprep.mubr.f32.mxu0 %v3533
      %3883 = vmatmul.mubr.f32.gmra.mrb[0].mxu0 %v3437
      %v3884 = vpop.f32.mrb[0].mxu0
      %v3885 = vadd.f32 %v3580, %v3884
      %v3886 = vpop.f32.mrb[0].mxu0
      %3887 = vmatprep.mubr.f32.mxu0 %v3534
      %3888 = vmatmul.mubr.f32.gmra.mrb[0].mxu0 %v3438
      %v3889 = vpop.f32.mrb[0].mxu0
      %v3890 = vadd.f32 %v3580, %v3889
      %v3891 = vpop.f32.mrb[0].mxu0
      %3892 = vmatprep.mubr.f32.mxu0 %v3535
      %3893 = vmatmul.mubr.f32.gmra.mrb[0].mxu0 %v3439
      %v3894 = vpop.f32.mrb[0].mxu0
      %v3895 = vadd.f32 %v3580, %v3894
      %v3896 = vpop.f32.mrb[0].mxu0
      %3897 = vmatprep.mubr.f32.mxu0 %v3536
      %3898 = vmatmul.mubr.f32.gmra.mrb[0].mxu0 %v3440
      %v3899 = vpop.f32.mrb[0].mxu0
      %v3900 = vadd.f32 %v3580, %v3899
      %v3901 = vpop.f32.mrb[0].mxu0
      %3902 = vdwg.mxu0
      %3903 = vmatprep.subr.mxu0 0.0
      %3904 = vmatpush1.msra.mxu0 %v3570
      %3905 = vmatprep.subr.mxu0 0.0
      %3906 = vmatpush1.msra.mxu0 %v3571
      %3907 = vmatprep.subr.mxu0 0.0
      %3908 = vmatpush1.msra.mxu0 %v3572
      %3909 = vmatprep.subr.mxu0 0.0
      %3910 = vmatpush1.msra.mxu0 %v3573
      %3911 = vmatprep.subr.mxu0 0.0
      %3912 = vmatpush1.msra.mxu0 0.0
      %3913 = vmatprep.subr.mxu0 0.0
      %3914 = vmatpush1.msra.mxu0 0.0
      %3915 = vmatprep.subr.mxu0 0.0
      %3916 = vmatpush1.msra.mxu0 0.0
      %3917 = vmatprep.subr.mxu0 0.0
      %3918 = vmatpush1.msra.mxu0 0.0
      %3919 = vmatprep.subr.mxu0 0.0
      %3920 = vmatpush1.msra.mxu0 0.0
      %3921 = vmatprep.subr.mxu0 0.0
      %3922 = vmatpush1.msra.mxu0 0.0
      %3923 = vmatprep.subr.mxu0 0.0
      %3924 = vmatpush1.msra.mxu0 0.0
      %3925 = vmatprep.subr.mxu0 0.0
      %3926 = vmatpush1.msra.mxu0 0.0
      %3927 = vmatprep.subr.mxu0 0.0
      %3928 = vmatpush1.msra.mxu0 0.0
      %3929 = vmatprep.subr.mxu0 0.0
      %3930 = vmatpush1.msra.mxu0 0.0
      %3931 = vmatprep.subr.mxu0 0.0
      %3932 = vmatpush1.msra.mxu0 0.0
      %3933 = vmatprep.subr.mxu0 0.0
      %3934 = vmatpush1.msra.mxu0 0.0
      %3935 = vmatprep.subr.mxu0 0.0
      %3936 = vmatpush1.msra.mxu0 0.0
      %3937 = vmatprep.subr.mxu0 0.0
      %3938 = vmatpush1.msra.mxu0 0.0
      %3939 = vmatprep.subr.mxu0 0.0
      %3940 = vmatpush1.msra.mxu0 0.0
      %3941 = vmatprep.subr.mxu0 0.0
      %3942 = vmatpush1.msra.mxu0 0.0
      %3943 = vmatprep.subr.mxu0 0.0
      %3944 = vmatpush1.msra.mxu0 0.0
      %3945 = vmatprep.subr.mxu0 0.0
      %3946 = vmatpush1.msra.mxu0 0.0
      %3947 = vmatprep.subr.mxu0 0.0
      %3948 = vmatpush1.msra.mxu0 0.0
      %3949 = vmatprep.subr.mxu0 0.0
      %3950 = vmatpush1.msra.mxu0 0.0
      %3951 = vmatprep.subr.mxu0 0.0
      %3952 = vmatpush1.msra.mxu0 0.0
      %3953 = vmatprep.subr.mxu0 0.0
      %3954 = vmatpush1.msra.mxu0 0.0
      %3955 = vmatprep.subr.mxu0 0.0
      %3956 = vmatpush1.msra.mxu0 0.0
      %3957 = vmatprep.subr.mxu0 0.0
      %3958 = vmatpush1.msra.mxu0 0.0
      %3959 = vmatprep.subr.mxu0 0.0
      %3960 = vmatpush1.msra.mxu0 0.0
      %3961 = vmatprep.subr.mxu0 0.0
      %3962 = vmatpush1.msra.mxu0 0.0
      %3963 = vmatprep.subr.mxu0 0.0
      %3964 = vmatpush1.msra.mxu0 0.0
      %3965 = vmatprep.subr.mxu0 0.0
      %3966 = vmatpush1.msra.mxu0 0.0
      %3967 = vmatprep.mubr.f32.mxu0 0.0
      %3968 = vmatmul.mubr.f32.gmra.mrb[0].mxu0 %v3583
      %v3969 = vpop.f32.mrb[0].mxu0
      %v3970 = vadd.f32 %v3745, %v3969
      %v3971 = vpop.f32.mrb[0].mxu0
      %3972 = vmatprep.mubr.f32.mxu0 0.0
      %3973 = vmatmul.mubr.f32.gmra.mrb[0].mxu0 %v3586
      %v3974 = vpop.f32.mrb[0].mxu0
      %v3975 = vadd.f32 %v3750, %v3974
      %v3976 = vpop.f32.mrb[0].mxu0
      %3977 = vmatprep.mubr.f32.mxu0 0.0
      %3978 = vmatmul.mubr.f32.gmra.mrb[0].mxu0 %v3589
      %v3979 = vpop.f32.mrb[0].mxu0
      %v3980 = vadd.f32 %v3755, %v3979
      %v3981 = vpop.f32.mrb[0].mxu0
      %3982 = vmatprep.mubr.f32.mxu0 0.0
      %3983 = vmatmul.mubr.f32.gmra.mrb[0].mxu0 %v3592
      %v3984 = vpop.f32.mrb[0].mxu0
      %v3985 = vadd.f32 %v3760, %v3984
      %v3986 = vpop.f32.mrb[0].mxu0
      %3987 = vmatprep.mubr.f32.mxu0 0.0
      %3988 = vmatmul.mubr.f32.gmra.mrb[0].mxu0 %v3595
      %v3989 = vpop.f32.mrb[0].mxu0
      %v3990 = vadd.f32 %v3765, %v3989
      %v3991 = vpop.f32.mrb[0].mxu0
      %3992 = vmatprep.mubr.f32.mxu0 0.0
      %3993 = vmatmul.mubr.f32.gmra.mrb[0].mxu0 %v3598
      %v3994 = vpop.f32.mrb[0].mxu0
      %v3995 = vadd.f32 %v3770, %v3994
      %v3996 = vpop.f32.mrb[0].mxu0
      %3997 = vmatprep.mubr.f32.mxu0 0.0
      %3998 = vmatmul.mubr.f32.gmra.mrb[0].mxu0 %v3601
      %v3999 = vpop.f32.mrb[0].mxu0
      %v4000 = vadd.f32 %v3775, %v3999
      %v4001 = vpop.f32.mrb[0].mxu0
      %4002 = vmatprep.mubr.f32.mxu0 0.0
      %4003 = vmatmul.mubr.f32.gmra.mrb[0].mxu0 %v3604
      %v4004 = vpop.f32.mrb[0].mxu0
      %v4005 = vadd.f32 %v3780, %v4004
      %v4006 = vpop.f32.mrb[0].mxu0
      %4007 = vmatprep.mubr.f32.mxu0 0.0
      %4008 = vmatmul.mubr.f32.gmra.mrb[0].mxu0 %v3607
      %v4009 = vpop.f32.mrb[0].mxu0
      %v4010 = vadd.f32 %v3785, %v4009
      %v4011 = vpop.f32.mrb[0].mxu0
      %4012 = vmatprep.mubr.f32.mxu0 0.0
      %4013 = vmatmul.mubr.f32.gmra.mrb[0].mxu0 %v3610
      %v4014 = vpop.f32.mrb[0].mxu0
      %v4015 = vadd.f32 %v3790, %v4014
      %v4016 = vpop.f32.mrb[0].mxu0
      %4017 = vmatprep.mubr.f32.mxu0 0.0
      %4018 = vmatmul.mubr.f32.gmra.mrb[0].mxu0 %v3613
      %v4019 = vpop.f32.mrb[0].mxu0
      %v4020 = vadd.f32 %v3795, %v4019
      %v4021 = vpop.f32.mrb[0].mxu0
      %4022 = vmatprep.mubr.f32.mxu0 0.0
      %4023 = vmatmul.mubr.f32.gmra.mrb[0].mxu0 %v3616
      %v4024 = vpop.f32.mrb[0].mxu0
      %v4025 = vadd.f32 %v3800, %v4024
      %v4026 = vpop.f32.mrb[0].mxu0
      %4027 = vmatprep.mubr.f32.mxu0 0.0
      %4028 = vmatmul.mubr.f32.gmra.mrb[0].mxu0 %v3619
      %v4029 = vpop.f32.mrb[0].mxu0
      %v4030 = vadd.f32 %v3805, %v4029
      %v4031 = vpop.f32.mrb[0].mxu0
      %4032 = vmatprep.mubr.f32.mxu0 0.0
      %4033 = vmatmul.mubr.f32.gmra.mrb[0].mxu0 %v3622
      %v4034 = vpop.f32.mrb[0].mxu0
      %v4035 = vadd.f32 %v3810, %v4034
      %v4036 = vpop.f32.mrb[0].mxu0
      %4037 = vmatprep.mubr.f32.mxu0 0.0
      %4038 = vmatmul.mubr.f32.gmra.mrb[0].mxu0 %v3625
      %v4039 = vpop.f32.mrb[0].mxu0
      %v4040 = vadd.f32 %v3815, %v4039
      %v4041 = vpop.f32.mrb[0].mxu0
      %4042 = vmatprep.mubr.f32.mxu0 0.0
      %4043 = vmatmul.mubr.f32.gmra.mrb[0].mxu0 %v3628
      %v4044 = vpop.f32.mrb[0].mxu0
      %v4045 = vadd.f32 %v3820, %v4044
      %v4046 = vpop.f32.mrb[0].mxu0
      %4047 = vmatprep.mubr.f32.mxu0 0.0
      %4048 = vmatmul.mubr.f32.gmra.mrb[0].mxu0 %v3631
      %v4049 = vpop.f32.mrb[0].mxu0
      %v4050 = vadd.f32 %v3825, %v4049
      %v4051 = vpop.f32.mrb[0].mxu0
      %4052 = vmatprep.mubr.f32.mxu0 0.0
      %4053 = vmatmul.mubr.f32.gmra.mrb[0].mxu0 %v3634
      %v4054 = vpop.f32.mrb[0].mxu0
      %v4055 = vadd.f32 %v3830, %v4054
      %v4056 = vpop.f32.mrb[0].mxu0
      %4057 = vmatprep.mubr.f32.mxu0 0.0
      %4058 = vmatmul.mubr.f32.gmra.mrb[0].mxu0 %v3637
      %v4059 = vpop.f32.mrb[0].mxu0
      %v4060 = vadd.f32 %v3835, %v4059
      %v4061 = vpop.f32.mrb[0].mxu0
      %4062 = vmatprep.mubr.f32.mxu0 0.0
      %4063 = vmatmul.mubr.f32.gmra.mrb[0].mxu0 %v3640
      %v4064 = vpop.f32.mrb[0].mxu0
      %v4065 = vadd.f32 %v3840, %v4064
      %v4066 = vpop.f32.mrb[0].mxu0
      %4067 = vmatprep.mubr.f32.mxu0 0.0
      %4068 = vmatmul.mubr.f32.gmra.mrb[0].mxu0 %v3643
      %v4069 = vpop.f32.mrb[0].mxu0
      %v4070 = vadd.f32 %v3845, %v4069
      %v4071 = vpop.f32.mrb[0].mxu0
      %4072 = vmatprep.mubr.f32.mxu0 0.0
      %4073 = vmatmul.mubr.f32.gmra.mrb[0].mxu0 %v3646
      %v4074 = vpop.f32.mrb[0].mxu0
      %v4075 = vadd.f32 %v3850, %v4074
      %v4076 = vpop.f32.mrb[0].mxu0
      %4077 = vmatprep.mubr.f32.mxu0 0.0
      %4078 = vmatmul.mubr.f32.gmra.mrb[0].mxu0 %v3649
      %v4079 = vpop.f32.mrb[0].mxu0
      %v4080 = vadd.f32 %v3855, %v4079
      %v4081 = vpop.f32.mrb[0].mxu0
      %4082 = vmatprep.mubr.f32.mxu0 0.0
      %4083 = vmatmul.mubr.f32.gmra.mrb[0].mxu0 %v3652
      %v4084 = vpop.f32.mrb[0].mxu0
      %v4085 = vadd.f32 %v3860, %v4084
      %v4086 = vpop.f32.mrb[0].mxu0
      %4087 = vmatprep.mubr.f32.mxu0 0.0
      %4088 = vmatmul.mubr.f32.gmra.mrb[0].mxu0 %v3655
      %v4089 = vpop.f32.mrb[0].mxu0
      %v4090 = vadd.f32 %v3865, %v4089
      %v4091 = vpop.f32.mrb[0].mxu0
      %4092 = vmatprep.mubr.f32.mxu0 0.0
      %4093 = vmatmul.mubr.f32.gmra.mrb[0].mxu0 %v3658
      %v4094 = vpop.f32.mrb[0].mxu0
      %v4095 = vadd.f32 %v3870, %v4094
      %v4096 = vpop.f32.mrb[0].mxu0
      %4097 = vmatprep.mubr.f32.mxu0 0.0
      %4098 = vmatmul.mubr.f32.gmra.mrb[0].mxu0 %v3661
      %v4099 = vpop.f32.mrb[0].mxu0
      %v4100 = vadd.f32 %v3875, %v4099
      %v4101 = vpop.f32.mrb[0].mxu0
      %4102 = vmatprep.mubr.f32.mxu0 0.0
      %4103 = vmatmul.mubr.f32.gmra.mrb[0].mxu0 %v3664
      %v4104 = vpop.f32.mrb[0].mxu0
      %v4105 = vadd.f32 %v3880, %v4104
      %v4106 = vpop.f32.mrb[0].mxu0
      %4107 = vmatprep.mubr.f32.mxu0 0.0
      %4108 = vmatmul.mubr.f32.gmra.mrb[0].mxu0 %v3667
      %v4109 = vpop.f32.mrb[0].mxu0
      %v4110 = vadd.f32 %v3885, %v4109
      %v4111 = vpop.f32.mrb[0].mxu0
      %4112 = vmatprep.mubr.f32.mxu0 0.0
      %4113 = vmatmul.mubr.f32.gmra.mrb[0].mxu0 %v3670
      %v4114 = vpop.f32.mrb[0].mxu0
      %v4115 = vadd.f32 %v3890, %v4114
      %v4116 = vpop.f32.mrb[0].mxu0
      %4117 = vmatprep.mubr.f32.mxu0 0.0
      %4118 = vmatmul.mubr.f32.gmra.mrb[0].mxu0 %v3673
      %v4119 = vpop.f32.mrb[0].mxu0
      %v4120 = vadd.f32 %v3895, %v4119
      %v4121 = vpop.f32.mrb[0].mxu0
      %4122 = vmatprep.mubr.f32.mxu0 0.0
      %4123 = vmatmul.mubr.f32.gmra.mrb[0].mxu0 %v3676
      %v4124 = vpop.f32.mrb[0].mxu0
      %v4125 = vadd.f32 %v3900, %v4124
      %v4126 = vpop.f32.mrb[0].mxu0
      %4127 = vdwg.mxu0
      %v4128 = vmax.f32 %v3970, 0.0
      %v4129 = vmax.f32 %v3975, 0.0
      %v4130 = vmax.f32 %v3980, 0.0
      %v4131 = vmax.f32 %v3985, 0.0
      %v4132 = vmax.f32 %v3990, 0.0
      %v4133 = vmax.f32 %v3995, 0.0
      %v4134 = vmax.f32 %v4000, 0.0
      %v4135 = vmax.f32 %v4005, 0.0
      %v4136 = vmax.f32 %v4010, 0.0
      %v4137 = vmax.f32 %v4015, 0.0
      %v4138 = vmax.f32 %v4020, 0.0
      %v4139 = vmax.f32 %v4025, 0.0
      %v4140 = vmax.f32 %v4030, 0.0
      %v4141 = vmax.f32 %v4035, 0.0
      %v4142 = vmax.f32 %v4040, 0.0
      %v4143 = vmax.f32 %v4045, 0.0
      %v4144 = vmax.f32 %v4050, 0.0
      %v4145 = vmax.f32 %v4055, 0.0
      %v4146 = vmax.f32 %v4060, 0.0
      %v4147 = vmax.f32 %v4065, 0.0
      %v4148 = vmax.f32 %v4070, 0.0
      %v4149 = vmax.f32 %v4075, 0.0
      %v4150 = vmax.f32 %v4080, 0.0
      %v4151 = vmax.f32 %v4085, 0.0
      %v4152 = vmax.f32 %v4090, 0.0
      %v4153 = vmax.f32 %v4095, 0.0
      %v4154 = vmax.f32 %v4100, 0.0
      %v4155 = vmax.f32 %v4105, 0.0
      %v4156 = vmax.f32 %v4110, 0.0
      %v4157 = vmax.f32 %v4115, 0.0
      %v4158 = vmax.f32 %v4120, 0.0
      %v4159 = vmax.f32 %v4125, 0.0
      %4160 = vst.msk [vmem:[%s352 + $0x1] sm:$0xff] %vm225, %v4128
      %4161 = vst.msk [vmem:[%s352 + $0x9] sm:$0xff] %vm225, %v4129
      %4162 = vst.msk [vmem:[%s352 + $0x19] sm:$0xff] %vm225, %v4130
      %4163 = vst.msk [vmem:[%s352 + $0x21] sm:$0xff] %vm225, %v4131
      %4164 = vst.msk [vmem:[%s352 + $0x31] sm:$0xff] %vm225, %v4132
      %4165 = vst.msk [vmem:[%s352 + $0x39] sm:$0xff] %vm225, %v4133
      %4166 = vst.msk [vmem:[%s352 + $0x49] sm:$0xff] %vm225, %v4134
      %4167 = vst.msk [vmem:[%s352 + $0x51] sm:$0xff] %vm225, %v4135
      %4168 = vst.msk [vmem:[%s352 + $0x61] sm:$0xff] %vm225, %v4136
      %4169 = vst.msk [vmem:[%s352 + $0x69] sm:$0xff] %vm225, %v4137
      %4170 = vst.msk [vmem:[%s352 + $0x79] sm:$0xff] %vm225, %v4138
      %4171 = vst.msk [vmem:[%s352 + $0x81] sm:$0xff] %vm225, %v4139
      %4172 = vst.msk [vmem:[%s352 + $0x91] sm:$0xff] %vm225, %v4140
      %4173 = vst.msk [vmem:[%s352 + $0x99] sm:$0xff] %vm225, %v4141
      %4174 = vst.msk [vmem:[%s352 + $0xa9] sm:$0xff] %vm225, %v4142
      %4175 = vst.msk [vmem:[%s352 + $0xb1] sm:$0xff] %vm225, %v4143
      %4176 = vst.msk [vmem:[%s352 + $0xc1] sm:$0xff] %vm225, %v4144
      %4177 = vst.msk [vmem:[%s352 + $0xc9] sm:$0xff] %vm225, %v4145
      %4178 = vst.msk [vmem:[%s352 + $0xd9] sm:$0xff] %vm225, %v4146
      %4179 = vst.msk [vmem:[%s352 + $0xe1] sm:$0xff] %vm225, %v4147
      %4180 = vst.msk [vmem:[%s352 + $0xf1] sm:$0xff] %vm225, %v4148
      %4181 = vst.msk [vmem:[%s352 + $0xf9] sm:$0xff] %vm225, %v4149
      %4182 = vst.msk [vmem:[%s352 + $0x109] sm:$0xff] %vm225, %v4150
      %4183 = vst.msk [vmem:[%s352 + $0x111] sm:$0xff] %vm225, %v4151
      %4184 = vst.msk [vmem:[%s352 + $0x121] sm:$0xff] %vm225, %v4152
      %4185 = vst.msk [vmem:[%s352 + $0x129] sm:$0xff] %vm225, %v4153
      %4186 = vst.msk [vmem:[%s352 + $0x139] sm:$0xff] %vm225, %v4154
      %4187 = vst.msk [vmem:[%s352 + $0x141] sm:$0xff] %vm225, %v4155
      %4188 = vst.msk [vmem:[%s352 + $0x151] sm:$0xff] %vm225, %v4156
      %4189 = vst.msk [vmem:[%s352 + $0x159] sm:$0xff] %vm225, %v4157
      %4190 = vst.msk [vmem:[%s352 + $0x169] sm:$0xff] %vm225, %v4158
      %4191 = vst.msk [vmem:[%s352 + $0x171] sm:$0xff] %vm225, %v4159
      %v4192 = vld [vmem:[#allocation2] sm:$0xff]
      %v4193 = vld [vmem:[#allocation2 + $0x8] sm:$0xff]
      %v4194 = vld [vmem:[#allocation2 + $0x18] sm:$0xff]
      %v4195 = vld [vmem:[#allocation2 + $0x20] sm:$0xff]
      %v4196 = vld [vmem:[#allocation2 + $0x30] sm:$0xff]
      %v4197 = vld [vmem:[#allocation2 + $0x38] sm:$0xff]
      %v4198 = vld [vmem:[#allocation2 + $0x48] sm:$0xff]
      %v4199 = vld [vmem:[#allocation2 + $0x50] sm:$0xff]
      %v4200 = vld [vmem:[#allocation2 + $0x60] sm:$0xff]
      %v4201 = vld [vmem:[#allocation2 + $0x68] sm:$0xff]
      %v4202 = vld [vmem:[#allocation2 + $0x78] sm:$0xff]
      %v4203 = vld [vmem:[#allocation2 + $0x80] sm:$0xff]
      %v4204 = vld [vmem:[#allocation2 + $0x90] sm:$0xff]
      %v4205 = vld [vmem:[#allocation2 + $0x98] sm:$0xff]
      %v4206 = vld [vmem:[#allocation2 + $0xa8] sm:$0xff]
      %v4207 = vld [vmem:[#allocation2 + $0xb0] sm:$0xff]
      %v4208 = vld [vmem:[#allocation2 + $0xc0] sm:$0xff]
      %v4209 = vld [vmem:[#allocation2 + $0xc8] sm:$0xff]
      %v4210 = vld [vmem:[#allocation2 + $0xd8] sm:$0xff]
      %v4211 = vld [vmem:[#allocation2 + $0xe0] sm:$0xff]
      %v4212 = vld [vmem:[#allocation2 + $0xf0] sm:$0xff]
      %v4213 = vld [vmem:[#allocation2 + $0xf8] sm:$0xff]
      %v4214 = vld [vmem:[#allocation2 + $0x108] sm:$0xff]
      %v4215 = vld [vmem:[#allocation2 + $0x110] sm:$0xff]
      %v4216 = vld [vmem:[#allocation2 + $0x120] sm:$0xff]
      %v4217 = vld [vmem:[#allocation2 + $0x128] sm:$0xff]
      %v4218 = vld [vmem:[#allocation2 + $0x138] sm:$0xff]
      %v4219 = vld [vmem:[#allocation2 + $0x140] sm:$0xff]
      %v4220 = vld [vmem:[#allocation2 + $0x150] sm:$0xff]
      %v4221 = vld [vmem:[#allocation2 + $0x158] sm:$0xff]
      %v4222 = vld [vmem:[#allocation2 + $0x168] sm:$0xff]
      %v4223 = vld [vmem:[#allocation2 + $0x170] sm:$0xff]
      %v4224 = vld [vmem:[#allocation2 + $0x1] sm:$0xff]
      %v4225 = vld [vmem:[#allocation2 + $0x9] sm:$0xff]
      %v4226 = vld [vmem:[#allocation2 + $0x19] sm:$0xff]
      %v4227 = vld [vmem:[#allocation2 + $0x21] sm:$0xff]
      %v4228 = vld [vmem:[#allocation2 + $0x31] sm:$0xff]
      %v4229 = vld [vmem:[#allocation2 + $0x39] sm:$0xff]
      %v4230 = vld [vmem:[#allocation2 + $0x49] sm:$0xff]
      %v4231 = vld [vmem:[#allocation2 + $0x51] sm:$0xff]
      %v4232 = vld [vmem:[#allocation2 + $0x61] sm:$0xff]
      %v4233 = vld [vmem:[#allocation2 + $0x69] sm:$0xff]
      %v4234 = vld [vmem:[#allocation2 + $0x79] sm:$0xff]
      %v4235 = vld [vmem:[#allocation2 + $0x81] sm:$0xff]
      %v4236 = vld [vmem:[#allocation2 + $0x91] sm:$0xff]
      %v4237 = vld [vmem:[#allocation2 + $0x99] sm:$0xff]
      %v4238 = vld [vmem:[#allocation2 + $0xa9] sm:$0xff]
      %v4239 = vld [vmem:[#allocation2 + $0xb1] sm:$0xff]
      %v4240 = vld [vmem:[#allocation2 + $0xc1] sm:$0xff]
      %v4241 = vld [vmem:[#allocation2 + $0xc9] sm:$0xff]
      %v4242 = vld [vmem:[#allocation2 + $0xd9] sm:$0xff]
      %v4243 = vld [vmem:[#allocation2 + $0xe1] sm:$0xff]
      %v4244 = vld [vmem:[#allocation2 + $0xf1] sm:$0xff]
      %v4245 = vld [vmem:[#allocation2 + $0xf9] sm:$0xff]
      %v4246 = vld [vmem:[#allocation2 + $0x109] sm:$0xff]
      %v4247 = vld [vmem:[#allocation2 + $0x111] sm:$0xff]
      %v4248 = vld [vmem:[#allocation2 + $0x121] sm:$0xff]
      %v4249 = vld [vmem:[#allocation2 + $0x129] sm:$0xff]
      %v4250 = vld [vmem:[#allocation2 + $0x139] sm:$0xff]
      %v4251 = vld [vmem:[#allocation2 + $0x141] sm:$0xff]
      %v4252 = vld [vmem:[#allocation2 + $0x151] sm:$0xff]
      %v4253 = vld [vmem:[#allocation2 + $0x159] sm:$0xff]
      %v4254 = vld [vmem:[#allocation2 + $0x169] sm:$0xff]
      %v4255 = vld [vmem:[#allocation2 + $0x171] sm:$0xff]
      %v4256 = vld [vmem:[#allocation2 + $0x2] sm:$0xff]
      %v4257 = vld [vmem:[#allocation2 + $0xa] sm:$0xff]
      %v4258 = vld [vmem:[#allocation2 + $0x1a] sm:$0xff]
      %v4259 = vld [vmem:[#allocation2 + $0x22] sm:$0xff]
      %v4260 = vld [vmem:[#allocation2 + $0x32] sm:$0xff]
      %v4261 = vld [vmem:[#allocation2 + $0x3a] sm:$0xff]
      %v4262 = vld [vmem:[#allocation2 + $0x4a] sm:$0xff]
      %v4263 = vld [vmem:[#allocation2 + $0x52] sm:$0xff]
      %v4264 = vld [vmem:[#allocation2 + $0x62] sm:$0xff]
      %v4265 = vld [vmem:[#allocation2 + $0x6a] sm:$0xff]
      %v4266 = vld [vmem:[#allocation2 + $0x7a] sm:$0xff]
      %v4267 = vld [vmem:[#allocation2 + $0x82] sm:$0xff]
      %v4268 = vld [vmem:[#allocation2 + $0x92] sm:$0xff]
      %v4269 = vld [vmem:[#allocation2 + $0x9a] sm:$0xff]
      %v4270 = vld [vmem:[#allocation2 + $0xaa] sm:$0xff]
      %v4271 = vld [vmem:[#allocation2 + $0xb2] sm:$0xff]
      %v4272 = vld [vmem:[#allocation2 + $0xc2] sm:$0xff]
      %v4273 = vld [vmem:[#allocation2 + $0xca] sm:$0xff]
      %v4274 = vld [vmem:[#allocation2 + $0xda] sm:$0xff]
      %v4275 = vld [vmem:[#allocation2 + $0xe2] sm:$0xff]
      %v4276 = vld [vmem:[#allocation2 + $0xf2] sm:$0xff]
      %v4277 = vld [vmem:[#allocation2 + $0xfa] sm:$0xff]
      %v4278 = vld [vmem:[#allocation2 + $0x10a] sm:$0xff]
      %v4279 = vld [vmem:[#allocation2 + $0x112] sm:$0xff]
      %v4280 = vld [vmem:[#allocation2 + $0x122] sm:$0xff]
      %v4281 = vld [vmem:[#allocation2 + $0x12a] sm:$0xff]
      %v4282 = vld [vmem:[#allocation2 + $0x13a] sm:$0xff]
      %v4283 = vld [vmem:[#allocation2 + $0x142] sm:$0xff]
      %v4284 = vld [vmem:[#allocation2 + $0x152] sm:$0xff]
      %v4285 = vld [vmem:[#allocation2 + $0x15a] sm:$0xff]
      %v4286 = vld [vmem:[#allocation2 + $0x16a] sm:$0xff]
      %v4287 = vld [vmem:[#allocation2 + $0x172] sm:$0xff]
      %v4288 = vld [vmem:[%s352] sm:$0xff]
      %v4289 = vld [vmem:[%s352 + $0x8] sm:$0xff]
      %v4290 = vld [vmem:[%s352 + $0x18] sm:$0xff]
      %v4291 = vld [vmem:[%s352 + $0x20] sm:$0xff]
      %v4292 = vld [vmem:[%s352 + $0x30] sm:$0xff]
      %v4293 = vld [vmem:[%s352 + $0x38] sm:$0xff]
      %v4294 = vld [vmem:[%s352 + $0x48] sm:$0xff]
      %v4295 = vld [vmem:[%s352 + $0x50] sm:$0xff]
      %v4296 = vld [vmem:[%s352 + $0x60] sm:$0xff]
      %v4297 = vld [vmem:[%s352 + $0x68] sm:$0xff]
      %v4298 = vld [vmem:[%s352 + $0x78] sm:$0xff]
      %v4299 = vld [vmem:[%s352 + $0x80] sm:$0xff]
      %v4300 = vld [vmem:[%s352 + $0x90] sm:$0xff]
      %v4301 = vld [vmem:[%s352 + $0x98] sm:$0xff]
      %v4302 = vld [vmem:[%s352 + $0xa8] sm:$0xff]
      %v4303 = vld [vmem:[%s352 + $0xb0] sm:$0xff]
      %v4304 = vld [vmem:[%s352 + $0xc0] sm:$0xff]
      %v4305 = vld [vmem:[%s352 + $0xc8] sm:$0xff]
      %v4306 = vld [vmem:[%s352 + $0xd8] sm:$0xff]
      %v4307 = vld [vmem:[%s352 + $0xe0] sm:$0xff]
      %v4308 = vld [vmem:[%s352 + $0xf0] sm:$0xff]
      %v4309 = vld [vmem:[%s352 + $0xf8] sm:$0xff]
      %v4310 = vld [vmem:[%s352 + $0x108] sm:$0xff]
      %v4311 = vld [vmem:[%s352 + $0x110] sm:$0xff]
      %v4312 = vld [vmem:[%s352 + $0x120] sm:$0xff]
      %v4313 = vld [vmem:[%s352 + $0x128] sm:$0xff]
      %v4314 = vld [vmem:[%s352 + $0x138] sm:$0xff]
      %v4315 = vld [vmem:[%s352 + $0x140] sm:$0xff]
      %v4316 = vld [vmem:[%s352 + $0x150] sm:$0xff]
      %v4317 = vld [vmem:[%s352 + $0x158] sm:$0xff]
      %v4318 = vld [vmem:[%s352 + $0x168] sm:$0xff]
      %v4319 = vld [vmem:[%s352 + $0x170] sm:$0xff]
      %v4320 = vld [vmem:[%s352 + $0x1] sm:$0xff]
      %v4321 = vld [vmem:[%s352 + $0x9] sm:$0xff]
      %v4322 = vld [vmem:[%s352 + $0x19] sm:$0xff]
      %v4323 = vld [vmem:[%s352 + $0x21] sm:$0xff]
      %v4324 = vld [vmem:[%s352 + $0x31] sm:$0xff]
      %v4325 = vld [vmem:[%s352 + $0x39] sm:$0xff]
      %v4326 = vld [vmem:[%s352 + $0x49] sm:$0xff]
      %v4327 = vld [vmem:[%s352 + $0x51] sm:$0xff]
      %v4328 = vld [vmem:[%s352 + $0x61] sm:$0xff]
      %v4329 = vld [vmem:[%s352 + $0x69] sm:$0xff]
      %v4330 = vld [vmem:[%s352 + $0x79] sm:$0xff]
      %v4331 = vld [vmem:[%s352 + $0x81] sm:$0xff]
      %v4332 = vld [vmem:[%s352 + $0x91] sm:$0xff]
      %v4333 = vld [vmem:[%s352 + $0x99] sm:$0xff]
      %v4334 = vld [vmem:[%s352 + $0xa9] sm:$0xff]
      %v4335 = vld [vmem:[%s352 + $0xb1] sm:$0xff]
      %v4336 = vld [vmem:[%s352 + $0xc1] sm:$0xff]
      %v4337 = vld [vmem:[%s352 + $0xc9] sm:$0xff]
      %v4338 = vld [vmem:[%s352 + $0xd9] sm:$0xff]
      %v4339 = vld [vmem:[%s352 + $0xe1] sm:$0xff]
      %v4340 = vld [vmem:[%s352 + $0xf1] sm:$0xff]
      %v4341 = vld [vmem:[%s352 + $0xf9] sm:$0xff]
      %v4342 = vld [vmem:[%s352 + $0x109] sm:$0xff]
      %v4343 = vld [vmem:[%s352 + $0x111] sm:$0xff]
      %v4344 = vld [vmem:[%s352 + $0x121] sm:$0xff]
      %v4345 = vld [vmem:[%s352 + $0x129] sm:$0xff]
      %v4346 = vld [vmem:[%s352 + $0x139] sm:$0xff]
      %v4347 = vld [vmem:[%s352 + $0x141] sm:$0xff]
      %v4348 = vld [vmem:[%s352 + $0x151] sm:$0xff]
      %v4349 = vld [vmem:[%s352 + $0x159] sm:$0xff]
      %v4350 = vld [vmem:[%s352 + $0x169] sm:$0xff]
      %v4351 = vld [vmem:[%s352 + $0x171] sm:$0xff]
      %v4352 = vld [vmem:[%s352 + $0x2] sm:$0xff]
      %v4353 = vld [vmem:[%s352 + $0xa] sm:$0xff]
      %v4354 = vld [vmem:[%s352 + $0x1a] sm:$0xff]
      %v4355 = vld [vmem:[%s352 + $0x22] sm:$0xff]
      %v4356 = vld [vmem:[%s352 + $0x32] sm:$0xff]
      %v4357 = vld [vmem:[%s352 + $0x3a] sm:$0xff]
      %v4358 = vld [vmem:[%s352 + $0x4a] sm:$0xff]
      %v4359 = vld [vmem:[%s352 + $0x52] sm:$0xff]
      %v4360 = vld [vmem:[%s352 + $0x62] sm:$0xff]
      %v4361 = vld [vmem:[%s352 + $0x6a] sm:$0xff]
      %v4362 = vld [vmem:[%s352 + $0x7a] sm:$0xff]
      %v4363 = vld [vmem:[%s352 + $0x82] sm:$0xff]
      %v4364 = vld [vmem:[%s352 + $0x92] sm:$0xff]
      %v4365 = vld [vmem:[%s352 + $0x9a] sm:$0xff]
      %v4366 = vld [vmem:[%s352 + $0xaa] sm:$0xff]
      %v4367 = vld [vmem:[%s352 + $0xb2] sm:$0xff]
      %v4368 = vld [vmem:[%s352 + $0xc2] sm:$0xff]
      %v4369 = vld [vmem:[%s352 + $0xca] sm:$0xff]
      %v4370 = vld [vmem:[%s352 + $0xda] sm:$0xff]
      %v4371 = vld [vmem:[%s352 + $0xe2] sm:$0xff]
      %v4372 = vld [vmem:[%s352 + $0xf2] sm:$0xff]
      %v4373 = vld [vmem:[%s352 + $0xfa] sm:$0xff]
      %v4374 = vld [vmem:[%s352 + $0x10a] sm:$0xff]
      %v4375 = vld [vmem:[%s352 + $0x112] sm:$0xff]
      %v4376 = vld [vmem:[%s352 + $0x122] sm:$0xff]
      %v4377 = vld [vmem:[%s352 + $0x12a] sm:$0xff]
      %v4378 = vld [vmem:[%s352 + $0x13a] sm:$0xff]
      %v4379 = vld [vmem:[%s352 + $0x142] sm:$0xff]
      %v4380 = vld [vmem:[%s352 + $0x152] sm:$0xff]
      %v4381 = vld [vmem:[%s352 + $0x15a] sm:$0xff]
      %v4382 = vld [vmem:[%s352 + $0x16a] sm:$0xff]
      %v4383 = vld [vmem:[%s352 + $0x172] sm:$0xff]
      %v4384 = vld [vmem:[%s577] sm:$0xff]
      %v4385 = vld [vmem:[%s577 + $0x8] sm:$0xff]
      %v4386 = vld [vmem:[%s577 + $0x18] sm:$0xff]
      %v4387 = vld [vmem:[%s577 + $0x20] sm:$0xff]
      %v4388 = vld [vmem:[%s577 + $0x30] sm:$0xff]
      %v4389 = vld [vmem:[%s577 + $0x38] sm:$0xff]
      %v4390 = vld [vmem:[%s577 + $0x48] sm:$0xff]
      %v4391 = vld [vmem:[%s577 + $0x50] sm:$0xff]
      %v4392 = vld [vmem:[%s577 + $0x60] sm:$0xff]
      %v4393 = vld [vmem:[%s577 + $0x68] sm:$0xff]
      %v4394 = vld [vmem:[%s577 + $0x78] sm:$0xff]
      %v4395 = vld [vmem:[%s577 + $0x80] sm:$0xff]
      %v4396 = vld [vmem:[%s577 + $0x90] sm:$0xff]
      %v4397 = vld [vmem:[%s577 + $0x98] sm:$0xff]
      %v4398 = vld [vmem:[%s577 + $0xa8] sm:$0xff]
      %v4399 = vld [vmem:[%s577 + $0xb0] sm:$0xff]
      %v4400 = vld [vmem:[%s577 + $0xc0] sm:$0xff]
      %v4401 = vld [vmem:[%s577 + $0xc8] sm:$0xff]
      %v4402 = vld [vmem:[%s577 + $0xd8] sm:$0xff]
      %v4403 = vld [vmem:[%s577 + $0xe0] sm:$0xff]
      %v4404 = vld [vmem:[%s577 + $0xf0] sm:$0xff]
      %v4405 = vld [vmem:[%s577 + $0xf8] sm:$0xff]
      %v4406 = vld [vmem:[%s577 + $0x108] sm:$0xff]
      %v4407 = vld [vmem:[%s577 + $0x110] sm:$0xff]
      %v4408 = vld [vmem:[%s577 + $0x120] sm:$0xff]
      %v4409 = vld [vmem:[%s577 + $0x128] sm:$0xff]
      %v4410 = vld [vmem:[%s577 + $0x138] sm:$0xff]
      %v4411 = vld [vmem:[%s577 + $0x140] sm:$0xff]
      %v4412 = vld [vmem:[%s577 + $0x150] sm:$0xff]
      %v4413 = vld [vmem:[%s577 + $0x158] sm:$0xff]
      %v4414 = vld [vmem:[%s577 + $0x168] sm:$0xff]
      %v4415 = vld [vmem:[%s577 + $0x170] sm:$0xff]
      %v4416 = vld [vmem:[%s577 + $0x1] sm:$0xff]
      %v4417 = vld [vmem:[%s577 + $0x9] sm:$0xff]
      %v4418 = vld [vmem:[%s577 + $0x19] sm:$0xff]
      %v4419 = vld [vmem:[%s577 + $0x21] sm:$0xff]
      %v4420 = vld [vmem:[%s577 + $0x31] sm:$0xff]
      %v4421 = vld [vmem:[%s577 + $0x39] sm:$0xff]
      %v4422 = vld [vmem:[%s577 + $0x49] sm:$0xff]
      %v4423 = vld [vmem:[%s577 + $0x51] sm:$0xff]
      %v4424 = vld [vmem:[%s577 + $0x61] sm:$0xff]
      %v4425 = vld [vmem:[%s577 + $0x69] sm:$0xff]
      %v4426 = vld [vmem:[%s577 + $0x79] sm:$0xff]
      %v4427 = vld [vmem:[%s577 + $0x81] sm:$0xff]
      %v4428 = vld [vmem:[%s577 + $0x91] sm:$0xff]
      %v4429 = vld [vmem:[%s577 + $0x99] sm:$0xff]
      %v4430 = vld [vmem:[%s577 + $0xa9] sm:$0xff]
      %v4431 = vld [vmem:[%s577 + $0xb1] sm:$0xff]
      %v4432 = vld [vmem:[%s577 + $0xc1] sm:$0xff]
      %v4433 = vld [vmem:[%s577 + $0xc9] sm:$0xff]
      %v4434 = vld [vmem:[%s577 + $0xd9] sm:$0xff]
      %v4435 = vld [vmem:[%s577 + $0xe1] sm:$0xff]
      %v4436 = vld [vmem:[%s577 + $0xf1] sm:$0xff]
      %v4437 = vld [vmem:[%s577 + $0xf9] sm:$0xff]
      %v4438 = vld [vmem:[%s577 + $0x109] sm:$0xff]
      %v4439 = vld [vmem:[%s577 + $0x111] sm:$0xff]
      %v4440 = vld [vmem:[%s577 + $0x121] sm:$0xff]
      %v4441 = vld [vmem:[%s577 + $0x129] sm:$0xff]
      %v4442 = vld [vmem:[%s577 + $0x139] sm:$0xff]
      %v4443 = vld [vmem:[%s577 + $0x141] sm:$0xff]
      %v4444 = vld [vmem:[%s577 + $0x151] sm:$0xff]
      %v4445 = vld [vmem:[%s577 + $0x159] sm:$0xff]
      %v4446 = vld [vmem:[%s577 + $0x169] sm:$0xff]
      %v4447 = vld [vmem:[%s577 + $0x171] sm:$0xff]
      %v4448 = vld [vmem:[%s577 + $0x2] sm:$0xff]
      %v4449 = vld [vmem:[%s577 + $0xa] sm:$0xff]
      %v4450 = vld [vmem:[%s577 + $0x1a] sm:$0xff]
      %v4451 = vld [vmem:[%s577 + $0x22] sm:$0xff]
      %v4452 = vld [vmem:[%s577 + $0x32] sm:$0xff]
      %v4453 = vld [vmem:[%s577 + $0x3a] sm:$0xff]
      %v4454 = vld [vmem:[%s577 + $0x4a] sm:$0xff]
      %v4455 = vld [vmem:[%s577 + $0x52] sm:$0xff]
      %v4456 = vld [vmem:[%s577 + $0x62] sm:$0xff]
      %v4457 = vld [vmem:[%s577 + $0x6a] sm:$0xff]
      %v4458 = vld [vmem:[%s577 + $0x7a] sm:$0xff]
      %v4459 = vld [vmem:[%s577 + $0x82] sm:$0xff]
      %v4460 = vld [vmem:[%s577 + $0x92] sm:$0xff]
      %v4461 = vld [vmem:[%s577 + $0x9a] sm:$0xff]
      %v4462 = vld [vmem:[%s577 + $0xaa] sm:$0xff]
      %v4463 = vld [vmem:[%s577 + $0xb2] sm:$0xff]
      %v4464 = vld [vmem:[%s577 + $0xc2] sm:$0xff]
      %v4465 = vld [vmem:[%s577 + $0xca] sm:$0xff]
      %v4466 = vld [vmem:[%s577 + $0xda] sm:$0xff]
      %v4467 = vld [vmem:[%s577 + $0xe2] sm:$0xff]
      %v4468 = vld [vmem:[%s577 + $0xf2] sm:$0xff]
      %v4469 = vld [vmem:[%s577 + $0xfa] sm:$0xff]
      %v4470 = vld [vmem:[%s577 + $0x10a] sm:$0xff]
      %v4471 = vld [vmem:[%s577 + $0x112] sm:$0xff]
      %v4472 = vld [vmem:[%s577 + $0x122] sm:$0xff]
      %v4473 = vld [vmem:[%s577 + $0x12a] sm:$0xff]
      %v4474 = vld [vmem:[%s577 + $0x13a] sm:$0xff]
      %v4475 = vld [vmem:[%s577 + $0x142] sm:$0xff]
      %v4476 = vld [vmem:[%s577 + $0x152] sm:$0xff]
      %v4477 = vld [vmem:[%s577 + $0x15a] sm:$0xff]
      %v4478 = vld [vmem:[%s577 + $0x16a] sm:$0xff]
      %v4479 = vld [vmem:[%s577 + $0x172] sm:$0xff]
      %4512 = vrot.lane.b32.xlu0 %v4224, 32
      %v4513 = vpop.permute.xlu0 %4512
      %4514 = vrot.lane.b32.xlu0 %v4225, 32
      %v4515 = vpop.permute.xlu0 %4514
      %4516 = vrot.lane.b32.xlu0 %v4226, 32
      %v4517 = vpop.permute.xlu0 %4516
      %4518 = vrot.lane.b32.xlu0 %v4227, 32
      %v4519 = vpop.permute.xlu0 %4518
      %4520 = vrot.lane.b32.xlu0 %v4228, 32
      %v4521 = vpop.permute.xlu0 %4520
      %4522 = vrot.lane.b32.xlu0 %v4229, 32
      %v4523 = vpop.permute.xlu0 %4522
      %4524 = vrot.lane.b32.xlu0 %v4230, 32
      %v4525 = vpop.permute.xlu0 %4524
      %4526 = vrot.lane.b32.xlu0 %v4231, 32
      %v4527 = vpop.permute.xlu0 %4526
      %4528 = vrot.lane.b32.xlu0 %v4232, 32
      %v4529 = vpop.permute.xlu0 %4528
      %4530 = vrot.lane.b32.xlu0 %v4233, 32
      %v4531 = vpop.permute.xlu0 %4530
      %4532 = vrot.lane.b32.xlu0 %v4234, 32
      %v4533 = vpop.permute.xlu0 %4532
      %4534 = vrot.lane.b32.xlu0 %v4235, 32
      %v4535 = vpop.permute.xlu0 %4534
      %4536 = vrot.lane.b32.xlu0 %v4236, 32
      %v4537 = vpop.permute.xlu0 %4536
      %4538 = vrot.lane.b32.xlu0 %v4237, 32
      %v4539 = vpop.permute.xlu0 %4538
      %4540 = vrot.lane.b32.xlu0 %v4238, 32
      %v4541 = vpop.permute.xlu0 %4540
      %4542 = vrot.lane.b32.xlu0 %v4239, 32
      %v4543 = vpop.permute.xlu0 %4542
      %4544 = vrot.lane.b32.xlu0 %v4240, 32
      %v4545 = vpop.permute.xlu0 %4544
      %4546 = vrot.lane.b32.xlu0 %v4241, 32
      %v4547 = vpop.permute.xlu0 %4546
      %4548 = vrot.lane.b32.xlu0 %v4242, 32
      %v4549 = vpop.permute.xlu0 %4548
      %4550 = vrot.lane.b32.xlu0 %v4243, 32
      %v4551 = vpop.permute.xlu0 %4550
      %4552 = vrot.lane.b32.xlu0 %v4244, 32
      %v4553 = vpop.permute.xlu0 %4552
      %4554 = vrot.lane.b32.xlu0 %v4245, 32
      %v4555 = vpop.permute.xlu0 %4554
      %4556 = vrot.lane.b32.xlu0 %v4246, 32
      %v4557 = vpop.permute.xlu0 %4556
      %4558 = vrot.lane.b32.xlu0 %v4247, 32
      %v4559 = vpop.permute.xlu0 %4558
      %4560 = vrot.lane.b32.xlu0 %v4248, 32
      %v4561 = vpop.permute.xlu0 %4560
      %4562 = vrot.lane.b32.xlu0 %v4249, 32
      %v4563 = vpop.permute.xlu0 %4562
      %4564 = vrot.lane.b32.xlu0 %v4250, 32
      %v4565 = vpop.permute.xlu0 %4564
      %4566 = vrot.lane.b32.xlu0 %v4251, 32
      %v4567 = vpop.permute.xlu0 %4566
      %4568 = vrot.lane.b32.xlu0 %v4252, 32
      %v4569 = vpop.permute.xlu0 %4568
      %4570 = vrot.lane.b32.xlu0 %v4253, 32
      %v4571 = vpop.permute.xlu0 %4570
      %4572 = vrot.lane.b32.xlu0 %v4254, 32
      %v4573 = vpop.permute.xlu0 %4572
      %4574 = vrot.lane.b32.xlu0 %v4255, 32
      %v4575 = vpop.permute.xlu0 %4574
      %4640 = vrot.lane.b32.xlu0 %v4256, 64
      %v4641 = vpop.permute.xlu0 %4640
      %4642 = vrot.lane.b32.xlu0 %v4257, 64
      %v4643 = vpop.permute.xlu0 %4642
      %4644 = vrot.lane.b32.xlu0 %v4258, 64
      %v4645 = vpop.permute.xlu0 %4644
      %4646 = vrot.lane.b32.xlu0 %v4259, 64
      %v4647 = vpop.permute.xlu0 %4646
      %4648 = vrot.lane.b32.xlu0 %v4260, 64
      %v4649 = vpop.permute.xlu0 %4648
      %4650 = vrot.lane.b32.xlu0 %v4261, 64
      %v4651 = vpop.permute.xlu0 %4650
      %4652 = vrot.lane.b32.xlu0 %v4262, 64
      %v4653 = vpop.permute.xlu0 %4652
      %4654 = vrot.lane.b32.xlu0 %v4263, 64
      %v4655 = vpop.permute.xlu0 %4654
      %4656 = vrot.lane.b32.xlu0 %v4264, 64
      %v4657 = vpop.permute.xlu0 %4656
      %4658 = vrot.lane.b32.xlu0 %v4265, 64
      %v4659 = vpop.permute.xlu0 %4658
      %4660 = vrot.lane.b32.xlu0 %v4266, 64
      %v4661 = vpop.permute.xlu0 %4660
      %4662 = vrot.lane.b32.xlu0 %v4267, 64
      %v4663 = vpop.permute.xlu0 %4662
      %4664 = vrot.lane.b32.xlu0 %v4268, 64
      %v4665 = vpop.permute.xlu0 %4664
      %4666 = vrot.lane.b32.xlu0 %v4269, 64
      %v4667 = vpop.permute.xlu0 %4666
      %4668 = vrot.lane.b32.xlu0 %v4270, 64
      %v4669 = vpop.permute.xlu0 %4668
      %4670 = vrot.lane.b32.xlu0 %v4271, 64
      %v4671 = vpop.permute.xlu0 %4670
      %4672 = vrot.lane.b32.xlu0 %v4272, 64
      %v4673 = vpop.permute.xlu0 %4672
      %4674 = vrot.lane.b32.xlu0 %v4273, 64
      %v4675 = vpop.permute.xlu0 %4674
      %4676 = vrot.lane.b32.xlu0 %v4274, 64
      %v4677 = vpop.permute.xlu0 %4676
      %4678 = vrot.lane.b32.xlu0 %v4275, 64
      %v4679 = vpop.permute.xlu0 %4678
      %4680 = vrot.lane.b32.xlu0 %v4276, 64
      %v4681 = vpop.permute.xlu0 %4680
      %4682 = vrot.lane.b32.xlu0 %v4277, 64
      %v4683 = vpop.permute.xlu0 %4682
      %4684 = vrot.lane.b32.xlu0 %v4278, 64
      %v4685 = vpop.permute.xlu0 %4684
      %4686 = vrot.lane.b32.xlu0 %v4279, 64
      %v4687 = vpop.permute.xlu0 %4686
      %4688 = vrot.lane.b32.xlu0 %v4280, 64
      %v4689 = vpop.permute.xlu0 %4688
      %4690 = vrot.lane.b32.xlu0 %v4281, 64
      %v4691 = vpop.permute.xlu0 %4690
      %4692 = vrot.lane.b32.xlu0 %v4282, 64
      %v4693 = vpop.permute.xlu0 %4692
      %4694 = vrot.lane.b32.xlu0 %v4283, 64
      %v4695 = vpop.permute.xlu0 %4694
      %4696 = vrot.lane.b32.xlu0 %v4284, 64
      %v4697 = vpop.permute.xlu0 %4696
      %4698 = vrot.lane.b32.xlu0 %v4285, 64
      %v4699 = vpop.permute.xlu0 %4698
      %4700 = vrot.lane.b32.xlu0 %v4286, 64
      %v4701 = vpop.permute.xlu0 %4700
      %4702 = vrot.lane.b32.xlu0 %v4287, 64
      %v4703 = vpop.permute.xlu0 %4702
      %4768 = vrot.lane.b32.xlu0 %v4288, 96
      %v4769 = vpop.permute.xlu0 %4768
      %4770 = vrot.lane.b32.xlu0 %v4289, 96
      %v4771 = vpop.permute.xlu0 %4770
      %4772 = vrot.lane.b32.xlu0 %v4290, 96
      %v4773 = vpop.permute.xlu0 %4772
      %4774 = vrot.lane.b32.xlu0 %v4291, 96
      %v4775 = vpop.permute.xlu0 %4774
      %4776 = vrot.lane.b32.xlu0 %v4292, 96
      %v4777 = vpop.permute.xlu0 %4776
      %4778 = vrot.lane.b32.xlu0 %v4293, 96
      %v4779 = vpop.permute.xlu0 %4778
      %4780 = vrot.lane.b32.xlu0 %v4294, 96
      %v4781 = vpop.permute.xlu0 %4780
      %4782 = vrot.lane.b32.xlu0 %v4295, 96
      %v4783 = vpop.permute.xlu0 %4782
      %4784 = vrot.lane.b32.xlu0 %v4296, 96
      %v4785 = vpop.permute.xlu0 %4784
      %4786 = vrot.lane.b32.xlu0 %v4297, 96
      %v4787 = vpop.permute.xlu0 %4786
      %4788 = vrot.lane.b32.xlu0 %v4298, 96
      %v4789 = vpop.permute.xlu0 %4788
      %4790 = vrot.lane.b32.xlu0 %v4299, 96
      %v4791 = vpop.permute.xlu0 %4790
      %4792 = vrot.lane.b32.xlu0 %v4300, 96
      %v4793 = vpop.permute.xlu0 %4792
      %4794 = vrot.lane.b32.xlu0 %v4301, 96
      %v4795 = vpop.permute.xlu0 %4794
      %4796 = vrot.lane.b32.xlu0 %v4302, 96
      %v4797 = vpop.permute.xlu0 %4796
      %4798 = vrot.lane.b32.xlu0 %v4303, 96
      %v4799 = vpop.permute.xlu0 %4798
      %4800 = vrot.lane.b32.xlu0 %v4304, 96
      %v4801 = vpop.permute.xlu0 %4800
      %4802 = vrot.lane.b32.xlu0 %v4305, 96
      %v4803 = vpop.permute.xlu0 %4802
      %4804 = vrot.lane.b32.xlu0 %v4306, 96
      %v4805 = vpop.permute.xlu0 %4804
      %4806 = vrot.lane.b32.xlu0 %v4307, 96
      %v4807 = vpop.permute.xlu0 %4806
      %4808 = vrot.lane.b32.xlu0 %v4308, 96
      %v4809 = vpop.permute.xlu0 %4808
      %4810 = vrot.lane.b32.xlu0 %v4309, 96
      %v4811 = vpop.permute.xlu0 %4810
      %4812 = vrot.lane.b32.xlu0 %v4310, 96
      %v4813 = vpop.permute.xlu0 %4812
      %4814 = vrot.lane.b32.xlu0 %v4311, 96
      %v4815 = vpop.permute.xlu0 %4814
      %4816 = vrot.lane.b32.xlu0 %v4312, 96
      %v4817 = vpop.permute.xlu0 %4816
      %4818 = vrot.lane.b32.xlu0 %v4313, 96
      %v4819 = vpop.permute.xlu0 %4818
      %4820 = vrot.lane.b32.xlu0 %v4314, 96
      %v4821 = vpop.permute.xlu0 %4820
      %4822 = vrot.lane.b32.xlu0 %v4315, 96
      %v4823 = vpop.permute.xlu0 %4822
      %4824 = vrot.lane.b32.xlu0 %v4316, 96
      %v4825 = vpop.permute.xlu0 %4824
      %4826 = vrot.lane.b32.xlu0 %v4317, 96
      %v4827 = vpop.permute.xlu0 %4826
      %4828 = vrot.lane.b32.xlu0 %v4318, 96
      %v4829 = vpop.permute.xlu0 %4828
      %4830 = vrot.lane.b32.xlu0 %v4319, 96
      %v4831 = vpop.permute.xlu0 %4830
      %4896 = vrot.lane.b32.xlu0 %v4352, 32
      %v4897 = vpop.permute.xlu0 %4896
      %4898 = vrot.lane.b32.xlu0 %v4353, 32
      %v4899 = vpop.permute.xlu0 %4898
      %4900 = vrot.lane.b32.xlu0 %v4354, 32
      %v4901 = vpop.permute.xlu0 %4900
      %4902 = vrot.lane.b32.xlu0 %v4355, 32
      %v4903 = vpop.permute.xlu0 %4902
      %4904 = vrot.lane.b32.xlu0 %v4356, 32
      %v4905 = vpop.permute.xlu0 %4904
      %4906 = vrot.lane.b32.xlu0 %v4357, 32
      %v4907 = vpop.permute.xlu0 %4906
      %4908 = vrot.lane.b32.xlu0 %v4358, 32
      %v4909 = vpop.permute.xlu0 %4908
      %4910 = vrot.lane.b32.xlu0 %v4359, 32
      %v4911 = vpop.permute.xlu0 %4910
      %4912 = vrot.lane.b32.xlu0 %v4360, 32
      %v4913 = vpop.permute.xlu0 %4912
      %4914 = vrot.lane.b32.xlu0 %v4361, 32
      %v4915 = vpop.permute.xlu0 %4914
      %4916 = vrot.lane.b32.xlu0 %v4362, 32
      %v4917 = vpop.permute.xlu0 %4916
      %4918 = vrot.lane.b32.xlu0 %v4363, 32
      %v4919 = vpop.permute.xlu0 %4918
      %4920 = vrot.lane.b32.xlu0 %v4364, 32
      %v4921 = vpop.permute.xlu0 %4920
      %4922 = vrot.lane.b32.xlu0 %v4365, 32
      %v4923 = vpop.permute.xlu0 %4922
      %4924 = vrot.lane.b32.xlu0 %v4366, 32
      %v4925 = vpop.permute.xlu0 %4924
      %4926 = vrot.lane.b32.xlu0 %v4367, 32
      %v4927 = vpop.permute.xlu0 %4926
      %4928 = vrot.lane.b32.xlu0 %v4368, 32
      %v4929 = vpop.permute.xlu0 %4928
      %4930 = vrot.lane.b32.xlu0 %v4369, 32
      %v4931 = vpop.permute.xlu0 %4930
      %4932 = vrot.lane.b32.xlu0 %v4370, 32
      %v4933 = vpop.permute.xlu0 %4932
      %4934 = vrot.lane.b32.xlu0 %v4371, 32
      %v4935 = vpop.permute.xlu0 %4934
      %4936 = vrot.lane.b32.xlu0 %v4372, 32
      %v4937 = vpop.permute.xlu0 %4936
      %4938 = vrot.lane.b32.xlu0 %v4373, 32
      %v4939 = vpop.permute.xlu0 %4938
      %4940 = vrot.lane.b32.xlu0 %v4374, 32
      %v4941 = vpop.permute.xlu0 %4940
      %4942 = vrot.lane.b32.xlu0 %v4375, 32
      %v4943 = vpop.permute.xlu0 %4942
      %4944 = vrot.lane.b32.xlu0 %v4376, 32
      %v4945 = vpop.permute.xlu0 %4944
      %4946 = vrot.lane.b32.xlu0 %v4377, 32
      %v4947 = vpop.permute.xlu0 %4946
      %4948 = vrot.lane.b32.xlu0 %v4378, 32
      %v4949 = vpop.permute.xlu0 %4948
      %4950 = vrot.lane.b32.xlu0 %v4379, 32
      %v4951 = vpop.permute.xlu0 %4950
      %4952 = vrot.lane.b32.xlu0 %v4380, 32
      %v4953 = vpop.permute.xlu0 %4952
      %4954 = vrot.lane.b32.xlu0 %v4381, 32
      %v4955 = vpop.permute.xlu0 %4954
      %4956 = vrot.lane.b32.xlu0 %v4382, 32
      %v4957 = vpop.permute.xlu0 %4956
      %4958 = vrot.lane.b32.xlu0 %v4383, 32
      %v4959 = vpop.permute.xlu0 %4958
      %5024 = vrot.lane.b32.xlu0 %v4384, 64
      %v5025 = vpop.permute.xlu0 %5024
      %5026 = vrot.lane.b32.xlu0 %v4385, 64
      %v5027 = vpop.permute.xlu0 %5026
      %5028 = vrot.lane.b32.xlu0 %v4386, 64
      %v5029 = vpop.permute.xlu0 %5028
      %5030 = vrot.lane.b32.xlu0 %v4387, 64
      %v5031 = vpop.permute.xlu0 %5030
      %5032 = vrot.lane.b32.xlu0 %v4388, 64
      %v5033 = vpop.permute.xlu0 %5032
      %5034 = vrot.lane.b32.xlu0 %v4389, 64
      %v5035 = vpop.permute.xlu0 %5034
      %5036 = vrot.lane.b32.xlu0 %v4390, 64
      %v5037 = vpop.permute.xlu0 %5036
      %5038 = vrot.lane.b32.xlu0 %v4391, 64
      %v5039 = vpop.permute.xlu0 %5038
      %5040 = vrot.lane.b32.xlu0 %v4392, 64
      %v5041 = vpop.permute.xlu0 %5040
      %5042 = vrot.lane.b32.xlu0 %v4393, 64
      %v5043 = vpop.permute.xlu0 %5042
      %5044 = vrot.lane.b32.xlu0 %v4394, 64
      %v5045 = vpop.permute.xlu0 %5044
      %5046 = vrot.lane.b32.xlu0 %v4395, 64
      %v5047 = vpop.permute.xlu0 %5046
      %5048 = vrot.lane.b32.xlu0 %v4396, 64
      %v5049 = vpop.permute.xlu0 %5048
      %5050 = vrot.lane.b32.xlu0 %v4397, 64
      %v5051 = vpop.permute.xlu0 %5050
      %5052 = vrot.lane.b32.xlu0 %v4398, 64
      %v5053 = vpop.permute.xlu0 %5052
      %5054 = vrot.lane.b32.xlu0 %v4399, 64
      %v5055 = vpop.permute.xlu0 %5054
      %5056 = vrot.lane.b32.xlu0 %v4400, 64
      %v5057 = vpop.permute.xlu0 %5056
      %5058 = vrot.lane.b32.xlu0 %v4401, 64
      %v5059 = vpop.permute.xlu0 %5058
      %5060 = vrot.lane.b32.xlu0 %v4402, 64
      %v5061 = vpop.permute.xlu0 %5060
      %5062 = vrot.lane.b32.xlu0 %v4403, 64
      %v5063 = vpop.permute.xlu0 %5062
      %5064 = vrot.lane.b32.xlu0 %v4404, 64
      %v5065 = vpop.permute.xlu0 %5064
      %5066 = vrot.lane.b32.xlu0 %v4405, 64
      %v5067 = vpop.permute.xlu0 %5066
      %5068 = vrot.lane.b32.xlu0 %v4406, 64
      %v5069 = vpop.permute.xlu0 %5068
      %5070 = vrot.lane.b32.xlu0 %v4407, 64
      %v5071 = vpop.permute.xlu0 %5070
      %5072 = vrot.lane.b32.xlu0 %v4408, 64
      %v5073 = vpop.permute.xlu0 %5072
      %5074 = vrot.lane.b32.xlu0 %v4409, 64
      %v5075 = vpop.permute.xlu0 %5074
      %5076 = vrot.lane.b32.xlu0 %v4410, 64
      %v5077 = vpop.permute.xlu0 %5076
      %5078 = vrot.lane.b32.xlu0 %v4411, 64
      %v5079 = vpop.permute.xlu0 %5078
      %5080 = vrot.lane.b32.xlu0 %v4412, 64
      %v5081 = vpop.permute.xlu0 %5080
      %5082 = vrot.lane.b32.xlu0 %v4413, 64
      %v5083 = vpop.permute.xlu0 %5082
      %5084 = vrot.lane.b32.xlu0 %v4414, 64
      %v5085 = vpop.permute.xlu0 %5084
      %5086 = vrot.lane.b32.xlu0 %v4415, 64
      %v5087 = vpop.permute.xlu0 %5086
      %5152 = vrot.lane.b32.xlu0 %v4416, 96
      %v5153 = vpop.permute.xlu0 %5152
      %5154 = vrot.lane.b32.xlu0 %v4417, 96
      %v5155 = vpop.permute.xlu0 %5154
      %5156 = vrot.lane.b32.xlu0 %v4418, 96
      %v5157 = vpop.permute.xlu0 %5156
      %5158 = vrot.lane.b32.xlu0 %v4419, 96
      %v5159 = vpop.permute.xlu0 %5158
      %5160 = vrot.lane.b32.xlu0 %v4420, 96
      %v5161 = vpop.permute.xlu0 %5160
      %5162 = vrot.lane.b32.xlu0 %v4421, 96
      %v5163 = vpop.permute.xlu0 %5162
      %5164 = vrot.lane.b32.xlu0 %v4422, 96
      %v5165 = vpop.permute.xlu0 %5164
      %5166 = vrot.lane.b32.xlu0 %v4423, 96
      %v5167 = vpop.permute.xlu0 %5166
      %5168 = vrot.lane.b32.xlu0 %v4424, 96
      %v5169 = vpop.permute.xlu0 %5168
      %5170 = vrot.lane.b32.xlu0 %v4425, 96
      %v5171 = vpop.permute.xlu0 %5170
      %5172 = vrot.lane.b32.xlu0 %v4426, 96
      %v5173 = vpop.permute.xlu0 %5172
      %5174 = vrot.lane.b32.xlu0 %v4427, 96
      %v5175 = vpop.permute.xlu0 %5174
      %5176 = vrot.lane.b32.xlu0 %v4428, 96
      %v5177 = vpop.permute.xlu0 %5176
      %5178 = vrot.lane.b32.xlu0 %v4429, 96
      %v5179 = vpop.permute.xlu0 %5178
      %5180 = vrot.lane.b32.xlu0 %v4430, 96
      %v5181 = vpop.permute.xlu0 %5180
      %5182 = vrot.lane.b32.xlu0 %v4431, 96
      %v5183 = vpop.permute.xlu0 %5182
      %5184 = vrot.lane.b32.xlu0 %v4432, 96
      %v5185 = vpop.permute.xlu0 %5184
      %5186 = vrot.lane.b32.xlu0 %v4433, 96
      %v5187 = vpop.permute.xlu0 %5186
      %5188 = vrot.lane.b32.xlu0 %v4434, 96
      %v5189 = vpop.permute.xlu0 %5188
      %5190 = vrot.lane.b32.xlu0 %v4435, 96
      %v5191 = vpop.permute.xlu0 %5190
      %5192 = vrot.lane.b32.xlu0 %v4436, 96
      %v5193 = vpop.permute.xlu0 %5192
      %5194 = vrot.lane.b32.xlu0 %v4437, 96
      %v5195 = vpop.permute.xlu0 %5194
      %5196 = vrot.lane.b32.xlu0 %v4438, 96
      %v5197 = vpop.permute.xlu0 %5196
      %5198 = vrot.lane.b32.xlu0 %v4439, 96
      %v5199 = vpop.permute.xlu0 %5198
      %5200 = vrot.lane.b32.xlu0 %v4440, 96
      %v5201 = vpop.permute.xlu0 %5200
      %5202 = vrot.lane.b32.xlu0 %v4441, 96
      %v5203 = vpop.permute.xlu0 %5202
      %5204 = vrot.lane.b32.xlu0 %v4442, 96
      %v5205 = vpop.permute.xlu0 %5204
      %5206 = vrot.lane.b32.xlu0 %v4443, 96
      %v5207 = vpop.permute.xlu0 %5206
      %5208 = vrot.lane.b32.xlu0 %v4444, 96
      %v5209 = vpop.permute.xlu0 %5208
      %5210 = vrot.lane.b32.xlu0 %v4445, 96
      %v5211 = vpop.permute.xlu0 %5210
      %5212 = vrot.lane.b32.xlu0 %v4446, 96
      %v5213 = vpop.permute.xlu0 %5212
      %5214 = vrot.lane.b32.xlu0 %v4447, 96
      %v5215 = vpop.permute.xlu0 %5214
      %v5248 = vsel %vm225, %v4192, %v4513
      %v5249 = vsel %vm225, %v4193, %v4515
      %v5250 = vsel %vm225, %v4194, %v4517
      %v5251 = vsel %vm225, %v4195, %v4519
      %v5252 = vsel %vm225, %v4196, %v4521
      %v5253 = vsel %vm225, %v4197, %v4523
      %v5254 = vsel %vm225, %v4198, %v4525
      %v5255 = vsel %vm225, %v4199, %v4527
      %v5256 = vsel %vm225, %v4200, %v4529
      %v5257 = vsel %vm225, %v4201, %v4531
      %v5258 = vsel %vm225, %v4202, %v4533
      %v5259 = vsel %vm225, %v4203, %v4535
      %v5260 = vsel %vm225, %v4204, %v4537
      %v5261 = vsel %vm225, %v4205, %v4539
      %v5262 = vsel %vm225, %v4206, %v4541
      %v5263 = vsel %vm225, %v4207, %v4543
      %v5264 = vsel %vm225, %v4208, %v4545
      %v5265 = vsel %vm225, %v4209, %v4547
      %v5266 = vsel %vm225, %v4210, %v4549
      %v5267 = vsel %vm225, %v4211, %v4551
      %v5268 = vsel %vm225, %v4212, %v4553
      %v5269 = vsel %vm225, %v4213, %v4555
      %v5270 = vsel %vm225, %v4214, %v4557
      %v5271 = vsel %vm225, %v4215, %v4559
      %v5272 = vsel %vm225, %v4216, %v4561
      %v5273 = vsel %vm225, %v4217, %v4563
      %v5274 = vsel %vm225, %v4218, %v4565
      %v5275 = vsel %vm225, %v4219, %v4567
      %v5276 = vsel %vm225, %v4220, %v4569
      %v5277 = vsel %vm225, %v4221, %v4571
      %v5278 = vsel %vm225, %v4222, %v4573
      %v5279 = vsel %vm225, %v4223, %v4575
      %v5280 = vsel %vm1474, %v5248, %v4641
      %v5281 = vsel %vm1474, %v5249, %v4643
      %v5282 = vsel %vm1474, %v5250, %v4645
      %v5283 = vsel %vm1474, %v5251, %v4647
      %v5284 = vsel %vm1474, %v5252, %v4649
      %v5285 = vsel %vm1474, %v5253, %v4651
      %v5286 = vsel %vm1474, %v5254, %v4653
      %v5287 = vsel %vm1474, %v5255, %v4655
      %v5288 = vsel %vm1474, %v5256, %v4657
      %v5289 = vsel %vm1474, %v5257, %v4659
      %v5290 = vsel %vm1474, %v5258, %v4661
      %v5291 = vsel %vm1474, %v5259, %v4663
      %v5292 = vsel %vm1474, %v5260, %v4665
      %v5293 = vsel %vm1474, %v5261, %v4667
      %v5294 = vsel %vm1474, %v5262, %v4669
      %v5295 = vsel %vm1474, %v5263, %v4671
      %v5296 = vsel %vm1474, %v5264, %v4673
      %v5297 = vsel %vm1474, %v5265, %v4675
      %v5298 = vsel %vm1474, %v5266, %v4677
      %v5299 = vsel %vm1474, %v5267, %v4679
      %v5300 = vsel %vm1474, %v5268, %v4681
      %v5301 = vsel %vm1474, %v5269, %v4683
      %v5302 = vsel %vm1474, %v5270, %v4685
      %v5303 = vsel %vm1474, %v5271, %v4687
      %v5304 = vsel %vm1474, %v5272, %v4689
      %v5305 = vsel %vm1474, %v5273, %v4691
      %v5306 = vsel %vm1474, %v5274, %v4693
      %v5307 = vsel %vm1474, %v5275, %v4695
      %v5308 = vsel %vm1474, %v5276, %v4697
      %v5309 = vsel %vm1474, %v5277, %v4699
      %v5310 = vsel %vm1474, %v5278, %v4701
      %v5311 = vsel %vm1474, %v5279, %v4703
      %v5312 = vsel %vm1507, %v5280, %v4769
      %v5313 = vsel %vm1507, %v5281, %v4771
      %v5314 = vsel %vm1507, %v5282, %v4773
      %v5315 = vsel %vm1507, %v5283, %v4775
      %v5316 = vsel %vm1507, %v5284, %v4777
      %v5317 = vsel %vm1507, %v5285, %v4779
      %v5318 = vsel %vm1507, %v5286, %v4781
      %v5319 = vsel %vm1507, %v5287, %v4783
      %v5320 = vsel %vm1507, %v5288, %v4785
      %v5321 = vsel %vm1507, %v5289, %v4787
      %v5322 = vsel %vm1507, %v5290, %v4789
      %v5323 = vsel %vm1507, %v5291, %v4791
      %v5324 = vsel %vm1507, %v5292, %v4793
      %v5325 = vsel %vm1507, %v5293, %v4795
      %v5326 = vsel %vm1507, %v5294, %v4797
      %v5327 = vsel %vm1507, %v5295, %v4799
      %v5328 = vsel %vm1507, %v5296, %v4801
      %v5329 = vsel %vm1507, %v5297, %v4803
      %v5330 = vsel %vm1507, %v5298, %v4805
      %v5331 = vsel %vm1507, %v5299, %v4807
      %v5332 = vsel %vm1507, %v5300, %v4809
      %v5333 = vsel %vm1507, %v5301, %v4811
      %v5334 = vsel %vm1507, %v5302, %v4813
      %v5335 = vsel %vm1507, %v5303, %v4815
      %v5336 = vsel %vm1507, %v5304, %v4817
      %v5337 = vsel %vm1507, %v5305, %v4819
      %v5338 = vsel %vm1507, %v5306, %v4821
      %v5339 = vsel %vm1507, %v5307, %v4823
      %v5340 = vsel %vm1507, %v5308, %v4825
      %v5341 = vsel %vm1507, %v5309, %v4827
      %v5342 = vsel %vm1507, %v5310, %v4829
      %v5343 = vsel %vm1507, %v5311, %v4831
      %v5344 = vsel %vm225, %v4320, %v4897
      %v5345 = vsel %vm225, %v4321, %v4899
      %v5346 = vsel %vm225, %v4322, %v4901
      %v5347 = vsel %vm225, %v4323, %v4903
      %v5348 = vsel %vm225, %v4324, %v4905
      %v5349 = vsel %vm225, %v4325, %v4907
      %v5350 = vsel %vm225, %v4326, %v4909
      %v5351 = vsel %vm225, %v4327, %v4911
      %v5352 = vsel %vm225, %v4328, %v4913
      %v5353 = vsel %vm225, %v4329, %v4915
      %v5354 = vsel %vm225, %v4330, %v4917
      %v5355 = vsel %vm225, %v4331, %v4919
      %v5356 = vsel %vm225, %v4332, %v4921
      %v5357 = vsel %vm225, %v4333, %v4923
      %v5358 = vsel %vm225, %v4334, %v4925
      %v5359 = vsel %vm225, %v4335, %v4927
      %v5360 = vsel %vm225, %v4336, %v4929
      %v5361 = vsel %vm225, %v4337, %v4931
      %v5362 = vsel %vm225, %v4338, %v4933
      %v5363 = vsel %vm225, %v4339, %v4935
      %v5364 = vsel %vm225, %v4340, %v4937
      %v5365 = vsel %vm225, %v4341, %v4939
      %v5366 = vsel %vm225, %v4342, %v4941
      %v5367 = vsel %vm225, %v4343, %v4943
      %v5368 = vsel %vm225, %v4344, %v4945
      %v5369 = vsel %vm225, %v4345, %v4947
      %v5370 = vsel %vm225, %v4346, %v4949
      %v5371 = vsel %vm225, %v4347, %v4951
      %v5372 = vsel %vm225, %v4348, %v4953
      %v5373 = vsel %vm225, %v4349, %v4955
      %v5374 = vsel %vm225, %v4350, %v4957
      %v5375 = vsel %vm225, %v4351, %v4959
      %v5376 = vsel %vm1474, %v5344, %v5025
      %v5377 = vsel %vm1474, %v5345, %v5027
      %v5378 = vsel %vm1474, %v5346, %v5029
      %v5379 = vsel %vm1474, %v5347, %v5031
      %v5380 = vsel %vm1474, %v5348, %v5033
      %v5381 = vsel %vm1474, %v5349, %v5035
      %v5382 = vsel %vm1474, %v5350, %v5037
      %v5383 = vsel %vm1474, %v5351, %v5039
      %v5384 = vsel %vm1474, %v5352, %v5041
      %v5385 = vsel %vm1474, %v5353, %v5043
      %v5386 = vsel %vm1474, %v5354, %v5045
      %v5387 = vsel %vm1474, %v5355, %v5047
      %v5388 = vsel %vm1474, %v5356, %v5049
      %v5389 = vsel %vm1474, %v5357, %v5051
      %v5390 = vsel %vm1474, %v5358, %v5053
      %v5391 = vsel %vm1474, %v5359, %v5055
      %v5392 = vsel %vm1474, %v5360, %v5057
      %v5393 = vsel %vm1474, %v5361, %v5059
      %v5394 = vsel %vm1474, %v5362, %v5061
      %v5395 = vsel %vm1474, %v5363, %v5063
      %v5396 = vsel %vm1474, %v5364, %v5065
      %v5397 = vsel %vm1474, %v5365, %v5067
      %v5398 = vsel %vm1474, %v5366, %v5069
      %v5399 = vsel %vm1474, %v5367, %v5071
      %v5400 = vsel %vm1474, %v5368, %v5073
      %v5401 = vsel %vm1474, %v5369, %v5075
      %v5402 = vsel %vm1474, %v5370, %v5077
      %v5403 = vsel %vm1474, %v5371, %v5079
      %v5404 = vsel %vm1474, %v5372, %v5081
      %v5405 = vsel %vm1474, %v5373, %v5083
      %v5406 = vsel %vm1474, %v5374, %v5085
      %v5407 = vsel %vm1474, %v5375, %v5087
      %v5408 = vsel %vm1507, %v5376, %v5153
      %v5409 = vsel %vm1507, %v5377, %v5155
      %v5410 = vsel %vm1507, %v5378, %v5157
      %v5411 = vsel %vm1507, %v5379, %v5159
      %v5412 = vsel %vm1507, %v5380, %v5161
      %v5413 = vsel %vm1507, %v5381, %v5163
      %v5414 = vsel %vm1507, %v5382, %v5165
      %v5415 = vsel %vm1507, %v5383, %v5167
      %v5416 = vsel %vm1507, %v5384, %v5169
      %v5417 = vsel %vm1507, %v5385, %v5171
      %v5418 = vsel %vm1507, %v5386, %v5173
      %v5419 = vsel %vm1507, %v5387, %v5175
      %v5420 = vsel %vm1507, %v5388, %v5177
      %v5421 = vsel %vm1507, %v5389, %v5179
      %v5422 = vsel %vm1507, %v5390, %v5181
      %v5423 = vsel %vm1507, %v5391, %v5183
      %v5424 = vsel %vm1507, %v5392, %v5185
      %v5425 = vsel %vm1507, %v5393, %v5187
      %v5426 = vsel %vm1507, %v5394, %v5189
      %v5427 = vsel %vm1507, %v5395, %v5191
      %v5428 = vsel %vm1507, %v5396, %v5193
      %v5429 = vsel %vm1507, %v5397, %v5195
      %v5430 = vsel %vm1507, %v5398, %v5197
      %v5431 = vsel %vm1507, %v5399, %v5199
      %v5432 = vsel %vm1507, %v5400, %v5201
      %v5433 = vsel %vm1507, %v5401, %v5203
      %v5434 = vsel %vm1507, %v5402, %v5205
      %v5435 = vsel %vm1507, %v5403, %v5207
      %v5436 = vsel %vm1507, %v5404, %v5209
      %v5437 = vsel %vm1507, %v5405, %v5211
      %v5438 = vsel %vm1507, %v5406, %v5213
      %v5439 = vsel %vm1507, %v5407, %v5215
      %s5440 = scalar_lea.vmem %s1, 576
      %v5441 = vld [vmem:[%s5440] sm:$0xff]
      %v5442 = vld [vmem:[%s5440 + $0x8] sm:$0xff]
      %v5443 = vld [vmem:[%s5440 + $0x10] sm:$0xff]
      %v5444 = vld [vmem:[%s5440 + $0x18] sm:$0xff]
      %v5445 = vld [vmem:[%s5440 + $0x20] sm:$0xff]
      %v5446 = vld [vmem:[%s5440 + $0x28] sm:$0xff]
      %v5447 = vld [vmem:[%s5440 + $0x30] sm:$0xff]
      %v5448 = vld [vmem:[%s5440 + $0x38] sm:$0xff]
      %v5449 = vld [vmem:[%s5440 + $0x40] sm:$0xff]
      %v5450 = vld [vmem:[%s5440 + $0x48] sm:$0xff]
      %v5451 = vld [vmem:[%s5440 + $0x50] sm:$0xff]
      %v5452 = vld [vmem:[%s5440 + $0x58] sm:$0xff]
      %v5453 = vld [vmem:[%s5440 + $0x60] sm:$0xff]
      %v5454 = vld [vmem:[%s5440 + $0x68] sm:$0xff]
      %v5455 = vld [vmem:[%s5440 + $0x70] sm:$0xff]
      %v5456 = vld [vmem:[%s5440 + $0x78] sm:$0xff]
      %v5457 = vld [vmem:[%s5440 + $0x80] sm:$0xff]
      %v5458 = vld [vmem:[%s5440 + $0x88] sm:$0xff]
      %v5459 = vld [vmem:[%s5440 + $0x90] sm:$0xff]
      %v5460 = vld [vmem:[%s5440 + $0x98] sm:$0xff]
      %v5461 = vld [vmem:[%s5440 + $0xa0] sm:$0xff]
      %v5462 = vld [vmem:[%s5440 + $0xa8] sm:$0xff]
      %v5463 = vld [vmem:[%s5440 + $0xb0] sm:$0xff]
      %v5464 = vld [vmem:[%s5440 + $0xb8] sm:$0xff]
      %v5465 = vld [vmem:[%s5440 + $0xc0] sm:$0xff]
      %v5466 = vld [vmem:[%s5440 + $0xc8] sm:$0xff]
      %v5467 = vld [vmem:[%s5440 + $0xd0] sm:$0xff]
      %v5468 = vld [vmem:[%s5440 + $0xd8] sm:$0xff]
      %v5469 = vld [vmem:[%s5440 + $0xe0] sm:$0xff]
      %v5470 = vld [vmem:[%s5440 + $0xe8] sm:$0xff]
      %v5471 = vld [vmem:[%s5440 + $0xf0] sm:$0xff]
      %v5472 = vld [vmem:[%s5440 + $0xf8] sm:$0xff]
      %v5473 = vld [vmem:[%s5440 + $0x100] sm:$0xff]
      %v5474 = vld [vmem:[%s5440 + $0x108] sm:$0xff]
      %v5475 = vld [vmem:[%s5440 + $0x110] sm:$0xff]
      %v5476 = vld [vmem:[%s5440 + $0x118] sm:$0xff]
      %s5477 = scalar_lea.vmem %s2, 2
      %v5478 = vld [vmem:[%s5477] sm:$0x1]
      %v5480 = vlaneseq
      %v5481 = vshrl.u32 %v5480, 7
      %v5482 = vsub.s32 0, %v5481
      %v5483 = vrot.slane %v5478, %v5482
      %v5486 = vsel %vm225, %v4448, 0
      %v5489 = vsel %vm225, %v4449, 0
      %v5492 = vsel %vm225, %v4450, 0
      %v5495 = vsel %vm225, %v4451, 0
      %v5498 = vsel %vm225, %v4452, 0
      %v5501 = vsel %vm225, %v4453, 0
      %v5504 = vsel %vm225, %v4454, 0
      %v5507 = vsel %vm225, %v4455, 0
      %v5510 = vsel %vm225, %v4456, 0
      %v5513 = vsel %vm225, %v4457, 0
      %v5516 = vsel %vm225, %v4458, 0
      %v5519 = vsel %vm225, %v4459, 0
      %v5522 = vsel %vm225, %v4460, 0
      %v5525 = vsel %vm225, %v4461, 0
      %v5528 = vsel %vm225, %v4462, 0
      %v5531 = vsel %vm225, %v4463, 0
      %v5534 = vsel %vm225, %v4464, 0
      %v5537 = vsel %vm225, %v4465, 0
      %v5540 = vsel %vm225, %v4466, 0
      %v5543 = vsel %vm225, %v4467, 0
      %v5546 = vsel %vm225, %v4468, 0
      %v5549 = vsel %vm225, %v4469, 0
      %v5552 = vsel %vm225, %v4470, 0
      %v5555 = vsel %vm225, %v4471, 0
      %v5558 = vsel %vm225, %v4472, 0
      %v5561 = vsel %vm225, %v4473, 0
      %v5564 = vsel %vm225, %v4474, 0
      %v5567 = vsel %vm225, %v4475, 0
      %v5570 = vsel %vm225, %v4476, 0
      %v5573 = vsel %vm225, %v4477, 0
      %v5576 = vsel %vm225, %v4478, 0
      %v5579 = vsel %vm225, %v4479, 0
      %5581 = vmatprep.subr.mxu0 0.0
      %5582 = vmatpush1.msra.mxu0 %v5441
      %5583 = vmatprep.subr.mxu0 0.0
      %5584 = vmatpush1.msra.mxu0 %v5442
      %5585 = vmatprep.subr.mxu0 0.0
      %5586 = vmatpush1.msra.mxu0 %v5443
      %5587 = vmatprep.subr.mxu0 0.0
      %5588 = vmatpush1.msra.mxu0 %v5444
      %5589 = vmatprep.subr.mxu0 0.0
      %5590 = vmatpush1.msra.mxu0 %v5445
      %5591 = vmatprep.subr.mxu0 0.0
      %5592 = vmatpush1.msra.mxu0 %v5446
      %5593 = vmatprep.subr.mxu0 0.0
      %5594 = vmatpush1.msra.mxu0 %v5447
      %5595 = vmatprep.subr.mxu0 0.0
      %5596 = vmatpush1.msra.mxu0 %v5448
      %5597 = vmatprep.subr.mxu0 0.0
      %5598 = vmatpush1.msra.mxu0 %v5449
      %5599 = vmatprep.subr.mxu0 0.0
      %5600 = vmatpush1.msra.mxu0 %v5450
      %5601 = vmatprep.subr.mxu0 0.0
      %5602 = vmatpush1.msra.mxu0 %v5451
      %5603 = vmatprep.subr.mxu0 0.0
      %5604 = vmatpush1.msra.mxu0 %v5452
      %5605 = vmatprep.subr.mxu0 0.0
      %5606 = vmatpush1.msra.mxu0 %v5453
      %5607 = vmatprep.subr.mxu0 0.0
      %5608 = vmatpush1.msra.mxu0 %v5454
      %5609 = vmatprep.subr.mxu0 0.0
      %5610 = vmatpush1.msra.mxu0 %v5455
      %5611 = vmatprep.subr.mxu0 0.0
      %5612 = vmatpush1.msra.mxu0 %v5456
      %5613 = vmatprep.subr.mxu0 0.0
      %5614 = vmatpush1.msra.mxu0 %v5457
      %5615 = vmatprep.subr.mxu0 0.0
      %5616 = vmatpush1.msra.mxu0 %v5458
      %5617 = vmatprep.subr.mxu0 0.0
      %5618 = vmatpush1.msra.mxu0 %v5459
      %5619 = vmatprep.subr.mxu0 0.0
      %5620 = vmatpush1.msra.mxu0 %v5460
      %5621 = vmatprep.subr.mxu0 0.0
      %5622 = vmatpush1.msra.mxu0 %v5461
      %5623 = vmatprep.subr.mxu0 0.0
      %5624 = vmatpush1.msra.mxu0 %v5462
      %5625 = vmatprep.subr.mxu0 0.0
      %5626 = vmatpush1.msra.mxu0 %v5463
      %5627 = vmatprep.subr.mxu0 0.0
      %5628 = vmatpush1.msra.mxu0 %v5464
      %5629 = vmatprep.subr.mxu0 0.0
      %5630 = vmatpush1.msra.mxu0 %v5465
      %5631 = vmatprep.subr.mxu0 0.0
      %5632 = vmatpush1.msra.mxu0 %v5466
      %5633 = vmatprep.subr.mxu0 0.0
      %5634 = vmatpush1.msra.mxu0 %v5467
      %5635 = vmatprep.subr.mxu0 0.0
      %5636 = vmatpush1.msra.mxu0 %v5468
      %5637 = vmatprep.subr.mxu0 0.0
      %5638 = vmatpush1.msra.mxu0 %v5469
      %5639 = vmatprep.subr.mxu0 0.0
      %5640 = vmatpush1.msra.mxu0 %v5470
      %5641 = vmatprep.subr.mxu0 0.0
      %5642 = vmatpush1.msra.mxu0 %v5471
      %5643 = vmatprep.subr.mxu0 0.0
      %5644 = vmatpush1.msra.mxu0 %v5472
      %5645 = vmatprep.mubr.f32.mxu0 %v5408
      %5646 = vmatmul.mubr.f32.gmra.mrb[0].mxu0 %v5312
      %v5647 = vpop.f32.mrb[0].mxu0
      %v5648 = vadd.f32 %v5483, %v5647
      %v5649 = vpop.f32.mrb[0].mxu0
      %5650 = vmatprep.mubr.f32.mxu0 %v5409
      %5651 = vmatmul.mubr.f32.gmra.mrb[0].mxu0 %v5313
      %v5652 = vpop.f32.mrb[0].mxu0
      %v5653 = vadd.f32 %v5483, %v5652
      %v5654 = vpop.f32.mrb[0].mxu0
      %5655 = vmatprep.mubr.f32.mxu0 %v5410
      %5656 = vmatmul.mubr.f32.gmra.mrb[0].mxu0 %v5314
      %v5657 = vpop.f32.mrb[0].mxu0
      %v5658 = vadd.f32 %v5483, %v5657
      %v5659 = vpop.f32.mrb[0].mxu0
      %5660 = vmatprep.mubr.f32.mxu0 %v5411
      %5661 = vmatmul.mubr.f32.gmra.mrb[0].mxu0 %v5315
      %v5662 = vpop.f32.mrb[0].mxu0
      %v5663 = vadd.f32 %v5483, %v5662
      %v5664 = vpop.f32.mrb[0].mxu0
      %5665 = vmatprep.mubr.f32.mxu0 %v5412
      %5666 = vmatmul.mubr.f32.gmra.mrb[0].mxu0 %v5316
      %v5667 = vpop.f32.mrb[0].mxu0
      %v5668 = vadd.f32 %v5483, %v5667
      %v5669 = vpop.f32.mrb[0].mxu0
      %5670 = vmatprep.mubr.f32.mxu0 %v5413
      %5671 = vmatmul.mubr.f32.gmra.mrb[0].mxu0 %v5317
      %v5672 = vpop.f32.mrb[0].mxu0
      %v5673 = vadd.f32 %v5483, %v5672
      %v5674 = vpop.f32.mrb[0].mxu0
      %5675 = vmatprep.mubr.f32.mxu0 %v5414
      %5676 = vmatmul.mubr.f32.gmra.mrb[0].mxu0 %v5318
      %v5677 = vpop.f32.mrb[0].mxu0
      %v5678 = vadd.f32 %v5483, %v5677
      %v5679 = vpop.f32.mrb[0].mxu0
      %5680 = vmatprep.mubr.f32.mxu0 %v5415
      %5681 = vmatmul.mubr.f32.gmra.mrb[0].mxu0 %v5319
      %v5682 = vpop.f32.mrb[0].mxu0
      %v5683 = vadd.f32 %v5483, %v5682
      %v5684 = vpop.f32.mrb[0].mxu0
      %5685 = vmatprep.mubr.f32.mxu0 %v5416
      %5686 = vmatmul.mubr.f32.gmra.mrb[0].mxu0 %v5320
      %v5687 = vpop.f32.mrb[0].mxu0
      %v5688 = vadd.f32 %v5483, %v5687
      %v5689 = vpop.f32.mrb[0].mxu0
      %5690 = vmatprep.mubr.f32.mxu0 %v5417
      %5691 = vmatmul.mubr.f32.gmra.mrb[0].mxu0 %v5321
      %v5692 = vpop.f32.mrb[0].mxu0
      %v5693 = vadd.f32 %v5483, %v5692
      %v5694 = vpop.f32.mrb[0].mxu0
      %5695 = vmatprep.mubr.f32.mxu0 %v5418
      %5696 = vmatmul.mubr.f32.gmra.mrb[0].mxu0 %v5322
      %v5697 = vpop.f32.mrb[0].mxu0
      %v5698 = vadd.f32 %v5483, %v5697
      %v5699 = vpop.f32.mrb[0].mxu0
      %5700 = vmatprep.mubr.f32.mxu0 %v5419
      %5701 = vmatmul.mubr.f32.gmra.mrb[0].mxu0 %v5323
      %v5702 = vpop.f32.mrb[0].mxu0
      %v5703 = vadd.f32 %v5483, %v5702
      %v5704 = vpop.f32.mrb[0].mxu0
      %5705 = vmatprep.mubr.f32.mxu0 %v5420
      %5706 = vmatmul.mubr.f32.gmra.mrb[0].mxu0 %v5324
      %v5707 = vpop.f32.mrb[0].mxu0
      %v5708 = vadd.f32 %v5483, %v5707
      %v5709 = vpop.f32.mrb[0].mxu0
      %5710 = vmatprep.mubr.f32.mxu0 %v5421
      %5711 = vmatmul.mubr.f32.gmra.mrb[0].mxu0 %v5325
      %v5712 = vpop.f32.mrb[0].mxu0
      %v5713 = vadd.f32 %v5483, %v5712
      %v5714 = vpop.f32.mrb[0].mxu0
      %5715 = vmatprep.mubr.f32.mxu0 %v5422
      %5716 = vmatmul.mubr.f32.gmra.mrb[0].mxu0 %v5326
      %v5717 = vpop.f32.mrb[0].mxu0
      %v5718 = vadd.f32 %v5483, %v5717
      %v5719 = vpop.f32.mrb[0].mxu0
      %5720 = vmatprep.mubr.f32.mxu0 %v5423
      %5721 = vmatmul.mubr.f32.gmra.mrb[0].mxu0 %v5327
      %v5722 = vpop.f32.mrb[0].mxu0
      %v5723 = vadd.f32 %v5483, %v5722
      %v5724 = vpop.f32.mrb[0].mxu0
      %5725 = vmatprep.mubr.f32.mxu0 %v5424
      %5726 = vmatmul.mubr.f32.gmra.mrb[0].mxu0 %v5328
      %v5727 = vpop.f32.mrb[0].mxu0
      %v5728 = vadd.f32 %v5483, %v5727
      %v5729 = vpop.f32.mrb[0].mxu0
      %5730 = vmatprep.mubr.f32.mxu0 %v5425
      %5731 = vmatmul.mubr.f32.gmra.mrb[0].mxu0 %v5329
      %v5732 = vpop.f32.mrb[0].mxu0
      %v5733 = vadd.f32 %v5483, %v5732
      %v5734 = vpop.f32.mrb[0].mxu0
      %5735 = vmatprep.mubr.f32.mxu0 %v5426
      %5736 = vmatmul.mubr.f32.gmra.mrb[0].mxu0 %v5330
      %v5737 = vpop.f32.mrb[0].mxu0
      %v5738 = vadd.f32 %v5483, %v5737
      %v5739 = vpop.f32.mrb[0].mxu0
      %5740 = vmatprep.mubr.f32.mxu0 %v5427
      %5741 = vmatmul.mubr.f32.gmra.mrb[0].mxu0 %v5331
      %v5742 = vpop.f32.mrb[0].mxu0
      %v5743 = vadd.f32 %v5483, %v5742
      %v5744 = vpop.f32.mrb[0].mxu0
      %5745 = vmatprep.mubr.f32.mxu0 %v5428
      %5746 = vmatmul.mubr.f32.gmra.mrb[0].mxu0 %v5332
      %v5747 = vpop.f32.mrb[0].mxu0
      %v5748 = vadd.f32 %v5483, %v5747
      %v5749 = vpop.f32.mrb[0].mxu0
      %5750 = vmatprep.mubr.f32.mxu0 %v5429
      %5751 = vmatmul.mubr.f32.gmra.mrb[0].mxu0 %v5333
      %v5752 = vpop.f32.mrb[0].mxu0
      %v5753 = vadd.f32 %v5483, %v5752
      %v5754 = vpop.f32.mrb[0].mxu0
      %5755 = vmatprep.mubr.f32.mxu0 %v5430
      %5756 = vmatmul.mubr.f32.gmra.mrb[0].mxu0 %v5334
      %v5757 = vpop.f32.mrb[0].mxu0
      %v5758 = vadd.f32 %v5483, %v5757
      %v5759 = vpop.f32.mrb[0].mxu0
      %5760 = vmatprep.mubr.f32.mxu0 %v5431
      %5761 = vmatmul.mubr.f32.gmra.mrb[0].mxu0 %v5335
      %v5762 = vpop.f32.mrb[0].mxu0
      %v5763 = vadd.f32 %v5483, %v5762
      %v5764 = vpop.f32.mrb[0].mxu0
      %5765 = vmatprep.mubr.f32.mxu0 %v5432
      %5766 = vmatmul.mubr.f32.gmra.mrb[0].mxu0 %v5336
      %v5767 = vpop.f32.mrb[0].mxu0
      %v5768 = vadd.f32 %v5483, %v5767
      %v5769 = vpop.f32.mrb[0].mxu0
      %5770 = vmatprep.mubr.f32.mxu0 %v5433
      %5771 = vmatmul.mubr.f32.gmra.mrb[0].mxu0 %v5337
      %v5772 = vpop.f32.mrb[0].mxu0
      %v5773 = vadd.f32 %v5483, %v5772
      %v5774 = vpop.f32.mrb[0].mxu0
      %5775 = vmatprep.mubr.f32.mxu0 %v5434
      %5776 = vmatmul.mubr.f32.gmra.mrb[0].mxu0 %v5338
      %v5777 = vpop.f32.mrb[0].mxu0
      %v5778 = vadd.f32 %v5483, %v5777
      %v5779 = vpop.f32.mrb[0].mxu0
      %5780 = vmatprep.mubr.f32.mxu0 %v5435
      %5781 = vmatmul.mubr.f32.gmra.mrb[0].mxu0 %v5339
      %v5782 = vpop.f32.mrb[0].mxu0
      %v5783 = vadd.f32 %v5483, %v5782
      %v5784 = vpop.f32.mrb[0].mxu0
      %5785 = vmatprep.mubr.f32.mxu0 %v5436
      %5786 = vmatmul.mubr.f32.gmra.mrb[0].mxu0 %v5340
      %v5787 = vpop.f32.mrb[0].mxu0
      %v5788 = vadd.f32 %v5483, %v5787
      %v5789 = vpop.f32.mrb[0].mxu0
      %5790 = vmatprep.mubr.f32.mxu0 %v5437
      %5791 = vmatmul.mubr.f32.gmra.mrb[0].mxu0 %v5341
      %v5792 = vpop.f32.mrb[0].mxu0
      %v5793 = vadd.f32 %v5483, %v5792
      %v5794 = vpop.f32.mrb[0].mxu0
      %5795 = vmatprep.mubr.f32.mxu0 %v5438
      %5796 = vmatmul.mubr.f32.gmra.mrb[0].mxu0 %v5342
      %v5797 = vpop.f32.mrb[0].mxu0
      %v5798 = vadd.f32 %v5483, %v5797
      %v5799 = vpop.f32.mrb[0].mxu0
      %5800 = vmatprep.mubr.f32.mxu0 %v5439
      %5801 = vmatmul.mubr.f32.gmra.mrb[0].mxu0 %v5343
      %v5802 = vpop.f32.mrb[0].mxu0
      %v5803 = vadd.f32 %v5483, %v5802
      %v5804 = vpop.f32.mrb[0].mxu0
      %5805 = vdwg.mxu0
      %5806 = vmatprep.subr.mxu0 0.0
      %5807 = vmatpush1.msra.mxu0 %v5473
      %5808 = vmatprep.subr.mxu0 0.0
      %5809 = vmatpush1.msra.mxu0 %v5474
      %5810 = vmatprep.subr.mxu0 0.0
      %5811 = vmatpush1.msra.mxu0 %v5475
      %5812 = vmatprep.subr.mxu0 0.0
      %5813 = vmatpush1.msra.mxu0 %v5476
      %5814 = vmatprep.subr.mxu0 0.0
      %5815 = vmatpush1.msra.mxu0 0.0
      %5816 = vmatprep.subr.mxu0 0.0
      %5817 = vmatpush1.msra.mxu0 0.0
      %5818 = vmatprep.subr.mxu0 0.0
      %5819 = vmatpush1.msra.mxu0 0.0
      %5820 = vmatprep.subr.mxu0 0.0
      %5821 = vmatpush1.msra.mxu0 0.0
      %5822 = vmatprep.subr.mxu0 0.0
      %5823 = vmatpush1.msra.mxu0 0.0
      %5824 = vmatprep.subr.mxu0 0.0
      %5825 = vmatpush1.msra.mxu0 0.0
      %5826 = vmatprep.subr.mxu0 0.0
      %5827 = vmatpush1.msra.mxu0 0.0
      %5828 = vmatprep.subr.mxu0 0.0
      %5829 = vmatpush1.msra.mxu0 0.0
      %5830 = vmatprep.subr.mxu0 0.0
      %5831 = vmatpush1.msra.mxu0 0.0
      %5832 = vmatprep.subr.mxu0 0.0
      %5833 = vmatpush1.msra.mxu0 0.0
      %5834 = vmatprep.subr.mxu0 0.0
      %5835 = vmatpush1.msra.mxu0 0.0
      %5836 = vmatprep.subr.mxu0 0.0
      %5837 = vmatpush1.msra.mxu0 0.0
      %5838 = vmatprep.subr.mxu0 0.0
      %5839 = vmatpush1.msra.mxu0 0.0
      %5840 = vmatprep.subr.mxu0 0.0
      %5841 = vmatpush1.msra.mxu0 0.0
      %5842 = vmatprep.subr.mxu0 0.0
      %5843 = vmatpush1.msra.mxu0 0.0
      %5844 = vmatprep.subr.mxu0 0.0
      %5845 = vmatpush1.msra.mxu0 0.0
      %5846 = vmatprep.subr.mxu0 0.0
      %5847 = vmatpush1.msra.mxu0 0.0
      %5848 = vmatprep.subr.mxu0 0.0
      %5849 = vmatpush1.msra.mxu0 0.0
      %5850 = vmatprep.subr.mxu0 0.0
      %5851 = vmatpush1.msra.mxu0 0.0
      %5852 = vmatprep.subr.mxu0 0.0
      %5853 = vmatpush1.msra.mxu0 0.0
      %5854 = vmatprep.subr.mxu0 0.0
      %5855 = vmatpush1.msra.mxu0 0.0
      %5856 = vmatprep.subr.mxu0 0.0
      %5857 = vmatpush1.msra.mxu0 0.0
      %5858 = vmatprep.subr.mxu0 0.0
      %5859 = vmatpush1.msra.mxu0 0.0
      %5860 = vmatprep.subr.mxu0 0.0
      %5861 = vmatpush1.msra.mxu0 0.0
      %5862 = vmatprep.subr.mxu0 0.0
      %5863 = vmatpush1.msra.mxu0 0.0
      %5864 = vmatprep.subr.mxu0 0.0
      %5865 = vmatpush1.msra.mxu0 0.0
      %5866 = vmatprep.subr.mxu0 0.0
      %5867 = vmatpush1.msra.mxu0 0.0
      %5868 = vmatprep.subr.mxu0 0.0
      %5869 = vmatpush1.msra.mxu0 0.0
      %5870 = vmatprep.mubr.f32.mxu0 0.0
      %5871 = vmatmul.mubr.f32.gmra.mrb[0].mxu0 %v5486
      %v5872 = vpop.f32.mrb[0].mxu0
      %v5873 = vadd.f32 %v5648, %v5872
      %v5874 = vpop.f32.mrb[0].mxu0
      %5875 = vmatprep.mubr.f32.mxu0 0.0
      %5876 = vmatmul.mubr.f32.gmra.mrb[0].mxu0 %v5489
      %v5877 = vpop.f32.mrb[0].mxu0
      %v5878 = vadd.f32 %v5653, %v5877
      %v5879 = vpop.f32.mrb[0].mxu0
      %5880 = vmatprep.mubr.f32.mxu0 0.0
      %5881 = vmatmul.mubr.f32.gmra.mrb[0].mxu0 %v5492
      %v5882 = vpop.f32.mrb[0].mxu0
      %v5883 = vadd.f32 %v5658, %v5882
      %v5884 = vpop.f32.mrb[0].mxu0
      %5885 = vmatprep.mubr.f32.mxu0 0.0
      %5886 = vmatmul.mubr.f32.gmra.mrb[0].mxu0 %v5495
      %v5887 = vpop.f32.mrb[0].mxu0
      %v5888 = vadd.f32 %v5663, %v5887
      %v5889 = vpop.f32.mrb[0].mxu0
      %5890 = vmatprep.mubr.f32.mxu0 0.0
      %5891 = vmatmul.mubr.f32.gmra.mrb[0].mxu0 %v5498
      %v5892 = vpop.f32.mrb[0].mxu0
      %v5893 = vadd.f32 %v5668, %v5892
      %v5894 = vpop.f32.mrb[0].mxu0
      %5895 = vmatprep.mubr.f32.mxu0 0.0
      %5896 = vmatmul.mubr.f32.gmra.mrb[0].mxu0 %v5501
      %v5897 = vpop.f32.mrb[0].mxu0
      %v5898 = vadd.f32 %v5673, %v5897
      %v5899 = vpop.f32.mrb[0].mxu0
      %5900 = vmatprep.mubr.f32.mxu0 0.0
      %5901 = vmatmul.mubr.f32.gmra.mrb[0].mxu0 %v5504
      %v5902 = vpop.f32.mrb[0].mxu0
      %v5903 = vadd.f32 %v5678, %v5902
      %v5904 = vpop.f32.mrb[0].mxu0
      %5905 = vmatprep.mubr.f32.mxu0 0.0
      %5906 = vmatmul.mubr.f32.gmra.mrb[0].mxu0 %v5507
      %v5907 = vpop.f32.mrb[0].mxu0
      %v5908 = vadd.f32 %v5683, %v5907
      %v5909 = vpop.f32.mrb[0].mxu0
      %5910 = vmatprep.mubr.f32.mxu0 0.0
      %5911 = vmatmul.mubr.f32.gmra.mrb[0].mxu0 %v5510
      %v5912 = vpop.f32.mrb[0].mxu0
      %v5913 = vadd.f32 %v5688, %v5912
      %v5914 = vpop.f32.mrb[0].mxu0
      %5915 = vmatprep.mubr.f32.mxu0 0.0
      %5916 = vmatmul.mubr.f32.gmra.mrb[0].mxu0 %v5513
      %v5917 = vpop.f32.mrb[0].mxu0
      %v5918 = vadd.f32 %v5693, %v5917
      %v5919 = vpop.f32.mrb[0].mxu0
      %5920 = vmatprep.mubr.f32.mxu0 0.0
      %5921 = vmatmul.mubr.f32.gmra.mrb[0].mxu0 %v5516
      %v5922 = vpop.f32.mrb[0].mxu0
      %v5923 = vadd.f32 %v5698, %v5922
      %v5924 = vpop.f32.mrb[0].mxu0
      %5925 = vmatprep.mubr.f32.mxu0 0.0
      %5926 = vmatmul.mubr.f32.gmra.mrb[0].mxu0 %v5519
      %v5927 = vpop.f32.mrb[0].mxu0
      %v5928 = vadd.f32 %v5703, %v5927
      %v5929 = vpop.f32.mrb[0].mxu0
      %5930 = vmatprep.mubr.f32.mxu0 0.0
      %5931 = vmatmul.mubr.f32.gmra.mrb[0].mxu0 %v5522
      %v5932 = vpop.f32.mrb[0].mxu0
      %v5933 = vadd.f32 %v5708, %v5932
      %v5934 = vpop.f32.mrb[0].mxu0
      %5935 = vmatprep.mubr.f32.mxu0 0.0
      %5936 = vmatmul.mubr.f32.gmra.mrb[0].mxu0 %v5525
      %v5937 = vpop.f32.mrb[0].mxu0
      %v5938 = vadd.f32 %v5713, %v5937
      %v5939 = vpop.f32.mrb[0].mxu0
      %5940 = vmatprep.mubr.f32.mxu0 0.0
      %5941 = vmatmul.mubr.f32.gmra.mrb[0].mxu0 %v5528
      %v5942 = vpop.f32.mrb[0].mxu0
      %v5943 = vadd.f32 %v5718, %v5942
      %v5944 = vpop.f32.mrb[0].mxu0
      %5945 = vmatprep.mubr.f32.mxu0 0.0
      %5946 = vmatmul.mubr.f32.gmra.mrb[0].mxu0 %v5531
      %v5947 = vpop.f32.mrb[0].mxu0
      %v5948 = vadd.f32 %v5723, %v5947
      %v5949 = vpop.f32.mrb[0].mxu0
      %5950 = vmatprep.mubr.f32.mxu0 0.0
      %5951 = vmatmul.mubr.f32.gmra.mrb[0].mxu0 %v5534
      %v5952 = vpop.f32.mrb[0].mxu0
      %v5953 = vadd.f32 %v5728, %v5952
      %v5954 = vpop.f32.mrb[0].mxu0
      %5955 = vmatprep.mubr.f32.mxu0 0.0
      %5956 = vmatmul.mubr.f32.gmra.mrb[0].mxu0 %v5537
      %v5957 = vpop.f32.mrb[0].mxu0
      %v5958 = vadd.f32 %v5733, %v5957
      %v5959 = vpop.f32.mrb[0].mxu0
      %5960 = vmatprep.mubr.f32.mxu0 0.0
      %5961 = vmatmul.mubr.f32.gmra.mrb[0].mxu0 %v5540
      %v5962 = vpop.f32.mrb[0].mxu0
      %v5963 = vadd.f32 %v5738, %v5962
      %v5964 = vpop.f32.mrb[0].mxu0
      %5965 = vmatprep.mubr.f32.mxu0 0.0
      %5966 = vmatmul.mubr.f32.gmra.mrb[0].mxu0 %v5543
      %v5967 = vpop.f32.mrb[0].mxu0
      %v5968 = vadd.f32 %v5743, %v5967
      %v5969 = vpop.f32.mrb[0].mxu0
      %5970 = vmatprep.mubr.f32.mxu0 0.0
      %5971 = vmatmul.mubr.f32.gmra.mrb[0].mxu0 %v5546
      %v5972 = vpop.f32.mrb[0].mxu0
      %v5973 = vadd.f32 %v5748, %v5972
      %v5974 = vpop.f32.mrb[0].mxu0
      %5975 = vmatprep.mubr.f32.mxu0 0.0
      %5976 = vmatmul.mubr.f32.gmra.mrb[0].mxu0 %v5549
      %v5977 = vpop.f32.mrb[0].mxu0
      %v5978 = vadd.f32 %v5753, %v5977
      %v5979 = vpop.f32.mrb[0].mxu0
      %5980 = vmatprep.mubr.f32.mxu0 0.0
      %5981 = vmatmul.mubr.f32.gmra.mrb[0].mxu0 %v5552
      %v5982 = vpop.f32.mrb[0].mxu0
      %v5983 = vadd.f32 %v5758, %v5982
      %v5984 = vpop.f32.mrb[0].mxu0
      %5985 = vmatprep.mubr.f32.mxu0 0.0
      %5986 = vmatmul.mubr.f32.gmra.mrb[0].mxu0 %v5555
      %v5987 = vpop.f32.mrb[0].mxu0
      %v5988 = vadd.f32 %v5763, %v5987
      %v5989 = vpop.f32.mrb[0].mxu0
      %5990 = vmatprep.mubr.f32.mxu0 0.0
      %5991 = vmatmul.mubr.f32.gmra.mrb[0].mxu0 %v5558
      %v5992 = vpop.f32.mrb[0].mxu0
      %v5993 = vadd.f32 %v5768, %v5992
      %v5994 = vpop.f32.mrb[0].mxu0
      %5995 = vmatprep.mubr.f32.mxu0 0.0
      %5996 = vmatmul.mubr.f32.gmra.mrb[0].mxu0 %v5561
      %v5997 = vpop.f32.mrb[0].mxu0
      %v5998 = vadd.f32 %v5773, %v5997
      %v5999 = vpop.f32.mrb[0].mxu0
      %6000 = vmatprep.mubr.f32.mxu0 0.0
      %6001 = vmatmul.mubr.f32.gmra.mrb[0].mxu0 %v5564
      %v6002 = vpop.f32.mrb[0].mxu0
      %v6003 = vadd.f32 %v5778, %v6002
      %v6004 = vpop.f32.mrb[0].mxu0
      %6005 = vmatprep.mubr.f32.mxu0 0.0
      %6006 = vmatmul.mubr.f32.gmra.mrb[0].mxu0 %v5567
      %v6007 = vpop.f32.mrb[0].mxu0
      %v6008 = vadd.f32 %v5783, %v6007
      %v6009 = vpop.f32.mrb[0].mxu0
      %6010 = vmatprep.mubr.f32.mxu0 0.0
      %6011 = vmatmul.mubr.f32.gmra.mrb[0].mxu0 %v5570
      %v6012 = vpop.f32.mrb[0].mxu0
      %v6013 = vadd.f32 %v5788, %v6012
      %v6014 = vpop.f32.mrb[0].mxu0
      %6015 = vmatprep.mubr.f32.mxu0 0.0
      %6016 = vmatmul.mubr.f32.gmra.mrb[0].mxu0 %v5573
      %v6017 = vpop.f32.mrb[0].mxu0
      %v6018 = vadd.f32 %v5793, %v6017
      %v6019 = vpop.f32.mrb[0].mxu0
      %6020 = vmatprep.mubr.f32.mxu0 0.0
      %6021 = vmatmul.mubr.f32.gmra.mrb[0].mxu0 %v5576
      %v6022 = vpop.f32.mrb[0].mxu0
      %v6023 = vadd.f32 %v5798, %v6022
      %v6024 = vpop.f32.mrb[0].mxu0
      %6025 = vmatprep.mubr.f32.mxu0 0.0
      %6026 = vmatmul.mubr.f32.gmra.mrb[0].mxu0 %v5579
      %v6027 = vpop.f32.mrb[0].mxu0
      %v6028 = vadd.f32 %v5803, %v6027
      %v6029 = vpop.f32.mrb[0].mxu0
      %6030 = vdwg.mxu0
      %v6031 = vmax.f32 %v5873, 0.0
      %v6032 = vmax.f32 %v5878, 0.0
      %v6033 = vmax.f32 %v5883, 0.0
      %v6034 = vmax.f32 %v5888, 0.0
      %v6035 = vmax.f32 %v5893, 0.0
      %v6036 = vmax.f32 %v5898, 0.0
      %v6037 = vmax.f32 %v5903, 0.0
      %v6038 = vmax.f32 %v5908, 0.0
      %v6039 = vmax.f32 %v5913, 0.0
      %v6040 = vmax.f32 %v5918, 0.0
      %v6041 = vmax.f32 %v5923, 0.0
      %v6042 = vmax.f32 %v5928, 0.0
      %v6043 = vmax.f32 %v5933, 0.0
      %v6044 = vmax.f32 %v5938, 0.0
      %v6045 = vmax.f32 %v5943, 0.0
      %v6046 = vmax.f32 %v5948, 0.0
      %v6047 = vmax.f32 %v5953, 0.0
      %v6048 = vmax.f32 %v5958, 0.0
      %v6049 = vmax.f32 %v5963, 0.0
      %v6050 = vmax.f32 %v5968, 0.0
      %v6051 = vmax.f32 %v5973, 0.0
      %v6052 = vmax.f32 %v5978, 0.0
      %v6053 = vmax.f32 %v5983, 0.0
      %v6054 = vmax.f32 %v5988, 0.0
      %v6055 = vmax.f32 %v5993, 0.0
      %v6056 = vmax.f32 %v5998, 0.0
      %v6057 = vmax.f32 %v6003, 0.0
      %v6058 = vmax.f32 %v6008, 0.0
      %v6059 = vmax.f32 %v6013, 0.0
      %v6060 = vmax.f32 %v6018, 0.0
      %v6061 = vmax.f32 %v6023, 0.0
      %v6062 = vmax.f32 %v6028, 0.0
      %6063 = vst.msk [vmem:[%s352 + $0x1] sm:$0xff] %vm225, %v6031
      %6064 = vst.msk [vmem:[%s352 + $0x9] sm:$0xff] %vm225, %v6032
      %6065 = vst.msk [vmem:[%s352 + $0x19] sm:$0xff] %vm225, %v6033
      %6066 = vst.msk [vmem:[%s352 + $0x21] sm:$0xff] %vm225, %v6034
      %6067 = vst.msk [vmem:[%s352 + $0x31] sm:$0xff] %vm225, %v6035
      %6068 = vst.msk [vmem:[%s352 + $0x39] sm:$0xff] %vm225, %v6036
      %6069 = vst.msk [vmem:[%s352 + $0x49] sm:$0xff] %vm225, %v6037
      %6070 = vst.msk [vmem:[%s352 + $0x51] sm:$0xff] %vm225, %v6038
      %6071 = vst.msk [vmem:[%s352 + $0x61] sm:$0xff] %vm225, %v6039
      %6072 = vst.msk [vmem:[%s352 + $0x69] sm:$0xff] %vm225, %v6040
      %6073 = vst.msk [vmem:[%s352 + $0x79] sm:$0xff] %vm225, %v6041
      %6074 = vst.msk [vmem:[%s352 + $0x81] sm:$0xff] %vm225, %v6042
      %6075 = vst.msk [vmem:[%s352 + $0x91] sm:$0xff] %vm225, %v6043
      %6076 = vst.msk [vmem:[%s352 + $0x99] sm:$0xff] %vm225, %v6044
      %6077 = vst.msk [vmem:[%s352 + $0xa9] sm:$0xff] %vm225, %v6045
      %6078 = vst.msk [vmem:[%s352 + $0xb1] sm:$0xff] %vm225, %v6046
      %6079 = vst.msk [vmem:[%s352 + $0xc1] sm:$0xff] %vm225, %v6047
      %6080 = vst.msk [vmem:[%s352 + $0xc9] sm:$0xff] %vm225, %v6048
      %6081 = vst.msk [vmem:[%s352 + $0xd9] sm:$0xff] %vm225, %v6049
      %6082 = vst.msk [vmem:[%s352 + $0xe1] sm:$0xff] %vm225, %v6050
      %6083 = vst.msk [vmem:[%s352 + $0xf1] sm:$0xff] %vm225, %v6051
      %6084 = vst.msk [vmem:[%s352 + $0xf9] sm:$0xff] %vm225, %v6052
      %6085 = vst.msk [vmem:[%s352 + $0x109] sm:$0xff] %vm225, %v6053
      %6086 = vst.msk [vmem:[%s352 + $0x111] sm:$0xff] %vm225, %v6054
      %6087 = vst.msk [vmem:[%s352 + $0x121] sm:$0xff] %vm225, %v6055
      %6088 = vst.msk [vmem:[%s352 + $0x129] sm:$0xff] %vm225, %v6056
      %6089 = vst.msk [vmem:[%s352 + $0x139] sm:$0xff] %vm225, %v6057
      %6090 = vst.msk [vmem:[%s352 + $0x141] sm:$0xff] %vm225, %v6058
      %6091 = vst.msk [vmem:[%s352 + $0x151] sm:$0xff] %vm225, %v6059
      %6092 = vst.msk [vmem:[%s352 + $0x159] sm:$0xff] %vm225, %v6060
      %6093 = vst.msk [vmem:[%s352 + $0x169] sm:$0xff] %vm225, %v6061
      %6094 = vst.msk [vmem:[%s352 + $0x171] sm:$0xff] %vm225, %v6062
      %v6095 = vld [vmem:[#allocation2] sm:$0xff]
      %v6096 = vld [vmem:[#allocation2 + $0x8] sm:$0xff]
      %v6097 = vld [vmem:[#allocation2 + $0x18] sm:$0xff]
      %v6098 = vld [vmem:[#allocation2 + $0x20] sm:$0xff]
      %v6099 = vld [vmem:[#allocation2 + $0x30] sm:$0xff]
      %v6100 = vld [vmem:[#allocation2 + $0x38] sm:$0xff]
      %v6101 = vld [vmem:[#allocation2 + $0x48] sm:$0xff]
      %v6102 = vld [vmem:[#allocation2 + $0x50] sm:$0xff]
      %v6103 = vld [vmem:[#allocation2 + $0x60] sm:$0xff]
      %v6104 = vld [vmem:[#allocation2 + $0x68] sm:$0xff]
      %v6105 = vld [vmem:[#allocation2 + $0x78] sm:$0xff]
      %v6106 = vld [vmem:[#allocation2 + $0x80] sm:$0xff]
      %v6107 = vld [vmem:[#allocation2 + $0x90] sm:$0xff]
      %v6108 = vld [vmem:[#allocation2 + $0x98] sm:$0xff]
      %v6109 = vld [vmem:[#allocation2 + $0xa8] sm:$0xff]
      %v6110 = vld [vmem:[#allocation2 + $0xb0] sm:$0xff]
      %v6111 = vld [vmem:[#allocation2 + $0xc0] sm:$0xff]
      %v6112 = vld [vmem:[#allocation2 + $0xc8] sm:$0xff]
      %v6113 = vld [vmem:[#allocation2 + $0xd8] sm:$0xff]
      %v6114 = vld [vmem:[#allocation2 + $0xe0] sm:$0xff]
      %v6115 = vld [vmem:[#allocation2 + $0xf0] sm:$0xff]
      %v6116 = vld [vmem:[#allocation2 + $0xf8] sm:$0xff]
      %v6117 = vld [vmem:[#allocation2 + $0x108] sm:$0xff]
      %v6118 = vld [vmem:[#allocation2 + $0x110] sm:$0xff]
      %v6119 = vld [vmem:[#allocation2 + $0x120] sm:$0xff]
      %v6120 = vld [vmem:[#allocation2 + $0x128] sm:$0xff]
      %v6121 = vld [vmem:[#allocation2 + $0x138] sm:$0xff]
      %v6122 = vld [vmem:[#allocation2 + $0x140] sm:$0xff]
      %v6123 = vld [vmem:[#allocation2 + $0x150] sm:$0xff]
      %v6124 = vld [vmem:[#allocation2 + $0x158] sm:$0xff]
      %v6125 = vld [vmem:[#allocation2 + $0x168] sm:$0xff]
      %v6126 = vld [vmem:[#allocation2 + $0x170] sm:$0xff]
      %v6127 = vld [vmem:[#allocation2 + $0x1] sm:$0xff]
      %v6128 = vld [vmem:[#allocation2 + $0x9] sm:$0xff]
      %v6129 = vld [vmem:[#allocation2 + $0x19] sm:$0xff]
      %v6130 = vld [vmem:[#allocation2 + $0x21] sm:$0xff]
      %v6131 = vld [vmem:[#allocation2 + $0x31] sm:$0xff]
      %v6132 = vld [vmem:[#allocation2 + $0x39] sm:$0xff]
      %v6133 = vld [vmem:[#allocation2 + $0x49] sm:$0xff]
      %v6134 = vld [vmem:[#allocation2 + $0x51] sm:$0xff]
      %v6135 = vld [vmem:[#allocation2 + $0x61] sm:$0xff]
      %v6136 = vld [vmem:[#allocation2 + $0x69] sm:$0xff]
      %v6137 = vld [vmem:[#allocation2 + $0x79] sm:$0xff]
      %v6138 = vld [vmem:[#allocation2 + $0x81] sm:$0xff]
      %v6139 = vld [vmem:[#allocation2 + $0x91] sm:$0xff]
      %v6140 = vld [vmem:[#allocation2 + $0x99] sm:$0xff]
      %v6141 = vld [vmem:[#allocation2 + $0xa9] sm:$0xff]
      %v6142 = vld [vmem:[#allocation2 + $0xb1] sm:$0xff]
      %v6143 = vld [vmem:[#allocation2 + $0xc1] sm:$0xff]
      %v6144 = vld [vmem:[#allocation2 + $0xc9] sm:$0xff]
      %v6145 = vld [vmem:[#allocation2 + $0xd9] sm:$0xff]
      %v6146 = vld [vmem:[#allocation2 + $0xe1] sm:$0xff]
      %v6147 = vld [vmem:[#allocation2 + $0xf1] sm:$0xff]
      %v6148 = vld [vmem:[#allocation2 + $0xf9] sm:$0xff]
      %v6149 = vld [vmem:[#allocation2 + $0x109] sm:$0xff]
      %v6150 = vld [vmem:[#allocation2 + $0x111] sm:$0xff]
      %v6151 = vld [vmem:[#allocation2 + $0x121] sm:$0xff]
      %v6152 = vld [vmem:[#allocation2 + $0x129] sm:$0xff]
      %v6153 = vld [vmem:[#allocation2 + $0x139] sm:$0xff]
      %v6154 = vld [vmem:[#allocation2 + $0x141] sm:$0xff]
      %v6155 = vld [vmem:[#allocation2 + $0x151] sm:$0xff]
      %v6156 = vld [vmem:[#allocation2 + $0x159] sm:$0xff]
      %v6157 = vld [vmem:[#allocation2 + $0x169] sm:$0xff]
      %v6158 = vld [vmem:[#allocation2 + $0x171] sm:$0xff]
      %v6159 = vld [vmem:[#allocation2 + $0x2] sm:$0xff]
      %v6160 = vld [vmem:[#allocation2 + $0xa] sm:$0xff]
      %v6161 = vld [vmem:[#allocation2 + $0x1a] sm:$0xff]
      %v6162 = vld [vmem:[#allocation2 + $0x22] sm:$0xff]
      %v6163 = vld [vmem:[#allocation2 + $0x32] sm:$0xff]
      %v6164 = vld [vmem:[#allocation2 + $0x3a] sm:$0xff]
      %v6165 = vld [vmem:[#allocation2 + $0x4a] sm:$0xff]
      %v6166 = vld [vmem:[#allocation2 + $0x52] sm:$0xff]
      %v6167 = vld [vmem:[#allocation2 + $0x62] sm:$0xff]
      %v6168 = vld [vmem:[#allocation2 + $0x6a] sm:$0xff]
      %v6169 = vld [vmem:[#allocation2 + $0x7a] sm:$0xff]
      %v6170 = vld [vmem:[#allocation2 + $0x82] sm:$0xff]
      %v6171 = vld [vmem:[#allocation2 + $0x92] sm:$0xff]
      %v6172 = vld [vmem:[#allocation2 + $0x9a] sm:$0xff]
      %v6173 = vld [vmem:[#allocation2 + $0xaa] sm:$0xff]
      %v6174 = vld [vmem:[#allocation2 + $0xb2] sm:$0xff]
      %v6175 = vld [vmem:[#allocation2 + $0xc2] sm:$0xff]
      %v6176 = vld [vmem:[#allocation2 + $0xca] sm:$0xff]
      %v6177 = vld [vmem:[#allocation2 + $0xda] sm:$0xff]
      %v6178 = vld [vmem:[#allocation2 + $0xe2] sm:$0xff]
      %v6179 = vld [vmem:[#allocation2 + $0xf2] sm:$0xff]
      %v6180 = vld [vmem:[#allocation2 + $0xfa] sm:$0xff]
      %v6181 = vld [vmem:[#allocation2 + $0x10a] sm:$0xff]
      %v6182 = vld [vmem:[#allocation2 + $0x112] sm:$0xff]
      %v6183 = vld [vmem:[#allocation2 + $0x122] sm:$0xff]
      %v6184 = vld [vmem:[#allocation2 + $0x12a] sm:$0xff]
      %v6185 = vld [vmem:[#allocation2 + $0x13a] sm:$0xff]
      %v6186 = vld [vmem:[#allocation2 + $0x142] sm:$0xff]
      %v6187 = vld [vmem:[#allocation2 + $0x152] sm:$0xff]
      %v6188 = vld [vmem:[#allocation2 + $0x15a] sm:$0xff]
      %v6189 = vld [vmem:[#allocation2 + $0x16a] sm:$0xff]
      %v6190 = vld [vmem:[#allocation2 + $0x172] sm:$0xff]
      %v6191 = vld [vmem:[%s352] sm:$0xff]
      %v6192 = vld [vmem:[%s352 + $0x8] sm:$0xff]
      %v6193 = vld [vmem:[%s352 + $0x18] sm:$0xff]
      %v6194 = vld [vmem:[%s352 + $0x20] sm:$0xff]
      %v6195 = vld [vmem:[%s352 + $0x30] sm:$0xff]
      %v6196 = vld [vmem:[%s352 + $0x38] sm:$0xff]
      %v6197 = vld [vmem:[%s352 + $0x48] sm:$0xff]
      %v6198 = vld [vmem:[%s352 + $0x50] sm:$0xff]
      %v6199 = vld [vmem:[%s352 + $0x60] sm:$0xff]
      %v6200 = vld [vmem:[%s352 + $0x68] sm:$0xff]
      %v6201 = vld [vmem:[%s352 + $0x78] sm:$0xff]
      %v6202 = vld [vmem:[%s352 + $0x80] sm:$0xff]
      %v6203 = vld [vmem:[%s352 + $0x90] sm:$0xff]
      %v6204 = vld [vmem:[%s352 + $0x98] sm:$0xff]
      %v6205 = vld [vmem:[%s352 + $0xa8] sm:$0xff]
      %v6206 = vld [vmem:[%s352 + $0xb0] sm:$0xff]
      %v6207 = vld [vmem:[%s352 + $0xc0] sm:$0xff]
      %v6208 = vld [vmem:[%s352 + $0xc8] sm:$0xff]
      %v6209 = vld [vmem:[%s352 + $0xd8] sm:$0xff]
      %v6210 = vld [vmem:[%s352 + $0xe0] sm:$0xff]
      %v6211 = vld [vmem:[%s352 + $0xf0] sm:$0xff]
      %v6212 = vld [vmem:[%s352 + $0xf8] sm:$0xff]
      %v6213 = vld [vmem:[%s352 + $0x108] sm:$0xff]
      %v6214 = vld [vmem:[%s352 + $0x110] sm:$0xff]
      %v6215 = vld [vmem:[%s352 + $0x120] sm:$0xff]
      %v6216 = vld [vmem:[%s352 + $0x128] sm:$0xff]
      %v6217 = vld [vmem:[%s352 + $0x138] sm:$0xff]
      %v6218 = vld [vmem:[%s352 + $0x140] sm:$0xff]
      %v6219 = vld [vmem:[%s352 + $0x150] sm:$0xff]
      %v6220 = vld [vmem:[%s352 + $0x158] sm:$0xff]
      %v6221 = vld [vmem:[%s352 + $0x168] sm:$0xff]
      %v6222 = vld [vmem:[%s352 + $0x170] sm:$0xff]
      %v6223 = vld [vmem:[%s352 + $0x1] sm:$0xff]
      %v6224 = vld [vmem:[%s352 + $0x9] sm:$0xff]
      %v6225 = vld [vmem:[%s352 + $0x19] sm:$0xff]
      %v6226 = vld [vmem:[%s352 + $0x21] sm:$0xff]
      %v6227 = vld [vmem:[%s352 + $0x31] sm:$0xff]
      %v6228 = vld [vmem:[%s352 + $0x39] sm:$0xff]
      %v6229 = vld [vmem:[%s352 + $0x49] sm:$0xff]
      %v6230 = vld [vmem:[%s352 + $0x51] sm:$0xff]
      %v6231 = vld [vmem:[%s352 + $0x61] sm:$0xff]
      %v6232 = vld [vmem:[%s352 + $0x69] sm:$0xff]
      %v6233 = vld [vmem:[%s352 + $0x79] sm:$0xff]
      %v6234 = vld [vmem:[%s352 + $0x81] sm:$0xff]
      %v6235 = vld [vmem:[%s352 + $0x91] sm:$0xff]
      %v6236 = vld [vmem:[%s352 + $0x99] sm:$0xff]
      %v6237 = vld [vmem:[%s352 + $0xa9] sm:$0xff]
      %v6238 = vld [vmem:[%s352 + $0xb1] sm:$0xff]
      %v6239 = vld [vmem:[%s352 + $0xc1] sm:$0xff]
      %v6240 = vld [vmem:[%s352 + $0xc9] sm:$0xff]
      %v6241 = vld [vmem:[%s352 + $0xd9] sm:$0xff]
      %v6242 = vld [vmem:[%s352 + $0xe1] sm:$0xff]
      %v6243 = vld [vmem:[%s352 + $0xf1] sm:$0xff]
      %v6244 = vld [vmem:[%s352 + $0xf9] sm:$0xff]
      %v6245 = vld [vmem:[%s352 + $0x109] sm:$0xff]
      %v6246 = vld [vmem:[%s352 + $0x111] sm:$0xff]
      %v6247 = vld [vmem:[%s352 + $0x121] sm:$0xff]
      %v6248 = vld [vmem:[%s352 + $0x129] sm:$0xff]
      %v6249 = vld [vmem:[%s352 + $0x139] sm:$0xff]
      %v6250 = vld [vmem:[%s352 + $0x141] sm:$0xff]
      %v6251 = vld [vmem:[%s352 + $0x151] sm:$0xff]
      %v6252 = vld [vmem:[%s352 + $0x159] sm:$0xff]
      %v6253 = vld [vmem:[%s352 + $0x169] sm:$0xff]
      %v6254 = vld [vmem:[%s352 + $0x171] sm:$0xff]
      %v6255 = vld [vmem:[%s352 + $0x2] sm:$0xff]
      %v6256 = vld [vmem:[%s352 + $0xa] sm:$0xff]
      %v6257 = vld [vmem:[%s352 + $0x1a] sm:$0xff]
      %v6258 = vld [vmem:[%s352 + $0x22] sm:$0xff]
      %v6259 = vld [vmem:[%s352 + $0x32] sm:$0xff]
      %v6260 = vld [vmem:[%s352 + $0x3a] sm:$0xff]
      %v6261 = vld [vmem:[%s352 + $0x4a] sm:$0xff]
      %v6262 = vld [vmem:[%s352 + $0x52] sm:$0xff]
      %v6263 = vld [vmem:[%s352 + $0x62] sm:$0xff]
      %v6264 = vld [vmem:[%s352 + $0x6a] sm:$0xff]
      %v6265 = vld [vmem:[%s352 + $0x7a] sm:$0xff]
      %v6266 = vld [vmem:[%s352 + $0x82] sm:$0xff]
      %v6267 = vld [vmem:[%s352 + $0x92] sm:$0xff]
      %v6268 = vld [vmem:[%s352 + $0x9a] sm:$0xff]
      %v6269 = vld [vmem:[%s352 + $0xaa] sm:$0xff]
      %v6270 = vld [vmem:[%s352 + $0xb2] sm:$0xff]
      %v6271 = vld [vmem:[%s352 + $0xc2] sm:$0xff]
      %v6272 = vld [vmem:[%s352 + $0xca] sm:$0xff]
      %v6273 = vld [vmem:[%s352 + $0xda] sm:$0xff]
      %v6274 = vld [vmem:[%s352 + $0xe2] sm:$0xff]
      %v6275 = vld [vmem:[%s352 + $0xf2] sm:$0xff]
      %v6276 = vld [vmem:[%s352 + $0xfa] sm:$0xff]
      %v6277 = vld [vmem:[%s352 + $0x10a] sm:$0xff]
      %v6278 = vld [vmem:[%s352 + $0x112] sm:$0xff]
      %v6279 = vld [vmem:[%s352 + $0x122] sm:$0xff]
      %v6280 = vld [vmem:[%s352 + $0x12a] sm:$0xff]
      %v6281 = vld [vmem:[%s352 + $0x13a] sm:$0xff]
      %v6282 = vld [vmem:[%s352 + $0x142] sm:$0xff]
      %v6283 = vld [vmem:[%s352 + $0x152] sm:$0xff]
      %v6284 = vld [vmem:[%s352 + $0x15a] sm:$0xff]
      %v6285 = vld [vmem:[%s352 + $0x16a] sm:$0xff]
      %v6286 = vld [vmem:[%s352 + $0x172] sm:$0xff]
      %v6287 = vld [vmem:[%s577] sm:$0xff]
      %v6288 = vld [vmem:[%s577 + $0x8] sm:$0xff]
      %v6289 = vld [vmem:[%s577 + $0x18] sm:$0xff]
      %v6290 = vld [vmem:[%s577 + $0x20] sm:$0xff]
      %v6291 = vld [vmem:[%s577 + $0x30] sm:$0xff]
      %v6292 = vld [vmem:[%s577 + $0x38] sm:$0xff]
      %v6293 = vld [vmem:[%s577 + $0x48] sm:$0xff]
      %v6294 = vld [vmem:[%s577 + $0x50] sm:$0xff]
      %v6295 = vld [vmem:[%s577 + $0x60] sm:$0xff]
      %v6296 = vld [vmem:[%s577 + $0x68] sm:$0xff]
      %v6297 = vld [vmem:[%s577 + $0x78] sm:$0xff]
      %v6298 = vld [vmem:[%s577 + $0x80] sm:$0xff]
      %v6299 = vld [vmem:[%s577 + $0x90] sm:$0xff]
      %v6300 = vld [vmem:[%s577 + $0x98] sm:$0xff]
      %v6301 = vld [vmem:[%s577 + $0xa8] sm:$0xff]
      %v6302 = vld [vmem:[%s577 + $0xb0] sm:$0xff]
      %v6303 = vld [vmem:[%s577 + $0xc0] sm:$0xff]
      %v6304 = vld [vmem:[%s577 + $0xc8] sm:$0xff]
      %v6305 = vld [vmem:[%s577 + $0xd8] sm:$0xff]
      %v6306 = vld [vmem:[%s577 + $0xe0] sm:$0xff]
      %v6307 = vld [vmem:[%s577 + $0xf0] sm:$0xff]
      %v6308 = vld [vmem:[%s577 + $0xf8] sm:$0xff]
      %v6309 = vld [vmem:[%s577 + $0x108] sm:$0xff]
      %v6310 = vld [vmem:[%s577 + $0x110] sm:$0xff]
      %v6311 = vld [vmem:[%s577 + $0x120] sm:$0xff]
      %v6312 = vld [vmem:[%s577 + $0x128] sm:$0xff]
      %v6313 = vld [vmem:[%s577 + $0x138] sm:$0xff]
      %v6314 = vld [vmem:[%s577 + $0x140] sm:$0xff]
      %v6315 = vld [vmem:[%s577 + $0x150] sm:$0xff]
      %v6316 = vld [vmem:[%s577 + $0x158] sm:$0xff]
      %v6317 = vld [vmem:[%s577 + $0x168] sm:$0xff]
      %v6318 = vld [vmem:[%s577 + $0x170] sm:$0xff]
      %v6319 = vld [vmem:[%s577 + $0x1] sm:$0xff]
      %v6320 = vld [vmem:[%s577 + $0x9] sm:$0xff]
      %v6321 = vld [vmem:[%s577 + $0x19] sm:$0xff]
      %v6322 = vld [vmem:[%s577 + $0x21] sm:$0xff]
      %v6323 = vld [vmem:[%s577 + $0x31] sm:$0xff]
      %v6324 = vld [vmem:[%s577 + $0x39] sm:$0xff]
      %v6325 = vld [vmem:[%s577 + $0x49] sm:$0xff]
      %v6326 = vld [vmem:[%s577 + $0x51] sm:$0xff]
      %v6327 = vld [vmem:[%s577 + $0x61] sm:$0xff]
      %v6328 = vld [vmem:[%s577 + $0x69] sm:$0xff]
      %v6329 = vld [vmem:[%s577 + $0x79] sm:$0xff]
      %v6330 = vld [vmem:[%s577 + $0x81] sm:$0xff]
      %v6331 = vld [vmem:[%s577 + $0x91] sm:$0xff]
      %v6332 = vld [vmem:[%s577 + $0x99] sm:$0xff]
      %v6333 = vld [vmem:[%s577 + $0xa9] sm:$0xff]
      %v6334 = vld [vmem:[%s577 + $0xb1] sm:$0xff]
      %v6335 = vld [vmem:[%s577 + $0xc1] sm:$0xff]
      %v6336 = vld [vmem:[%s577 + $0xc9] sm:$0xff]
      %v6337 = vld [vmem:[%s577 + $0xd9] sm:$0xff]
      %v6338 = vld [vmem:[%s577 + $0xe1] sm:$0xff]
      %v6339 = vld [vmem:[%s577 + $0xf1] sm:$0xff]
      %v6340 = vld [vmem:[%s577 + $0xf9] sm:$0xff]
      %v6341 = vld [vmem:[%s577 + $0x109] sm:$0xff]
      %v6342 = vld [vmem:[%s577 + $0x111] sm:$0xff]
      %v6343 = vld [vmem:[%s577 + $0x121] sm:$0xff]
      %v6344 = vld [vmem:[%s577 + $0x129] sm:$0xff]
      %v6345 = vld [vmem:[%s577 + $0x139] sm:$0xff]
      %v6346 = vld [vmem:[%s577 + $0x141] sm:$0xff]
      %v6347 = vld [vmem:[%s577 + $0x151] sm:$0xff]
      %v6348 = vld [vmem:[%s577 + $0x159] sm:$0xff]
      %v6349 = vld [vmem:[%s577 + $0x169] sm:$0xff]
      %v6350 = vld [vmem:[%s577 + $0x171] sm:$0xff]
      %v6351 = vld [vmem:[%s577 + $0x2] sm:$0xff]
      %v6352 = vld [vmem:[%s577 + $0xa] sm:$0xff]
      %v6353 = vld [vmem:[%s577 + $0x1a] sm:$0xff]
      %v6354 = vld [vmem:[%s577 + $0x22] sm:$0xff]
      %v6355 = vld [vmem:[%s577 + $0x32] sm:$0xff]
      %v6356 = vld [vmem:[%s577 + $0x3a] sm:$0xff]
      %v6357 = vld [vmem:[%s577 + $0x4a] sm:$0xff]
      %v6358 = vld [vmem:[%s577 + $0x52] sm:$0xff]
      %v6359 = vld [vmem:[%s577 + $0x62] sm:$0xff]
      %v6360 = vld [vmem:[%s577 + $0x6a] sm:$0xff]
      %v6361 = vld [vmem:[%s577 + $0x7a] sm:$0xff]
      %v6362 = vld [vmem:[%s577 + $0x82] sm:$0xff]
      %v6363 = vld [vmem:[%s577 + $0x92] sm:$0xff]
      %v6364 = vld [vmem:[%s577 + $0x9a] sm:$0xff]
      %v6365 = vld [vmem:[%s577 + $0xaa] sm:$0xff]
      %v6366 = vld [vmem:[%s577 + $0xb2] sm:$0xff]
      %v6367 = vld [vmem:[%s577 + $0xc2] sm:$0xff]
      %v6368 = vld [vmem:[%s577 + $0xca] sm:$0xff]
      %v6369 = vld [vmem:[%s577 + $0xda] sm:$0xff]
      %v6370 = vld [vmem:[%s577 + $0xe2] sm:$0xff]
      %v6371 = vld [vmem:[%s577 + $0xf2] sm:$0xff]
      %v6372 = vld [vmem:[%s577 + $0xfa] sm:$0xff]
      %v6373 = vld [vmem:[%s577 + $0x10a] sm:$0xff]
      %v6374 = vld [vmem:[%s577 + $0x112] sm:$0xff]
      %v6375 = vld [vmem:[%s577 + $0x122] sm:$0xff]
      %v6376 = vld [vmem:[%s577 + $0x12a] sm:$0xff]
      %v6377 = vld [vmem:[%s577 + $0x13a] sm:$0xff]
      %v6378 = vld [vmem:[%s577 + $0x142] sm:$0xff]
      %v6379 = vld [vmem:[%s577 + $0x152] sm:$0xff]
      %v6380 = vld [vmem:[%s577 + $0x15a] sm:$0xff]
      %v6381 = vld [vmem:[%s577 + $0x16a] sm:$0xff]
      %v6382 = vld [vmem:[%s577 + $0x172] sm:$0xff]
      %6415 = vrot.lane.b32.xlu0 %v6127, 32
      %v6416 = vpop.permute.xlu0 %6415
      %6417 = vrot.lane.b32.xlu0 %v6128, 32
      %v6418 = vpop.permute.xlu0 %6417
      %6419 = vrot.lane.b32.xlu0 %v6129, 32
      %v6420 = vpop.permute.xlu0 %6419
      %6421 = vrot.lane.b32.xlu0 %v6130, 32
      %v6422 = vpop.permute.xlu0 %6421
      %6423 = vrot.lane.b32.xlu0 %v6131, 32
      %v6424 = vpop.permute.xlu0 %6423
      %6425 = vrot.lane.b32.xlu0 %v6132, 32
      %v6426 = vpop.permute.xlu0 %6425
      %6427 = vrot.lane.b32.xlu0 %v6133, 32
      %v6428 = vpop.permute.xlu0 %6427
      %6429 = vrot.lane.b32.xlu0 %v6134, 32
      %v6430 = vpop.permute.xlu0 %6429
      %6431 = vrot.lane.b32.xlu0 %v6135, 32
      %v6432 = vpop.permute.xlu0 %6431
      %6433 = vrot.lane.b32.xlu0 %v6136, 32
      %v6434 = vpop.permute.xlu0 %6433
      %6435 = vrot.lane.b32.xlu0 %v6137, 32
      %v6436 = vpop.permute.xlu0 %6435
      %6437 = vrot.lane.b32.xlu0 %v6138, 32
      %v6438 = vpop.permute.xlu0 %6437
      %6439 = vrot.lane.b32.xlu0 %v6139, 32
      %v6440 = vpop.permute.xlu0 %6439
      %6441 = vrot.lane.b32.xlu0 %v6140, 32
      %v6442 = vpop.permute.xlu0 %6441
      %6443 = vrot.lane.b32.xlu0 %v6141, 32
      %v6444 = vpop.permute.xlu0 %6443
      %6445 = vrot.lane.b32.xlu0 %v6142, 32
      %v6446 = vpop.permute.xlu0 %6445
      %6447 = vrot.lane.b32.xlu0 %v6143, 32
      %v6448 = vpop.permute.xlu0 %6447
      %6449 = vrot.lane.b32.xlu0 %v6144, 32
      %v6450 = vpop.permute.xlu0 %6449
      %6451 = vrot.lane.b32.xlu0 %v6145, 32
      %v6452 = vpop.permute.xlu0 %6451
      %6453 = vrot.lane.b32.xlu0 %v6146, 32
      %v6454 = vpop.permute.xlu0 %6453
      %6455 = vrot.lane.b32.xlu0 %v6147, 32
      %v6456 = vpop.permute.xlu0 %6455
      %6457 = vrot.lane.b32.xlu0 %v6148, 32
      %v6458 = vpop.permute.xlu0 %6457
      %6459 = vrot.lane.b32.xlu0 %v6149, 32
      %v6460 = vpop.permute.xlu0 %6459
      %6461 = vrot.lane.b32.xlu0 %v6150, 32
      %v6462 = vpop.permute.xlu0 %6461
      %6463 = vrot.lane.b32.xlu0 %v6151, 32
      %v6464 = vpop.permute.xlu0 %6463
      %6465 = vrot.lane.b32.xlu0 %v6152, 32
      %v6466 = vpop.permute.xlu0 %6465
      %6467 = vrot.lane.b32.xlu0 %v6153, 32
      %v6468 = vpop.permute.xlu0 %6467
      %6469 = vrot.lane.b32.xlu0 %v6154, 32
      %v6470 = vpop.permute.xlu0 %6469
      %6471 = vrot.lane.b32.xlu0 %v6155, 32
      %v6472 = vpop.permute.xlu0 %6471
      %6473 = vrot.lane.b32.xlu0 %v6156, 32
      %v6474 = vpop.permute.xlu0 %6473
      %6475 = vrot.lane.b32.xlu0 %v6157, 32
      %v6476 = vpop.permute.xlu0 %6475
      %6477 = vrot.lane.b32.xlu0 %v6158, 32
      %v6478 = vpop.permute.xlu0 %6477
      %6543 = vrot.lane.b32.xlu0 %v6159, 64
      %v6544 = vpop.permute.xlu0 %6543
      %6545 = vrot.lane.b32.xlu0 %v6160, 64
      %v6546 = vpop.permute.xlu0 %6545
      %6547 = vrot.lane.b32.xlu0 %v6161, 64
      %v6548 = vpop.permute.xlu0 %6547
      %6549 = vrot.lane.b32.xlu0 %v6162, 64
      %v6550 = vpop.permute.xlu0 %6549
      %6551 = vrot.lane.b32.xlu0 %v6163, 64
      %v6552 = vpop.permute.xlu0 %6551
      %6553 = vrot.lane.b32.xlu0 %v6164, 64
      %v6554 = vpop.permute.xlu0 %6553
      %6555 = vrot.lane.b32.xlu0 %v6165, 64
      %v6556 = vpop.permute.xlu0 %6555
      %6557 = vrot.lane.b32.xlu0 %v6166, 64
      %v6558 = vpop.permute.xlu0 %6557
      %6559 = vrot.lane.b32.xlu0 %v6167, 64
      %v6560 = vpop.permute.xlu0 %6559
      %6561 = vrot.lane.b32.xlu0 %v6168, 64
      %v6562 = vpop.permute.xlu0 %6561
      %6563 = vrot.lane.b32.xlu0 %v6169, 64
      %v6564 = vpop.permute.xlu0 %6563
      %6565 = vrot.lane.b32.xlu0 %v6170, 64
      %v6566 = vpop.permute.xlu0 %6565
      %6567 = vrot.lane.b32.xlu0 %v6171, 64
      %v6568 = vpop.permute.xlu0 %6567
      %6569 = vrot.lane.b32.xlu0 %v6172, 64
      %v6570 = vpop.permute.xlu0 %6569
      %6571 = vrot.lane.b32.xlu0 %v6173, 64
      %v6572 = vpop.permute.xlu0 %6571
      %6573 = vrot.lane.b32.xlu0 %v6174, 64
      %v6574 = vpop.permute.xlu0 %6573
      %6575 = vrot.lane.b32.xlu0 %v6175, 64
      %v6576 = vpop.permute.xlu0 %6575
      %6577 = vrot.lane.b32.xlu0 %v6176, 64
      %v6578 = vpop.permute.xlu0 %6577
      %6579 = vrot.lane.b32.xlu0 %v6177, 64
      %v6580 = vpop.permute.xlu0 %6579
      %6581 = vrot.lane.b32.xlu0 %v6178, 64
      %v6582 = vpop.permute.xlu0 %6581
      %6583 = vrot.lane.b32.xlu0 %v6179, 64
      %v6584 = vpop.permute.xlu0 %6583
      %6585 = vrot.lane.b32.xlu0 %v6180, 64
      %v6586 = vpop.permute.xlu0 %6585
      %6587 = vrot.lane.b32.xlu0 %v6181, 64
      %v6588 = vpop.permute.xlu0 %6587
      %6589 = vrot.lane.b32.xlu0 %v6182, 64
      %v6590 = vpop.permute.xlu0 %6589
      %6591 = vrot.lane.b32.xlu0 %v6183, 64
      %v6592 = vpop.permute.xlu0 %6591
      %6593 = vrot.lane.b32.xlu0 %v6184, 64
      %v6594 = vpop.permute.xlu0 %6593
      %6595 = vrot.lane.b32.xlu0 %v6185, 64
      %v6596 = vpop.permute.xlu0 %6595
      %6597 = vrot.lane.b32.xlu0 %v6186, 64
      %v6598 = vpop.permute.xlu0 %6597
      %6599 = vrot.lane.b32.xlu0 %v6187, 64
      %v6600 = vpop.permute.xlu0 %6599
      %6601 = vrot.lane.b32.xlu0 %v6188, 64
      %v6602 = vpop.permute.xlu0 %6601
      %6603 = vrot.lane.b32.xlu0 %v6189, 64
      %v6604 = vpop.permute.xlu0 %6603
      %6605 = vrot.lane.b32.xlu0 %v6190, 64
      %v6606 = vpop.permute.xlu0 %6605
      %6671 = vrot.lane.b32.xlu0 %v6191, 96
      %v6672 = vpop.permute.xlu0 %6671
      %6673 = vrot.lane.b32.xlu0 %v6192, 96
      %v6674 = vpop.permute.xlu0 %6673
      %6675 = vrot.lane.b32.xlu0 %v6193, 96
      %v6676 = vpop.permute.xlu0 %6675
      %6677 = vrot.lane.b32.xlu0 %v6194, 96
      %v6678 = vpop.permute.xlu0 %6677
      %6679 = vrot.lane.b32.xlu0 %v6195, 96
      %v6680 = vpop.permute.xlu0 %6679
      %6681 = vrot.lane.b32.xlu0 %v6196, 96
      %v6682 = vpop.permute.xlu0 %6681
      %6683 = vrot.lane.b32.xlu0 %v6197, 96
      %v6684 = vpop.permute.xlu0 %6683
      %6685 = vrot.lane.b32.xlu0 %v6198, 96
      %v6686 = vpop.permute.xlu0 %6685
      %6687 = vrot.lane.b32.xlu0 %v6199, 96
      %v6688 = vpop.permute.xlu0 %6687
      %6689 = vrot.lane.b32.xlu0 %v6200, 96
      %v6690 = vpop.permute.xlu0 %6689
      %6691 = vrot.lane.b32.xlu0 %v6201, 96
      %v6692 = vpop.permute.xlu0 %6691
      %6693 = vrot.lane.b32.xlu0 %v6202, 96
      %v6694 = vpop.permute.xlu0 %6693
      %6695 = vrot.lane.b32.xlu0 %v6203, 96
      %v6696 = vpop.permute.xlu0 %6695
      %6697 = vrot.lane.b32.xlu0 %v6204, 96
      %v6698 = vpop.permute.xlu0 %6697
      %6699 = vrot.lane.b32.xlu0 %v6205, 96
      %v6700 = vpop.permute.xlu0 %6699
      %6701 = vrot.lane.b32.xlu0 %v6206, 96
      %v6702 = vpop.permute.xlu0 %6701
      %6703 = vrot.lane.b32.xlu0 %v6207, 96
      %v6704 = vpop.permute.xlu0 %6703
      %6705 = vrot.lane.b32.xlu0 %v6208, 96
      %v6706 = vpop.permute.xlu0 %6705
      %6707 = vrot.lane.b32.xlu0 %v6209, 96
      %v6708 = vpop.permute.xlu0 %6707
      %6709 = vrot.lane.b32.xlu0 %v6210, 96
      %v6710 = vpop.permute.xlu0 %6709
      %6711 = vrot.lane.b32.xlu0 %v6211, 96
      %v6712 = vpop.permute.xlu0 %6711
      %6713 = vrot.lane.b32.xlu0 %v6212, 96
      %v6714 = vpop.permute.xlu0 %6713
      %6715 = vrot.lane.b32.xlu0 %v6213, 96
      %v6716 = vpop.permute.xlu0 %6715
      %6717 = vrot.lane.b32.xlu0 %v6214, 96
      %v6718 = vpop.permute.xlu0 %6717
      %6719 = vrot.lane.b32.xlu0 %v6215, 96
      %v6720 = vpop.permute.xlu0 %6719
      %6721 = vrot.lane.b32.xlu0 %v6216, 96
      %v6722 = vpop.permute.xlu0 %6721
      %6723 = vrot.lane.b32.xlu0 %v6217, 96
      %v6724 = vpop.permute.xlu0 %6723
      %6725 = vrot.lane.b32.xlu0 %v6218, 96
      %v6726 = vpop.permute.xlu0 %6725
      %6727 = vrot.lane.b32.xlu0 %v6219, 96
      %v6728 = vpop.permute.xlu0 %6727
      %6729 = vrot.lane.b32.xlu0 %v6220, 96
      %v6730 = vpop.permute.xlu0 %6729
      %6731 = vrot.lane.b32.xlu0 %v6221, 96
      %v6732 = vpop.permute.xlu0 %6731
      %6733 = vrot.lane.b32.xlu0 %v6222, 96
      %v6734 = vpop.permute.xlu0 %6733
      %6799 = vrot.lane.b32.xlu0 %v6255, 32
      %v6800 = vpop.permute.xlu0 %6799
      %6801 = vrot.lane.b32.xlu0 %v6256, 32
      %v6802 = vpop.permute.xlu0 %6801
      %6803 = vrot.lane.b32.xlu0 %v6257, 32
      %v6804 = vpop.permute.xlu0 %6803
      %6805 = vrot.lane.b32.xlu0 %v6258, 32
      %v6806 = vpop.permute.xlu0 %6805
      %6807 = vrot.lane.b32.xlu0 %v6259, 32
      %v6808 = vpop.permute.xlu0 %6807
      %6809 = vrot.lane.b32.xlu0 %v6260, 32
      %v6810 = vpop.permute.xlu0 %6809
      %6811 = vrot.lane.b32.xlu0 %v6261, 32
      %v6812 = vpop.permute.xlu0 %6811
      %6813 = vrot.lane.b32.xlu0 %v6262, 32
      %v6814 = vpop.permute.xlu0 %6813
      %6815 = vrot.lane.b32.xlu0 %v6263, 32
      %v6816 = vpop.permute.xlu0 %6815
      %6817 = vrot.lane.b32.xlu0 %v6264, 32
      %v6818 = vpop.permute.xlu0 %6817
      %6819 = vrot.lane.b32.xlu0 %v6265, 32
      %v6820 = vpop.permute.xlu0 %6819
      %6821 = vrot.lane.b32.xlu0 %v6266, 32
      %v6822 = vpop.permute.xlu0 %6821
      %6823 = vrot.lane.b32.xlu0 %v6267, 32
      %v6824 = vpop.permute.xlu0 %6823
      %6825 = vrot.lane.b32.xlu0 %v6268, 32
      %v6826 = vpop.permute.xlu0 %6825
      %6827 = vrot.lane.b32.xlu0 %v6269, 32
      %v6828 = vpop.permute.xlu0 %6827
      %6829 = vrot.lane.b32.xlu0 %v6270, 32
      %v6830 = vpop.permute.xlu0 %6829
      %6831 = vrot.lane.b32.xlu0 %v6271, 32
      %v6832 = vpop.permute.xlu0 %6831
      %6833 = vrot.lane.b32.xlu0 %v6272, 32
      %v6834 = vpop.permute.xlu0 %6833
      %6835 = vrot.lane.b32.xlu0 %v6273, 32
      %v6836 = vpop.permute.xlu0 %6835
      %6837 = vrot.lane.b32.xlu0 %v6274, 32
      %v6838 = vpop.permute.xlu0 %6837
      %6839 = vrot.lane.b32.xlu0 %v6275, 32
      %v6840 = vpop.permute.xlu0 %6839
      %6841 = vrot.lane.b32.xlu0 %v6276, 32
      %v6842 = vpop.permute.xlu0 %6841
      %6843 = vrot.lane.b32.xlu0 %v6277, 32
      %v6844 = vpop.permute.xlu0 %6843
      %6845 = vrot.lane.b32.xlu0 %v6278, 32
      %v6846 = vpop.permute.xlu0 %6845
      %6847 = vrot.lane.b32.xlu0 %v6279, 32
      %v6848 = vpop.permute.xlu0 %6847
      %6849 = vrot.lane.b32.xlu0 %v6280, 32
      %v6850 = vpop.permute.xlu0 %6849
      %6851 = vrot.lane.b32.xlu0 %v6281, 32
      %v6852 = vpop.permute.xlu0 %6851
      %6853 = vrot.lane.b32.xlu0 %v6282, 32
      %v6854 = vpop.permute.xlu0 %6853
      %6855 = vrot.lane.b32.xlu0 %v6283, 32
      %v6856 = vpop.permute.xlu0 %6855
      %6857 = vrot.lane.b32.xlu0 %v6284, 32
      %v6858 = vpop.permute.xlu0 %6857
      %6859 = vrot.lane.b32.xlu0 %v6285, 32
      %v6860 = vpop.permute.xlu0 %6859
      %6861 = vrot.lane.b32.xlu0 %v6286, 32
      %v6862 = vpop.permute.xlu0 %6861
      %6927 = vrot.lane.b32.xlu0 %v6287, 64
      %v6928 = vpop.permute.xlu0 %6927
      %6929 = vrot.lane.b32.xlu0 %v6288, 64
      %v6930 = vpop.permute.xlu0 %6929
      %6931 = vrot.lane.b32.xlu0 %v6289, 64
      %v6932 = vpop.permute.xlu0 %6931
      %6933 = vrot.lane.b32.xlu0 %v6290, 64
      %v6934 = vpop.permute.xlu0 %6933
      %6935 = vrot.lane.b32.xlu0 %v6291, 64
      %v6936 = vpop.permute.xlu0 %6935
      %6937 = vrot.lane.b32.xlu0 %v6292, 64
      %v6938 = vpop.permute.xlu0 %6937
      %6939 = vrot.lane.b32.xlu0 %v6293, 64
      %v6940 = vpop.permute.xlu0 %6939
      %6941 = vrot.lane.b32.xlu0 %v6294, 64
      %v6942 = vpop.permute.xlu0 %6941
      %6943 = vrot.lane.b32.xlu0 %v6295, 64
      %v6944 = vpop.permute.xlu0 %6943
      %6945 = vrot.lane.b32.xlu0 %v6296, 64
      %v6946 = vpop.permute.xlu0 %6945
      %6947 = vrot.lane.b32.xlu0 %v6297, 64
      %v6948 = vpop.permute.xlu0 %6947
      %6949 = vrot.lane.b32.xlu0 %v6298, 64
      %v6950 = vpop.permute.xlu0 %6949
      %6951 = vrot.lane.b32.xlu0 %v6299, 64
      %v6952 = vpop.permute.xlu0 %6951
      %6953 = vrot.lane.b32.xlu0 %v6300, 64
      %v6954 = vpop.permute.xlu0 %6953
      %6955 = vrot.lane.b32.xlu0 %v6301, 64
      %v6956 = vpop.permute.xlu0 %6955
      %6957 = vrot.lane.b32.xlu0 %v6302, 64
      %v6958 = vpop.permute.xlu0 %6957
      %6959 = vrot.lane.b32.xlu0 %v6303, 64
      %v6960 = vpop.permute.xlu0 %6959
      %6961 = vrot.lane.b32.xlu0 %v6304, 64
      %v6962 = vpop.permute.xlu0 %6961
      %6963 = vrot.lane.b32.xlu0 %v6305, 64
      %v6964 = vpop.permute.xlu0 %6963
      %6965 = vrot.lane.b32.xlu0 %v6306, 64
      %v6966 = vpop.permute.xlu0 %6965
      %6967 = vrot.lane.b32.xlu0 %v6307, 64
      %v6968 = vpop.permute.xlu0 %6967
      %6969 = vrot.lane.b32.xlu0 %v6308, 64
      %v6970 = vpop.permute.xlu0 %6969
      %6971 = vrot.lane.b32.xlu0 %v6309, 64
      %v6972 = vpop.permute.xlu0 %6971
      %6973 = vrot.lane.b32.xlu0 %v6310, 64
      %v6974 = vpop.permute.xlu0 %6973
      %6975 = vrot.lane.b32.xlu0 %v6311, 64
      %v6976 = vpop.permute.xlu0 %6975
      %6977 = vrot.lane.b32.xlu0 %v6312, 64
      %v6978 = vpop.permute.xlu0 %6977
      %6979 = vrot.lane.b32.xlu0 %v6313, 64
      %v6980 = vpop.permute.xlu0 %6979
      %6981 = vrot.lane.b32.xlu0 %v6314, 64
      %v6982 = vpop.permute.xlu0 %6981
      %6983 = vrot.lane.b32.xlu0 %v6315, 64
      %v6984 = vpop.permute.xlu0 %6983
      %6985 = vrot.lane.b32.xlu0 %v6316, 64
      %v6986 = vpop.permute.xlu0 %6985
      %6987 = vrot.lane.b32.xlu0 %v6317, 64
      %v6988 = vpop.permute.xlu0 %6987
      %6989 = vrot.lane.b32.xlu0 %v6318, 64
      %v6990 = vpop.permute.xlu0 %6989
      %7055 = vrot.lane.b32.xlu0 %v6319, 96
      %v7056 = vpop.permute.xlu0 %7055
      %7057 = vrot.lane.b32.xlu0 %v6320, 96
      %v7058 = vpop.permute.xlu0 %7057
      %7059 = vrot.lane.b32.xlu0 %v6321, 96
      %v7060 = vpop.permute.xlu0 %7059
      %7061 = vrot.lane.b32.xlu0 %v6322, 96
      %v7062 = vpop.permute.xlu0 %7061
      %7063 = vrot.lane.b32.xlu0 %v6323, 96
      %v7064 = vpop.permute.xlu0 %7063
      %7065 = vrot.lane.b32.xlu0 %v6324, 96
      %v7066 = vpop.permute.xlu0 %7065
      %7067 = vrot.lane.b32.xlu0 %v6325, 96
      %v7068 = vpop.permute.xlu0 %7067
      %7069 = vrot.lane.b32.xlu0 %v6326, 96
      %v7070 = vpop.permute.xlu0 %7069
      %7071 = vrot.lane.b32.xlu0 %v6327, 96
      %v7072 = vpop.permute.xlu0 %7071
      %7073 = vrot.lane.b32.xlu0 %v6328, 96
      %v7074 = vpop.permute.xlu0 %7073
      %7075 = vrot.lane.b32.xlu0 %v6329, 96
      %v7076 = vpop.permute.xlu0 %7075
      %7077 = vrot.lane.b32.xlu0 %v6330, 96
      %v7078 = vpop.permute.xlu0 %7077
      %7079 = vrot.lane.b32.xlu0 %v6331, 96
      %v7080 = vpop.permute.xlu0 %7079
      %7081 = vrot.lane.b32.xlu0 %v6332, 96
      %v7082 = vpop.permute.xlu0 %7081
      %7083 = vrot.lane.b32.xlu0 %v6333, 96
      %v7084 = vpop.permute.xlu0 %7083
      %7085 = vrot.lane.b32.xlu0 %v6334, 96
      %v7086 = vpop.permute.xlu0 %7085
      %7087 = vrot.lane.b32.xlu0 %v6335, 96
      %v7088 = vpop.permute.xlu0 %7087
      %7089 = vrot.lane.b32.xlu0 %v6336, 96
      %v7090 = vpop.permute.xlu0 %7089
      %7091 = vrot.lane.b32.xlu0 %v6337, 96
      %v7092 = vpop.permute.xlu0 %7091
      %7093 = vrot.lane.b32.xlu0 %v6338, 96
      %v7094 = vpop.permute.xlu0 %7093
      %7095 = vrot.lane.b32.xlu0 %v6339, 96
      %v7096 = vpop.permute.xlu0 %7095
      %7097 = vrot.lane.b32.xlu0 %v6340, 96
      %v7098 = vpop.permute.xlu0 %7097
      %7099 = vrot.lane.b32.xlu0 %v6341, 96
      %v7100 = vpop.permute.xlu0 %7099
      %7101 = vrot.lane.b32.xlu0 %v6342, 96
      %v7102 = vpop.permute.xlu0 %7101
      %7103 = vrot.lane.b32.xlu0 %v6343, 96
      %v7104 = vpop.permute.xlu0 %7103
      %7105 = vrot.lane.b32.xlu0 %v6344, 96
      %v7106 = vpop.permute.xlu0 %7105
      %7107 = vrot.lane.b32.xlu0 %v6345, 96
      %v7108 = vpop.permute.xlu0 %7107
      %7109 = vrot.lane.b32.xlu0 %v6346, 96
      %v7110 = vpop.permute.xlu0 %7109
      %7111 = vrot.lane.b32.xlu0 %v6347, 96
      %v7112 = vpop.permute.xlu0 %7111
      %7113 = vrot.lane.b32.xlu0 %v6348, 96
      %v7114 = vpop.permute.xlu0 %7113
      %7115 = vrot.lane.b32.xlu0 %v6349, 96
      %v7116 = vpop.permute.xlu0 %7115
      %7117 = vrot.lane.b32.xlu0 %v6350, 96
      %v7118 = vpop.permute.xlu0 %7117
      %v7151 = vsel %vm225, %v6095, %v6416
      %v7152 = vsel %vm225, %v6096, %v6418
      %v7153 = vsel %vm225, %v6097, %v6420
      %v7154 = vsel %vm225, %v6098, %v6422
      %v7155 = vsel %vm225, %v6099, %v6424
      %v7156 = vsel %vm225, %v6100, %v6426
      %v7157 = vsel %vm225, %v6101, %v6428
      %v7158 = vsel %vm225, %v6102, %v6430
      %v7159 = vsel %vm225, %v6103, %v6432
      %v7160 = vsel %vm225, %v6104, %v6434
      %v7161 = vsel %vm225, %v6105, %v6436
      %v7162 = vsel %vm225, %v6106, %v6438
      %v7163 = vsel %vm225, %v6107, %v6440
      %v7164 = vsel %vm225, %v6108, %v6442
      %v7165 = vsel %vm225, %v6109, %v6444
      %v7166 = vsel %vm225, %v6110, %v6446
      %v7167 = vsel %vm225, %v6111, %v6448
      %v7168 = vsel %vm225, %v6112, %v6450
      %v7169 = vsel %vm225, %v6113, %v6452
      %v7170 = vsel %vm225, %v6114, %v6454
      %v7171 = vsel %vm225, %v6115, %v6456
      %v7172 = vsel %vm225, %v6116, %v6458
      %v7173 = vsel %vm225, %v6117, %v6460
      %v7174 = vsel %vm225, %v6118, %v6462
      %v7175 = vsel %vm225, %v6119, %v6464
      %v7176 = vsel %vm225, %v6120, %v6466
      %v7177 = vsel %vm225, %v6121, %v6468
      %v7178 = vsel %vm225, %v6122, %v6470
      %v7179 = vsel %vm225, %v6123, %v6472
      %v7180 = vsel %vm225, %v6124, %v6474
      %v7181 = vsel %vm225, %v6125, %v6476
      %v7182 = vsel %vm225, %v6126, %v6478
      %v7183 = vsel %vm1474, %v7151, %v6544
      %v7184 = vsel %vm1474, %v7152, %v6546
      %v7185 = vsel %vm1474, %v7153, %v6548
      %v7186 = vsel %vm1474, %v7154, %v6550
      %v7187 = vsel %vm1474, %v7155, %v6552
      %v7188 = vsel %vm1474, %v7156, %v6554
      %v7189 = vsel %vm1474, %v7157, %v6556
      %v7190 = vsel %vm1474, %v7158, %v6558
      %v7191 = vsel %vm1474, %v7159, %v6560
      %v7192 = vsel %vm1474, %v7160, %v6562
      %v7193 = vsel %vm1474, %v7161, %v6564
      %v7194 = vsel %vm1474, %v7162, %v6566
      %v7195 = vsel %vm1474, %v7163, %v6568
      %v7196 = vsel %vm1474, %v7164, %v6570
      %v7197 = vsel %vm1474, %v7165, %v6572
      %v7198 = vsel %vm1474, %v7166, %v6574
      %v7199 = vsel %vm1474, %v7167, %v6576
      %v7200 = vsel %vm1474, %v7168, %v6578
      %v7201 = vsel %vm1474, %v7169, %v6580
      %v7202 = vsel %vm1474, %v7170, %v6582
      %v7203 = vsel %vm1474, %v7171, %v6584
      %v7204 = vsel %vm1474, %v7172, %v6586
      %v7205 = vsel %vm1474, %v7173, %v6588
      %v7206 = vsel %vm1474, %v7174, %v6590
      %v7207 = vsel %vm1474, %v7175, %v6592
      %v7208 = vsel %vm1474, %v7176, %v6594
      %v7209 = vsel %vm1474, %v7177, %v6596
      %v7210 = vsel %vm1474, %v7178, %v6598
      %v7211 = vsel %vm1474, %v7179, %v6600
      %v7212 = vsel %vm1474, %v7180, %v6602
      %v7213 = vsel %vm1474, %v7181, %v6604
      %v7214 = vsel %vm1474, %v7182, %v6606
      %v7215 = vsel %vm1507, %v7183, %v6672
      %v7216 = vsel %vm1507, %v7184, %v6674
      %v7217 = vsel %vm1507, %v7185, %v6676
      %v7218 = vsel %vm1507, %v7186, %v6678
      %v7219 = vsel %vm1507, %v7187, %v6680
      %v7220 = vsel %vm1507, %v7188, %v6682
      %v7221 = vsel %vm1507, %v7189, %v6684
      %v7222 = vsel %vm1507, %v7190, %v6686
      %v7223 = vsel %vm1507, %v7191, %v6688
      %v7224 = vsel %vm1507, %v7192, %v6690
      %v7225 = vsel %vm1507, %v7193, %v6692
      %v7226 = vsel %vm1507, %v7194, %v6694
      %v7227 = vsel %vm1507, %v7195, %v6696
      %v7228 = vsel %vm1507, %v7196, %v6698
      %v7229 = vsel %vm1507, %v7197, %v6700
      %v7230 = vsel %vm1507, %v7198, %v6702
      %v7231 = vsel %vm1507, %v7199, %v6704
      %v7232 = vsel %vm1507, %v7200, %v6706
      %v7233 = vsel %vm1507, %v7201, %v6708
      %v7234 = vsel %vm1507, %v7202, %v6710
      %v7235 = vsel %vm1507, %v7203, %v6712
      %v7236 = vsel %vm1507, %v7204, %v6714
      %v7237 = vsel %vm1507, %v7205, %v6716
      %v7238 = vsel %vm1507, %v7206, %v6718
      %v7239 = vsel %vm1507, %v7207, %v6720
      %v7240 = vsel %vm1507, %v7208, %v6722
      %v7241 = vsel %vm1507, %v7209, %v6724
      %v7242 = vsel %vm1507, %v7210, %v6726
      %v7243 = vsel %vm1507, %v7211, %v6728
      %v7244 = vsel %vm1507, %v7212, %v6730
      %v7245 = vsel %vm1507, %v7213, %v6732
      %v7246 = vsel %vm1507, %v7214, %v6734
      %v7247 = vsel %vm225, %v6223, %v6800
      %v7248 = vsel %vm225, %v6224, %v6802
      %v7249 = vsel %vm225, %v6225, %v6804
      %v7250 = vsel %vm225, %v6226, %v6806
      %v7251 = vsel %vm225, %v6227, %v6808
      %v7252 = vsel %vm225, %v6228, %v6810
      %v7253 = vsel %vm225, %v6229, %v6812
      %v7254 = vsel %vm225, %v6230, %v6814
      %v7255 = vsel %vm225, %v6231, %v6816
      %v7256 = vsel %vm225, %v6232, %v6818
      %v7257 = vsel %vm225, %v6233, %v6820
      %v7258 = vsel %vm225, %v6234, %v6822
      %v7259 = vsel %vm225, %v6235, %v6824
      %v7260 = vsel %vm225, %v6236, %v6826
      %v7261 = vsel %vm225, %v6237, %v6828
      %v7262 = vsel %vm225, %v6238, %v6830
      %v7263 = vsel %vm225, %v6239, %v6832
      %v7264 = vsel %vm225, %v6240, %v6834
      %v7265 = vsel %vm225, %v6241, %v6836
      %v7266 = vsel %vm225, %v6242, %v6838
      %v7267 = vsel %vm225, %v6243, %v6840
      %v7268 = vsel %vm225, %v6244, %v6842
      %v7269 = vsel %vm225, %v6245, %v6844
      %v7270 = vsel %vm225, %v6246, %v6846
      %v7271 = vsel %vm225, %v6247, %v6848
      %v7272 = vsel %vm225, %v6248, %v6850
      %v7273 = vsel %vm225, %v6249, %v6852
      %v7274 = vsel %vm225, %v6250, %v6854
      %v7275 = vsel %vm225, %v6251, %v6856
      %v7276 = vsel %vm225, %v6252, %v6858
      %v7277 = vsel %vm225, %v6253, %v6860
      %v7278 = vsel %vm225, %v6254, %v6862
      %v7279 = vsel %vm1474, %v7247, %v6928
      %v7280 = vsel %vm1474, %v7248, %v6930
      %v7281 = vsel %vm1474, %v7249, %v6932
      %v7282 = vsel %vm1474, %v7250, %v6934
      %v7283 = vsel %vm1474, %v7251, %v6936
      %v7284 = vsel %vm1474, %v7252, %v6938
      %v7285 = vsel %vm1474, %v7253, %v6940
      %v7286 = vsel %vm1474, %v7254, %v6942
      %v7287 = vsel %vm1474, %v7255, %v6944
      %v7288 = vsel %vm1474, %v7256, %v6946
      %v7289 = vsel %vm1474, %v7257, %v6948
      %v7290 = vsel %vm1474, %v7258, %v6950
      %v7291 = vsel %vm1474, %v7259, %v6952
      %v7292 = vsel %vm1474, %v7260, %v6954
      %v7293 = vsel %vm1474, %v7261, %v6956
      %v7294 = vsel %vm1474, %v7262, %v6958
      %v7295 = vsel %vm1474, %v7263, %v6960
      %v7296 = vsel %vm1474, %v7264, %v6962
      %v7297 = vsel %vm1474, %v7265, %v6964
      %v7298 = vsel %vm1474, %v7266, %v6966
      %v7299 = vsel %vm1474, %v7267, %v6968
      %v7300 = vsel %vm1474, %v7268, %v6970
      %v7301 = vsel %vm1474, %v7269, %v6972
      %v7302 = vsel %vm1474, %v7270, %v6974
      %v7303 = vsel %vm1474, %v7271, %v6976
      %v7304 = vsel %vm1474, %v7272, %v6978
      %v7305 = vsel %vm1474, %v7273, %v6980
      %v7306 = vsel %vm1474, %v7274, %v6982
      %v7307 = vsel %vm1474, %v7275, %v6984
      %v7308 = vsel %vm1474, %v7276, %v6986
      %v7309 = vsel %vm1474, %v7277, %v6988
      %v7310 = vsel %vm1474, %v7278, %v6990
      %v7311 = vsel %vm1507, %v7279, %v7056
      %v7312 = vsel %vm1507, %v7280, %v7058
      %v7313 = vsel %vm1507, %v7281, %v7060
      %v7314 = vsel %vm1507, %v7282, %v7062
      %v7315 = vsel %vm1507, %v7283, %v7064
      %v7316 = vsel %vm1507, %v7284, %v7066
      %v7317 = vsel %vm1507, %v7285, %v7068
      %v7318 = vsel %vm1507, %v7286, %v7070
      %v7319 = vsel %vm1507, %v7287, %v7072
      %v7320 = vsel %vm1507, %v7288, %v7074
      %v7321 = vsel %vm1507, %v7289, %v7076
      %v7322 = vsel %vm1507, %v7290, %v7078
      %v7323 = vsel %vm1507, %v7291, %v7080
      %v7324 = vsel %vm1507, %v7292, %v7082
      %v7325 = vsel %vm1507, %v7293, %v7084
      %v7326 = vsel %vm1507, %v7294, %v7086
      %v7327 = vsel %vm1507, %v7295, %v7088
      %v7328 = vsel %vm1507, %v7296, %v7090
      %v7329 = vsel %vm1507, %v7297, %v7092
      %v7330 = vsel %vm1507, %v7298, %v7094
      %v7331 = vsel %vm1507, %v7299, %v7096
      %v7332 = vsel %vm1507, %v7300, %v7098
      %v7333 = vsel %vm1507, %v7301, %v7100
      %v7334 = vsel %vm1507, %v7302, %v7102
      %v7335 = vsel %vm1507, %v7303, %v7104
      %v7336 = vsel %vm1507, %v7304, %v7106
      %v7337 = vsel %vm1507, %v7305, %v7108
      %v7338 = vsel %vm1507, %v7306, %v7110
      %v7339 = vsel %vm1507, %v7307, %v7112
      %v7340 = vsel %vm1507, %v7308, %v7114
      %v7341 = vsel %vm1507, %v7309, %v7116
      %v7342 = vsel %vm1507, %v7310, %v7118
      %s7343 = scalar_lea.vmem %s1, 864
      %v7344 = vld [vmem:[%s7343] sm:$0xff]
      %v7345 = vld [vmem:[%s7343 + $0x8] sm:$0xff]
      %v7346 = vld [vmem:[%s7343 + $0x10] sm:$0xff]
      %v7347 = vld [vmem:[%s7343 + $0x18] sm:$0xff]
      %v7348 = vld [vmem:[%s7343 + $0x20] sm:$0xff]
      %v7349 = vld [vmem:[%s7343 + $0x28] sm:$0xff]
      %v7350 = vld [vmem:[%s7343 + $0x30] sm:$0xff]
      %v7351 = vld [vmem:[%s7343 + $0x38] sm:$0xff]
      %v7352 = vld [vmem:[%s7343 + $0x40] sm:$0xff]
      %v7353 = vld [vmem:[%s7343 + $0x48] sm:$0xff]
      %v7354 = vld [vmem:[%s7343 + $0x50] sm:$0xff]
      %v7355 = vld [vmem:[%s7343 + $0x58] sm:$0xff]
      %v7356 = vld [vmem:[%s7343 + $0x60] sm:$0xff]
      %v7357 = vld [vmem:[%s7343 + $0x68] sm:$0xff]
      %v7358 = vld [vmem:[%s7343 + $0x70] sm:$0xff]
      %v7359 = vld [vmem:[%s7343 + $0x78] sm:$0xff]
      %v7360 = vld [vmem:[%s7343 + $0x80] sm:$0xff]
      %v7361 = vld [vmem:[%s7343 + $0x88] sm:$0xff]
      %v7362 = vld [vmem:[%s7343 + $0x90] sm:$0xff]
      %v7363 = vld [vmem:[%s7343 + $0x98] sm:$0xff]
      %v7364 = vld [vmem:[%s7343 + $0xa0] sm:$0xff]
      %v7365 = vld [vmem:[%s7343 + $0xa8] sm:$0xff]
      %v7366 = vld [vmem:[%s7343 + $0xb0] sm:$0xff]
      %v7367 = vld [vmem:[%s7343 + $0xb8] sm:$0xff]
      %v7368 = vld [vmem:[%s7343 + $0xc0] sm:$0xff]
      %v7369 = vld [vmem:[%s7343 + $0xc8] sm:$0xff]
      %v7370 = vld [vmem:[%s7343 + $0xd0] sm:$0xff]
      %v7371 = vld [vmem:[%s7343 + $0xd8] sm:$0xff]
      %v7372 = vld [vmem:[%s7343 + $0xe0] sm:$0xff]
      %v7373 = vld [vmem:[%s7343 + $0xe8] sm:$0xff]
      %v7374 = vld [vmem:[%s7343 + $0xf0] sm:$0xff]
      %v7375 = vld [vmem:[%s7343 + $0xf8] sm:$0xff]
      %v7376 = vld [vmem:[%s7343 + $0x100] sm:$0xff]
      %v7377 = vld [vmem:[%s7343 + $0x108] sm:$0xff]
      %v7378 = vld [vmem:[%s7343 + $0x110] sm:$0xff]
      %v7379 = vld [vmem:[%s7343 + $0x118] sm:$0xff]
      %s7380 = scalar_lea.vmem %s2, 3
      %v7381 = vld [vmem:[%s7380] sm:$0x1]
      %v7383 = vlaneseq
      %v7384 = vshrl.u32 %v7383, 7
      %v7385 = vsub.s32 0, %v7384
      %v7386 = vrot.slane %v7381, %v7385
      %v7389 = vsel %vm225, %v6351, 0
      %v7392 = vsel %vm225, %v6352, 0
      %v7395 = vsel %vm225, %v6353, 0
      %v7398 = vsel %vm225, %v6354, 0
      %v7401 = vsel %vm225, %v6355, 0
      %v7404 = vsel %vm225, %v6356, 0
      %v7407 = vsel %vm225, %v6357, 0
      %v7410 = vsel %vm225, %v6358, 0
      %v7413 = vsel %vm225, %v6359, 0
      %v7416 = vsel %vm225, %v6360, 0
      %v7419 = vsel %vm225, %v6361, 0
      %v7422 = vsel %vm225, %v6362, 0
      %v7425 = vsel %vm225, %v6363, 0
      %v7428 = vsel %vm225, %v6364, 0
      %v7431 = vsel %vm225, %v6365, 0
      %v7434 = vsel %vm225, %v6366, 0
      %v7437 = vsel %vm225, %v6367, 0
      %v7440 = vsel %vm225, %v6368, 0
      %v7443 = vsel %vm225, %v6369, 0
      %v7446 = vsel %vm225, %v6370, 0
      %v7449 = vsel %vm225, %v6371, 0
      %v7452 = vsel %vm225, %v6372, 0
      %v7455 = vsel %vm225, %v6373, 0
      %v7458 = vsel %vm225, %v6374, 0
      %v7461 = vsel %vm225, %v6375, 0
      %v7464 = vsel %vm225, %v6376, 0
      %v7467 = vsel %vm225, %v6377, 0
      %v7470 = vsel %vm225, %v6378, 0
      %v7473 = vsel %vm225, %v6379, 0
      %v7476 = vsel %vm225, %v6380, 0
      %v7479 = vsel %vm225, %v6381, 0
      %v7482 = vsel %vm225, %v6382, 0
      %7484 = vmatprep.subr.mxu0 0.0
      %7485 = vmatpush1.msra.mxu0 %v7344
      %7486 = vmatprep.subr.mxu0 0.0
      %7487 = vmatpush1.msra.mxu0 %v7345
      %7488 = vmatprep.subr.mxu0 0.0
      %7489 = vmatpush1.msra.mxu0 %v7346
      %7490 = vmatprep.subr.mxu0 0.0
      %7491 = vmatpush1.msra.mxu0 %v7347
      %7492 = vmatprep.subr.mxu0 0.0
      %7493 = vmatpush1.msra.mxu0 %v7348
      %7494 = vmatprep.subr.mxu0 0.0
      %7495 = vmatpush1.msra.mxu0 %v7349
      %7496 = vmatprep.subr.mxu0 0.0
      %7497 = vmatpush1.msra.mxu0 %v7350
      %7498 = vmatprep.subr.mxu0 0.0
      %7499 = vmatpush1.msra.mxu0 %v7351
      %7500 = vmatprep.subr.mxu0 0.0
      %7501 = vmatpush1.msra.mxu0 %v7352
      %7502 = vmatprep.subr.mxu0 0.0
      %7503 = vmatpush1.msra.mxu0 %v7353
      %7504 = vmatprep.subr.mxu0 0.0
      %7505 = vmatpush1.msra.mxu0 %v7354
      %7506 = vmatprep.subr.mxu0 0.0
      %7507 = vmatpush1.msra.mxu0 %v7355
      %7508 = vmatprep.subr.mxu0 0.0
      %7509 = vmatpush1.msra.mxu0 %v7356
      %7510 = vmatprep.subr.mxu0 0.0
      %7511 = vmatpush1.msra.mxu0 %v7357
      %7512 = vmatprep.subr.mxu0 0.0
      %7513 = vmatpush1.msra.mxu0 %v7358
      %7514 = vmatprep.subr.mxu0 0.0
      %7515 = vmatpush1.msra.mxu0 %v7359
      %7516 = vmatprep.subr.mxu0 0.0
      %7517 = vmatpush1.msra.mxu0 %v7360
      %7518 = vmatprep.subr.mxu0 0.0
      %7519 = vmatpush1.msra.mxu0 %v7361
      %7520 = vmatprep.subr.mxu0 0.0
      %7521 = vmatpush1.msra.mxu0 %v7362
      %7522 = vmatprep.subr.mxu0 0.0
      %7523 = vmatpush1.msra.mxu0 %v7363
      %7524 = vmatprep.subr.mxu0 0.0
      %7525 = vmatpush1.msra.mxu0 %v7364
      %7526 = vmatprep.subr.mxu0 0.0
      %7527 = vmatpush1.msra.mxu0 %v7365
      %7528 = vmatprep.subr.mxu0 0.0
      %7529 = vmatpush1.msra.mxu0 %v7366
      %7530 = vmatprep.subr.mxu0 0.0
      %7531 = vmatpush1.msra.mxu0 %v7367
      %7532 = vmatprep.subr.mxu0 0.0
      %7533 = vmatpush1.msra.mxu0 %v7368
      %7534 = vmatprep.subr.mxu0 0.0
      %7535 = vmatpush1.msra.mxu0 %v7369
      %7536 = vmatprep.subr.mxu0 0.0
      %7537 = vmatpush1.msra.mxu0 %v7370
      %7538 = vmatprep.subr.mxu0 0.0
      %7539 = vmatpush1.msra.mxu0 %v7371
      %7540 = vmatprep.subr.mxu0 0.0
      %7541 = vmatpush1.msra.mxu0 %v7372
      %7542 = vmatprep.subr.mxu0 0.0
      %7543 = vmatpush1.msra.mxu0 %v7373
      %7544 = vmatprep.subr.mxu0 0.0
      %7545 = vmatpush1.msra.mxu0 %v7374
      %7546 = vmatprep.subr.mxu0 0.0
      %7547 = vmatpush1.msra.mxu0 %v7375
      %7548 = vmatprep.mubr.f32.mxu0 %v7311
      %7549 = vmatmul.mubr.f32.gmra.mrb[0].mxu0 %v7215
      %v7550 = vpop.f32.mrb[0].mxu0
      %v7551 = vadd.f32 %v7386, %v7550
      %v7552 = vpop.f32.mrb[0].mxu0
      %7553 = vmatprep.mubr.f32.mxu0 %v7312
      %7554 = vmatmul.mubr.f32.gmra.mrb[0].mxu0 %v7216
      %v7555 = vpop.f32.mrb[0].mxu0
      %v7556 = vadd.f32 %v7386, %v7555
      %v7557 = vpop.f32.mrb[0].mxu0
      %7558 = vmatprep.mubr.f32.mxu0 %v7313
      %7559 = vmatmul.mubr.f32.gmra.mrb[0].mxu0 %v7217
      %v7560 = vpop.f32.mrb[0].mxu0
      %v7561 = vadd.f32 %v7386, %v7560
      %v7562 = vpop.f32.mrb[0].mxu0
      %7563 = vmatprep.mubr.f32.mxu0 %v7314
      %7564 = vmatmul.mubr.f32.gmra.mrb[0].mxu0 %v7218
      %v7565 = vpop.f32.mrb[0].mxu0
      %v7566 = vadd.f32 %v7386, %v7565
      %v7567 = vpop.f32.mrb[0].mxu0
      %7568 = vmatprep.mubr.f32.mxu0 %v7315
      %7569 = vmatmul.mubr.f32.gmra.mrb[0].mxu0 %v7219
      %v7570 = vpop.f32.mrb[0].mxu0
      %v7571 = vadd.f32 %v7386, %v7570
      %v7572 = vpop.f32.mrb[0].mxu0
      %7573 = vmatprep.mubr.f32.mxu0 %v7316
      %7574 = vmatmul.mubr.f32.gmra.mrb[0].mxu0 %v7220
      %v7575 = vpop.f32.mrb[0].mxu0
      %v7576 = vadd.f32 %v7386, %v7575
      %v7577 = vpop.f32.mrb[0].mxu0
      %7578 = vmatprep.mubr.f32.mxu0 %v7317
      %7579 = vmatmul.mubr.f32.gmra.mrb[0].mxu0 %v7221
      %v7580 = vpop.f32.mrb[0].mxu0
      %v7581 = vadd.f32 %v7386, %v7580
      %v7582 = vpop.f32.mrb[0].mxu0
      %7583 = vmatprep.mubr.f32.mxu0 %v7318
      %7584 = vmatmul.mubr.f32.gmra.mrb[0].mxu0 %v7222
      %v7585 = vpop.f32.mrb[0].mxu0
      %v7586 = vadd.f32 %v7386, %v7585
      %v7587 = vpop.f32.mrb[0].mxu0
      %7588 = vmatprep.mubr.f32.mxu0 %v7319
      %7589 = vmatmul.mubr.f32.gmra.mrb[0].mxu0 %v7223
      %v7590 = vpop.f32.mrb[0].mxu0
      %v7591 = vadd.f32 %v7386, %v7590
      %v7592 = vpop.f32.mrb[0].mxu0
      %7593 = vmatprep.mubr.f32.mxu0 %v7320
      %7594 = vmatmul.mubr.f32.gmra.mrb[0].mxu0 %v7224
      %v7595 = vpop.f32.mrb[0].mxu0
      %v7596 = vadd.f32 %v7386, %v7595
      %v7597 = vpop.f32.mrb[0].mxu0
      %7598 = vmatprep.mubr.f32.mxu0 %v7321
      %7599 = vmatmul.mubr.f32.gmra.mrb[0].mxu0 %v7225
      %v7600 = vpop.f32.mrb[0].mxu0
      %v7601 = vadd.f32 %v7386, %v7600
      %v7602 = vpop.f32.mrb[0].mxu0
      %7603 = vmatprep.mubr.f32.mxu0 %v7322
      %7604 = vmatmul.mubr.f32.gmra.mrb[0].mxu0 %v7226
      %v7605 = vpop.f32.mrb[0].mxu0
      %v7606 = vadd.f32 %v7386, %v7605
      %v7607 = vpop.f32.mrb[0].mxu0
      %7608 = vmatprep.mubr.f32.mxu0 %v7323
      %7609 = vmatmul.mubr.f32.gmra.mrb[0].mxu0 %v7227
      %v7610 = vpop.f32.mrb[0].mxu0
      %v7611 = vadd.f32 %v7386, %v7610
      %v7612 = vpop.f32.mrb[0].mxu0
      %7613 = vmatprep.mubr.f32.mxu0 %v7324
      %7614 = vmatmul.mubr.f32.gmra.mrb[0].mxu0 %v7228
      %v7615 = vpop.f32.mrb[0].mxu0
      %v7616 = vadd.f32 %v7386, %v7615
      %v7617 = vpop.f32.mrb[0].mxu0
      %7618 = vmatprep.mubr.f32.mxu0 %v7325
      %7619 = vmatmul.mubr.f32.gmra.mrb[0].mxu0 %v7229
      %v7620 = vpop.f32.mrb[0].mxu0
      %v7621 = vadd.f32 %v7386, %v7620
      %v7622 = vpop.f32.mrb[0].mxu0
      %7623 = vmatprep.mubr.f32.mxu0 %v7326
      %7624 = vmatmul.mubr.f32.gmra.mrb[0].mxu0 %v7230
      %v7625 = vpop.f32.mrb[0].mxu0
      %v7626 = vadd.f32 %v7386, %v7625
      %v7627 = vpop.f32.mrb[0].mxu0
      %7628 = vmatprep.mubr.f32.mxu0 %v7327
      %7629 = vmatmul.mubr.f32.gmra.mrb[0].mxu0 %v7231
      %v7630 = vpop.f32.mrb[0].mxu0
      %v7631 = vadd.f32 %v7386, %v7630
      %v7632 = vpop.f32.mrb[0].mxu0
      %7633 = vmatprep.mubr.f32.mxu0 %v7328
      %7634 = vmatmul.mubr.f32.gmra.mrb[0].mxu0 %v7232
      %v7635 = vpop.f32.mrb[0].mxu0
      %v7636 = vadd.f32 %v7386, %v7635
      %v7637 = vpop.f32.mrb[0].mxu0
      %7638 = vmatprep.mubr.f32.mxu0 %v7329
      %7639 = vmatmul.mubr.f32.gmra.mrb[0].mxu0 %v7233
      %v7640 = vpop.f32.mrb[0].mxu0
      %v7641 = vadd.f32 %v7386, %v7640
      %v7642 = vpop.f32.mrb[0].mxu0
      %7643 = vmatprep.mubr.f32.mxu0 %v7330
      %7644 = vmatmul.mubr.f32.gmra.mrb[0].mxu0 %v7234
      %v7645 = vpop.f32.mrb[0].mxu0
      %v7646 = vadd.f32 %v7386, %v7645
      %v7647 = vpop.f32.mrb[0].mxu0
      %7648 = vmatprep.mubr.f32.mxu0 %v7331
      %7649 = vmatmul.mubr.f32.gmra.mrb[0].mxu0 %v7235
      %v7650 = vpop.f32.mrb[0].mxu0
      %v7651 = vadd.f32 %v7386, %v7650
      %v7652 = vpop.f32.mrb[0].mxu0
      %7653 = vmatprep.mubr.f32.mxu0 %v7332
      %7654 = vmatmul.mubr.f32.gmra.mrb[0].mxu0 %v7236
      %v7655 = vpop.f32.mrb[0].mxu0
      %v7656 = vadd.f32 %v7386, %v7655
      %v7657 = vpop.f32.mrb[0].mxu0
      %7658 = vmatprep.mubr.f32.mxu0 %v7333
      %7659 = vmatmul.mubr.f32.gmra.mrb[0].mxu0 %v7237
      %v7660 = vpop.f32.mrb[0].mxu0
      %v7661 = vadd.f32 %v7386, %v7660
      %v7662 = vpop.f32.mrb[0].mxu0
      %7663 = vmatprep.mubr.f32.mxu0 %v7334
      %7664 = vmatmul.mubr.f32.gmra.mrb[0].mxu0 %v7238
      %v7665 = vpop.f32.mrb[0].mxu0
      %v7666 = vadd.f32 %v7386, %v7665
      %v7667 = vpop.f32.mrb[0].mxu0
      %7668 = vmatprep.mubr.f32.mxu0 %v7335
      %7669 = vmatmul.mubr.f32.gmra.mrb[0].mxu0 %v7239
      %v7670 = vpop.f32.mrb[0].mxu0
      %v7671 = vadd.f32 %v7386, %v7670
      %v7672 = vpop.f32.mrb[0].mxu0
      %7673 = vmatprep.mubr.f32.mxu0 %v7336
      %7674 = vmatmul.mubr.f32.gmra.mrb[0].mxu0 %v7240
      %v7675 = vpop.f32.mrb[0].mxu0
      %v7676 = vadd.f32 %v7386, %v7675
      %v7677 = vpop.f32.mrb[0].mxu0
      %7678 = vmatprep.mubr.f32.mxu0 %v7337
      %7679 = vmatmul.mubr.f32.gmra.mrb[0].mxu0 %v7241
      %v7680 = vpop.f32.mrb[0].mxu0
      %v7681 = vadd.f32 %v7386, %v7680
      %v7682 = vpop.f32.mrb[0].mxu0
      %7683 = vmatprep.mubr.f32.mxu0 %v7338
      %7684 = vmatmul.mubr.f32.gmra.mrb[0].mxu0 %v7242
      %v7685 = vpop.f32.mrb[0].mxu0
      %v7686 = vadd.f32 %v7386, %v7685
      %v7687 = vpop.f32.mrb[0].mxu0
      %7688 = vmatprep.mubr.f32.mxu0 %v7339
      %7689 = vmatmul.mubr.f32.gmra.mrb[0].mxu0 %v7243
      %v7690 = vpop.f32.mrb[0].mxu0
      %v7691 = vadd.f32 %v7386, %v7690
      %v7692 = vpop.f32.mrb[0].mxu0
      %7693 = vmatprep.mubr.f32.mxu0 %v7340
      %7694 = vmatmul.mubr.f32.gmra.mrb[0].mxu0 %v7244
      %v7695 = vpop.f32.mrb[0].mxu0
      %v7696 = vadd.f32 %v7386, %v7695
      %v7697 = vpop.f32.mrb[0].mxu0
      %7698 = vmatprep.mubr.f32.mxu0 %v7341
      %7699 = vmatmul.mubr.f32.gmra.mrb[0].mxu0 %v7245
      %v7700 = vpop.f32.mrb[0].mxu0
      %v7701 = vadd.f32 %v7386, %v7700
      %v7702 = vpop.f32.mrb[0].mxu0
      %7703 = vmatprep.mubr.f32.mxu0 %v7342
      %7704 = vmatmul.mubr.f32.gmra.mrb[0].mxu0 %v7246
      %v7705 = vpop.f32.mrb[0].mxu0
      %v7706 = vadd.f32 %v7386, %v7705
      %v7707 = vpop.f32.mrb[0].mxu0
      %7708 = vdwg.mxu0
      %7709 = vmatprep.subr.mxu0 0.0
      %7710 = vmatpush1.msra.mxu0 %v7376
      %7711 = vmatprep.subr.mxu0 0.0
      %7712 = vmatpush1.msra.mxu0 %v7377
      %7713 = vmatprep.subr.mxu0 0.0
      %7714 = vmatpush1.msra.mxu0 %v7378
      %7715 = vmatprep.subr.mxu0 0.0
      %7716 = vmatpush1.msra.mxu0 %v7379
      %7717 = vmatprep.subr.mxu0 0.0
      %7718 = vmatpush1.msra.mxu0 0.0
      %7719 = vmatprep.subr.mxu0 0.0
      %7720 = vmatpush1.msra.mxu0 0.0
      %7721 = vmatprep.subr.mxu0 0.0
      %7722 = vmatpush1.msra.mxu0 0.0
      %7723 = vmatprep.subr.mxu0 0.0
      %7724 = vmatpush1.msra.mxu0 0.0
      %7725 = vmatprep.subr.mxu0 0.0
      %7726 = vmatpush1.msra.mxu0 0.0
      %7727 = vmatprep.subr.mxu0 0.0
      %7728 = vmatpush1.msra.mxu0 0.0
      %7729 = vmatprep.subr.mxu0 0.0
      %7730 = vmatpush1.msra.mxu0 0.0
      %7731 = vmatprep.subr.mxu0 0.0
      %7732 = vmatpush1.msra.mxu0 0.0
      %7733 = vmatprep.subr.mxu0 0.0
      %7734 = vmatpush1.msra.mxu0 0.0
      %7735 = vmatprep.subr.mxu0 0.0
      %7736 = vmatpush1.msra.mxu0 0.0
      %7737 = vmatprep.subr.mxu0 0.0
      %7738 = vmatpush1.msra.mxu0 0.0
      %7739 = vmatprep.subr.mxu0 0.0
      %7740 = vmatpush1.msra.mxu0 0.0
      %7741 = vmatprep.subr.mxu0 0.0
      %7742 = vmatpush1.msra.mxu0 0.0
      %7743 = vmatprep.subr.mxu0 0.0
      %7744 = vmatpush1.msra.mxu0 0.0
      %7745 = vmatprep.subr.mxu0 0.0
      %7746 = vmatpush1.msra.mxu0 0.0
      %7747 = vmatprep.subr.mxu0 0.0
      %7748 = vmatpush1.msra.mxu0 0.0
      %7749 = vmatprep.subr.mxu0 0.0
      %7750 = vmatpush1.msra.mxu0 0.0
      %7751 = vmatprep.subr.mxu0 0.0
      %7752 = vmatpush1.msra.mxu0 0.0
      %7753 = vmatprep.subr.mxu0 0.0
      %7754 = vmatpush1.msra.mxu0 0.0
      %7755 = vmatprep.subr.mxu0 0.0
      %7756 = vmatpush1.msra.mxu0 0.0
      %7757 = vmatprep.subr.mxu0 0.0
      %7758 = vmatpush1.msra.mxu0 0.0
      %7759 = vmatprep.subr.mxu0 0.0
      %7760 = vmatpush1.msra.mxu0 0.0
      %7761 = vmatprep.subr.mxu0 0.0
      %7762 = vmatpush1.msra.mxu0 0.0
      %7763 = vmatprep.subr.mxu0 0.0
      %7764 = vmatpush1.msra.mxu0 0.0
      %7765 = vmatprep.subr.mxu0 0.0
      %7766 = vmatpush1.msra.mxu0 0.0
      %7767 = vmatprep.subr.mxu0 0.0
      %7768 = vmatpush1.msra.mxu0 0.0
      %7769 = vmatprep.subr.mxu0 0.0
      %7770 = vmatpush1.msra.mxu0 0.0
      %7771 = vmatprep.subr.mxu0 0.0
      %7772 = vmatpush1.msra.mxu0 0.0
      %7773 = vmatprep.mubr.f32.mxu0 0.0
      %7774 = vmatmul.mubr.f32.gmra.mrb[0].mxu0 %v7389
      %v7775 = vpop.f32.mrb[0].mxu0
      %v7776 = vadd.f32 %v7551, %v7775
      %v7777 = vpop.f32.mrb[0].mxu0
      %7778 = vmatprep.mubr.f32.mxu0 0.0
      %7779 = vmatmul.mubr.f32.gmra.mrb[0].mxu0 %v7392
      %v7780 = vpop.f32.mrb[0].mxu0
      %v7781 = vadd.f32 %v7556, %v7780
      %v7782 = vpop.f32.mrb[0].mxu0
      %7783 = vmatprep.mubr.f32.mxu0 0.0
      %7784 = vmatmul.mubr.f32.gmra.mrb[0].mxu0 %v7395
      %v7785 = vpop.f32.mrb[0].mxu0
      %v7786 = vadd.f32 %v7561, %v7785
      %v7787 = vpop.f32.mrb[0].mxu0
      %7788 = vmatprep.mubr.f32.mxu0 0.0
      %7789 = vmatmul.mubr.f32.gmra.mrb[0].mxu0 %v7398
      %v7790 = vpop.f32.mrb[0].mxu0
      %v7791 = vadd.f32 %v7566, %v7790
      %v7792 = vpop.f32.mrb[0].mxu0
      %7793 = vmatprep.mubr.f32.mxu0 0.0
      %7794 = vmatmul.mubr.f32.gmra.mrb[0].mxu0 %v7401
      %v7795 = vpop.f32.mrb[0].mxu0
      %v7796 = vadd.f32 %v7571, %v7795
      %v7797 = vpop.f32.mrb[0].mxu0
      %7798 = vmatprep.mubr.f32.mxu0 0.0
      %7799 = vmatmul.mubr.f32.gmra.mrb[0].mxu0 %v7404
      %v7800 = vpop.f32.mrb[0].mxu0
      %v7801 = vadd.f32 %v7576, %v7800
      %v7802 = vpop.f32.mrb[0].mxu0
      %7803 = vmatprep.mubr.f32.mxu0 0.0
      %7804 = vmatmul.mubr.f32.gmra.mrb[0].mxu0 %v7407
      %v7805 = vpop.f32.mrb[0].mxu0
      %v7806 = vadd.f32 %v7581, %v7805
      %v7807 = vpop.f32.mrb[0].mxu0
      %7808 = vmatprep.mubr.f32.mxu0 0.0
      %7809 = vmatmul.mubr.f32.gmra.mrb[0].mxu0 %v7410
      %v7810 = vpop.f32.mrb[0].mxu0
      %v7811 = vadd.f32 %v7586, %v7810
      %v7812 = vpop.f32.mrb[0].mxu0
      %7813 = vmatprep.mubr.f32.mxu0 0.0
      %7814 = vmatmul.mubr.f32.gmra.mrb[0].mxu0 %v7413
      %v7815 = vpop.f32.mrb[0].mxu0
      %v7816 = vadd.f32 %v7591, %v7815
      %v7817 = vpop.f32.mrb[0].mxu0
      %7818 = vmatprep.mubr.f32.mxu0 0.0
      %7819 = vmatmul.mubr.f32.gmra.mrb[0].mxu0 %v7416
      %v7820 = vpop.f32.mrb[0].mxu0
      %v7821 = vadd.f32 %v7596, %v7820
      %v7822 = vpop.f32.mrb[0].mxu0
      %7823 = vmatprep.mubr.f32.mxu0 0.0
      %7824 = vmatmul.mubr.f32.gmra.mrb[0].mxu0 %v7419
      %v7825 = vpop.f32.mrb[0].mxu0
      %v7826 = vadd.f32 %v7601, %v7825
      %v7827 = vpop.f32.mrb[0].mxu0
      %7828 = vmatprep.mubr.f32.mxu0 0.0
      %7829 = vmatmul.mubr.f32.gmra.mrb[0].mxu0 %v7422
      %v7830 = vpop.f32.mrb[0].mxu0
      %v7831 = vadd.f32 %v7606, %v7830
      %v7832 = vpop.f32.mrb[0].mxu0
      %7833 = vmatprep.mubr.f32.mxu0 0.0
      %7834 = vmatmul.mubr.f32.gmra.mrb[0].mxu0 %v7425
      %v7835 = vpop.f32.mrb[0].mxu0
      %v7836 = vadd.f32 %v7611, %v7835
      %v7837 = vpop.f32.mrb[0].mxu0
      %7838 = vmatprep.mubr.f32.mxu0 0.0
      %7839 = vmatmul.mubr.f32.gmra.mrb[0].mxu0 %v7428
      %v7840 = vpop.f32.mrb[0].mxu0
      %v7841 = vadd.f32 %v7616, %v7840
      %v7842 = vpop.f32.mrb[0].mxu0
      %7843 = vmatprep.mubr.f32.mxu0 0.0
      %7844 = vmatmul.mubr.f32.gmra.mrb[0].mxu0 %v7431
      %v7845 = vpop.f32.mrb[0].mxu0
      %v7846 = vadd.f32 %v7621, %v7845
      %v7847 = vpop.f32.mrb[0].mxu0
      %7848 = vmatprep.mubr.f32.mxu0 0.0
      %7849 = vmatmul.mubr.f32.gmra.mrb[0].mxu0 %v7434
      %v7850 = vpop.f32.mrb[0].mxu0
      %v7851 = vadd.f32 %v7626, %v7850
      %v7852 = vpop.f32.mrb[0].mxu0
      %7853 = vmatprep.mubr.f32.mxu0 0.0
      %7854 = vmatmul.mubr.f32.gmra.mrb[0].mxu0 %v7437
      %v7855 = vpop.f32.mrb[0].mxu0
      %v7856 = vadd.f32 %v7631, %v7855
      %v7857 = vpop.f32.mrb[0].mxu0
      %7858 = vmatprep.mubr.f32.mxu0 0.0
      %7859 = vmatmul.mubr.f32.gmra.mrb[0].mxu0 %v7440
      %v7860 = vpop.f32.mrb[0].mxu0
      %v7861 = vadd.f32 %v7636, %v7860
      %v7862 = vpop.f32.mrb[0].mxu0
      %7863 = vmatprep.mubr.f32.mxu0 0.0
      %7864 = vmatmul.mubr.f32.gmra.mrb[0].mxu0 %v7443
      %v7865 = vpop.f32.mrb[0].mxu0
      %v7866 = vadd.f32 %v7641, %v7865
      %v7867 = vpop.f32.mrb[0].mxu0
      %7868 = vmatprep.mubr.f32.mxu0 0.0
      %7869 = vmatmul.mubr.f32.gmra.mrb[0].mxu0 %v7446
      %v7870 = vpop.f32.mrb[0].mxu0
      %v7871 = vadd.f32 %v7646, %v7870
      %v7872 = vpop.f32.mrb[0].mxu0
      %7873 = vmatprep.mubr.f32.mxu0 0.0
      %7874 = vmatmul.mubr.f32.gmra.mrb[0].mxu0 %v7449
      %v7875 = vpop.f32.mrb[0].mxu0
      %v7876 = vadd.f32 %v7651, %v7875
      %v7877 = vpop.f32.mrb[0].mxu0
      %7878 = vmatprep.mubr.f32.mxu0 0.0
      %7879 = vmatmul.mubr.f32.gmra.mrb[0].mxu0 %v7452
      %v7880 = vpop.f32.mrb[0].mxu0
      %v7881 = vadd.f32 %v7656, %v7880
      %v7882 = vpop.f32.mrb[0].mxu0
      %7883 = vmatprep.mubr.f32.mxu0 0.0
      %7884 = vmatmul.mubr.f32.gmra.mrb[0].mxu0 %v7455
      %v7885 = vpop.f32.mrb[0].mxu0
      %v7886 = vadd.f32 %v7661, %v7885
      %v7887 = vpop.f32.mrb[0].mxu0
      %7888 = vmatprep.mubr.f32.mxu0 0.0
      %7889 = vmatmul.mubr.f32.gmra.mrb[0].mxu0 %v7458
      %v7890 = vpop.f32.mrb[0].mxu0
      %v7891 = vadd.f32 %v7666, %v7890
      %v7892 = vpop.f32.mrb[0].mxu0
      %7893 = vmatprep.mubr.f32.mxu0 0.0
      %7894 = vmatmul.mubr.f32.gmra.mrb[0].mxu0 %v7461
      %v7895 = vpop.f32.mrb[0].mxu0
      %v7896 = vadd.f32 %v7671, %v7895
      %v7897 = vpop.f32.mrb[0].mxu0
      %7898 = vmatprep.mubr.f32.mxu0 0.0
      %7899 = vmatmul.mubr.f32.gmra.mrb[0].mxu0 %v7464
      %v7900 = vpop.f32.mrb[0].mxu0
      %v7901 = vadd.f32 %v7676, %v7900
      %v7902 = vpop.f32.mrb[0].mxu0
      %7903 = vmatprep.mubr.f32.mxu0 0.0
      %7904 = vmatmul.mubr.f32.gmra.mrb[0].mxu0 %v7467
      %v7905 = vpop.f32.mrb[0].mxu0
      %v7906 = vadd.f32 %v7681, %v7905
      %v7907 = vpop.f32.mrb[0].mxu0
      %7908 = vmatprep.mubr.f32.mxu0 0.0
      %7909 = vmatmul.mubr.f32.gmra.mrb[0].mxu0 %v7470
      %v7910 = vpop.f32.mrb[0].mxu0
      %v7911 = vadd.f32 %v7686, %v7910
      %v7912 = vpop.f32.mrb[0].mxu0
      %7913 = vmatprep.mubr.f32.mxu0 0.0
      %7914 = vmatmul.mubr.f32.gmra.mrb[0].mxu0 %v7473
      %v7915 = vpop.f32.mrb[0].mxu0
      %v7916 = vadd.f32 %v7691, %v7915
      %v7917 = vpop.f32.mrb[0].mxu0
      %7918 = vmatprep.mubr.f32.mxu0 0.0
      %7919 = vmatmul.mubr.f32.gmra.mrb[0].mxu0 %v7476
      %v7920 = vpop.f32.mrb[0].mxu0
      %v7921 = vadd.f32 %v7696, %v7920
      %v7922 = vpop.f32.mrb[0].mxu0
      %7923 = vmatprep.mubr.f32.mxu0 0.0
      %7924 = vmatmul.mubr.f32.gmra.mrb[0].mxu0 %v7479
      %v7925 = vpop.f32.mrb[0].mxu0
      %v7926 = vadd.f32 %v7701, %v7925
      %v7927 = vpop.f32.mrb[0].mxu0
      %7928 = vmatprep.mubr.f32.mxu0 0.0
      %7929 = vmatmul.mubr.f32.gmra.mrb[0].mxu0 %v7482
      %v7930 = vpop.f32.mrb[0].mxu0
      %v7931 = vadd.f32 %v7706, %v7930
      %v7932 = vpop.f32.mrb[0].mxu0
      %7933 = vdwg.mxu0
      %v7934 = vmax.f32 %v7776, 0.0
      %v7935 = vmax.f32 %v7781, 0.0
      %v7936 = vmax.f32 %v7786, 0.0
      %v7937 = vmax.f32 %v7791, 0.0
      %v7938 = vmax.f32 %v7796, 0.0
      %v7939 = vmax.f32 %v7801, 0.0
      %v7940 = vmax.f32 %v7806, 0.0
      %v7941 = vmax.f32 %v7811, 0.0
      %v7942 = vmax.f32 %v7816, 0.0
      %v7943 = vmax.f32 %v7821, 0.0
      %v7944 = vmax.f32 %v7826, 0.0
      %v7945 = vmax.f32 %v7831, 0.0
      %v7946 = vmax.f32 %v7836, 0.0
      %v7947 = vmax.f32 %v7841, 0.0
      %v7948 = vmax.f32 %v7846, 0.0
      %v7949 = vmax.f32 %v7851, 0.0
      %v7950 = vmax.f32 %v7856, 0.0
      %v7951 = vmax.f32 %v7861, 0.0
      %v7952 = vmax.f32 %v7866, 0.0
      %v7953 = vmax.f32 %v7871, 0.0
      %v7954 = vmax.f32 %v7876, 0.0
      %v7955 = vmax.f32 %v7881, 0.0
      %v7956 = vmax.f32 %v7886, 0.0
      %v7957 = vmax.f32 %v7891, 0.0
      %v7958 = vmax.f32 %v7896, 0.0
      %v7959 = vmax.f32 %v7901, 0.0
      %v7960 = vmax.f32 %v7906, 0.0
      %v7961 = vmax.f32 %v7911, 0.0
      %v7962 = vmax.f32 %v7916, 0.0
      %v7963 = vmax.f32 %v7921, 0.0
      %v7964 = vmax.f32 %v7926, 0.0
      %v7965 = vmax.f32 %v7931, 0.0
      %7966 = vst.msk [vmem:[%s352 + $0x1] sm:$0xff] %vm225, %v7934
      %7967 = vst.msk [vmem:[%s352 + $0x9] sm:$0xff] %vm225, %v7935
      %7968 = vst.msk [vmem:[%s352 + $0x19] sm:$0xff] %vm225, %v7936
      %7969 = vst.msk [vmem:[%s352 + $0x21] sm:$0xff] %vm225, %v7937
      %7970 = vst.msk [vmem:[%s352 + $0x31] sm:$0xff] %vm225, %v7938
      %7971 = vst.msk [vmem:[%s352 + $0x39] sm:$0xff] %vm225, %v7939
      %7972 = vst.msk [vmem:[%s352 + $0x49] sm:$0xff] %vm225, %v7940
      %7973 = vst.msk [vmem:[%s352 + $0x51] sm:$0xff] %vm225, %v7941
      %7974 = vst.msk [vmem:[%s352 + $0x61] sm:$0xff] %vm225, %v7942
      %7975 = vst.msk [vmem:[%s352 + $0x69] sm:$0xff] %vm225, %v7943
      %7976 = vst.msk [vmem:[%s352 + $0x79] sm:$0xff] %vm225, %v7944
      %7977 = vst.msk [vmem:[%s352 + $0x81] sm:$0xff] %vm225, %v7945
      %7978 = vst.msk [vmem:[%s352 + $0x91] sm:$0xff] %vm225, %v7946
      %7979 = vst.msk [vmem:[%s352 + $0x99] sm:$0xff] %vm225, %v7947
      %7980 = vst.msk [vmem:[%s352 + $0xa9] sm:$0xff] %vm225, %v7948
      %7981 = vst.msk [vmem:[%s352 + $0xb1] sm:$0xff] %vm225, %v7949
      %7982 = vst.msk [vmem:[%s352 + $0xc1] sm:$0xff] %vm225, %v7950
      %7983 = vst.msk [vmem:[%s352 + $0xc9] sm:$0xff] %vm225, %v7951
      %7984 = vst.msk [vmem:[%s352 + $0xd9] sm:$0xff] %vm225, %v7952
      %7985 = vst.msk [vmem:[%s352 + $0xe1] sm:$0xff] %vm225, %v7953
      %7986 = vst.msk [vmem:[%s352 + $0xf1] sm:$0xff] %vm225, %v7954
      %7987 = vst.msk [vmem:[%s352 + $0xf9] sm:$0xff] %vm225, %v7955
      %7988 = vst.msk [vmem:[%s352 + $0x109] sm:$0xff] %vm225, %v7956
      %7989 = vst.msk [vmem:[%s352 + $0x111] sm:$0xff] %vm225, %v7957
      %7990 = vst.msk [vmem:[%s352 + $0x121] sm:$0xff] %vm225, %v7958
      %7991 = vst.msk [vmem:[%s352 + $0x129] sm:$0xff] %vm225, %v7959
      %7992 = vst.msk [vmem:[%s352 + $0x139] sm:$0xff] %vm225, %v7960
      %7993 = vst.msk [vmem:[%s352 + $0x141] sm:$0xff] %vm225, %v7961
      %7994 = vst.msk [vmem:[%s352 + $0x151] sm:$0xff] %vm225, %v7962
      %7995 = vst.msk [vmem:[%s352 + $0x159] sm:$0xff] %vm225, %v7963
      %7996 = vst.msk [vmem:[%s352 + $0x169] sm:$0xff] %vm225, %v7964
      %7997 = vst.msk [vmem:[%s352 + $0x171] sm:$0xff] %vm225, %v7965
      %v7998 = vld [vmem:[#allocation2] sm:$0xff]
      %v7999 = vld [vmem:[#allocation2 + $0x8] sm:$0xff]
      %v8000 = vld [vmem:[#allocation2 + $0x18] sm:$0xff]
      %v8001 = vld [vmem:[#allocation2 + $0x20] sm:$0xff]
      %v8002 = vld [vmem:[#allocation2 + $0x30] sm:$0xff]
      %v8003 = vld [vmem:[#allocation2 + $0x38] sm:$0xff]
      %v8004 = vld [vmem:[#allocation2 + $0x48] sm:$0xff]
      %v8005 = vld [vmem:[#allocation2 + $0x50] sm:$0xff]
      %v8006 = vld [vmem:[#allocation2 + $0x60] sm:$0xff]
      %v8007 = vld [vmem:[#allocation2 + $0x68] sm:$0xff]
      %v8008 = vld [vmem:[#allocation2 + $0x78] sm:$0xff]
      %v8009 = vld [vmem:[#allocation2 + $0x80] sm:$0xff]
      %v8010 = vld [vmem:[#allocation2 + $0x90] sm:$0xff]
      %v8011 = vld [vmem:[#allocation2 + $0x98] sm:$0xff]
      %v8012 = vld [vmem:[#allocation2 + $0xa8] sm:$0xff]
      %v8013 = vld [vmem:[#allocation2 + $0xb0] sm:$0xff]
      %v8014 = vld [vmem:[#allocation2 + $0xc0] sm:$0xff]
      %v8015 = vld [vmem:[#allocation2 + $0xc8] sm:$0xff]
      %v8016 = vld [vmem:[#allocation2 + $0xd8] sm:$0xff]
      %v8017 = vld [vmem:[#allocation2 + $0xe0] sm:$0xff]
      %v8018 = vld [vmem:[#allocation2 + $0xf0] sm:$0xff]
      %v8019 = vld [vmem:[#allocation2 + $0xf8] sm:$0xff]
      %v8020 = vld [vmem:[#allocation2 + $0x108] sm:$0xff]
      %v8021 = vld [vmem:[#allocation2 + $0x110] sm:$0xff]
      %v8022 = vld [vmem:[#allocation2 + $0x120] sm:$0xff]
      %v8023 = vld [vmem:[#allocation2 + $0x128] sm:$0xff]
      %v8024 = vld [vmem:[#allocation2 + $0x138] sm:$0xff]
      %v8025 = vld [vmem:[#allocation2 + $0x140] sm:$0xff]
      %v8026 = vld [vmem:[#allocation2 + $0x150] sm:$0xff]
      %v8027 = vld [vmem:[#allocation2 + $0x158] sm:$0xff]
      %v8028 = vld [vmem:[#allocation2 + $0x168] sm:$0xff]
      %v8029 = vld [vmem:[#allocation2 + $0x170] sm:$0xff]
      %v8030 = vld [vmem:[#allocation2 + $0x1] sm:$0xff]
      %v8031 = vld [vmem:[#allocation2 + $0x9] sm:$0xff]
      %v8032 = vld [vmem:[#allocation2 + $0x19] sm:$0xff]
      %v8033 = vld [vmem:[#allocation2 + $0x21] sm:$0xff]
      %v8034 = vld [vmem:[#allocation2 + $0x31] sm:$0xff]
      %v8035 = vld [vmem:[#allocation2 + $0x39] sm:$0xff]
      %v8036 = vld [vmem:[#allocation2 + $0x49] sm:$0xff]
      %v8037 = vld [vmem:[#allocation2 + $0x51] sm:$0xff]
      %v8038 = vld [vmem:[#allocation2 + $0x61] sm:$0xff]
      %v8039 = vld [vmem:[#allocation2 + $0x69] sm:$0xff]
      %v8040 = vld [vmem:[#allocation2 + $0x79] sm:$0xff]
      %v8041 = vld [vmem:[#allocation2 + $0x81] sm:$0xff]
      %v8042 = vld [vmem:[#allocation2 + $0x91] sm:$0xff]
      %v8043 = vld [vmem:[#allocation2 + $0x99] sm:$0xff]
      %v8044 = vld [vmem:[#allocation2 + $0xa9] sm:$0xff]
      %v8045 = vld [vmem:[#allocation2 + $0xb1] sm:$0xff]
      %v8046 = vld [vmem:[#allocation2 + $0xc1] sm:$0xff]
      %v8047 = vld [vmem:[#allocation2 + $0xc9] sm:$0xff]
      %v8048 = vld [vmem:[#allocation2 + $0xd9] sm:$0xff]
      %v8049 = vld [vmem:[#allocation2 + $0xe1] sm:$0xff]
      %v8050 = vld [vmem:[#allocation2 + $0xf1] sm:$0xff]
      %v8051 = vld [vmem:[#allocation2 + $0xf9] sm:$0xff]
      %v8052 = vld [vmem:[#allocation2 + $0x109] sm:$0xff]
      %v8053 = vld [vmem:[#allocation2 + $0x111] sm:$0xff]
      %v8054 = vld [vmem:[#allocation2 + $0x121] sm:$0xff]
      %v8055 = vld [vmem:[#allocation2 + $0x129] sm:$0xff]
      %v8056 = vld [vmem:[#allocation2 + $0x139] sm:$0xff]
      %v8057 = vld [vmem:[#allocation2 + $0x141] sm:$0xff]
      %v8058 = vld [vmem:[#allocation2 + $0x151] sm:$0xff]
      %v8059 = vld [vmem:[#allocation2 + $0x159] sm:$0xff]
      %v8060 = vld [vmem:[#allocation2 + $0x169] sm:$0xff]
      %v8061 = vld [vmem:[#allocation2 + $0x171] sm:$0xff]
      %v8062 = vld [vmem:[#allocation2 + $0x2] sm:$0xff]
      %v8063 = vld [vmem:[#allocation2 + $0xa] sm:$0xff]
      %v8064 = vld [vmem:[#allocation2 + $0x1a] sm:$0xff]
      %v8065 = vld [vmem:[#allocation2 + $0x22] sm:$0xff]
      %v8066 = vld [vmem:[#allocation2 + $0x32] sm:$0xff]
      %v8067 = vld [vmem:[#allocation2 + $0x3a] sm:$0xff]
      %v8068 = vld [vmem:[#allocation2 + $0x4a] sm:$0xff]
      %v8069 = vld [vmem:[#allocation2 + $0x52] sm:$0xff]
      %v8070 = vld [vmem:[#allocation2 + $0x62] sm:$0xff]
      %v8071 = vld [vmem:[#allocation2 + $0x6a] sm:$0xff]
      %v8072 = vld [vmem:[#allocation2 + $0x7a] sm:$0xff]
      %v8073 = vld [vmem:[#allocation2 + $0x82] sm:$0xff]
      %v8074 = vld [vmem:[#allocation2 + $0x92] sm:$0xff]
      %v8075 = vld [vmem:[#allocation2 + $0x9a] sm:$0xff]
      %v8076 = vld [vmem:[#allocation2 + $0xaa] sm:$0xff]
      %v8077 = vld [vmem:[#allocation2 + $0xb2] sm:$0xff]
      %v8078 = vld [vmem:[#allocation2 + $0xc2] sm:$0xff]
      %v8079 = vld [vmem:[#allocation2 + $0xca] sm:$0xff]
      %v8080 = vld [vmem:[#allocation2 + $0xda] sm:$0xff]
      %v8081 = vld [vmem:[#allocation2 + $0xe2] sm:$0xff]
      %v8082 = vld [vmem:[#allocation2 + $0xf2] sm:$0xff]
      %v8083 = vld [vmem:[#allocation2 + $0xfa] sm:$0xff]
      %v8084 = vld [vmem:[#allocation2 + $0x10a] sm:$0xff]
      %v8085 = vld [vmem:[#allocation2 + $0x112] sm:$0xff]
      %v8086 = vld [vmem:[#allocation2 + $0x122] sm:$0xff]
      %v8087 = vld [vmem:[#allocation2 + $0x12a] sm:$0xff]
      %v8088 = vld [vmem:[#allocation2 + $0x13a] sm:$0xff]
      %v8089 = vld [vmem:[#allocation2 + $0x142] sm:$0xff]
      %v8090 = vld [vmem:[#allocation2 + $0x152] sm:$0xff]
      %v8091 = vld [vmem:[#allocation2 + $0x15a] sm:$0xff]
      %v8092 = vld [vmem:[#allocation2 + $0x16a] sm:$0xff]
      %v8093 = vld [vmem:[#allocation2 + $0x172] sm:$0xff]
      %v8094 = vld [vmem:[%s352] sm:$0xff]
      %v8095 = vld [vmem:[%s352 + $0x8] sm:$0xff]
      %v8096 = vld [vmem:[%s352 + $0x18] sm:$0xff]
      %v8097 = vld [vmem:[%s352 + $0x20] sm:$0xff]
      %v8098 = vld [vmem:[%s352 + $0x30] sm:$0xff]
      %v8099 = vld [vmem:[%s352 + $0x38] sm:$0xff]
      %v8100 = vld [vmem:[%s352 + $0x48] sm:$0xff]
      %v8101 = vld [vmem:[%s352 + $0x50] sm:$0xff]
      %v8102 = vld [vmem:[%s352 + $0x60] sm:$0xff]
      %v8103 = vld [vmem:[%s352 + $0x68] sm:$0xff]
      %v8104 = vld [vmem:[%s352 + $0x78] sm:$0xff]
      %v8105 = vld [vmem:[%s352 + $0x80] sm:$0xff]
      %v8106 = vld [vmem:[%s352 + $0x90] sm:$0xff]
      %v8107 = vld [vmem:[%s352 + $0x98] sm:$0xff]
      %v8108 = vld [vmem:[%s352 + $0xa8] sm:$0xff]
      %v8109 = vld [vmem:[%s352 + $0xb0] sm:$0xff]
      %v8110 = vld [vmem:[%s352 + $0xc0] sm:$0xff]
      %v8111 = vld [vmem:[%s352 + $0xc8] sm:$0xff]
      %v8112 = vld [vmem:[%s352 + $0xd8] sm:$0xff]
      %v8113 = vld [vmem:[%s352 + $0xe0] sm:$0xff]
      %v8114 = vld [vmem:[%s352 + $0xf0] sm:$0xff]
      %v8115 = vld [vmem:[%s352 + $0xf8] sm:$0xff]
      %v8116 = vld [vmem:[%s352 + $0x108] sm:$0xff]
      %v8117 = vld [vmem:[%s352 + $0x110] sm:$0xff]
      %v8118 = vld [vmem:[%s352 + $0x120] sm:$0xff]
      %v8119 = vld [vmem:[%s352 + $0x128] sm:$0xff]
      %v8120 = vld [vmem:[%s352 + $0x138] sm:$0xff]
      %v8121 = vld [vmem:[%s352 + $0x140] sm:$0xff]
      %v8122 = vld [vmem:[%s352 + $0x150] sm:$0xff]
      %v8123 = vld [vmem:[%s352 + $0x158] sm:$0xff]
      %v8124 = vld [vmem:[%s352 + $0x168] sm:$0xff]
      %v8125 = vld [vmem:[%s352 + $0x170] sm:$0xff]
      %v8126 = vld [vmem:[%s352 + $0x1] sm:$0xff]
      %v8127 = vld [vmem:[%s352 + $0x9] sm:$0xff]
      %v8128 = vld [vmem:[%s352 + $0x19] sm:$0xff]
      %v8129 = vld [vmem:[%s352 + $0x21] sm:$0xff]
      %v8130 = vld [vmem:[%s352 + $0x31] sm:$0xff]
      %v8131 = vld [vmem:[%s352 + $0x39] sm:$0xff]
      %v8132 = vld [vmem:[%s352 + $0x49] sm:$0xff]
      %v8133 = vld [vmem:[%s352 + $0x51] sm:$0xff]
      %v8134 = vld [vmem:[%s352 + $0x61] sm:$0xff]
      %v8135 = vld [vmem:[%s352 + $0x69] sm:$0xff]
      %v8136 = vld [vmem:[%s352 + $0x79] sm:$0xff]
      %v8137 = vld [vmem:[%s352 + $0x81] sm:$0xff]
      %v8138 = vld [vmem:[%s352 + $0x91] sm:$0xff]
      %v8139 = vld [vmem:[%s352 + $0x99] sm:$0xff]
      %v8140 = vld [vmem:[%s352 + $0xa9] sm:$0xff]
      %v8141 = vld [vmem:[%s352 + $0xb1] sm:$0xff]
      %v8142 = vld [vmem:[%s352 + $0xc1] sm:$0xff]
      %v8143 = vld [vmem:[%s352 + $0xc9] sm:$0xff]
      %v8144 = vld [vmem:[%s352 + $0xd9] sm:$0xff]
      %v8145 = vld [vmem:[%s352 + $0xe1] sm:$0xff]
      %v8146 = vld [vmem:[%s352 + $0xf1] sm:$0xff]
      %v8147 = vld [vmem:[%s352 + $0xf9] sm:$0xff]
      %v8148 = vld [vmem:[%s352 + $0x109] sm:$0xff]
      %v8149 = vld [vmem:[%s352 + $0x111] sm:$0xff]
      %v8150 = vld [vmem:[%s352 + $0x121] sm:$0xff]
      %v8151 = vld [vmem:[%s352 + $0x129] sm:$0xff]
      %v8152 = vld [vmem:[%s352 + $0x139] sm:$0xff]
      %v8153 = vld [vmem:[%s352 + $0x141] sm:$0xff]
      %v8154 = vld [vmem:[%s352 + $0x151] sm:$0xff]
      %v8155 = vld [vmem:[%s352 + $0x159] sm:$0xff]
      %v8156 = vld [vmem:[%s352 + $0x169] sm:$0xff]
      %v8157 = vld [vmem:[%s352 + $0x171] sm:$0xff]
      %v8158 = vld [vmem:[%s352 + $0x2] sm:$0xff]
      %v8159 = vld [vmem:[%s352 + $0xa] sm:$0xff]
      %v8160 = vld [vmem:[%s352 + $0x1a] sm:$0xff]
      %v8161 = vld [vmem:[%s352 + $0x22] sm:$0xff]
      %v8162 = vld [vmem:[%s352 + $0x32] sm:$0xff]
      %v8163 = vld [vmem:[%s352 + $0x3a] sm:$0xff]
      %v8164 = vld [vmem:[%s352 + $0x4a] sm:$0xff]
      %v8165 = vld [vmem:[%s352 + $0x52] sm:$0xff]
      %v8166 = vld [vmem:[%s352 + $0x62] sm:$0xff]
      %v8167 = vld [vmem:[%s352 + $0x6a] sm:$0xff]
      %v8168 = vld [vmem:[%s352 + $0x7a] sm:$0xff]
      %v8169 = vld [vmem:[%s352 + $0x82] sm:$0xff]
      %v8170 = vld [vmem:[%s352 + $0x92] sm:$0xff]
      %v8171 = vld [vmem:[%s352 + $0x9a] sm:$0xff]
      %v8172 = vld [vmem:[%s352 + $0xaa] sm:$0xff]
      %v8173 = vld [vmem:[%s352 + $0xb2] sm:$0xff]
      %v8174 = vld [vmem:[%s352 + $0xc2] sm:$0xff]
      %v8175 = vld [vmem:[%s352 + $0xca] sm:$0xff]
      %v8176 = vld [vmem:[%s352 + $0xda] sm:$0xff]
      %v8177 = vld [vmem:[%s352 + $0xe2] sm:$0xff]
      %v8178 = vld [vmem:[%s352 + $0xf2] sm:$0xff]
      %v8179 = vld [vmem:[%s352 + $0xfa] sm:$0xff]
      %v8180 = vld [vmem:[%s352 + $0x10a] sm:$0xff]
      %v8181 = vld [vmem:[%s352 + $0x112] sm:$0xff]
      %v8182 = vld [vmem:[%s352 + $0x122] sm:$0xff]
      %v8183 = vld [vmem:[%s352 + $0x12a] sm:$0xff]
      %v8184 = vld [vmem:[%s352 + $0x13a] sm:$0xff]
      %v8185 = vld [vmem:[%s352 + $0x142] sm:$0xff]
      %v8186 = vld [vmem:[%s352 + $0x152] sm:$0xff]
      %v8187 = vld [vmem:[%s352 + $0x15a] sm:$0xff]
      %v8188 = vld [vmem:[%s352 + $0x16a] sm:$0xff]
      %v8189 = vld [vmem:[%s352 + $0x172] sm:$0xff]
      %v8190 = vld [vmem:[%s577] sm:$0xff]
      %v8191 = vld [vmem:[%s577 + $0x8] sm:$0xff]
      %v8192 = vld [vmem:[%s577 + $0x18] sm:$0xff]
      %v8193 = vld [vmem:[%s577 + $0x20] sm:$0xff]
      %v8194 = vld [vmem:[%s577 + $0x30] sm:$0xff]
      %v8195 = vld [vmem:[%s577 + $0x38] sm:$0xff]
      %v8196 = vld [vmem:[%s577 + $0x48] sm:$0xff]
      %v8197 = vld [vmem:[%s577 + $0x50] sm:$0xff]
      %v8198 = vld [vmem:[%s577 + $0x60] sm:$0xff]
      %v8199 = vld [vmem:[%s577 + $0x68] sm:$0xff]
      %v8200 = vld [vmem:[%s577 + $0x78] sm:$0xff]
      %v8201 = vld [vmem:[%s577 + $0x80] sm:$0xff]
      %v8202 = vld [vmem:[%s577 + $0x90] sm:$0xff]
      %v8203 = vld [vmem:[%s577 + $0x98] sm:$0xff]
      %v8204 = vld [vmem:[%s577 + $0xa8] sm:$0xff]
      %v8205 = vld [vmem:[%s577 + $0xb0] sm:$0xff]
      %v8206 = vld [vmem:[%s577 + $0xc0] sm:$0xff]
      %v8207 = vld [vmem:[%s577 + $0xc8] sm:$0xff]
      %v8208 = vld [vmem:[%s577 + $0xd8] sm:$0xff]
      %v8209 = vld [vmem:[%s577 + $0xe0] sm:$0xff]
      %v8210 = vld [vmem:[%s577 + $0xf0] sm:$0xff]
      %v8211 = vld [vmem:[%s577 + $0xf8] sm:$0xff]
      %v8212 = vld [vmem:[%s577 + $0x108] sm:$0xff]
      %v8213 = vld [vmem:[%s577 + $0x110] sm:$0xff]
      %v8214 = vld [vmem:[%s577 + $0x120] sm:$0xff]
      %v8215 = vld [vmem:[%s577 + $0x128] sm:$0xff]
      %v8216 = vld [vmem:[%s577 + $0x138] sm:$0xff]
      %v8217 = vld [vmem:[%s577 + $0x140] sm:$0xff]
      %v8218 = vld [vmem:[%s577 + $0x150] sm:$0xff]
      %v8219 = vld [vmem:[%s577 + $0x158] sm:$0xff]
      %v8220 = vld [vmem:[%s577 + $0x168] sm:$0xff]
      %v8221 = vld [vmem:[%s577 + $0x170] sm:$0xff]
      %v8222 = vld [vmem:[%s577 + $0x1] sm:$0xff]
      %v8223 = vld [vmem:[%s577 + $0x9] sm:$0xff]
      %v8224 = vld [vmem:[%s577 + $0x19] sm:$0xff]
      %v8225 = vld [vmem:[%s577 + $0x21] sm:$0xff]
      %v8226 = vld [vmem:[%s577 + $0x31] sm:$0xff]
      %v8227 = vld [vmem:[%s577 + $0x39] sm:$0xff]
      %v8228 = vld [vmem:[%s577 + $0x49] sm:$0xff]
      %v8229 = vld [vmem:[%s577 + $0x51] sm:$0xff]
      %v8230 = vld [vmem:[%s577 + $0x61] sm:$0xff]
      %v8231 = vld [vmem:[%s577 + $0x69] sm:$0xff]
      %v8232 = vld [vmem:[%s577 + $0x79] sm:$0xff]
      %v8233 = vld [vmem:[%s577 + $0x81] sm:$0xff]
      %v8234 = vld [vmem:[%s577 + $0x91] sm:$0xff]
      %v8235 = vld [vmem:[%s577 + $0x99] sm:$0xff]
      %v8236 = vld [vmem:[%s577 + $0xa9] sm:$0xff]
      %v8237 = vld [vmem:[%s577 + $0xb1] sm:$0xff]
      %v8238 = vld [vmem:[%s577 + $0xc1] sm:$0xff]
      %v8239 = vld [vmem:[%s577 + $0xc9] sm:$0xff]
      %v8240 = vld [vmem:[%s577 + $0xd9] sm:$0xff]
      %v8241 = vld [vmem:[%s577 + $0xe1] sm:$0xff]
      %v8242 = vld [vmem:[%s577 + $0xf1] sm:$0xff]
      %v8243 = vld [vmem:[%s577 + $0xf9] sm:$0xff]
      %v8244 = vld [vmem:[%s577 + $0x109] sm:$0xff]
      %v8245 = vld [vmem:[%s577 + $0x111] sm:$0xff]
      %v8246 = vld [vmem:[%s577 + $0x121] sm:$0xff]
      %v8247 = vld [vmem:[%s577 + $0x129] sm:$0xff]
      %v8248 = vld [vmem:[%s577 + $0x139] sm:$0xff]
      %v8249 = vld [vmem:[%s577 + $0x141] sm:$0xff]
      %v8250 = vld [vmem:[%s577 + $0x151] sm:$0xff]
      %v8251 = vld [vmem:[%s577 + $0x159] sm:$0xff]
      %v8252 = vld [vmem:[%s577 + $0x169] sm:$0xff]
      %v8253 = vld [vmem:[%s577 + $0x171] sm:$0xff]
      %v8254 = vld [vmem:[%s577 + $0x2] sm:$0xff]
      %v8255 = vld [vmem:[%s577 + $0xa] sm:$0xff]
      %v8256 = vld [vmem:[%s577 + $0x1a] sm:$0xff]
      %v8257 = vld [vmem:[%s577 + $0x22] sm:$0xff]
      %v8258 = vld [vmem:[%s577 + $0x32] sm:$0xff]
      %v8259 = vld [vmem:[%s577 + $0x3a] sm:$0xff]
      %v8260 = vld [vmem:[%s577 + $0x4a] sm:$0xff]
      %v8261 = vld [vmem:[%s577 + $0x52] sm:$0xff]
      %v8262 = vld [vmem:[%s577 + $0x62] sm:$0xff]
      %v8263 = vld [vmem:[%s577 + $0x6a] sm:$0xff]
      %v8264 = vld [vmem:[%s577 + $0x7a] sm:$0xff]
      %v8265 = vld [vmem:[%s577 + $0x82] sm:$0xff]
      %v8266 = vld [vmem:[%s577 + $0x92] sm:$0xff]
      %v8267 = vld [vmem:[%s577 + $0x9a] sm:$0xff]
      %v8268 = vld [vmem:[%s577 + $0xaa] sm:$0xff]
      %v8269 = vld [vmem:[%s577 + $0xb2] sm:$0xff]
      %v8270 = vld [vmem:[%s577 + $0xc2] sm:$0xff]
      %v8271 = vld [vmem:[%s577 + $0xca] sm:$0xff]
      %v8272 = vld [vmem:[%s577 + $0xda] sm:$0xff]
      %v8273 = vld [vmem:[%s577 + $0xe2] sm:$0xff]
      %v8274 = vld [vmem:[%s577 + $0xf2] sm:$0xff]
      %v8275 = vld [vmem:[%s577 + $0xfa] sm:$0xff]
      %v8276 = vld [vmem:[%s577 + $0x10a] sm:$0xff]
      %v8277 = vld [vmem:[%s577 + $0x112] sm:$0xff]
      %v8278 = vld [vmem:[%s577 + $0x122] sm:$0xff]
      %v8279 = vld [vmem:[%s577 + $0x12a] sm:$0xff]
      %v8280 = vld [vmem:[%s577 + $0x13a] sm:$0xff]
      %v8281 = vld [vmem:[%s577 + $0x142] sm:$0xff]
      %v8282 = vld [vmem:[%s577 + $0x152] sm:$0xff]
      %v8283 = vld [vmem:[%s577 + $0x15a] sm:$0xff]
      %v8284 = vld [vmem:[%s577 + $0x16a] sm:$0xff]
      %v8285 = vld [vmem:[%s577 + $0x172] sm:$0xff]
      %8318 = vrot.lane.b32.xlu0 %v8030, 32
      %v8319 = vpop.permute.xlu0 %8318
      %8320 = vrot.lane.b32.xlu0 %v8031, 32
      %v8321 = vpop.permute.xlu0 %8320
      %8322 = vrot.lane.b32.xlu0 %v8032, 32
      %v8323 = vpop.permute.xlu0 %8322
      %8324 = vrot.lane.b32.xlu0 %v8033, 32
      %v8325 = vpop.permute.xlu0 %8324
      %8326 = vrot.lane.b32.xlu0 %v8034, 32
      %v8327 = vpop.permute.xlu0 %8326
      %8328 = vrot.lane.b32.xlu0 %v8035, 32
      %v8329 = vpop.permute.xlu0 %8328
      %8330 = vrot.lane.b32.xlu0 %v8036, 32
      %v8331 = vpop.permute.xlu0 %8330
      %8332 = vrot.lane.b32.xlu0 %v8037, 32
      %v8333 = vpop.permute.xlu0 %8332
      %8334 = vrot.lane.b32.xlu0 %v8038, 32
      %v8335 = vpop.permute.xlu0 %8334
      %8336 = vrot.lane.b32.xlu0 %v8039, 32
      %v8337 = vpop.permute.xlu0 %8336
      %8338 = vrot.lane.b32.xlu0 %v8040, 32
      %v8339 = vpop.permute.xlu0 %8338
      %8340 = vrot.lane.b32.xlu0 %v8041, 32
      %v8341 = vpop.permute.xlu0 %8340
      %8342 = vrot.lane.b32.xlu0 %v8042, 32
      %v8343 = vpop.permute.xlu0 %8342
      %8344 = vrot.lane.b32.xlu0 %v8043, 32
      %v8345 = vpop.permute.xlu0 %8344
      %8346 = vrot.lane.b32.xlu0 %v8044, 32
      %v8347 = vpop.permute.xlu0 %8346
      %8348 = vrot.lane.b32.xlu0 %v8045, 32
      %v8349 = vpop.permute.xlu0 %8348
      %8350 = vrot.lane.b32.xlu0 %v8046, 32
      %v8351 = vpop.permute.xlu0 %8350
      %8352 = vrot.lane.b32.xlu0 %v8047, 32
      %v8353 = vpop.permute.xlu0 %8352
      %8354 = vrot.lane.b32.xlu0 %v8048, 32
      %v8355 = vpop.permute.xlu0 %8354
      %8356 = vrot.lane.b32.xlu0 %v8049, 32
      %v8357 = vpop.permute.xlu0 %8356
      %8358 = vrot.lane.b32.xlu0 %v8050, 32
      %v8359 = vpop.permute.xlu0 %8358
      %8360 = vrot.lane.b32.xlu0 %v8051, 32
      %v8361 = vpop.permute.xlu0 %8360
      %8362 = vrot.lane.b32.xlu0 %v8052, 32
      %v8363 = vpop.permute.xlu0 %8362
      %8364 = vrot.lane.b32.xlu0 %v8053, 32
      %v8365 = vpop.permute.xlu0 %8364
      %8366 = vrot.lane.b32.xlu0 %v8054, 32
      %v8367 = vpop.permute.xlu0 %8366
      %8368 = vrot.lane.b32.xlu0 %v8055, 32
      %v8369 = vpop.permute.xlu0 %8368
      %8370 = vrot.lane.b32.xlu0 %v8056, 32
      %v8371 = vpop.permute.xlu0 %8370
      %8372 = vrot.lane.b32.xlu0 %v8057, 32
      %v8373 = vpop.permute.xlu0 %8372
      %8374 = vrot.lane.b32.xlu0 %v8058, 32
      %v8375 = vpop.permute.xlu0 %8374
      %8376 = vrot.lane.b32.xlu0 %v8059, 32
      %v8377 = vpop.permute.xlu0 %8376
      %8378 = vrot.lane.b32.xlu0 %v8060, 32
      %v8379 = vpop.permute.xlu0 %8378
      %8380 = vrot.lane.b32.xlu0 %v8061, 32
      %v8381 = vpop.permute.xlu0 %8380
      %8446 = vrot.lane.b32.xlu0 %v8062, 64
      %v8447 = vpop.permute.xlu0 %8446
      %8448 = vrot.lane.b32.xlu0 %v8063, 64
      %v8449 = vpop.permute.xlu0 %8448
      %8450 = vrot.lane.b32.xlu0 %v8064, 64
      %v8451 = vpop.permute.xlu0 %8450
      %8452 = vrot.lane.b32.xlu0 %v8065, 64
      %v8453 = vpop.permute.xlu0 %8452
      %8454 = vrot.lane.b32.xlu0 %v8066, 64
      %v8455 = vpop.permute.xlu0 %8454
      %8456 = vrot.lane.b32.xlu0 %v8067, 64
      %v8457 = vpop.permute.xlu0 %8456
      %8458 = vrot.lane.b32.xlu0 %v8068, 64
      %v8459 = vpop.permute.xlu0 %8458
      %8460 = vrot.lane.b32.xlu0 %v8069, 64
      %v8461 = vpop.permute.xlu0 %8460
      %8462 = vrot.lane.b32.xlu0 %v8070, 64
      %v8463 = vpop.permute.xlu0 %8462
      %8464 = vrot.lane.b32.xlu0 %v8071, 64
      %v8465 = vpop.permute.xlu0 %8464
      %8466 = vrot.lane.b32.xlu0 %v8072, 64
      %v8467 = vpop.permute.xlu0 %8466
      %8468 = vrot.lane.b32.xlu0 %v8073, 64
      %v8469 = vpop.permute.xlu0 %8468
      %8470 = vrot.lane.b32.xlu0 %v8074, 64
      %v8471 = vpop.permute.xlu0 %8470
      %8472 = vrot.lane.b32.xlu0 %v8075, 64
      %v8473 = vpop.permute.xlu0 %8472
      %8474 = vrot.lane.b32.xlu0 %v8076, 64
      %v8475 = vpop.permute.xlu0 %8474
      %8476 = vrot.lane.b32.xlu0 %v8077, 64
      %v8477 = vpop.permute.xlu0 %8476
      %8478 = vrot.lane.b32.xlu0 %v8078, 64
      %v8479 = vpop.permute.xlu0 %8478
      %8480 = vrot.lane.b32.xlu0 %v8079, 64
      %v8481 = vpop.permute.xlu0 %8480
      %8482 = vrot.lane.b32.xlu0 %v8080, 64
      %v8483 = vpop.permute.xlu0 %8482
      %8484 = vrot.lane.b32.xlu0 %v8081, 64
      %v8485 = vpop.permute.xlu0 %8484
      %8486 = vrot.lane.b32.xlu0 %v8082, 64
      %v8487 = vpop.permute.xlu0 %8486
      %8488 = vrot.lane.b32.xlu0 %v8083, 64
      %v8489 = vpop.permute.xlu0 %8488
      %8490 = vrot.lane.b32.xlu0 %v8084, 64
      %v8491 = vpop.permute.xlu0 %8490
      %8492 = vrot.lane.b32.xlu0 %v8085, 64
      %v8493 = vpop.permute.xlu0 %8492
      %8494 = vrot.lane.b32.xlu0 %v8086, 64
      %v8495 = vpop.permute.xlu0 %8494
      %8496 = vrot.lane.b32.xlu0 %v8087, 64
      %v8497 = vpop.permute.xlu0 %8496
      %8498 = vrot.lane.b32.xlu0 %v8088, 64
      %v8499 = vpop.permute.xlu0 %8498
      %8500 = vrot.lane.b32.xlu0 %v8089, 64
      %v8501 = vpop.permute.xlu0 %8500
      %8502 = vrot.lane.b32.xlu0 %v8090, 64
      %v8503 = vpop.permute.xlu0 %8502
      %8504 = vrot.lane.b32.xlu0 %v8091, 64
      %v8505 = vpop.permute.xlu0 %8504
      %8506 = vrot.lane.b32.xlu0 %v8092, 64
      %v8507 = vpop.permute.xlu0 %8506
      %8508 = vrot.lane.b32.xlu0 %v8093, 64
      %v8509 = vpop.permute.xlu0 %8508
      %8574 = vrot.lane.b32.xlu0 %v8094, 96
      %v8575 = vpop.permute.xlu0 %8574
      %8576 = vrot.lane.b32.xlu0 %v8095, 96
      %v8577 = vpop.permute.xlu0 %8576
      %8578 = vrot.lane.b32.xlu0 %v8096, 96
      %v8579 = vpop.permute.xlu0 %8578
      %8580 = vrot.lane.b32.xlu0 %v8097, 96
      %v8581 = vpop.permute.xlu0 %8580
      %8582 = vrot.lane.b32.xlu0 %v8098, 96
      %v8583 = vpop.permute.xlu0 %8582
      %8584 = vrot.lane.b32.xlu0 %v8099, 96
      %v8585 = vpop.permute.xlu0 %8584
      %8586 = vrot.lane.b32.xlu0 %v8100, 96
      %v8587 = vpop.permute.xlu0 %8586
      %8588 = vrot.lane.b32.xlu0 %v8101, 96
      %v8589 = vpop.permute.xlu0 %8588
      %8590 = vrot.lane.b32.xlu0 %v8102, 96
      %v8591 = vpop.permute.xlu0 %8590
      %8592 = vrot.lane.b32.xlu0 %v8103, 96
      %v8593 = vpop.permute.xlu0 %8592
      %8594 = vrot.lane.b32.xlu0 %v8104, 96
      %v8595 = vpop.permute.xlu0 %8594
      %8596 = vrot.lane.b32.xlu0 %v8105, 96
      %v8597 = vpop.permute.xlu0 %8596
      %8598 = vrot.lane.b32.xlu0 %v8106, 96
      %v8599 = vpop.permute.xlu0 %8598
      %8600 = vrot.lane.b32.xlu0 %v8107, 96
      %v8601 = vpop.permute.xlu0 %8600
      %8602 = vrot.lane.b32.xlu0 %v8108, 96
      %v8603 = vpop.permute.xlu0 %8602
      %8604 = vrot.lane.b32.xlu0 %v8109, 96
      %v8605 = vpop.permute.xlu0 %8604
      %8606 = vrot.lane.b32.xlu0 %v8110, 96
      %v8607 = vpop.permute.xlu0 %8606
      %8608 = vrot.lane.b32.xlu0 %v8111, 96
      %v8609 = vpop.permute.xlu0 %8608
      %8610 = vrot.lane.b32.xlu0 %v8112, 96
      %v8611 = vpop.permute.xlu0 %8610
      %8612 = vrot.lane.b32.xlu0 %v8113, 96
      %v8613 = vpop.permute.xlu0 %8612
      %8614 = vrot.lane.b32.xlu0 %v8114, 96
      %v8615 = vpop.permute.xlu0 %8614
      %8616 = vrot.lane.b32.xlu0 %v8115, 96
      %v8617 = vpop.permute.xlu0 %8616
      %8618 = vrot.lane.b32.xlu0 %v8116, 96
      %v8619 = vpop.permute.xlu0 %8618
      %8620 = vrot.lane.b32.xlu0 %v8117, 96
      %v8621 = vpop.permute.xlu0 %8620
      %8622 = vrot.lane.b32.xlu0 %v8118, 96
      %v8623 = vpop.permute.xlu0 %8622
      %8624 = vrot.lane.b32.xlu0 %v8119, 96
      %v8625 = vpop.permute.xlu0 %8624
      %8626 = vrot.lane.b32.xlu0 %v8120, 96
      %v8627 = vpop.permute.xlu0 %8626
      %8628 = vrot.lane.b32.xlu0 %v8121, 96
      %v8629 = vpop.permute.xlu0 %8628
      %8630 = vrot.lane.b32.xlu0 %v8122, 96
      %v8631 = vpop.permute.xlu0 %8630
      %8632 = vrot.lane.b32.xlu0 %v8123, 96
      %v8633 = vpop.permute.xlu0 %8632
      %8634 = vrot.lane.b32.xlu0 %v8124, 96
      %v8635 = vpop.permute.xlu0 %8634
      %8636 = vrot.lane.b32.xlu0 %v8125, 96
      %v8637 = vpop.permute.xlu0 %8636
      %8702 = vrot.lane.b32.xlu0 %v8158, 32
      %v8703 = vpop.permute.xlu0 %8702
      %8704 = vrot.lane.b32.xlu0 %v8159, 32
      %v8705 = vpop.permute.xlu0 %8704
      %8706 = vrot.lane.b32.xlu0 %v8160, 32
      %v8707 = vpop.permute.xlu0 %8706
      %8708 = vrot.lane.b32.xlu0 %v8161, 32
      %v8709 = vpop.permute.xlu0 %8708
      %8710 = vrot.lane.b32.xlu0 %v8162, 32
      %v8711 = vpop.permute.xlu0 %8710
      %8712 = vrot.lane.b32.xlu0 %v8163, 32
      %v8713 = vpop.permute.xlu0 %8712
      %8714 = vrot.lane.b32.xlu0 %v8164, 32
      %v8715 = vpop.permute.xlu0 %8714
      %8716 = vrot.lane.b32.xlu0 %v8165, 32
      %v8717 = vpop.permute.xlu0 %8716
      %8718 = vrot.lane.b32.xlu0 %v8166, 32
      %v8719 = vpop.permute.xlu0 %8718
      %8720 = vrot.lane.b32.xlu0 %v8167, 32
      %v8721 = vpop.permute.xlu0 %8720
      %8722 = vrot.lane.b32.xlu0 %v8168, 32
      %v8723 = vpop.permute.xlu0 %8722
      %8724 = vrot.lane.b32.xlu0 %v8169, 32
      %v8725 = vpop.permute.xlu0 %8724
      %8726 = vrot.lane.b32.xlu0 %v8170, 32
      %v8727 = vpop.permute.xlu0 %8726
      %8728 = vrot.lane.b32.xlu0 %v8171, 32
      %v8729 = vpop.permute.xlu0 %8728
      %8730 = vrot.lane.b32.xlu0 %v8172, 32
      %v8731 = vpop.permute.xlu0 %8730
      %8732 = vrot.lane.b32.xlu0 %v8173, 32
      %v8733 = vpop.permute.xlu0 %8732
      %8734 = vrot.lane.b32.xlu0 %v8174, 32
      %v8735 = vpop.permute.xlu0 %8734
      %8736 = vrot.lane.b32.xlu0 %v8175, 32
      %v8737 = vpop.permute.xlu0 %8736
      %8738 = vrot.lane.b32.xlu0 %v8176, 32
      %v8739 = vpop.permute.xlu0 %8738
      %8740 = vrot.lane.b32.xlu0 %v8177, 32
      %v8741 = vpop.permute.xlu0 %8740
      %8742 = vrot.lane.b32.xlu0 %v8178, 32
      %v8743 = vpop.permute.xlu0 %8742
      %8744 = vrot.lane.b32.xlu0 %v8179, 32
      %v8745 = vpop.permute.xlu0 %8744
      %8746 = vrot.lane.b32.xlu0 %v8180, 32
      %v8747 = vpop.permute.xlu0 %8746
      %8748 = vrot.lane.b32.xlu0 %v8181, 32
      %v8749 = vpop.permute.xlu0 %8748
      %8750 = vrot.lane.b32.xlu0 %v8182, 32
      %v8751 = vpop.permute.xlu0 %8750
      %8752 = vrot.lane.b32.xlu0 %v8183, 32
      %v8753 = vpop.permute.xlu0 %8752
      %8754 = vrot.lane.b32.xlu0 %v8184, 32
      %v8755 = vpop.permute.xlu0 %8754
      %8756 = vrot.lane.b32.xlu0 %v8185, 32
      %v8757 = vpop.permute.xlu0 %8756
      %8758 = vrot.lane.b32.xlu0 %v8186, 32
      %v8759 = vpop.permute.xlu0 %8758
      %8760 = vrot.lane.b32.xlu0 %v8187, 32
      %v8761 = vpop.permute.xlu0 %8760
      %8762 = vrot.lane.b32.xlu0 %v8188, 32
      %v8763 = vpop.permute.xlu0 %8762
      %8764 = vrot.lane.b32.xlu0 %v8189, 32
      %v8765 = vpop.permute.xlu0 %8764
      %8830 = vrot.lane.b32.xlu0 %v8190, 64
      %v8831 = vpop.permute.xlu0 %8830
      %8832 = vrot.lane.b32.xlu0 %v8191, 64
      %v8833 = vpop.permute.xlu0 %8832
      %8834 = vrot.lane.b32.xlu0 %v8192, 64
      %v8835 = vpop.permute.xlu0 %8834
      %8836 = vrot.lane.b32.xlu0 %v8193, 64
      %v8837 = vpop.permute.xlu0 %8836
      %8838 = vrot.lane.b32.xlu0 %v8194, 64
      %v8839 = vpop.permute.xlu0 %8838
      %8840 = vrot.lane.b32.xlu0 %v8195, 64
      %v8841 = vpop.permute.xlu0 %8840
      %8842 = vrot.lane.b32.xlu0 %v8196, 64
      %v8843 = vpop.permute.xlu0 %8842
      %8844 = vrot.lane.b32.xlu0 %v8197, 64
      %v8845 = vpop.permute.xlu0 %8844
      %8846 = vrot.lane.b32.xlu0 %v8198, 64
      %v8847 = vpop.permute.xlu0 %8846
      %8848 = vrot.lane.b32.xlu0 %v8199, 64
      %v8849 = vpop.permute.xlu0 %8848
      %8850 = vrot.lane.b32.xlu0 %v8200, 64
      %v8851 = vpop.permute.xlu0 %8850
      %8852 = vrot.lane.b32.xlu0 %v8201, 64
      %v8853 = vpop.permute.xlu0 %8852
      %8854 = vrot.lane.b32.xlu0 %v8202, 64
      %v8855 = vpop.permute.xlu0 %8854
      %8856 = vrot.lane.b32.xlu0 %v8203, 64
      %v8857 = vpop.permute.xlu0 %8856
      %8858 = vrot.lane.b32.xlu0 %v8204, 64
      %v8859 = vpop.permute.xlu0 %8858
      %8860 = vrot.lane.b32.xlu0 %v8205, 64
      %v8861 = vpop.permute.xlu0 %8860
      %8862 = vrot.lane.b32.xlu0 %v8206, 64
      %v8863 = vpop.permute.xlu0 %8862
      %8864 = vrot.lane.b32.xlu0 %v8207, 64
      %v8865 = vpop.permute.xlu0 %8864
      %8866 = vrot.lane.b32.xlu0 %v8208, 64
      %v8867 = vpop.permute.xlu0 %8866
      %8868 = vrot.lane.b32.xlu0 %v8209, 64
      %v8869 = vpop.permute.xlu0 %8868
      %8870 = vrot.lane.b32.xlu0 %v8210, 64
      %v8871 = vpop.permute.xlu0 %8870
      %8872 = vrot.lane.b32.xlu0 %v8211, 64
      %v8873 = vpop.permute.xlu0 %8872
      %8874 = vrot.lane.b32.xlu0 %v8212, 64
      %v8875 = vpop.permute.xlu0 %8874
      %8876 = vrot.lane.b32.xlu0 %v8213, 64
      %v8877 = vpop.permute.xlu0 %8876
      %8878 = vrot.lane.b32.xlu0 %v8214, 64
      %v8879 = vpop.permute.xlu0 %8878
      %8880 = vrot.lane.b32.xlu0 %v8215, 64
      %v8881 = vpop.permute.xlu0 %8880
      %8882 = vrot.lane.b32.xlu0 %v8216, 64
      %v8883 = vpop.permute.xlu0 %8882
      %8884 = vrot.lane.b32.xlu0 %v8217, 64
      %v8885 = vpop.permute.xlu0 %8884
      %8886 = vrot.lane.b32.xlu0 %v8218, 64
      %v8887 = vpop.permute.xlu0 %8886
      %8888 = vrot.lane.b32.xlu0 %v8219, 64
      %v8889 = vpop.permute.xlu0 %8888
      %8890 = vrot.lane.b32.xlu0 %v8220, 64
      %v8891 = vpop.permute.xlu0 %8890
      %8892 = vrot.lane.b32.xlu0 %v8221, 64
      %v8893 = vpop.permute.xlu0 %8892
      %8958 = vrot.lane.b32.xlu0 %v8222, 96
      %v8959 = vpop.permute.xlu0 %8958
      %8960 = vrot.lane.b32.xlu0 %v8223, 96
      %v8961 = vpop.permute.xlu0 %8960
      %8962 = vrot.lane.b32.xlu0 %v8224, 96
      %v8963 = vpop.permute.xlu0 %8962
      %8964 = vrot.lane.b32.xlu0 %v8225, 96
      %v8965 = vpop.permute.xlu0 %8964
      %8966 = vrot.lane.b32.xlu0 %v8226, 96
      %v8967 = vpop.permute.xlu0 %8966
      %8968 = vrot.lane.b32.xlu0 %v8227, 96
      %v8969 = vpop.permute.xlu0 %8968
      %8970 = vrot.lane.b32.xlu0 %v8228, 96
      %v8971 = vpop.permute.xlu0 %8970
      %8972 = vrot.lane.b32.xlu0 %v8229, 96
      %v8973 = vpop.permute.xlu0 %8972
      %8974 = vrot.lane.b32.xlu0 %v8230, 96
      %v8975 = vpop.permute.xlu0 %8974
      %8976 = vrot.lane.b32.xlu0 %v8231, 96
      %v8977 = vpop.permute.xlu0 %8976
      %8978 = vrot.lane.b32.xlu0 %v8232, 96
      %v8979 = vpop.permute.xlu0 %8978
      %8980 = vrot.lane.b32.xlu0 %v8233, 96
      %v8981 = vpop.permute.xlu0 %8980
      %8982 = vrot.lane.b32.xlu0 %v8234, 96
      %v8983 = vpop.permute.xlu0 %8982
      %8984 = vrot.lane.b32.xlu0 %v8235, 96
      %v8985 = vpop.permute.xlu0 %8984
      %8986 = vrot.lane.b32.xlu0 %v8236, 96
      %v8987 = vpop.permute.xlu0 %8986
      %8988 = vrot.lane.b32.xlu0 %v8237, 96
      %v8989 = vpop.permute.xlu0 %8988
      %8990 = vrot.lane.b32.xlu0 %v8238, 96
      %v8991 = vpop.permute.xlu0 %8990
      %8992 = vrot.lane.b32.xlu0 %v8239, 96
      %v8993 = vpop.permute.xlu0 %8992
      %8994 = vrot.lane.b32.xlu0 %v8240, 96
      %v8995 = vpop.permute.xlu0 %8994
      %8996 = vrot.lane.b32.xlu0 %v8241, 96
      %v8997 = vpop.permute.xlu0 %8996
      %8998 = vrot.lane.b32.xlu0 %v8242, 96
      %v8999 = vpop.permute.xlu0 %8998
      %9000 = vrot.lane.b32.xlu0 %v8243, 96
      %v9001 = vpop.permute.xlu0 %9000
      %9002 = vrot.lane.b32.xlu0 %v8244, 96
      %v9003 = vpop.permute.xlu0 %9002
      %9004 = vrot.lane.b32.xlu0 %v8245, 96
      %v9005 = vpop.permute.xlu0 %9004
      %9006 = vrot.lane.b32.xlu0 %v8246, 96
      %v9007 = vpop.permute.xlu0 %9006
      %9008 = vrot.lane.b32.xlu0 %v8247, 96
      %v9009 = vpop.permute.xlu0 %9008
      %9010 = vrot.lane.b32.xlu0 %v8248, 96
      %v9011 = vpop.permute.xlu0 %9010
      %9012 = vrot.lane.b32.xlu0 %v8249, 96
      %v9013 = vpop.permute.xlu0 %9012
      %9014 = vrot.lane.b32.xlu0 %v8250, 96
      %v9015 = vpop.permute.xlu0 %9014
      %9016 = vrot.lane.b32.xlu0 %v8251, 96
      %v9017 = vpop.permute.xlu0 %9016
      %9018 = vrot.lane.b32.xlu0 %v8252, 96
      %v9019 = vpop.permute.xlu0 %9018
      %9020 = vrot.lane.b32.xlu0 %v8253, 96
      %v9021 = vpop.permute.xlu0 %9020
      %v9054 = vsel %vm225, %v7998, %v8319
      %v9055 = vsel %vm225, %v7999, %v8321
      %v9056 = vsel %vm225, %v8000, %v8323
      %v9057 = vsel %vm225, %v8001, %v8325
      %v9058 = vsel %vm225, %v8002, %v8327
      %v9059 = vsel %vm225, %v8003, %v8329
      %v9060 = vsel %vm225, %v8004, %v8331
      %v9061 = vsel %vm225, %v8005, %v8333
      %v9062 = vsel %vm225, %v8006, %v8335
      %v9063 = vsel %vm225, %v8007, %v8337
      %v9064 = vsel %vm225, %v8008, %v8339
      %v9065 = vsel %vm225, %v8009, %v8341
      %v9066 = vsel %vm225, %v8010, %v8343
      %v9067 = vsel %vm225, %v8011, %v8345
      %v9068 = vsel %vm225, %v8012, %v8347
      %v9069 = vsel %vm225, %v8013, %v8349
      %v9070 = vsel %vm225, %v8014, %v8351
      %v9071 = vsel %vm225, %v8015, %v8353
      %v9072 = vsel %vm225, %v8016, %v8355
      %v9073 = vsel %vm225, %v8017, %v8357
      %v9074 = vsel %vm225, %v8018, %v8359
      %v9075 = vsel %vm225, %v8019, %v8361
      %v9076 = vsel %vm225, %v8020, %v8363
      %v9077 = vsel %vm225, %v8021, %v8365
      %v9078 = vsel %vm225, %v8022, %v8367
      %v9079 = vsel %vm225, %v8023, %v8369
      %v9080 = vsel %vm225, %v8024, %v8371
      %v9081 = vsel %vm225, %v8025, %v8373
      %v9082 = vsel %vm225, %v8026, %v8375
      %v9083 = vsel %vm225, %v8027, %v8377
      %v9084 = vsel %vm225, %v8028, %v8379
      %v9085 = vsel %vm225, %v8029, %v8381
      %v9086 = vsel %vm1474, %v9054, %v8447
      %v9087 = vsel %vm1474, %v9055, %v8449
      %v9088 = vsel %vm1474, %v9056, %v8451
      %v9089 = vsel %vm1474, %v9057, %v8453
      %v9090 = vsel %vm1474, %v9058, %v8455
      %v9091 = vsel %vm1474, %v9059, %v8457
      %v9092 = vsel %vm1474, %v9060, %v8459
      %v9093 = vsel %vm1474, %v9061, %v8461
      %v9094 = vsel %vm1474, %v9062, %v8463
      %v9095 = vsel %vm1474, %v9063, %v8465
      %v9096 = vsel %vm1474, %v9064, %v8467
      %v9097 = vsel %vm1474, %v9065, %v8469
      %v9098 = vsel %vm1474, %v9066, %v8471
      %v9099 = vsel %vm1474, %v9067, %v8473
      %v9100 = vsel %vm1474, %v9068, %v8475
      %v9101 = vsel %vm1474, %v9069, %v8477
      %v9102 = vsel %vm1474, %v9070, %v8479
      %v9103 = vsel %vm1474, %v9071, %v8481
      %v9104 = vsel %vm1474, %v9072, %v8483
      %v9105 = vsel %vm1474, %v9073, %v8485
      %v9106 = vsel %vm1474, %v9074, %v8487
      %v9107 = vsel %vm1474, %v9075, %v8489
      %v9108 = vsel %vm1474, %v9076, %v8491
      %v9109 = vsel %vm1474, %v9077, %v8493
      %v9110 = vsel %vm1474, %v9078, %v8495
      %v9111 = vsel %vm1474, %v9079, %v8497
      %v9112 = vsel %vm1474, %v9080, %v8499
      %v9113 = vsel %vm1474, %v9081, %v8501
      %v9114 = vsel %vm1474, %v9082, %v8503
      %v9115 = vsel %vm1474, %v9083, %v8505
      %v9116 = vsel %vm1474, %v9084, %v8507
      %v9117 = vsel %vm1474, %v9085, %v8509
      %v9118 = vsel %vm1507, %v9086, %v8575
      %v9119 = vsel %vm1507, %v9087, %v8577
      %v9120 = vsel %vm1507, %v9088, %v8579
      %v9121 = vsel %vm1507, %v9089, %v8581
      %v9122 = vsel %vm1507, %v9090, %v8583
      %v9123 = vsel %vm1507, %v9091, %v8585
      %v9124 = vsel %vm1507, %v9092, %v8587
      %v9125 = vsel %vm1507, %v9093, %v8589
      %v9126 = vsel %vm1507, %v9094, %v8591
      %v9127 = vsel %vm1507, %v9095, %v8593
      %v9128 = vsel %vm1507, %v9096, %v8595
      %v9129 = vsel %vm1507, %v9097, %v8597
      %v9130 = vsel %vm1507, %v9098, %v8599
      %v9131 = vsel %vm1507, %v9099, %v8601
      %v9132 = vsel %vm1507, %v9100, %v8603
      %v9133 = vsel %vm1507, %v9101, %v8605
      %v9134 = vsel %vm1507, %v9102, %v8607
      %v9135 = vsel %vm1507, %v9103, %v8609
      %v9136 = vsel %vm1507, %v9104, %v8611
      %v9137 = vsel %vm1507, %v9105, %v8613
      %v9138 = vsel %vm1507, %v9106, %v8615
      %v9139 = vsel %vm1507, %v9107, %v8617
      %v9140 = vsel %vm1507, %v9108, %v8619
      %v9141 = vsel %vm1507, %v9109, %v8621
      %v9142 = vsel %vm1507, %v9110, %v8623
      %v9143 = vsel %vm1507, %v9111, %v8625
      %v9144 = vsel %vm1507, %v9112, %v8627
      %v9145 = vsel %vm1507, %v9113, %v8629
      %v9146 = vsel %vm1507, %v9114, %v8631
      %v9147 = vsel %vm1507, %v9115, %v8633
      %v9148 = vsel %vm1507, %v9116, %v8635
      %v9149 = vsel %vm1507, %v9117, %v8637
      %v9150 = vsel %vm225, %v8126, %v8703
      %v9151 = vsel %vm225, %v8127, %v8705
      %v9152 = vsel %vm225, %v8128, %v8707
      %v9153 = vsel %vm225, %v8129, %v8709
      %v9154 = vsel %vm225, %v8130, %v8711
      %v9155 = vsel %vm225, %v8131, %v8713
      %v9156 = vsel %vm225, %v8132, %v8715
      %v9157 = vsel %vm225, %v8133, %v8717
      %v9158 = vsel %vm225, %v8134, %v8719
      %v9159 = vsel %vm225, %v8135, %v8721
      %v9160 = vsel %vm225, %v8136, %v8723
      %v9161 = vsel %vm225, %v8137, %v8725
      %v9162 = vsel %vm225, %v8138, %v8727
      %v9163 = vsel %vm225, %v8139, %v8729
      %v9164 = vsel %vm225, %v8140, %v8731
      %v9165 = vsel %vm225, %v8141, %v8733
      %v9166 = vsel %vm225, %v8142, %v8735
      %v9167 = vsel %vm225, %v8143, %v8737
      %v9168 = vsel %vm225, %v8144, %v8739
      %v9169 = vsel %vm225, %v8145, %v8741
      %v9170 = vsel %vm225, %v8146, %v8743
      %v9171 = vsel %vm225, %v8147, %v8745
      %v9172 = vsel %vm225, %v8148, %v8747
      %v9173 = vsel %vm225, %v8149, %v8749
      %v9174 = vsel %vm225, %v8150, %v8751
      %v9175 = vsel %vm225, %v8151, %v8753
      %v9176 = vsel %vm225, %v8152, %v8755
      %v9177 = vsel %vm225, %v8153, %v8757
      %v9178 = vsel %vm225, %v8154, %v8759
      %v9179 = vsel %vm225, %v8155, %v8761
      %v9180 = vsel %vm225, %v8156, %v8763
      %v9181 = vsel %vm225, %v8157, %v8765
      %v9182 = vsel %vm1474, %v9150, %v8831
      %v9183 = vsel %vm1474, %v9151, %v8833
      %v9184 = vsel %vm1474, %v9152, %v8835
      %v9185 = vsel %vm1474, %v9153, %v8837
      %v9186 = vsel %vm1474, %v9154, %v8839
      %v9187 = vsel %vm1474, %v9155, %v8841
      %v9188 = vsel %vm1474, %v9156, %v8843
      %v9189 = vsel %vm1474, %v9157, %v8845
      %v9190 = vsel %vm1474, %v9158, %v8847
      %v9191 = vsel %vm1474, %v9159, %v8849
      %v9192 = vsel %vm1474, %v9160, %v8851
      %v9193 = vsel %vm1474, %v9161, %v8853
      %v9194 = vsel %vm1474, %v9162, %v8855
      %v9195 = vsel %vm1474, %v9163, %v8857
      %v9196 = vsel %vm1474, %v9164, %v8859
      %v9197 = vsel %vm1474, %v9165, %v8861
      %v9198 = vsel %vm1474, %v9166, %v8863
      %v9199 = vsel %vm1474, %v9167, %v8865
      %v9200 = vsel %vm1474, %v9168, %v8867
      %v9201 = vsel %vm1474, %v9169, %v8869
      %v9202 = vsel %vm1474, %v9170, %v8871
      %v9203 = vsel %vm1474, %v9171, %v8873
      %v9204 = vsel %vm1474, %v9172, %v8875
      %v9205 = vsel %vm1474, %v9173, %v8877
      %v9206 = vsel %vm1474, %v9174, %v8879
      %v9207 = vsel %vm1474, %v9175, %v8881
      %v9208 = vsel %vm1474, %v9176, %v8883
      %v9209 = vsel %vm1474, %v9177, %v8885
      %v9210 = vsel %vm1474, %v9178, %v8887
      %v9211 = vsel %vm1474, %v9179, %v8889
      %v9212 = vsel %vm1474, %v9180, %v8891
      %v9213 = vsel %vm1474, %v9181, %v8893
      %v9214 = vsel %vm1507, %v9182, %v8959
      %v9215 = vsel %vm1507, %v9183, %v8961
      %v9216 = vsel %vm1507, %v9184, %v8963
      %v9217 = vsel %vm1507, %v9185, %v8965
      %v9218 = vsel %vm1507, %v9186, %v8967
      %v9219 = vsel %vm1507, %v9187, %v8969
      %v9220 = vsel %vm1507, %v9188, %v8971
      %v9221 = vsel %vm1507, %v9189, %v8973
      %v9222 = vsel %vm1507, %v9190, %v8975
      %v9223 = vsel %vm1507, %v9191, %v8977
      %v9224 = vsel %vm1507, %v9192, %v8979
      %v9225 = vsel %vm1507, %v9193, %v8981
      %v9226 = vsel %vm1507, %v9194, %v8983
      %v9227 = vsel %vm1507, %v9195, %v8985
      %v9228 = vsel %vm1507, %v9196, %v8987
      %v9229 = vsel %vm1507, %v9197, %v8989
      %v9230 = vsel %vm1507, %v9198, %v8991
      %v9231 = vsel %vm1507, %v9199, %v8993
      %v9232 = vsel %vm1507, %v9200, %v8995
      %v9233 = vsel %vm1507, %v9201, %v8997
      %v9234 = vsel %vm1507, %v9202, %v8999
      %v9235 = vsel %vm1507, %v9203, %v9001
      %v9236 = vsel %vm1507, %v9204, %v9003
      %v9237 = vsel %vm1507, %v9205, %v9005
      %v9238 = vsel %vm1507, %v9206, %v9007
      %v9239 = vsel %vm1507, %v9207, %v9009
      %v9240 = vsel %vm1507, %v9208, %v9011
      %v9241 = vsel %vm1507, %v9209, %v9013
      %v9242 = vsel %vm1507, %v9210, %v9015
      %v9243 = vsel %vm1507, %v9211, %v9017
      %v9244 = vsel %vm1507, %v9212, %v9019
      %v9245 = vsel %vm1507, %v9213, %v9021
      %s9246 = scalar_lea.vmem %s1, 1152
      %v9247 = vld [vmem:[%s9246] sm:$0xff]
      %v9248 = vld [vmem:[%s9246 + $0x8] sm:$0xff]
      %v9249 = vld [vmem:[%s9246 + $0x10] sm:$0xff]
      %v9250 = vld [vmem:[%s9246 + $0x18] sm:$0xff]
      %v9251 = vld [vmem:[%s9246 + $0x20] sm:$0xff]
      %v9252 = vld [vmem:[%s9246 + $0x28] sm:$0xff]
      %v9253 = vld [vmem:[%s9246 + $0x30] sm:$0xff]
      %v9254 = vld [vmem:[%s9246 + $0x38] sm:$0xff]
      %v9255 = vld [vmem:[%s9246 + $0x40] sm:$0xff]
      %v9256 = vld [vmem:[%s9246 + $0x48] sm:$0xff]
      %v9257 = vld [vmem:[%s9246 + $0x50] sm:$0xff]
      %v9258 = vld [vmem:[%s9246 + $0x58] sm:$0xff]
      %v9259 = vld [vmem:[%s9246 + $0x60] sm:$0xff]
      %v9260 = vld [vmem:[%s9246 + $0x68] sm:$0xff]
      %v9261 = vld [vmem:[%s9246 + $0x70] sm:$0xff]
      %v9262 = vld [vmem:[%s9246 + $0x78] sm:$0xff]
      %v9263 = vld [vmem:[%s9246 + $0x80] sm:$0xff]
      %v9264 = vld [vmem:[%s9246 + $0x88] sm:$0xff]
      %v9265 = vld [vmem:[%s9246 + $0x90] sm:$0xff]
      %v9266 = vld [vmem:[%s9246 + $0x98] sm:$0xff]
      %v9267 = vld [vmem:[%s9246 + $0xa0] sm:$0xff]
      %v9268 = vld [vmem:[%s9246 + $0xa8] sm:$0xff]
      %v9269 = vld [vmem:[%s9246 + $0xb0] sm:$0xff]
      %v9270 = vld [vmem:[%s9246 + $0xb8] sm:$0xff]
      %v9271 = vld [vmem:[%s9246 + $0xc0] sm:$0xff]
      %v9272 = vld [vmem:[%s9246 + $0xc8] sm:$0xff]
      %v9273 = vld [vmem:[%s9246 + $0xd0] sm:$0xff]
      %v9274 = vld [vmem:[%s9246 + $0xd8] sm:$0xff]
      %v9275 = vld [vmem:[%s9246 + $0xe0] sm:$0xff]
      %v9276 = vld [vmem:[%s9246 + $0xe8] sm:$0xff]
      %v9277 = vld [vmem:[%s9246 + $0xf0] sm:$0xff]
      %v9278 = vld [vmem:[%s9246 + $0xf8] sm:$0xff]
      %v9279 = vld [vmem:[%s9246 + $0x100] sm:$0xff]
      %v9280 = vld [vmem:[%s9246 + $0x108] sm:$0xff]
      %v9281 = vld [vmem:[%s9246 + $0x110] sm:$0xff]
      %v9282 = vld [vmem:[%s9246 + $0x118] sm:$0xff]
      %s9283 = scalar_lea.vmem %s2, 4
      %v9284 = vld [vmem:[%s9283] sm:$0x1]
      %v9286 = vlaneseq
      %v9287 = vshrl.u32 %v9286, 7
      %v9288 = vsub.s32 0, %v9287
      %v9289 = vrot.slane %v9284, %v9288
      %v9292 = vsel %vm225, %v8254, 0
      %v9295 = vsel %vm225, %v8255, 0
      %v9298 = vsel %vm225, %v8256, 0
      %v9301 = vsel %vm225, %v8257, 0
      %v9304 = vsel %vm225, %v8258, 0
      %v9307 = vsel %vm225, %v8259, 0
      %v9310 = vsel %vm225, %v8260, 0
      %v9313 = vsel %vm225, %v8261, 0
      %v9316 = vsel %vm225, %v8262, 0
      %v9319 = vsel %vm225, %v8263, 0
      %v9322 = vsel %vm225, %v8264, 0
      %v9325 = vsel %vm225, %v8265, 0
      %v9328 = vsel %vm225, %v8266, 0
      %v9331 = vsel %vm225, %v8267, 0
      %v9334 = vsel %vm225, %v8268, 0
      %v9337 = vsel %vm225, %v8269, 0
      %v9340 = vsel %vm225, %v8270, 0
      %v9343 = vsel %vm225, %v8271, 0
      %v9346 = vsel %vm225, %v8272, 0
      %v9349 = vsel %vm225, %v8273, 0
      %v9352 = vsel %vm225, %v8274, 0
      %v9355 = vsel %vm225, %v8275, 0
      %v9358 = vsel %vm225, %v8276, 0
      %v9361 = vsel %vm225, %v8277, 0
      %v9364 = vsel %vm225, %v8278, 0
      %v9367 = vsel %vm225, %v8279, 0
      %v9370 = vsel %vm225, %v8280, 0
      %v9373 = vsel %vm225, %v8281, 0
      %v9376 = vsel %vm225, %v8282, 0
      %v9379 = vsel %vm225, %v8283, 0
      %v9382 = vsel %vm225, %v8284, 0
      %v9385 = vsel %vm225, %v8285, 0
      %9387 = vmatprep.subr.mxu0 0.0
      %9388 = vmatpush1.msra.mxu0 %v9247
      %9389 = vmatprep.subr.mxu0 0.0
      %9390 = vmatpush1.msra.mxu0 %v9248
      %9391 = vmatprep.subr.mxu0 0.0
      %9392 = vmatpush1.msra.mxu0 %v9249
      %9393 = vmatprep.subr.mxu0 0.0
      %9394 = vmatpush1.msra.mxu0 %v9250
      %9395 = vmatprep.subr.mxu0 0.0
      %9396 = vmatpush1.msra.mxu0 %v9251
      %9397 = vmatprep.subr.mxu0 0.0
      %9398 = vmatpush1.msra.mxu0 %v9252
      %9399 = vmatprep.subr.mxu0 0.0
      %9400 = vmatpush1.msra.mxu0 %v9253
      %9401 = vmatprep.subr.mxu0 0.0
      %9402 = vmatpush1.msra.mxu0 %v9254
      %9403 = vmatprep.subr.mxu0 0.0
      %9404 = vmatpush1.msra.mxu0 %v9255
      %9405 = vmatprep.subr.mxu0 0.0
      %9406 = vmatpush1.msra.mxu0 %v9256
      %9407 = vmatprep.subr.mxu0 0.0
      %9408 = vmatpush1.msra.mxu0 %v9257
      %9409 = vmatprep.subr.mxu0 0.0
      %9410 = vmatpush1.msra.mxu0 %v9258
      %9411 = vmatprep.subr.mxu0 0.0
      %9412 = vmatpush1.msra.mxu0 %v9259
      %9413 = vmatprep.subr.mxu0 0.0
      %9414 = vmatpush1.msra.mxu0 %v9260
      %9415 = vmatprep.subr.mxu0 0.0
      %9416 = vmatpush1.msra.mxu0 %v9261
      %9417 = vmatprep.subr.mxu0 0.0
      %9418 = vmatpush1.msra.mxu0 %v9262
      %9419 = vmatprep.subr.mxu0 0.0
      %9420 = vmatpush1.msra.mxu0 %v9263
      %9421 = vmatprep.subr.mxu0 0.0
      %9422 = vmatpush1.msra.mxu0 %v9264
      %9423 = vmatprep.subr.mxu0 0.0
      %9424 = vmatpush1.msra.mxu0 %v9265
      %9425 = vmatprep.subr.mxu0 0.0
      %9426 = vmatpush1.msra.mxu0 %v9266
      %9427 = vmatprep.subr.mxu0 0.0
      %9428 = vmatpush1.msra.mxu0 %v9267
      %9429 = vmatprep.subr.mxu0 0.0
      %9430 = vmatpush1.msra.mxu0 %v9268
      %9431 = vmatprep.subr.mxu0 0.0
      %9432 = vmatpush1.msra.mxu0 %v9269
      %9433 = vmatprep.subr.mxu0 0.0
      %9434 = vmatpush1.msra.mxu0 %v9270
      %9435 = vmatprep.subr.mxu0 0.0
      %9436 = vmatpush1.msra.mxu0 %v9271
      %9437 = vmatprep.subr.mxu0 0.0
      %9438 = vmatpush1.msra.mxu0 %v9272
      %9439 = vmatprep.subr.mxu0 0.0
      %9440 = vmatpush1.msra.mxu0 %v9273
      %9441 = vmatprep.subr.mxu0 0.0
      %9442 = vmatpush1.msra.mxu0 %v9274
      %9443 = vmatprep.subr.mxu0 0.0
      %9444 = vmatpush1.msra.mxu0 %v9275
      %9445 = vmatprep.subr.mxu0 0.0
      %9446 = vmatpush1.msra.mxu0 %v9276
      %9447 = vmatprep.subr.mxu0 0.0
      %9448 = vmatpush1.msra.mxu0 %v9277
      %9449 = vmatprep.subr.mxu0 0.0
      %9450 = vmatpush1.msra.mxu0 %v9278
      %9451 = vmatprep.mubr.f32.mxu0 %v9214
      %9452 = vmatmul.mubr.f32.gmra.mrb[0].mxu0 %v9118
      %v9453 = vpop.f32.mrb[0].mxu0
      %v9454 = vadd.f32 %v9289, %v9453
      %v9455 = vpop.f32.mrb[0].mxu0
      %9456 = vmatprep.mubr.f32.mxu0 %v9215
      %9457 = vmatmul.mubr.f32.gmra.mrb[0].mxu0 %v9119
      %v9458 = vpop.f32.mrb[0].mxu0
      %v9459 = vadd.f32 %v9289, %v9458
      %v9460 = vpop.f32.mrb[0].mxu0
      %9461 = vmatprep.mubr.f32.mxu0 %v9216
      %9462 = vmatmul.mubr.f32.gmra.mrb[0].mxu0 %v9120
      %v9463 = vpop.f32.mrb[0].mxu0
      %v9464 = vadd.f32 %v9289, %v9463
      %v9465 = vpop.f32.mrb[0].mxu0
      %9466 = vmatprep.mubr.f32.mxu0 %v9217
      %9467 = vmatmul.mubr.f32.gmra.mrb[0].mxu0 %v9121
      %v9468 = vpop.f32.mrb[0].mxu0
      %v9469 = vadd.f32 %v9289, %v9468
      %v9470 = vpop.f32.mrb[0].mxu0
      %9471 = vmatprep.mubr.f32.mxu0 %v9218
      %9472 = vmatmul.mubr.f32.gmra.mrb[0].mxu0 %v9122
      %v9473 = vpop.f32.mrb[0].mxu0
      %v9474 = vadd.f32 %v9289, %v9473
      %v9475 = vpop.f32.mrb[0].mxu0
      %9476 = vmatprep.mubr.f32.mxu0 %v9219
      %9477 = vmatmul.mubr.f32.gmra.mrb[0].mxu0 %v9123
      %v9478 = vpop.f32.mrb[0].mxu0
      %v9479 = vadd.f32 %v9289, %v9478
      %v9480 = vpop.f32.mrb[0].mxu0
      %9481 = vmatprep.mubr.f32.mxu0 %v9220
      %9482 = vmatmul.mubr.f32.gmra.mrb[0].mxu0 %v9124
      %v9483 = vpop.f32.mrb[0].mxu0
      %v9484 = vadd.f32 %v9289, %v9483
      %v9485 = vpop.f32.mrb[0].mxu0
      %9486 = vmatprep.mubr.f32.mxu0 %v9221
      %9487 = vmatmul.mubr.f32.gmra.mrb[0].mxu0 %v9125
      %v9488 = vpop.f32.mrb[0].mxu0
      %v9489 = vadd.f32 %v9289, %v9488
      %v9490 = vpop.f32.mrb[0].mxu0
      %9491 = vmatprep.mubr.f32.mxu0 %v9222
      %9492 = vmatmul.mubr.f32.gmra.mrb[0].mxu0 %v9126
      %v9493 = vpop.f32.mrb[0].mxu0
      %v9494 = vadd.f32 %v9289, %v9493
      %v9495 = vpop.f32.mrb[0].mxu0
      %9496 = vmatprep.mubr.f32.mxu0 %v9223
      %9497 = vmatmul.mubr.f32.gmra.mrb[0].mxu0 %v9127
      %v9498 = vpop.f32.mrb[0].mxu0
      %v9499 = vadd.f32 %v9289, %v9498
      %v9500 = vpop.f32.mrb[0].mxu0
      %9501 = vmatprep.mubr.f32.mxu0 %v9224
      %9502 = vmatmul.mubr.f32.gmra.mrb[0].mxu0 %v9128
      %v9503 = vpop.f32.mrb[0].mxu0
      %v9504 = vadd.f32 %v9289, %v9503
      %v9505 = vpop.f32.mrb[0].mxu0
      %9506 = vmatprep.mubr.f32.mxu0 %v9225
      %9507 = vmatmul.mubr.f32.gmra.mrb[0].mxu0 %v9129
      %v9508 = vpop.f32.mrb[0].mxu0
      %v9509 = vadd.f32 %v9289, %v9508
      %v9510 = vpop.f32.mrb[0].mxu0
      %9511 = vmatprep.mubr.f32.mxu0 %v9226
      %9512 = vmatmul.mubr.f32.gmra.mrb[0].mxu0 %v9130
      %v9513 = vpop.f32.mrb[0].mxu0
      %v9514 = vadd.f32 %v9289, %v9513
      %v9515 = vpop.f32.mrb[0].mxu0
      %9516 = vmatprep.mubr.f32.mxu0 %v9227
      %9517 = vmatmul.mubr.f32.gmra.mrb[0].mxu0 %v9131
      %v9518 = vpop.f32.mrb[0].mxu0
      %v9519 = vadd.f32 %v9289, %v9518
      %v9520 = vpop.f32.mrb[0].mxu0
      %9521 = vmatprep.mubr.f32.mxu0 %v9228
      %9522 = vmatmul.mubr.f32.gmra.mrb[0].mxu0 %v9132
      %v9523 = vpop.f32.mrb[0].mxu0
      %v9524 = vadd.f32 %v9289, %v9523
      %v9525 = vpop.f32.mrb[0].mxu0
      %9526 = vmatprep.mubr.f32.mxu0 %v9229
      %9527 = vmatmul.mubr.f32.gmra.mrb[0].mxu0 %v9133
      %v9528 = vpop.f32.mrb[0].mxu0
      %v9529 = vadd.f32 %v9289, %v9528
      %v9530 = vpop.f32.mrb[0].mxu0
      %9531 = vmatprep.mubr.f32.mxu0 %v9230
      %9532 = vmatmul.mubr.f32.gmra.mrb[0].mxu0 %v9134
      %v9533 = vpop.f32.mrb[0].mxu0
      %v9534 = vadd.f32 %v9289, %v9533
      %v9535 = vpop.f32.mrb[0].mxu0
      %9536 = vmatprep.mubr.f32.mxu0 %v9231
      %9537 = vmatmul.mubr.f32.gmra.mrb[0].mxu0 %v9135
      %v9538 = vpop.f32.mrb[0].mxu0
      %v9539 = vadd.f32 %v9289, %v9538
      %v9540 = vpop.f32.mrb[0].mxu0
      %9541 = vmatprep.mubr.f32.mxu0 %v9232
      %9542 = vmatmul.mubr.f32.gmra.mrb[0].mxu0 %v9136
      %v9543 = vpop.f32.mrb[0].mxu0
      %v9544 = vadd.f32 %v9289, %v9543
      %v9545 = vpop.f32.mrb[0].mxu0
      %9546 = vmatprep.mubr.f32.mxu0 %v9233
      %9547 = vmatmul.mubr.f32.gmra.mrb[0].mxu0 %v9137
      %v9548 = vpop.f32.mrb[0].mxu0
      %v9549 = vadd.f32 %v9289, %v9548
      %v9550 = vpop.f32.mrb[0].mxu0
      %9551 = vmatprep.mubr.f32.mxu0 %v9234
      %9552 = vmatmul.mubr.f32.gmra.mrb[0].mxu0 %v9138
      %v9553 = vpop.f32.mrb[0].mxu0
      %v9554 = vadd.f32 %v9289, %v9553
      %v9555 = vpop.f32.mrb[0].mxu0
      %9556 = vmatprep.mubr.f32.mxu0 %v9235
      %9557 = vmatmul.mubr.f32.gmra.mrb[0].mxu0 %v9139
      %v9558 = vpop.f32.mrb[0].mxu0
      %v9559 = vadd.f32 %v9289, %v9558
      %v9560 = vpop.f32.mrb[0].mxu0
      %9561 = vmatprep.mubr.f32.mxu0 %v9236
      %9562 = vmatmul.mubr.f32.gmra.mrb[0].mxu0 %v9140
      %v9563 = vpop.f32.mrb[0].mxu0
      %v9564 = vadd.f32 %v9289, %v9563
      %v9565 = vpop.f32.mrb[0].mxu0
      %9566 = vmatprep.mubr.f32.mxu0 %v9237
      %9567 = vmatmul.mubr.f32.gmra.mrb[0].mxu0 %v9141
      %v9568 = vpop.f32.mrb[0].mxu0
      %v9569 = vadd.f32 %v9289, %v9568
      %v9570 = vpop.f32.mrb[0].mxu0
      %9571 = vmatprep.mubr.f32.mxu0 %v9238
      %9572 = vmatmul.mubr.f32.gmra.mrb[0].mxu0 %v9142
      %v9573 = vpop.f32.mrb[0].mxu0
      %v9574 = vadd.f32 %v9289, %v9573
      %v9575 = vpop.f32.mrb[0].mxu0
      %9576 = vmatprep.mubr.f32.mxu0 %v9239
      %9577 = vmatmul.mubr.f32.gmra.mrb[0].mxu0 %v9143
      %v9578 = vpop.f32.mrb[0].mxu0
      %v9579 = vadd.f32 %v9289, %v9578
      %v9580 = vpop.f32.mrb[0].mxu0
      %9581 = vmatprep.mubr.f32.mxu0 %v9240
      %9582 = vmatmul.mubr.f32.gmra.mrb[0].mxu0 %v9144
      %v9583 = vpop.f32.mrb[0].mxu0
      %v9584 = vadd.f32 %v9289, %v9583
      %v9585 = vpop.f32.mrb[0].mxu0
      %9586 = vmatprep.mubr.f32.mxu0 %v9241
      %9587 = vmatmul.mubr.f32.gmra.mrb[0].mxu0 %v9145
      %v9588 = vpop.f32.mrb[0].mxu0
      %v9589 = vadd.f32 %v9289, %v9588
      %v9590 = vpop.f32.mrb[0].mxu0
      %9591 = vmatprep.mubr.f32.mxu0 %v9242
      %9592 = vmatmul.mubr.f32.gmra.mrb[0].mxu0 %v9146
      %v9593 = vpop.f32.mrb[0].mxu0
      %v9594 = vadd.f32 %v9289, %v9593
      %v9595 = vpop.f32.mrb[0].mxu0
      %9596 = vmatprep.mubr.f32.mxu0 %v9243
      %9597 = vmatmul.mubr.f32.gmra.mrb[0].mxu0 %v9147
      %v9598 = vpop.f32.mrb[0].mxu0
      %v9599 = vadd.f32 %v9289, %v9598
      %v9600 = vpop.f32.mrb[0].mxu0
      %9601 = vmatprep.mubr.f32.mxu0 %v9244
      %9602 = vmatmul.mubr.f32.gmra.mrb[0].mxu0 %v9148
      %v9603 = vpop.f32.mrb[0].mxu0
      %v9604 = vadd.f32 %v9289, %v9603
      %v9605 = vpop.f32.mrb[0].mxu0
      %9606 = vmatprep.mubr.f32.mxu0 %v9245
      %9607 = vmatmul.mubr.f32.gmra.mrb[0].mxu0 %v9149
      %v9608 = vpop.f32.mrb[0].mxu0
      %v9609 = vadd.f32 %v9289, %v9608
      %v9610 = vpop.f32.mrb[0].mxu0
      %9611 = vdwg.mxu0
      %9612 = vmatprep.subr.mxu0 0.0
      %9613 = vmatpush1.msra.mxu0 %v9279
      %9614 = vmatprep.subr.mxu0 0.0
      %9615 = vmatpush1.msra.mxu0 %v9280
      %9616 = vmatprep.subr.mxu0 0.0
      %9617 = vmatpush1.msra.mxu0 %v9281
      %9618 = vmatprep.subr.mxu0 0.0
      %9619 = vmatpush1.msra.mxu0 %v9282
      %9620 = vmatprep.subr.mxu0 0.0
      %9621 = vmatpush1.msra.mxu0 0.0
      %9622 = vmatprep.subr.mxu0 0.0
      %9623 = vmatpush1.msra.mxu0 0.0
      %9624 = vmatprep.subr.mxu0 0.0
      %9625 = vmatpush1.msra.mxu0 0.0
      %9626 = vmatprep.subr.mxu0 0.0
      %9627 = vmatpush1.msra.mxu0 0.0
      %9628 = vmatprep.subr.mxu0 0.0
      %9629 = vmatpush1.msra.mxu0 0.0
      %9630 = vmatprep.subr.mxu0 0.0
      %9631 = vmatpush1.msra.mxu0 0.0
      %9632 = vmatprep.subr.mxu0 0.0
      %9633 = vmatpush1.msra.mxu0 0.0
      %9634 = vmatprep.subr.mxu0 0.0
      %9635 = vmatpush1.msra.mxu0 0.0
      %9636 = vmatprep.subr.mxu0 0.0
      %9637 = vmatpush1.msra.mxu0 0.0
      %9638 = vmatprep.subr.mxu0 0.0
      %9639 = vmatpush1.msra.mxu0 0.0
      %9640 = vmatprep.subr.mxu0 0.0
      %9641 = vmatpush1.msra.mxu0 0.0
      %9642 = vmatprep.subr.mxu0 0.0
      %9643 = vmatpush1.msra.mxu0 0.0
      %9644 = vmatprep.subr.mxu0 0.0
      %9645 = vmatpush1.msra.mxu0 0.0
      %9646 = vmatprep.subr.mxu0 0.0
      %9647 = vmatpush1.msra.mxu0 0.0
      %9648 = vmatprep.subr.mxu0 0.0
      %9649 = vmatpush1.msra.mxu0 0.0
      %9650 = vmatprep.subr.mxu0 0.0
      %9651 = vmatpush1.msra.mxu0 0.0
      %9652 = vmatprep.subr.mxu0 0.0
      %9653 = vmatpush1.msra.mxu0 0.0
      %9654 = vmatprep.subr.mxu0 0.0
      %9655 = vmatpush1.msra.mxu0 0.0
      %9656 = vmatprep.subr.mxu0 0.0
      %9657 = vmatpush1.msra.mxu0 0.0
      %9658 = vmatprep.subr.mxu0 0.0
      %9659 = vmatpush1.msra.mxu0 0.0
      %9660 = vmatprep.subr.mxu0 0.0
      %9661 = vmatpush1.msra.mxu0 0.0
      %9662 = vmatprep.subr.mxu0 0.0
      %9663 = vmatpush1.msra.mxu0 0.0
      %9664 = vmatprep.subr.mxu0 0.0
      %9665 = vmatpush1.msra.mxu0 0.0
      %9666 = vmatprep.subr.mxu0 0.0
      %9667 = vmatpush1.msra.mxu0 0.0
      %9668 = vmatprep.subr.mxu0 0.0
      %9669 = vmatpush1.msra.mxu0 0.0
      %9670 = vmatprep.subr.mxu0 0.0
      %9671 = vmatpush1.msra.mxu0 0.0
      %9672 = vmatprep.subr.mxu0 0.0
      %9673 = vmatpush1.msra.mxu0 0.0
      %9674 = vmatprep.subr.mxu0 0.0
      %9675 = vmatpush1.msra.mxu0 0.0
      %9676 = vmatprep.mubr.f32.mxu0 0.0
      %9677 = vmatmul.mubr.f32.gmra.mrb[0].mxu0 %v9292
      %v9678 = vpop.f32.mrb[0].mxu0
      %v9679 = vadd.f32 %v9454, %v9678
      %v9680 = vpop.f32.mrb[0].mxu0
      %9681 = vmatprep.mubr.f32.mxu0 0.0
      %9682 = vmatmul.mubr.f32.gmra.mrb[0].mxu0 %v9295
      %v9683 = vpop.f32.mrb[0].mxu0
      %v9684 = vadd.f32 %v9459, %v9683
      %v9685 = vpop.f32.mrb[0].mxu0
      %9686 = vmatprep.mubr.f32.mxu0 0.0
      %9687 = vmatmul.mubr.f32.gmra.mrb[0].mxu0 %v9298
      %v9688 = vpop.f32.mrb[0].mxu0
      %v9689 = vadd.f32 %v9464, %v9688
      %v9690 = vpop.f32.mrb[0].mxu0
      %9691 = vmatprep.mubr.f32.mxu0 0.0
      %9692 = vmatmul.mubr.f32.gmra.mrb[0].mxu0 %v9301
      %v9693 = vpop.f32.mrb[0].mxu0
      %v9694 = vadd.f32 %v9469, %v9693
      %v9695 = vpop.f32.mrb[0].mxu0
      %9696 = vmatprep.mubr.f32.mxu0 0.0
      %9697 = vmatmul.mubr.f32.gmra.mrb[0].mxu0 %v9304
      %v9698 = vpop.f32.mrb[0].mxu0
      %v9699 = vadd.f32 %v9474, %v9698
      %v9700 = vpop.f32.mrb[0].mxu0
      %9701 = vmatprep.mubr.f32.mxu0 0.0
      %9702 = vmatmul.mubr.f32.gmra.mrb[0].mxu0 %v9307
      %v9703 = vpop.f32.mrb[0].mxu0
      %v9704 = vadd.f32 %v9479, %v9703
      %v9705 = vpop.f32.mrb[0].mxu0
      %9706 = vmatprep.mubr.f32.mxu0 0.0
      %9707 = vmatmul.mubr.f32.gmra.mrb[0].mxu0 %v9310
      %v9708 = vpop.f32.mrb[0].mxu0
      %v9709 = vadd.f32 %v9484, %v9708
      %v9710 = vpop.f32.mrb[0].mxu0
      %9711 = vmatprep.mubr.f32.mxu0 0.0
      %9712 = vmatmul.mubr.f32.gmra.mrb[0].mxu0 %v9313
      %v9713 = vpop.f32.mrb[0].mxu0
      %v9714 = vadd.f32 %v9489, %v9713
      %v9715 = vpop.f32.mrb[0].mxu0
      %9716 = vmatprep.mubr.f32.mxu0 0.0
      %9717 = vmatmul.mubr.f32.gmra.mrb[0].mxu0 %v9316
      %v9718 = vpop.f32.mrb[0].mxu0
      %v9719 = vadd.f32 %v9494, %v9718
      %v9720 = vpop.f32.mrb[0].mxu0
      %9721 = vmatprep.mubr.f32.mxu0 0.0
      %9722 = vmatmul.mubr.f32.gmra.mrb[0].mxu0 %v9319
      %v9723 = vpop.f32.mrb[0].mxu0
      %v9724 = vadd.f32 %v9499, %v9723
      %v9725 = vpop.f32.mrb[0].mxu0
      %9726 = vmatprep.mubr.f32.mxu0 0.0
      %9727 = vmatmul.mubr.f32.gmra.mrb[0].mxu0 %v9322
      %v9728 = vpop.f32.mrb[0].mxu0
      %v9729 = vadd.f32 %v9504, %v9728
      %v9730 = vpop.f32.mrb[0].mxu0
      %9731 = vmatprep.mubr.f32.mxu0 0.0
      %9732 = vmatmul.mubr.f32.gmra.mrb[0].mxu0 %v9325
      %v9733 = vpop.f32.mrb[0].mxu0
      %v9734 = vadd.f32 %v9509, %v9733
      %v9735 = vpop.f32.mrb[0].mxu0
      %9736 = vmatprep.mubr.f32.mxu0 0.0
      %9737 = vmatmul.mubr.f32.gmra.mrb[0].mxu0 %v9328
      %v9738 = vpop.f32.mrb[0].mxu0
      %v9739 = vadd.f32 %v9514, %v9738
      %v9740 = vpop.f32.mrb[0].mxu0
      %9741 = vmatprep.mubr.f32.mxu0 0.0
      %9742 = vmatmul.mubr.f32.gmra.mrb[0].mxu0 %v9331
      %v9743 = vpop.f32.mrb[0].mxu0
      %v9744 = vadd.f32 %v9519, %v9743
      %v9745 = vpop.f32.mrb[0].mxu0
      %9746 = vmatprep.mubr.f32.mxu0 0.0
      %9747 = vmatmul.mubr.f32.gmra.mrb[0].mxu0 %v9334
      %v9748 = vpop.f32.mrb[0].mxu0
      %v9749 = vadd.f32 %v9524, %v9748
      %v9750 = vpop.f32.mrb[0].mxu0
      %9751 = vmatprep.mubr.f32.mxu0 0.0
      %9752 = vmatmul.mubr.f32.gmra.mrb[0].mxu0 %v9337
      %v9753 = vpop.f32.mrb[0].mxu0
      %v9754 = vadd.f32 %v9529, %v9753
      %v9755 = vpop.f32.mrb[0].mxu0
      %9756 = vmatprep.mubr.f32.mxu0 0.0
      %9757 = vmatmul.mubr.f32.gmra.mrb[0].mxu0 %v9340
      %v9758 = vpop.f32.mrb[0].mxu0
      %v9759 = vadd.f32 %v9534, %v9758
      %v9760 = vpop.f32.mrb[0].mxu0
      %9761 = vmatprep.mubr.f32.mxu0 0.0
      %9762 = vmatmul.mubr.f32.gmra.mrb[0].mxu0 %v9343
      %v9763 = vpop.f32.mrb[0].mxu0
      %v9764 = vadd.f32 %v9539, %v9763
      %v9765 = vpop.f32.mrb[0].mxu0
      %9766 = vmatprep.mubr.f32.mxu0 0.0
      %9767 = vmatmul.mubr.f32.gmra.mrb[0].mxu0 %v9346
      %v9768 = vpop.f32.mrb[0].mxu0
      %v9769 = vadd.f32 %v9544, %v9768
      %v9770 = vpop.f32.mrb[0].mxu0
      %9771 = vmatprep.mubr.f32.mxu0 0.0
      %9772 = vmatmul.mubr.f32.gmra.mrb[0].mxu0 %v9349
      %v9773 = vpop.f32.mrb[0].mxu0
      %v9774 = vadd.f32 %v9549, %v9773
      %v9775 = vpop.f32.mrb[0].mxu0
      %9776 = vmatprep.mubr.f32.mxu0 0.0
      %9777 = vmatmul.mubr.f32.gmra.mrb[0].mxu0 %v9352
      %v9778 = vpop.f32.mrb[0].mxu0
      %v9779 = vadd.f32 %v9554, %v9778
      %v9780 = vpop.f32.mrb[0].mxu0
      %9781 = vmatprep.mubr.f32.mxu0 0.0
      %9782 = vmatmul.mubr.f32.gmra.mrb[0].mxu0 %v9355
      %v9783 = vpop.f32.mrb[0].mxu0
      %v9784 = vadd.f32 %v9559, %v9783
      %v9785 = vpop.f32.mrb[0].mxu0
      %9786 = vmatprep.mubr.f32.mxu0 0.0
      %9787 = vmatmul.mubr.f32.gmra.mrb[0].mxu0 %v9358
      %v9788 = vpop.f32.mrb[0].mxu0
      %v9789 = vadd.f32 %v9564, %v9788
      %v9790 = vpop.f32.mrb[0].mxu0
      %9791 = vmatprep.mubr.f32.mxu0 0.0
      %9792 = vmatmul.mubr.f32.gmra.mrb[0].mxu0 %v9361
      %v9793 = vpop.f32.mrb[0].mxu0
      %v9794 = vadd.f32 %v9569, %v9793
      %v9795 = vpop.f32.mrb[0].mxu0
      %9796 = vmatprep.mubr.f32.mxu0 0.0
      %9797 = vmatmul.mubr.f32.gmra.mrb[0].mxu0 %v9364
      %v9798 = vpop.f32.mrb[0].mxu0
      %v9799 = vadd.f32 %v9574, %v9798
      %v9800 = vpop.f32.mrb[0].mxu0
      %9801 = vmatprep.mubr.f32.mxu0 0.0
      %9802 = vmatmul.mubr.f32.gmra.mrb[0].mxu0 %v9367
      %v9803 = vpop.f32.mrb[0].mxu0
      %v9804 = vadd.f32 %v9579, %v9803
      %v9805 = vpop.f32.mrb[0].mxu0
      %9806 = vmatprep.mubr.f32.mxu0 0.0
      %9807 = vmatmul.mubr.f32.gmra.mrb[0].mxu0 %v9370
      %v9808 = vpop.f32.mrb[0].mxu0
      %v9809 = vadd.f32 %v9584, %v9808
      %v9810 = vpop.f32.mrb[0].mxu0
      %9811 = vmatprep.mubr.f32.mxu0 0.0
      %9812 = vmatmul.mubr.f32.gmra.mrb[0].mxu0 %v9373
      %v9813 = vpop.f32.mrb[0].mxu0
      %v9814 = vadd.f32 %v9589, %v9813
      %v9815 = vpop.f32.mrb[0].mxu0
      %9816 = vmatprep.mubr.f32.mxu0 0.0
      %9817 = vmatmul.mubr.f32.gmra.mrb[0].mxu0 %v9376
      %v9818 = vpop.f32.mrb[0].mxu0
      %v9819 = vadd.f32 %v9594, %v9818
      %v9820 = vpop.f32.mrb[0].mxu0
      %9821 = vmatprep.mubr.f32.mxu0 0.0
      %9822 = vmatmul.mubr.f32.gmra.mrb[0].mxu0 %v9379
      %v9823 = vpop.f32.mrb[0].mxu0
      %v9824 = vadd.f32 %v9599, %v9823
      %v9825 = vpop.f32.mrb[0].mxu0
      %9826 = vmatprep.mubr.f32.mxu0 0.0
      %9827 = vmatmul.mubr.f32.gmra.mrb[0].mxu0 %v9382
      %v9828 = vpop.f32.mrb[0].mxu0
      %v9829 = vadd.f32 %v9604, %v9828
      %v9830 = vpop.f32.mrb[0].mxu0
      %9831 = vmatprep.mubr.f32.mxu0 0.0
      %9832 = vmatmul.mubr.f32.gmra.mrb[0].mxu0 %v9385
      %v9833 = vpop.f32.mrb[0].mxu0
      %v9834 = vadd.f32 %v9609, %v9833
      %v9835 = vpop.f32.mrb[0].mxu0
      %9836 = vdwg.mxu0
      %v9837 = vmax.f32 %v9679, 0.0
      %v9838 = vmax.f32 %v9684, 0.0
      %v9839 = vmax.f32 %v9689, 0.0
      %v9840 = vmax.f32 %v9694, 0.0
      %v9841 = vmax.f32 %v9699, 0.0
      %v9842 = vmax.f32 %v9704, 0.0
      %v9843 = vmax.f32 %v9709, 0.0
      %v9844 = vmax.f32 %v9714, 0.0
      %v9845 = vmax.f32 %v9719, 0.0
      %v9846 = vmax.f32 %v9724, 0.0
      %v9847 = vmax.f32 %v9729, 0.0
      %v9848 = vmax.f32 %v9734, 0.0
      %v9849 = vmax.f32 %v9739, 0.0
      %v9850 = vmax.f32 %v9744, 0.0
      %v9851 = vmax.f32 %v9749, 0.0
      %v9852 = vmax.f32 %v9754, 0.0
      %v9853 = vmax.f32 %v9759, 0.0
      %v9854 = vmax.f32 %v9764, 0.0
      %v9855 = vmax.f32 %v9769, 0.0
      %v9856 = vmax.f32 %v9774, 0.0
      %v9857 = vmax.f32 %v9779, 0.0
      %v9858 = vmax.f32 %v9784, 0.0
      %v9859 = vmax.f32 %v9789, 0.0
      %v9860 = vmax.f32 %v9794, 0.0
      %v9861 = vmax.f32 %v9799, 0.0
      %v9862 = vmax.f32 %v9804, 0.0
      %v9863 = vmax.f32 %v9809, 0.0
      %v9864 = vmax.f32 %v9814, 0.0
      %v9865 = vmax.f32 %v9819, 0.0
      %v9866 = vmax.f32 %v9824, 0.0
      %v9867 = vmax.f32 %v9829, 0.0
      %v9868 = vmax.f32 %v9834, 0.0
      %9869 = vst.msk [vmem:[%s352 + $0x1] sm:$0xff] %vm225, %v9837
      %9870 = vst.msk [vmem:[%s352 + $0x9] sm:$0xff] %vm225, %v9838
      %9871 = vst.msk [vmem:[%s352 + $0x19] sm:$0xff] %vm225, %v9839
      %9872 = vst.msk [vmem:[%s352 + $0x21] sm:$0xff] %vm225, %v9840
      %9873 = vst.msk [vmem:[%s352 + $0x31] sm:$0xff] %vm225, %v9841
      %9874 = vst.msk [vmem:[%s352 + $0x39] sm:$0xff] %vm225, %v9842
      %9875 = vst.msk [vmem:[%s352 + $0x49] sm:$0xff] %vm225, %v9843
      %9876 = vst.msk [vmem:[%s352 + $0x51] sm:$0xff] %vm225, %v9844
      %9877 = vst.msk [vmem:[%s352 + $0x61] sm:$0xff] %vm225, %v9845
      %9878 = vst.msk [vmem:[%s352 + $0x69] sm:$0xff] %vm225, %v9846
      %9879 = vst.msk [vmem:[%s352 + $0x79] sm:$0xff] %vm225, %v9847
      %9880 = vst.msk [vmem:[%s352 + $0x81] sm:$0xff] %vm225, %v9848
      %9881 = vst.msk [vmem:[%s352 + $0x91] sm:$0xff] %vm225, %v9849
      %9882 = vst.msk [vmem:[%s352 + $0x99] sm:$0xff] %vm225, %v9850
      %9883 = vst.msk [vmem:[%s352 + $0xa9] sm:$0xff] %vm225, %v9851
      %9884 = vst.msk [vmem:[%s352 + $0xb1] sm:$0xff] %vm225, %v9852
      %9885 = vst.msk [vmem:[%s352 + $0xc1] sm:$0xff] %vm225, %v9853
      %9886 = vst.msk [vmem:[%s352 + $0xc9] sm:$0xff] %vm225, %v9854
      %9887 = vst.msk [vmem:[%s352 + $0xd9] sm:$0xff] %vm225, %v9855
      %9888 = vst.msk [vmem:[%s352 + $0xe1] sm:$0xff] %vm225, %v9856
      %9889 = vst.msk [vmem:[%s352 + $0xf1] sm:$0xff] %vm225, %v9857
      %9890 = vst.msk [vmem:[%s352 + $0xf9] sm:$0xff] %vm225, %v9858
      %9891 = vst.msk [vmem:[%s352 + $0x109] sm:$0xff] %vm225, %v9859
      %9892 = vst.msk [vmem:[%s352 + $0x111] sm:$0xff] %vm225, %v9860
      %9893 = vst.msk [vmem:[%s352 + $0x121] sm:$0xff] %vm225, %v9861
      %9894 = vst.msk [vmem:[%s352 + $0x129] sm:$0xff] %vm225, %v9862
      %9895 = vst.msk [vmem:[%s352 + $0x139] sm:$0xff] %vm225, %v9863
      %9896 = vst.msk [vmem:[%s352 + $0x141] sm:$0xff] %vm225, %v9864
      %9897 = vst.msk [vmem:[%s352 + $0x151] sm:$0xff] %vm225, %v9865
      %9898 = vst.msk [vmem:[%s352 + $0x159] sm:$0xff] %vm225, %v9866
      %9899 = vst.msk [vmem:[%s352 + $0x169] sm:$0xff] %vm225, %v9867
      %9900 = vst.msk [vmem:[%s352 + $0x171] sm:$0xff] %vm225, %v9868
      %v9901 = vld [vmem:[#allocation2] sm:$0xff]
      %v9902 = vld [vmem:[#allocation2 + $0x8] sm:$0xff]
      %v9903 = vld [vmem:[#allocation2 + $0x18] sm:$0xff]
      %v9904 = vld [vmem:[#allocation2 + $0x20] sm:$0xff]
      %v9905 = vld [vmem:[#allocation2 + $0x30] sm:$0xff]
      %v9906 = vld [vmem:[#allocation2 + $0x38] sm:$0xff]
      %v9907 = vld [vmem:[#allocation2 + $0x48] sm:$0xff]
      %v9908 = vld [vmem:[#allocation2 + $0x50] sm:$0xff]
      %v9909 = vld [vmem:[#allocation2 + $0x60] sm:$0xff]
      %v9910 = vld [vmem:[#allocation2 + $0x68] sm:$0xff]
      %v9911 = vld [vmem:[#allocation2 + $0x78] sm:$0xff]
      %v9912 = vld [vmem:[#allocation2 + $0x80] sm:$0xff]
      %v9913 = vld [vmem:[#allocation2 + $0x90] sm:$0xff]
      %v9914 = vld [vmem:[#allocation2 + $0x98] sm:$0xff]
      %v9915 = vld [vmem:[#allocation2 + $0xa8] sm:$0xff]
      %v9916 = vld [vmem:[#allocation2 + $0xb0] sm:$0xff]
      %v9917 = vld [vmem:[#allocation2 + $0xc0] sm:$0xff]
      %v9918 = vld [vmem:[#allocation2 + $0xc8] sm:$0xff]
      %v9919 = vld [vmem:[#allocation2 + $0xd8] sm:$0xff]
      %v9920 = vld [vmem:[#allocation2 + $0xe0] sm:$0xff]
      %v9921 = vld [vmem:[#allocation2 + $0xf0] sm:$0xff]
      %v9922 = vld [vmem:[#allocation2 + $0xf8] sm:$0xff]
      %v9923 = vld [vmem:[#allocation2 + $0x108] sm:$0xff]
      %v9924 = vld [vmem:[#allocation2 + $0x110] sm:$0xff]
      %v9925 = vld [vmem:[#allocation2 + $0x120] sm:$0xff]
      %v9926 = vld [vmem:[#allocation2 + $0x128] sm:$0xff]
      %v9927 = vld [vmem:[#allocation2 + $0x138] sm:$0xff]
      %v9928 = vld [vmem:[#allocation2 + $0x140] sm:$0xff]
      %v9929 = vld [vmem:[#allocation2 + $0x150] sm:$0xff]
      %v9930 = vld [vmem:[#allocation2 + $0x158] sm:$0xff]
      %v9931 = vld [vmem:[#allocation2 + $0x168] sm:$0xff]
      %v9932 = vld [vmem:[#allocation2 + $0x170] sm:$0xff]
      %v9933 = vld [vmem:[#allocation2 + $0x1] sm:$0xff]
      %v9934 = vld [vmem:[#allocation2 + $0x9] sm:$0xff]
      %v9935 = vld [vmem:[#allocation2 + $0x19] sm:$0xff]
      %v9936 = vld [vmem:[#allocation2 + $0x21] sm:$0xff]
      %v9937 = vld [vmem:[#allocation2 + $0x31] sm:$0xff]
      %v9938 = vld [vmem:[#allocation2 + $0x39] sm:$0xff]
      %v9939 = vld [vmem:[#allocation2 + $0x49] sm:$0xff]
      %v9940 = vld [vmem:[#allocation2 + $0x51] sm:$0xff]
      %v9941 = vld [vmem:[#allocation2 + $0x61] sm:$0xff]
      %v9942 = vld [vmem:[#allocation2 + $0x69] sm:$0xff]
      %v9943 = vld [vmem:[#allocation2 + $0x79] sm:$0xff]
      %v9944 = vld [vmem:[#allocation2 + $0x81] sm:$0xff]
      %v9945 = vld [vmem:[#allocation2 + $0x91] sm:$0xff]
      %v9946 = vld [vmem:[#allocation2 + $0x99] sm:$0xff]
      %v9947 = vld [vmem:[#allocation2 + $0xa9] sm:$0xff]
      %v9948 = vld [vmem:[#allocation2 + $0xb1] sm:$0xff]
      %v9949 = vld [vmem:[#allocation2 + $0xc1] sm:$0xff]
      %v9950 = vld [vmem:[#allocation2 + $0xc9] sm:$0xff]
      %v9951 = vld [vmem:[#allocation2 + $0xd9] sm:$0xff]
      %v9952 = vld [vmem:[#allocation2 + $0xe1] sm:$0xff]
      %v9953 = vld [vmem:[#allocation2 + $0xf1] sm:$0xff]
      %v9954 = vld [vmem:[#allocation2 + $0xf9] sm:$0xff]
      %v9955 = vld [vmem:[#allocation2 + $0x109] sm:$0xff]
      %v9956 = vld [vmem:[#allocation2 + $0x111] sm:$0xff]
      %v9957 = vld [vmem:[#allocation2 + $0x121] sm:$0xff]
      %v9958 = vld [vmem:[#allocation2 + $0x129] sm:$0xff]
      %v9959 = vld [vmem:[#allocation2 + $0x139] sm:$0xff]
      %v9960 = vld [vmem:[#allocation2 + $0x141] sm:$0xff]
      %v9961 = vld [vmem:[#allocation2 + $0x151] sm:$0xff]
      %v9962 = vld [vmem:[#allocation2 + $0x159] sm:$0xff]
      %v9963 = vld [vmem:[#allocation2 + $0x169] sm:$0xff]
      %v9964 = vld [vmem:[#allocation2 + $0x171] sm:$0xff]
      %v9965 = vld [vmem:[#allocation2 + $0x2] sm:$0xff]
      %v9966 = vld [vmem:[#allocation2 + $0xa] sm:$0xff]
      %v9967 = vld [vmem:[#allocation2 + $0x1a] sm:$0xff]
      %v9968 = vld [vmem:[#allocation2 + $0x22] sm:$0xff]
      %v9969 = vld [vmem:[#allocation2 + $0x32] sm:$0xff]
      %v9970 = vld [vmem:[#allocation2 + $0x3a] sm:$0xff]
      %v9971 = vld [vmem:[#allocation2 + $0x4a] sm:$0xff]
      %v9972 = vld [vmem:[#allocation2 + $0x52] sm:$0xff]
      %v9973 = vld [vmem:[#allocation2 + $0x62] sm:$0xff]
      %v9974 = vld [vmem:[#allocation2 + $0x6a] sm:$0xff]
      %v9975 = vld [vmem:[#allocation2 + $0x7a] sm:$0xff]
      %v9976 = vld [vmem:[#allocation2 + $0x82] sm:$0xff]
      %v9977 = vld [vmem:[#allocation2 + $0x92] sm:$0xff]
      %v9978 = vld [vmem:[#allocation2 + $0x9a] sm:$0xff]
      %v9979 = vld [vmem:[#allocation2 + $0xaa] sm:$0xff]
      %v9980 = vld [vmem:[#allocation2 + $0xb2] sm:$0xff]
      %v9981 = vld [vmem:[#allocation2 + $0xc2] sm:$0xff]
      %v9982 = vld [vmem:[#allocation2 + $0xca] sm:$0xff]
      %v9983 = vld [vmem:[#allocation2 + $0xda] sm:$0xff]
      %v9984 = vld [vmem:[#allocation2 + $0xe2] sm:$0xff]
      %v9985 = vld [vmem:[#allocation2 + $0xf2] sm:$0xff]
      %v9986 = vld [vmem:[#allocation2 + $0xfa] sm:$0xff]
      %v9987 = vld [vmem:[#allocation2 + $0x10a] sm:$0xff]
      %v9988 = vld [vmem:[#allocation2 + $0x112] sm:$0xff]
      %v9989 = vld [vmem:[#allocation2 + $0x122] sm:$0xff]
      %v9990 = vld [vmem:[#allocation2 + $0x12a] sm:$0xff]
      %v9991 = vld [vmem:[#allocation2 + $0x13a] sm:$0xff]
      %v9992 = vld [vmem:[#allocation2 + $0x142] sm:$0xff]
      %v9993 = vld [vmem:[#allocation2 + $0x152] sm:$0xff]
      %v9994 = vld [vmem:[#allocation2 + $0x15a] sm:$0xff]
      %v9995 = vld [vmem:[#allocation2 + $0x16a] sm:$0xff]
      %v9996 = vld [vmem:[#allocation2 + $0x172] sm:$0xff]
      %v9997 = vld [vmem:[%s352] sm:$0xff]
      %v9998 = vld [vmem:[%s352 + $0x8] sm:$0xff]
      %v9999 = vld [vmem:[%s352 + $0x18] sm:$0xff]
      %v10000 = vld [vmem:[%s352 + $0x20] sm:$0xff]
      %v10001 = vld [vmem:[%s352 + $0x30] sm:$0xff]
      %v10002 = vld [vmem:[%s352 + $0x38] sm:$0xff]
      %v10003 = vld [vmem:[%s352 + $0x48] sm:$0xff]
      %v10004 = vld [vmem:[%s352 + $0x50] sm:$0xff]
      %v10005 = vld [vmem:[%s352 + $0x60] sm:$0xff]
      %v10006 = vld [vmem:[%s352 + $0x68] sm:$0xff]
      %v10007 = vld [vmem:[%s352 + $0x78] sm:$0xff]
      %v10008 = vld [vmem:[%s352 + $0x80] sm:$0xff]
      %v10009 = vld [vmem:[%s352 + $0x90] sm:$0xff]
      %v10010 = vld [vmem:[%s352 + $0x98] sm:$0xff]
      %v10011 = vld [vmem:[%s352 + $0xa8] sm:$0xff]
      %v10012 = vld [vmem:[%s352 + $0xb0] sm:$0xff]
      %v10013 = vld [vmem:[%s352 + $0xc0] sm:$0xff]
      %v10014 = vld [vmem:[%s352 + $0xc8] sm:$0xff]
      %v10015 = vld [vmem:[%s352 + $0xd8] sm:$0xff]
      %v10016 = vld [vmem:[%s352 + $0xe0] sm:$0xff]
      %v10017 = vld [vmem:[%s352 + $0xf0] sm:$0xff]
      %v10018 = vld [vmem:[%s352 + $0xf8] sm:$0xff]
      %v10019 = vld [vmem:[%s352 + $0x108] sm:$0xff]
      %v10020 = vld [vmem:[%s352 + $0x110] sm:$0xff]
      %v10021 = vld [vmem:[%s352 + $0x120] sm:$0xff]
      %v10022 = vld [vmem:[%s352 + $0x128] sm:$0xff]
      %v10023 = vld [vmem:[%s352 + $0x138] sm:$0xff]
      %v10024 = vld [vmem:[%s352 + $0x140] sm:$0xff]
      %v10025 = vld [vmem:[%s352 + $0x150] sm:$0xff]
      %v10026 = vld [vmem:[%s352 + $0x158] sm:$0xff]
      %v10027 = vld [vmem:[%s352 + $0x168] sm:$0xff]
      %v10028 = vld [vmem:[%s352 + $0x170] sm:$0xff]
      %v10029 = vld [vmem:[%s352 + $0x1] sm:$0xff]
      %v10030 = vld [vmem:[%s352 + $0x9] sm:$0xff]
      %v10031 = vld [vmem:[%s352 + $0x19] sm:$0xff]
      %v10032 = vld [vmem:[%s352 + $0x21] sm:$0xff]
      %v10033 = vld [vmem:[%s352 + $0x31] sm:$0xff]
      %v10034 = vld [vmem:[%s352 + $0x39] sm:$0xff]
      %v10035 = vld [vmem:[%s352 + $0x49] sm:$0xff]
      %v10036 = vld [vmem:[%s352 + $0x51] sm:$0xff]
      %v10037 = vld [vmem:[%s352 + $0x61] sm:$0xff]
      %v10038 = vld [vmem:[%s352 + $0x69] sm:$0xff]
      %v10039 = vld [vmem:[%s352 + $0x79] sm:$0xff]
      %v10040 = vld [vmem:[%s352 + $0x81] sm:$0xff]
      %v10041 = vld [vmem:[%s352 + $0x91] sm:$0xff]
      %v10042 = vld [vmem:[%s352 + $0x99] sm:$0xff]
      %v10043 = vld [vmem:[%s352 + $0xa9] sm:$0xff]
      %v10044 = vld [vmem:[%s352 + $0xb1] sm:$0xff]
      %v10045 = vld [vmem:[%s352 + $0xc1] sm:$0xff]
      %v10046 = vld [vmem:[%s352 + $0xc9] sm:$0xff]
      %v10047 = vld [vmem:[%s352 + $0xd9] sm:$0xff]
      %v10048 = vld [vmem:[%s352 + $0xe1] sm:$0xff]
      %v10049 = vld [vmem:[%s352 + $0xf1] sm:$0xff]
      %v10050 = vld [vmem:[%s352 + $0xf9] sm:$0xff]
      %v10051 = vld [vmem:[%s352 + $0x109] sm:$0xff]
      %v10052 = vld [vmem:[%s352 + $0x111] sm:$0xff]
      %v10053 = vld [vmem:[%s352 + $0x121] sm:$0xff]
      %v10054 = vld [vmem:[%s352 + $0x129] sm:$0xff]
      %v10055 = vld [vmem:[%s352 + $0x139] sm:$0xff]
      %v10056 = vld [vmem:[%s352 + $0x141] sm:$0xff]
      %v10057 = vld [vmem:[%s352 + $0x151] sm:$0xff]
      %v10058 = vld [vmem:[%s352 + $0x159] sm:$0xff]
      %v10059 = vld [vmem:[%s352 + $0x169] sm:$0xff]
      %v10060 = vld [vmem:[%s352 + $0x171] sm:$0xff]
      %v10061 = vld [vmem:[%s352 + $0x2] sm:$0xff]
      %v10062 = vld [vmem:[%s352 + $0xa] sm:$0xff]
      %v10063 = vld [vmem:[%s352 + $0x1a] sm:$0xff]
      %v10064 = vld [vmem:[%s352 + $0x22] sm:$0xff]
      %v10065 = vld [vmem:[%s352 + $0x32] sm:$0xff]
      %v10066 = vld [vmem:[%s352 + $0x3a] sm:$0xff]
      %v10067 = vld [vmem:[%s352 + $0x4a] sm:$0xff]
      %v10068 = vld [vmem:[%s352 + $0x52] sm:$0xff]
      %v10069 = vld [vmem:[%s352 + $0x62] sm:$0xff]
      %v10070 = vld [vmem:[%s352 + $0x6a] sm:$0xff]
      %v10071 = vld [vmem:[%s352 + $0x7a] sm:$0xff]
      %v10072 = vld [vmem:[%s352 + $0x82] sm:$0xff]
      %v10073 = vld [vmem:[%s352 + $0x92] sm:$0xff]
      %v10074 = vld [vmem:[%s352 + $0x9a] sm:$0xff]
      %v10075 = vld [vmem:[%s352 + $0xaa] sm:$0xff]
      %v10076 = vld [vmem:[%s352 + $0xb2] sm:$0xff]
      %v10077 = vld [vmem:[%s352 + $0xc2] sm:$0xff]
      %v10078 = vld [vmem:[%s352 + $0xca] sm:$0xff]
      %v10079 = vld [vmem:[%s352 + $0xda] sm:$0xff]
      %v10080 = vld [vmem:[%s352 + $0xe2] sm:$0xff]
      %v10081 = vld [vmem:[%s352 + $0xf2] sm:$0xff]
      %v10082 = vld [vmem:[%s352 + $0xfa] sm:$0xff]
      %v10083 = vld [vmem:[%s352 + $0x10a] sm:$0xff]
      %v10084 = vld [vmem:[%s352 + $0x112] sm:$0xff]
      %v10085 = vld [vmem:[%s352 + $0x122] sm:$0xff]
      %v10086 = vld [vmem:[%s352 + $0x12a] sm:$0xff]
      %v10087 = vld [vmem:[%s352 + $0x13a] sm:$0xff]
      %v10088 = vld [vmem:[%s352 + $0x142] sm:$0xff]
      %v10089 = vld [vmem:[%s352 + $0x152] sm:$0xff]
      %v10090 = vld [vmem:[%s352 + $0x15a] sm:$0xff]
      %v10091 = vld [vmem:[%s352 + $0x16a] sm:$0xff]
      %v10092 = vld [vmem:[%s352 + $0x172] sm:$0xff]
      %v10093 = vld [vmem:[%s577] sm:$0xff]
      %v10094 = vld [vmem:[%s577 + $0x8] sm:$0xff]
      %v10095 = vld [vmem:[%s577 + $0x18] sm:$0xff]
      %v10096 = vld [vmem:[%s577 + $0x20] sm:$0xff]
      %v10097 = vld [vmem:[%s577 + $0x30] sm:$0xff]
      %v10098 = vld [vmem:[%s577 + $0x38] sm:$0xff]
      %v10099 = vld [vmem:[%s577 + $0x48] sm:$0xff]
      %v10100 = vld [vmem:[%s577 + $0x50] sm:$0xff]
      %v10101 = vld [vmem:[%s577 + $0x60] sm:$0xff]
      %v10102 = vld [vmem:[%s577 + $0x68] sm:$0xff]
      %v10103 = vld [vmem:[%s577 + $0x78] sm:$0xff]
      %v10104 = vld [vmem:[%s577 + $0x80] sm:$0xff]
      %v10105 = vld [vmem:[%s577 + $0x90] sm:$0xff]
      %v10106 = vld [vmem:[%s577 + $0x98] sm:$0xff]
      %v10107 = vld [vmem:[%s577 + $0xa8] sm:$0xff]
      %v10108 = vld [vmem:[%s577 + $0xb0] sm:$0xff]
      %v10109 = vld [vmem:[%s577 + $0xc0] sm:$0xff]
      %v10110 = vld [vmem:[%s577 + $0xc8] sm:$0xff]
      %v10111 = vld [vmem:[%s577 + $0xd8] sm:$0xff]
      %v10112 = vld [vmem:[%s577 + $0xe0] sm:$0xff]
      %v10113 = vld [vmem:[%s577 + $0xf0] sm:$0xff]
      %v10114 = vld [vmem:[%s577 + $0xf8] sm:$0xff]
      %v10115 = vld [vmem:[%s577 + $0x108] sm:$0xff]
      %v10116 = vld [vmem:[%s577 + $0x110] sm:$0xff]
      %v10117 = vld [vmem:[%s577 + $0x120] sm:$0xff]
      %v10118 = vld [vmem:[%s577 + $0x128] sm:$0xff]
      %v10119 = vld [vmem:[%s577 + $0x138] sm:$0xff]
      %v10120 = vld [vmem:[%s577 + $0x140] sm:$0xff]
      %v10121 = vld [vmem:[%s577 + $0x150] sm:$0xff]
      %v10122 = vld [vmem:[%s577 + $0x158] sm:$0xff]
      %v10123 = vld [vmem:[%s577 + $0x168] sm:$0xff]
      %v10124 = vld [vmem:[%s577 + $0x170] sm:$0xff]
      %v10125 = vld [vmem:[%s577 + $0x1] sm:$0xff]
      %v10126 = vld [vmem:[%s577 + $0x9] sm:$0xff]
      %v10127 = vld [vmem:[%s577 + $0x19] sm:$0xff]
      %v10128 = vld [vmem:[%s577 + $0x21] sm:$0xff]
      %v10129 = vld [vmem:[%s577 + $0x31] sm:$0xff]
      %v10130 = vld [vmem:[%s577 + $0x39] sm:$0xff]
      %v10131 = vld [vmem:[%s577 + $0x49] sm:$0xff]
      %v10132 = vld [vmem:[%s577 + $0x51] sm:$0xff]
      %v10133 = vld [vmem:[%s577 + $0x61] sm:$0xff]
      %v10134 = vld [vmem:[%s577 + $0x69] sm:$0xff]
      %v10135 = vld [vmem:[%s577 + $0x79] sm:$0xff]
      %v10136 = vld [vmem:[%s577 + $0x81] sm:$0xff]
      %v10137 = vld [vmem:[%s577 + $0x91] sm:$0xff]
      %v10138 = vld [vmem:[%s577 + $0x99] sm:$0xff]
      %v10139 = vld [vmem:[%s577 + $0xa9] sm:$0xff]
      %v10140 = vld [vmem:[%s577 + $0xb1] sm:$0xff]
      %v10141 = vld [vmem:[%s577 + $0xc1] sm:$0xff]
      %v10142 = vld [vmem:[%s577 + $0xc9] sm:$0xff]
      %v10143 = vld [vmem:[%s577 + $0xd9] sm:$0xff]
      %v10144 = vld [vmem:[%s577 + $0xe1] sm:$0xff]
      %v10145 = vld [vmem:[%s577 + $0xf1] sm:$0xff]
      %v10146 = vld [vmem:[%s577 + $0xf9] sm:$0xff]
      %v10147 = vld [vmem:[%s577 + $0x109] sm:$0xff]
      %v10148 = vld [vmem:[%s577 + $0x111] sm:$0xff]
      %v10149 = vld [vmem:[%s577 + $0x121] sm:$0xff]
      %v10150 = vld [vmem:[%s577 + $0x129] sm:$0xff]
      %v10151 = vld [vmem:[%s577 + $0x139] sm:$0xff]
      %v10152 = vld [vmem:[%s577 + $0x141] sm:$0xff]
      %v10153 = vld [vmem:[%s577 + $0x151] sm:$0xff]
      %v10154 = vld [vmem:[%s577 + $0x159] sm:$0xff]
      %v10155 = vld [vmem:[%s577 + $0x169] sm:$0xff]
      %v10156 = vld [vmem:[%s577 + $0x171] sm:$0xff]
      %v10157 = vld [vmem:[%s577 + $0x2] sm:$0xff]
      %v10158 = vld [vmem:[%s577 + $0xa] sm:$0xff]
      %v10159 = vld [vmem:[%s577 + $0x1a] sm:$0xff]
      %v10160 = vld [vmem:[%s577 + $0x22] sm:$0xff]
      %v10161 = vld [vmem:[%s577 + $0x32] sm:$0xff]
      %v10162 = vld [vmem:[%s577 + $0x3a] sm:$0xff]
      %v10163 = vld [vmem:[%s577 + $0x4a] sm:$0xff]
      %v10164 = vld [vmem:[%s577 + $0x52] sm:$0xff]
      %v10165 = vld [vmem:[%s577 + $0x62] sm:$0xff]
      %v10166 = vld [vmem:[%s577 + $0x6a] sm:$0xff]
      %v10167 = vld [vmem:[%s577 + $0x7a] sm:$0xff]
      %v10168 = vld [vmem:[%s577 + $0x82] sm:$0xff]
      %v10169 = vld [vmem:[%s577 + $0x92] sm:$0xff]
      %v10170 = vld [vmem:[%s577 + $0x9a] sm:$0xff]
      %v10171 = vld [vmem:[%s577 + $0xaa] sm:$0xff]
      %v10172 = vld [vmem:[%s577 + $0xb2] sm:$0xff]
      %v10173 = vld [vmem:[%s577 + $0xc2] sm:$0xff]
      %v10174 = vld [vmem:[%s577 + $0xca] sm:$0xff]
      %v10175 = vld [vmem:[%s577 + $0xda] sm:$0xff]
      %v10176 = vld [vmem:[%s577 + $0xe2] sm:$0xff]
      %v10177 = vld [vmem:[%s577 + $0xf2] sm:$0xff]
      %v10178 = vld [vmem:[%s577 + $0xfa] sm:$0xff]
      %v10179 = vld [vmem:[%s577 + $0x10a] sm:$0xff]
      %v10180 = vld [vmem:[%s577 + $0x112] sm:$0xff]
      %v10181 = vld [vmem:[%s577 + $0x122] sm:$0xff]
      %v10182 = vld [vmem:[%s577 + $0x12a] sm:$0xff]
      %v10183 = vld [vmem:[%s577 + $0x13a] sm:$0xff]
      %v10184 = vld [vmem:[%s577 + $0x142] sm:$0xff]
      %v10185 = vld [vmem:[%s577 + $0x152] sm:$0xff]
      %v10186 = vld [vmem:[%s577 + $0x15a] sm:$0xff]
      %v10187 = vld [vmem:[%s577 + $0x16a] sm:$0xff]
      %v10188 = vld [vmem:[%s577 + $0x172] sm:$0xff]
      %10221 = vrot.lane.b32.xlu0 %v9933, 32
      %v10222 = vpop.permute.xlu0 %10221
      %10223 = vrot.lane.b32.xlu0 %v9934, 32
      %v10224 = vpop.permute.xlu0 %10223
      %10225 = vrot.lane.b32.xlu0 %v9935, 32
      %v10226 = vpop.permute.xlu0 %10225
      %10227 = vrot.lane.b32.xlu0 %v9936, 32
      %v10228 = vpop.permute.xlu0 %10227
      %10229 = vrot.lane.b32.xlu0 %v9937, 32
      %v10230 = vpop.permute.xlu0 %10229
      %10231 = vrot.lane.b32.xlu0 %v9938, 32
      %v10232 = vpop.permute.xlu0 %10231
      %10233 = vrot.lane.b32.xlu0 %v9939, 32
      %v10234 = vpop.permute.xlu0 %10233
      %10235 = vrot.lane.b32.xlu0 %v9940, 32
      %v10236 = vpop.permute.xlu0 %10235
      %10237 = vrot.lane.b32.xlu0 %v9941, 32
      %v10238 = vpop.permute.xlu0 %10237
      %10239 = vrot.lane.b32.xlu0 %v9942, 32
      %v10240 = vpop.permute.xlu0 %10239
      %10241 = vrot.lane.b32.xlu0 %v9943, 32
      %v10242 = vpop.permute.xlu0 %10241
      %10243 = vrot.lane.b32.xlu0 %v9944, 32
      %v10244 = vpop.permute.xlu0 %10243
      %10245 = vrot.lane.b32.xlu0 %v9945, 32
      %v10246 = vpop.permute.xlu0 %10245
      %10247 = vrot.lane.b32.xlu0 %v9946, 32
      %v10248 = vpop.permute.xlu0 %10247
      %10249 = vrot.lane.b32.xlu0 %v9947, 32
      %v10250 = vpop.permute.xlu0 %10249
      %10251 = vrot.lane.b32.xlu0 %v9948, 32
      %v10252 = vpop.permute.xlu0 %10251
      %10253 = vrot.lane.b32.xlu0 %v9949, 32
      %v10254 = vpop.permute.xlu0 %10253
      %10255 = vrot.lane.b32.xlu0 %v9950, 32
      %v10256 = vpop.permute.xlu0 %10255
      %10257 = vrot.lane.b32.xlu0 %v9951, 32
      %v10258 = vpop.permute.xlu0 %10257
      %10259 = vrot.lane.b32.xlu0 %v9952, 32
      %v10260 = vpop.permute.xlu0 %10259
      %10261 = vrot.lane.b32.xlu0 %v9953, 32
      %v10262 = vpop.permute.xlu0 %10261
      %10263 = vrot.lane.b32.xlu0 %v9954, 32
      %v10264 = vpop.permute.xlu0 %10263
      %10265 = vrot.lane.b32.xlu0 %v9955, 32
      %v10266 = vpop.permute.xlu0 %10265
      %10267 = vrot.lane.b32.xlu0 %v9956, 32
      %v10268 = vpop.permute.xlu0 %10267
      %10269 = vrot.lane.b32.xlu0 %v9957, 32
      %v10270 = vpop.permute.xlu0 %10269
      %10271 = vrot.lane.b32.xlu0 %v9958, 32
      %v10272 = vpop.permute.xlu0 %10271
      %10273 = vrot.lane.b32.xlu0 %v9959, 32
      %v10274 = vpop.permute.xlu0 %10273
      %10275 = vrot.lane.b32.xlu0 %v9960, 32
      %v10276 = vpop.permute.xlu0 %10275
      %10277 = vrot.lane.b32.xlu0 %v9961, 32
      %v10278 = vpop.permute.xlu0 %10277
      %10279 = vrot.lane.b32.xlu0 %v9962, 32
      %v10280 = vpop.permute.xlu0 %10279
      %10281 = vrot.lane.b32.xlu0 %v9963, 32
      %v10282 = vpop.permute.xlu0 %10281
      %10283 = vrot.lane.b32.xlu0 %v9964, 32
      %v10284 = vpop.permute.xlu0 %10283
      %10349 = vrot.lane.b32.xlu0 %v9965, 64
      %v10350 = vpop.permute.xlu0 %10349
      %10351 = vrot.lane.b32.xlu0 %v9966, 64
      %v10352 = vpop.permute.xlu0 %10351
      %10353 = vrot.lane.b32.xlu0 %v9967, 64
      %v10354 = vpop.permute.xlu0 %10353
      %10355 = vrot.lane.b32.xlu0 %v9968, 64
      %v10356 = vpop.permute.xlu0 %10355
      %10357 = vrot.lane.b32.xlu0 %v9969, 64
      %v10358 = vpop.permute.xlu0 %10357
      %10359 = vrot.lane.b32.xlu0 %v9970, 64
      %v10360 = vpop.permute.xlu0 %10359
      %10361 = vrot.lane.b32.xlu0 %v9971, 64
      %v10362 = vpop.permute.xlu0 %10361
      %10363 = vrot.lane.b32.xlu0 %v9972, 64
      %v10364 = vpop.permute.xlu0 %10363
      %10365 = vrot.lane.b32.xlu0 %v9973, 64
      %v10366 = vpop.permute.xlu0 %10365
      %10367 = vrot.lane.b32.xlu0 %v9974, 64
      %v10368 = vpop.permute.xlu0 %10367
      %10369 = vrot.lane.b32.xlu0 %v9975, 64
      %v10370 = vpop.permute.xlu0 %10369
      %10371 = vrot.lane.b32.xlu0 %v9976, 64
      %v10372 = vpop.permute.xlu0 %10371
      %10373 = vrot.lane.b32.xlu0 %v9977, 64
      %v10374 = vpop.permute.xlu0 %10373
      %10375 = vrot.lane.b32.xlu0 %v9978, 64
      %v10376 = vpop.permute.xlu0 %10375
      %10377 = vrot.lane.b32.xlu0 %v9979, 64
      %v10378 = vpop.permute.xlu0 %10377
      %10379 = vrot.lane.b32.xlu0 %v9980, 64
      %v10380 = vpop.permute.xlu0 %10379
      %10381 = vrot.lane.b32.xlu0 %v9981, 64
      %v10382 = vpop.permute.xlu0 %10381
      %10383 = vrot.lane.b32.xlu0 %v9982, 64
      %v10384 = vpop.permute.xlu0 %10383
      %10385 = vrot.lane.b32.xlu0 %v9983, 64
      %v10386 = vpop.permute.xlu0 %10385
      %10387 = vrot.lane.b32.xlu0 %v9984, 64
      %v10388 = vpop.permute.xlu0 %10387
      %10389 = vrot.lane.b32.xlu0 %v9985, 64
      %v10390 = vpop.permute.xlu0 %10389
      %10391 = vrot.lane.b32.xlu0 %v9986, 64
      %v10392 = vpop.permute.xlu0 %10391
      %10393 = vrot.lane.b32.xlu0 %v9987, 64
      %v10394 = vpop.permute.xlu0 %10393
      %10395 = vrot.lane.b32.xlu0 %v9988, 64
      %v10396 = vpop.permute.xlu0 %10395
      %10397 = vrot.lane.b32.xlu0 %v9989, 64
      %v10398 = vpop.permute.xlu0 %10397
      %10399 = vrot.lane.b32.xlu0 %v9990, 64
      %v10400 = vpop.permute.xlu0 %10399
      %10401 = vrot.lane.b32.xlu0 %v9991, 64
      %v10402 = vpop.permute.xlu0 %10401
      %10403 = vrot.lane.b32.xlu0 %v9992, 64
      %v10404 = vpop.permute.xlu0 %10403
      %10405 = vrot.lane.b32.xlu0 %v9993, 64
      %v10406 = vpop.permute.xlu0 %10405
      %10407 = vrot.lane.b32.xlu0 %v9994, 64
      %v10408 = vpop.permute.xlu0 %10407
      %10409 = vrot.lane.b32.xlu0 %v9995, 64
      %v10410 = vpop.permute.xlu0 %10409
      %10411 = vrot.lane.b32.xlu0 %v9996, 64
      %v10412 = vpop.permute.xlu0 %10411
      %10477 = vrot.lane.b32.xlu0 %v9997, 96
      %v10478 = vpop.permute.xlu0 %10477
      %10479 = vrot.lane.b32.xlu0 %v9998, 96
      %v10480 = vpop.permute.xlu0 %10479
      %10481 = vrot.lane.b32.xlu0 %v9999, 96
      %v10482 = vpop.permute.xlu0 %10481
      %10483 = vrot.lane.b32.xlu0 %v10000, 96
      %v10484 = vpop.permute.xlu0 %10483
      %10485 = vrot.lane.b32.xlu0 %v10001, 96
      %v10486 = vpop.permute.xlu0 %10485
      %10487 = vrot.lane.b32.xlu0 %v10002, 96
      %v10488 = vpop.permute.xlu0 %10487
      %10489 = vrot.lane.b32.xlu0 %v10003, 96
      %v10490 = vpop.permute.xlu0 %10489
      %10491 = vrot.lane.b32.xlu0 %v10004, 96
      %v10492 = vpop.permute.xlu0 %10491
      %10493 = vrot.lane.b32.xlu0 %v10005, 96
      %v10494 = vpop.permute.xlu0 %10493
      %10495 = vrot.lane.b32.xlu0 %v10006, 96
      %v10496 = vpop.permute.xlu0 %10495
      %10497 = vrot.lane.b32.xlu0 %v10007, 96
      %v10498 = vpop.permute.xlu0 %10497
      %10499 = vrot.lane.b32.xlu0 %v10008, 96
      %v10500 = vpop.permute.xlu0 %10499
      %10501 = vrot.lane.b32.xlu0 %v10009, 96
      %v10502 = vpop.permute.xlu0 %10501
      %10503 = vrot.lane.b32.xlu0 %v10010, 96
      %v10504 = vpop.permute.xlu0 %10503
      %10505 = vrot.lane.b32.xlu0 %v10011, 96
      %v10506 = vpop.permute.xlu0 %10505
      %10507 = vrot.lane.b32.xlu0 %v10012, 96
      %v10508 = vpop.permute.xlu0 %10507
      %10509 = vrot.lane.b32.xlu0 %v10013, 96
      %v10510 = vpop.permute.xlu0 %10509
      %10511 = vrot.lane.b32.xlu0 %v10014, 96
      %v10512 = vpop.permute.xlu0 %10511
      %10513 = vrot.lane.b32.xlu0 %v10015, 96
      %v10514 = vpop.permute.xlu0 %10513
      %10515 = vrot.lane.b32.xlu0 %v10016, 96
      %v10516 = vpop.permute.xlu0 %10515
      %10517 = vrot.lane.b32.xlu0 %v10017, 96
      %v10518 = vpop.permute.xlu0 %10517
      %10519 = vrot.lane.b32.xlu0 %v10018, 96
      %v10520 = vpop.permute.xlu0 %10519
      %10521 = vrot.lane.b32.xlu0 %v10019, 96
      %v10522 = vpop.permute.xlu0 %10521
      %10523 = vrot.lane.b32.xlu0 %v10020, 96
      %v10524 = vpop.permute.xlu0 %10523
      %10525 = vrot.lane.b32.xlu0 %v10021, 96
      %v10526 = vpop.permute.xlu0 %10525
      %10527 = vrot.lane.b32.xlu0 %v10022, 96
      %v10528 = vpop.permute.xlu0 %10527
      %10529 = vrot.lane.b32.xlu0 %v10023, 96
      %v10530 = vpop.permute.xlu0 %10529
      %10531 = vrot.lane.b32.xlu0 %v10024, 96
      %v10532 = vpop.permute.xlu0 %10531
      %10533 = vrot.lane.b32.xlu0 %v10025, 96
      %v10534 = vpop.permute.xlu0 %10533
      %10535 = vrot.lane.b32.xlu0 %v10026, 96
      %v10536 = vpop.permute.xlu0 %10535
      %10537 = vrot.lane.b32.xlu0 %v10027, 96
      %v10538 = vpop.permute.xlu0 %10537
      %10539 = vrot.lane.b32.xlu0 %v10028, 96
      %v10540 = vpop.permute.xlu0 %10539
      %10605 = vrot.lane.b32.xlu0 %v10061, 32
      %v10606 = vpop.permute.xlu0 %10605
      %10607 = vrot.lane.b32.xlu0 %v10062, 32
      %v10608 = vpop.permute.xlu0 %10607
      %10609 = vrot.lane.b32.xlu0 %v10063, 32
      %v10610 = vpop.permute.xlu0 %10609
      %10611 = vrot.lane.b32.xlu0 %v10064, 32
      %v10612 = vpop.permute.xlu0 %10611
      %10613 = vrot.lane.b32.xlu0 %v10065, 32
      %v10614 = vpop.permute.xlu0 %10613
      %10615 = vrot.lane.b32.xlu0 %v10066, 32
      %v10616 = vpop.permute.xlu0 %10615
      %10617 = vrot.lane.b32.xlu0 %v10067, 32
      %v10618 = vpop.permute.xlu0 %10617
      %10619 = vrot.lane.b32.xlu0 %v10068, 32
      %v10620 = vpop.permute.xlu0 %10619
      %10621 = vrot.lane.b32.xlu0 %v10069, 32
      %v10622 = vpop.permute.xlu0 %10621
      %10623 = vrot.lane.b32.xlu0 %v10070, 32
      %v10624 = vpop.permute.xlu0 %10623
      %10625 = vrot.lane.b32.xlu0 %v10071, 32
      %v10626 = vpop.permute.xlu0 %10625
      %10627 = vrot.lane.b32.xlu0 %v10072, 32
      %v10628 = vpop.permute.xlu0 %10627
      %10629 = vrot.lane.b32.xlu0 %v10073, 32
      %v10630 = vpop.permute.xlu0 %10629
      %10631 = vrot.lane.b32.xlu0 %v10074, 32
      %v10632 = vpop.permute.xlu0 %10631
      %10633 = vrot.lane.b32.xlu0 %v10075, 32
      %v10634 = vpop.permute.xlu0 %10633
      %10635 = vrot.lane.b32.xlu0 %v10076, 32
      %v10636 = vpop.permute.xlu0 %10635
      %10637 = vrot.lane.b32.xlu0 %v10077, 32
      %v10638 = vpop.permute.xlu0 %10637
      %10639 = vrot.lane.b32.xlu0 %v10078, 32
      %v10640 = vpop.permute.xlu0 %10639
      %10641 = vrot.lane.b32.xlu0 %v10079, 32
      %v10642 = vpop.permute.xlu0 %10641
      %10643 = vrot.lane.b32.xlu0 %v10080, 32
      %v10644 = vpop.permute.xlu0 %10643
      %10645 = vrot.lane.b32.xlu0 %v10081, 32
      %v10646 = vpop.permute.xlu0 %10645
      %10647 = vrot.lane.b32.xlu0 %v10082, 32
      %v10648 = vpop.permute.xlu0 %10647
      %10649 = vrot.lane.b32.xlu0 %v10083, 32
      %v10650 = vpop.permute.xlu0 %10649
      %10651 = vrot.lane.b32.xlu0 %v10084, 32
      %v10652 = vpop.permute.xlu0 %10651
      %10653 = vrot.lane.b32.xlu0 %v10085, 32
      %v10654 = vpop.permute.xlu0 %10653
      %10655 = vrot.lane.b32.xlu0 %v10086, 32
      %v10656 = vpop.permute.xlu0 %10655
      %10657 = vrot.lane.b32.xlu0 %v10087, 32
      %v10658 = vpop.permute.xlu0 %10657
      %10659 = vrot.lane.b32.xlu0 %v10088, 32
      %v10660 = vpop.permute.xlu0 %10659
      %10661 = vrot.lane.b32.xlu0 %v10089, 32
      %v10662 = vpop.permute.xlu0 %10661
      %10663 = vrot.lane.b32.xlu0 %v10090, 32
      %v10664 = vpop.permute.xlu0 %10663
      %10665 = vrot.lane.b32.xlu0 %v10091, 32
      %v10666 = vpop.permute.xlu0 %10665
      %10667 = vrot.lane.b32.xlu0 %v10092, 32
      %v10668 = vpop.permute.xlu0 %10667
      %10733 = vrot.lane.b32.xlu0 %v10093, 64
      %v10734 = vpop.permute.xlu0 %10733
      %10735 = vrot.lane.b32.xlu0 %v10094, 64
      %v10736 = vpop.permute.xlu0 %10735
      %10737 = vrot.lane.b32.xlu0 %v10095, 64
      %v10738 = vpop.permute.xlu0 %10737
      %10739 = vrot.lane.b32.xlu0 %v10096, 64
      %v10740 = vpop.permute.xlu0 %10739
      %10741 = vrot.lane.b32.xlu0 %v10097, 64
      %v10742 = vpop.permute.xlu0 %10741
      %10743 = vrot.lane.b32.xlu0 %v10098, 64
      %v10744 = vpop.permute.xlu0 %10743
      %10745 = vrot.lane.b32.xlu0 %v10099, 64
      %v10746 = vpop.permute.xlu0 %10745
      %10747 = vrot.lane.b32.xlu0 %v10100, 64
      %v10748 = vpop.permute.xlu0 %10747
      %10749 = vrot.lane.b32.xlu0 %v10101, 64
      %v10750 = vpop.permute.xlu0 %10749
      %10751 = vrot.lane.b32.xlu0 %v10102, 64
      %v10752 = vpop.permute.xlu0 %10751
      %10753 = vrot.lane.b32.xlu0 %v10103, 64
      %v10754 = vpop.permute.xlu0 %10753
      %10755 = vrot.lane.b32.xlu0 %v10104, 64
      %v10756 = vpop.permute.xlu0 %10755
      %10757 = vrot.lane.b32.xlu0 %v10105, 64
      %v10758 = vpop.permute.xlu0 %10757
      %10759 = vrot.lane.b32.xlu0 %v10106, 64
      %v10760 = vpop.permute.xlu0 %10759
      %10761 = vrot.lane.b32.xlu0 %v10107, 64
      %v10762 = vpop.permute.xlu0 %10761
      %10763 = vrot.lane.b32.xlu0 %v10108, 64
      %v10764 = vpop.permute.xlu0 %10763
      %10765 = vrot.lane.b32.xlu0 %v10109, 64
      %v10766 = vpop.permute.xlu0 %10765
      %10767 = vrot.lane.b32.xlu0 %v10110, 64
      %v10768 = vpop.permute.xlu0 %10767
      %10769 = vrot.lane.b32.xlu0 %v10111, 64
      %v10770 = vpop.permute.xlu0 %10769
      %10771 = vrot.lane.b32.xlu0 %v10112, 64
      %v10772 = vpop.permute.xlu0 %10771
      %10773 = vrot.lane.b32.xlu0 %v10113, 64
      %v10774 = vpop.permute.xlu0 %10773
      %10775 = vrot.lane.b32.xlu0 %v10114, 64
      %v10776 = vpop.permute.xlu0 %10775
      %10777 = vrot.lane.b32.xlu0 %v10115, 64
      %v10778 = vpop.permute.xlu0 %10777
      %10779 = vrot.lane.b32.xlu0 %v10116, 64
      %v10780 = vpop.permute.xlu0 %10779
      %10781 = vrot.lane.b32.xlu0 %v10117, 64
      %v10782 = vpop.permute.xlu0 %10781
      %10783 = vrot.lane.b32.xlu0 %v10118, 64
      %v10784 = vpop.permute.xlu0 %10783
      %10785 = vrot.lane.b32.xlu0 %v10119, 64
      %v10786 = vpop.permute.xlu0 %10785
      %10787 = vrot.lane.b32.xlu0 %v10120, 64
      %v10788 = vpop.permute.xlu0 %10787
      %10789 = vrot.lane.b32.xlu0 %v10121, 64
      %v10790 = vpop.permute.xlu0 %10789
      %10791 = vrot.lane.b32.xlu0 %v10122, 64
      %v10792 = vpop.permute.xlu0 %10791
      %10793 = vrot.lane.b32.xlu0 %v10123, 64
      %v10794 = vpop.permute.xlu0 %10793
      %10795 = vrot.lane.b32.xlu0 %v10124, 64
      %v10796 = vpop.permute.xlu0 %10795
      %10861 = vrot.lane.b32.xlu0 %v10125, 96
      %v10862 = vpop.permute.xlu0 %10861
      %10863 = vrot.lane.b32.xlu0 %v10126, 96
      %v10864 = vpop.permute.xlu0 %10863
      %10865 = vrot.lane.b32.xlu0 %v10127, 96
      %v10866 = vpop.permute.xlu0 %10865
      %10867 = vrot.lane.b32.xlu0 %v10128, 96
      %v10868 = vpop.permute.xlu0 %10867
      %10869 = vrot.lane.b32.xlu0 %v10129, 96
      %v10870 = vpop.permute.xlu0 %10869
      %10871 = vrot.lane.b32.xlu0 %v10130, 96
      %v10872 = vpop.permute.xlu0 %10871
      %10873 = vrot.lane.b32.xlu0 %v10131, 96
      %v10874 = vpop.permute.xlu0 %10873
      %10875 = vrot.lane.b32.xlu0 %v10132, 96
      %v10876 = vpop.permute.xlu0 %10875
      %10877 = vrot.lane.b32.xlu0 %v10133, 96
      %v10878 = vpop.permute.xlu0 %10877
      %10879 = vrot.lane.b32.xlu0 %v10134, 96
      %v10880 = vpop.permute.xlu0 %10879
      %10881 = vrot.lane.b32.xlu0 %v10135, 96
      %v10882 = vpop.permute.xlu0 %10881
      %10883 = vrot.lane.b32.xlu0 %v10136, 96
      %v10884 = vpop.permute.xlu0 %10883
      %10885 = vrot.lane.b32.xlu0 %v10137, 96
      %v10886 = vpop.permute.xlu0 %10885
      %10887 = vrot.lane.b32.xlu0 %v10138, 96
      %v10888 = vpop.permute.xlu0 %10887
      %10889 = vrot.lane.b32.xlu0 %v10139, 96
      %v10890 = vpop.permute.xlu0 %10889
      %10891 = vrot.lane.b32.xlu0 %v10140, 96
      %v10892 = vpop.permute.xlu0 %10891
      %10893 = vrot.lane.b32.xlu0 %v10141, 96
      %v10894 = vpop.permute.xlu0 %10893
      %10895 = vrot.lane.b32.xlu0 %v10142, 96
      %v10896 = vpop.permute.xlu0 %10895
      %10897 = vrot.lane.b32.xlu0 %v10143, 96
      %v10898 = vpop.permute.xlu0 %10897
      %10899 = vrot.lane.b32.xlu0 %v10144, 96
      %v10900 = vpop.permute.xlu0 %10899
      %10901 = vrot.lane.b32.xlu0 %v10145, 96
      %v10902 = vpop.permute.xlu0 %10901
      %10903 = vrot.lane.b32.xlu0 %v10146, 96
      %v10904 = vpop.permute.xlu0 %10903
      %10905 = vrot.lane.b32.xlu0 %v10147, 96
      %v10906 = vpop.permute.xlu0 %10905
      %10907 = vrot.lane.b32.xlu0 %v10148, 96
      %v10908 = vpop.permute.xlu0 %10907
      %10909 = vrot.lane.b32.xlu0 %v10149, 96
      %v10910 = vpop.permute.xlu0 %10909
      %10911 = vrot.lane.b32.xlu0 %v10150, 96
      %v10912 = vpop.permute.xlu0 %10911
      %10913 = vrot.lane.b32.xlu0 %v10151, 96
      %v10914 = vpop.permute.xlu0 %10913
      %10915 = vrot.lane.b32.xlu0 %v10152, 96
      %v10916 = vpop.permute.xlu0 %10915
      %10917 = vrot.lane.b32.xlu0 %v10153, 96
      %v10918 = vpop.permute.xlu0 %10917
      %10919 = vrot.lane.b32.xlu0 %v10154, 96
      %v10920 = vpop.permute.xlu0 %10919
      %10921 = vrot.lane.b32.xlu0 %v10155, 96
      %v10922 = vpop.permute.xlu0 %10921
      %10923 = vrot.lane.b32.xlu0 %v10156, 96
      %v10924 = vpop.permute.xlu0 %10923
      %v10957 = vsel %vm225, %v9901, %v10222
      %v10958 = vsel %vm225, %v9902, %v10224
      %v10959 = vsel %vm225, %v9903, %v10226
      %v10960 = vsel %vm225, %v9904, %v10228
      %v10961 = vsel %vm225, %v9905, %v10230
      %v10962 = vsel %vm225, %v9906, %v10232
      %v10963 = vsel %vm225, %v9907, %v10234
      %v10964 = vsel %vm225, %v9908, %v10236
      %v10965 = vsel %vm225, %v9909, %v10238
      %v10966 = vsel %vm225, %v9910, %v10240
      %v10967 = vsel %vm225, %v9911, %v10242
      %v10968 = vsel %vm225, %v9912, %v10244
      %v10969 = vsel %vm225, %v9913, %v10246
      %v10970 = vsel %vm225, %v9914, %v10248
      %v10971 = vsel %vm225, %v9915, %v10250
      %v10972 = vsel %vm225, %v9916, %v10252
      %v10973 = vsel %vm225, %v9917, %v10254
      %v10974 = vsel %vm225, %v9918, %v10256
      %v10975 = vsel %vm225, %v9919, %v10258
      %v10976 = vsel %vm225, %v9920, %v10260
      %v10977 = vsel %vm225, %v9921, %v10262
      %v10978 = vsel %vm225, %v9922, %v10264
      %v10979 = vsel %vm225, %v9923, %v10266
      %v10980 = vsel %vm225, %v9924, %v10268
      %v10981 = vsel %vm225, %v9925, %v10270
      %v10982 = vsel %vm225, %v9926, %v10272
      %v10983 = vsel %vm225, %v9927, %v10274
      %v10984 = vsel %vm225, %v9928, %v10276
      %v10985 = vsel %vm225, %v9929, %v10278
      %v10986 = vsel %vm225, %v9930, %v10280
      %v10987 = vsel %vm225, %v9931, %v10282
      %v10988 = vsel %vm225, %v9932, %v10284
      %v10989 = vsel %vm1474, %v10957, %v10350
      %v10990 = vsel %vm1474, %v10958, %v10352
      %v10991 = vsel %vm1474, %v10959, %v10354
      %v10992 = vsel %vm1474, %v10960, %v10356
      %v10993 = vsel %vm1474, %v10961, %v10358
      %v10994 = vsel %vm1474, %v10962, %v10360
      %v10995 = vsel %vm1474, %v10963, %v10362
      %v10996 = vsel %vm1474, %v10964, %v10364
      %v10997 = vsel %vm1474, %v10965, %v10366
      %v10998 = vsel %vm1474, %v10966, %v10368
      %v10999 = vsel %vm1474, %v10967, %v10370
      %v11000 = vsel %vm1474, %v10968, %v10372
      %v11001 = vsel %vm1474, %v10969, %v10374
      %v11002 = vsel %vm1474, %v10970, %v10376
      %v11003 = vsel %vm1474, %v10971, %v10378
      %v11004 = vsel %vm1474, %v10972, %v10380
      %v11005 = vsel %vm1474, %v10973, %v10382
      %v11006 = vsel %vm1474, %v10974, %v10384
      %v11007 = vsel %vm1474, %v10975, %v10386
      %v11008 = vsel %vm1474, %v10976, %v10388
      %v11009 = vsel %vm1474, %v10977, %v10390
      %v11010 = vsel %vm1474, %v10978, %v10392
      %v11011 = vsel %vm1474, %v10979, %v10394
      %v11012 = vsel %vm1474, %v10980, %v10396
      %v11013 = vsel %vm1474, %v10981, %v10398
      %v11014 = vsel %vm1474, %v10982, %v10400
      %v11015 = vsel %vm1474, %v10983, %v10402
      %v11016 = vsel %vm1474, %v10984, %v10404
      %v11017 = vsel %vm1474, %v10985, %v10406
      %v11018 = vsel %vm1474, %v10986, %v10408
      %v11019 = vsel %vm1474, %v10987, %v10410
      %v11020 = vsel %vm1474, %v10988, %v10412
      %v11021 = vsel %vm1507, %v10989, %v10478
      %v11022 = vsel %vm1507, %v10990, %v10480
      %v11023 = vsel %vm1507, %v10991, %v10482
      %v11024 = vsel %vm1507, %v10992, %v10484
      %v11025 = vsel %vm1507, %v10993, %v10486
      %v11026 = vsel %vm1507, %v10994, %v10488
      %v11027 = vsel %vm1507, %v10995, %v10490
      %v11028 = vsel %vm1507, %v10996, %v10492
      %v11029 = vsel %vm1507, %v10997, %v10494
      %v11030 = vsel %vm1507, %v10998, %v10496
      %v11031 = vsel %vm1507, %v10999, %v10498
      %v11032 = vsel %vm1507, %v11000, %v10500
      %v11033 = vsel %vm1507, %v11001, %v10502
      %v11034 = vsel %vm1507, %v11002, %v10504
      %v11035 = vsel %vm1507, %v11003, %v10506
      %v11036 = vsel %vm1507, %v11004, %v10508
      %v11037 = vsel %vm1507, %v11005, %v10510
      %v11038 = vsel %vm1507, %v11006, %v10512
      %v11039 = vsel %vm1507, %v11007, %v10514
      %v11040 = vsel %vm1507, %v11008, %v10516
      %v11041 = vsel %vm1507, %v11009, %v10518
      %v11042 = vsel %vm1507, %v11010, %v10520
      %v11043 = vsel %vm1507, %v11011, %v10522
      %v11044 = vsel %vm1507, %v11012, %v10524
      %v11045 = vsel %vm1507, %v11013, %v10526
      %v11046 = vsel %vm1507, %v11014, %v10528
      %v11047 = vsel %vm1507, %v11015, %v10530
      %v11048 = vsel %vm1507, %v11016, %v10532
      %v11049 = vsel %vm1507, %v11017, %v10534
      %v11050 = vsel %vm1507, %v11018, %v10536
      %v11051 = vsel %vm1507, %v11019, %v10538
      %v11052 = vsel %vm1507, %v11020, %v10540
      %v11053 = vsel %vm225, %v10029, %v10606
      %v11054 = vsel %vm225, %v10030, %v10608
      %v11055 = vsel %vm225, %v10031, %v10610
      %v11056 = vsel %vm225, %v10032, %v10612
      %v11057 = vsel %vm225, %v10033, %v10614
      %v11058 = vsel %vm225, %v10034, %v10616
      %v11059 = vsel %vm225, %v10035, %v10618
      %v11060 = vsel %vm225, %v10036, %v10620
      %v11061 = vsel %vm225, %v10037, %v10622
      %v11062 = vsel %vm225, %v10038, %v10624
      %v11063 = vsel %vm225, %v10039, %v10626
      %v11064 = vsel %vm225, %v10040, %v10628
      %v11065 = vsel %vm225, %v10041, %v10630
      %v11066 = vsel %vm225, %v10042, %v10632
      %v11067 = vsel %vm225, %v10043, %v10634
      %v11068 = vsel %vm225, %v10044, %v10636
      %v11069 = vsel %vm225, %v10045, %v10638
      %v11070 = vsel %vm225, %v10046, %v10640
      %v11071 = vsel %vm225, %v10047, %v10642
      %v11072 = vsel %vm225, %v10048, %v10644
      %v11073 = vsel %vm225, %v10049, %v10646
      %v11074 = vsel %vm225, %v10050, %v10648
      %v11075 = vsel %vm225, %v10051, %v10650
      %v11076 = vsel %vm225, %v10052, %v10652
      %v11077 = vsel %vm225, %v10053, %v10654
      %v11078 = vsel %vm225, %v10054, %v10656
      %v11079 = vsel %vm225, %v10055, %v10658
      %v11080 = vsel %vm225, %v10056, %v10660
      %v11081 = vsel %vm225, %v10057, %v10662
      %v11082 = vsel %vm225, %v10058, %v10664
      %v11083 = vsel %vm225, %v10059, %v10666
      %v11084 = vsel %vm225, %v10060, %v10668
      %v11085 = vsel %vm1474, %v11053, %v10734
      %v11086 = vsel %vm1474, %v11054, %v10736
      %v11087 = vsel %vm1474, %v11055, %v10738
      %v11088 = vsel %vm1474, %v11056, %v10740
      %v11089 = vsel %vm1474, %v11057, %v10742
      %v11090 = vsel %vm1474, %v11058, %v10744
      %v11091 = vsel %vm1474, %v11059, %v10746
      %v11092 = vsel %vm1474, %v11060, %v10748
      %v11093 = vsel %vm1474, %v11061, %v10750
      %v11094 = vsel %vm1474, %v11062, %v10752
      %v11095 = vsel %vm1474, %v11063, %v10754
      %v11096 = vsel %vm1474, %v11064, %v10756
      %v11097 = vsel %vm1474, %v11065, %v10758
      %v11098 = vsel %vm1474, %v11066, %v10760
      %v11099 = vsel %vm1474, %v11067, %v10762
      %v11100 = vsel %vm1474, %v11068, %v10764
      %v11101 = vsel %vm1474, %v11069, %v10766
      %v11102 = vsel %vm1474, %v11070, %v10768
      %v11103 = vsel %vm1474, %v11071, %v10770
      %v11104 = vsel %vm1474, %v11072, %v10772
      %v11105 = vsel %vm1474, %v11073, %v10774
      %v11106 = vsel %vm1474, %v11074, %v10776
      %v11107 = vsel %vm1474, %v11075, %v10778
      %v11108 = vsel %vm1474, %v11076, %v10780
      %v11109 = vsel %vm1474, %v11077, %v10782
      %v11110 = vsel %vm1474, %v11078, %v10784
      %v11111 = vsel %vm1474, %v11079, %v10786
      %v11112 = vsel %vm1474, %v11080, %v10788
      %v11113 = vsel %vm1474, %v11081, %v10790
      %v11114 = vsel %vm1474, %v11082, %v10792
      %v11115 = vsel %vm1474, %v11083, %v10794
      %v11116 = vsel %vm1474, %v11084, %v10796
      %v11117 = vsel %vm1507, %v11085, %v10862
      %v11118 = vsel %vm1507, %v11086, %v10864
      %v11119 = vsel %vm1507, %v11087, %v10866
      %v11120 = vsel %vm1507, %v11088, %v10868
      %v11121 = vsel %vm1507, %v11089, %v10870
      %v11122 = vsel %vm1507, %v11090, %v10872
      %v11123 = vsel %vm1507, %v11091, %v10874
      %v11124 = vsel %vm1507, %v11092, %v10876
      %v11125 = vsel %vm1507, %v11093, %v10878
      %v11126 = vsel %vm1507, %v11094, %v10880
      %v11127 = vsel %vm1507, %v11095, %v10882
      %v11128 = vsel %vm1507, %v11096, %v10884
      %v11129 = vsel %vm1507, %v11097, %v10886
      %v11130 = vsel %vm1507, %v11098, %v10888
      %v11131 = vsel %vm1507, %v11099, %v10890
      %v11132 = vsel %vm1507, %v11100, %v10892
      %v11133 = vsel %vm1507, %v11101, %v10894
      %v11134 = vsel %vm1507, %v11102, %v10896
      %v11135 = vsel %vm1507, %v11103, %v10898
      %v11136 = vsel %vm1507, %v11104, %v10900
      %v11137 = vsel %vm1507, %v11105, %v10902
      %v11138 = vsel %vm1507, %v11106, %v10904
      %v11139 = vsel %vm1507, %v11107, %v10906
      %v11140 = vsel %vm1507, %v11108, %v10908
      %v11141 = vsel %vm1507, %v11109, %v10910
      %v11142 = vsel %vm1507, %v11110, %v10912
      %v11143 = vsel %vm1507, %v11111, %v10914
      %v11144 = vsel %vm1507, %v11112, %v10916
      %v11145 = vsel %vm1507, %v11113, %v10918
      %v11146 = vsel %vm1507, %v11114, %v10920
      %v11147 = vsel %vm1507, %v11115, %v10922
      %v11148 = vsel %vm1507, %v11116, %v10924
      %s11149 = scalar_lea.vmem %s1, 1440
      %v11150 = vld [vmem:[%s11149] sm:$0xff]
      %v11151 = vld [vmem:[%s11149 + $0x8] sm:$0xff]
      %v11152 = vld [vmem:[%s11149 + $0x10] sm:$0xff]
      %v11153 = vld [vmem:[%s11149 + $0x18] sm:$0xff]
      %v11154 = vld [vmem:[%s11149 + $0x20] sm:$0xff]
      %v11155 = vld [vmem:[%s11149 + $0x28] sm:$0xff]
      %v11156 = vld [vmem:[%s11149 + $0x30] sm:$0xff]
      %v11157 = vld [vmem:[%s11149 + $0x38] sm:$0xff]
      %v11158 = vld [vmem:[%s11149 + $0x40] sm:$0xff]
      %v11159 = vld [vmem:[%s11149 + $0x48] sm:$0xff]
      %v11160 = vld [vmem:[%s11149 + $0x50] sm:$0xff]
      %v11161 = vld [vmem:[%s11149 + $0x58] sm:$0xff]
      %v11162 = vld [vmem:[%s11149 + $0x60] sm:$0xff]
      %v11163 = vld [vmem:[%s11149 + $0x68] sm:$0xff]
      %v11164 = vld [vmem:[%s11149 + $0x70] sm:$0xff]
      %v11165 = vld [vmem:[%s11149 + $0x78] sm:$0xff]
      %v11166 = vld [vmem:[%s11149 + $0x80] sm:$0xff]
      %v11167 = vld [vmem:[%s11149 + $0x88] sm:$0xff]
      %v11168 = vld [vmem:[%s11149 + $0x90] sm:$0xff]
      %v11169 = vld [vmem:[%s11149 + $0x98] sm:$0xff]
      %v11170 = vld [vmem:[%s11149 + $0xa0] sm:$0xff]
      %v11171 = vld [vmem:[%s11149 + $0xa8] sm:$0xff]
      %v11172 = vld [vmem:[%s11149 + $0xb0] sm:$0xff]
      %v11173 = vld [vmem:[%s11149 + $0xb8] sm:$0xff]
      %v11174 = vld [vmem:[%s11149 + $0xc0] sm:$0xff]
      %v11175 = vld [vmem:[%s11149 + $0xc8] sm:$0xff]
      %v11176 = vld [vmem:[%s11149 + $0xd0] sm:$0xff]
      %v11177 = vld [vmem:[%s11149 + $0xd8] sm:$0xff]
      %v11178 = vld [vmem:[%s11149 + $0xe0] sm:$0xff]
      %v11179 = vld [vmem:[%s11149 + $0xe8] sm:$0xff]
      %v11180 = vld [vmem:[%s11149 + $0xf0] sm:$0xff]
      %v11181 = vld [vmem:[%s11149 + $0xf8] sm:$0xff]
      %v11182 = vld [vmem:[%s11149 + $0x100] sm:$0xff]
      %v11183 = vld [vmem:[%s11149 + $0x108] sm:$0xff]
      %v11184 = vld [vmem:[%s11149 + $0x110] sm:$0xff]
      %v11185 = vld [vmem:[%s11149 + $0x118] sm:$0xff]
      %s11186 = scalar_lea.vmem %s2, 5
      %v11187 = vld [vmem:[%s11186] sm:$0x1]
      %v11189 = vlaneseq
      %v11190 = vshrl.u32 %v11189, 7
      %v11191 = vsub.s32 0, %v11190
      %v11192 = vrot.slane %v11187, %v11191
      %v11195 = vsel %vm225, %v10157, 0
      %v11198 = vsel %vm225, %v10158, 0
      %v11201 = vsel %vm225, %v10159, 0
      %v11204 = vsel %vm225, %v10160, 0
      %v11207 = vsel %vm225, %v10161, 0
      %v11210 = vsel %vm225, %v10162, 0
      %v11213 = vsel %vm225, %v10163, 0
      %v11216 = vsel %vm225, %v10164, 0
      %v11219 = vsel %vm225, %v10165, 0
      %v11222 = vsel %vm225, %v10166, 0
      %v11225 = vsel %vm225, %v10167, 0
      %v11228 = vsel %vm225, %v10168, 0
      %v11231 = vsel %vm225, %v10169, 0
      %v11234 = vsel %vm225, %v10170, 0
      %v11237 = vsel %vm225, %v10171, 0
      %v11240 = vsel %vm225, %v10172, 0
      %v11243 = vsel %vm225, %v10173, 0
      %v11246 = vsel %vm225, %v10174, 0
      %v11249 = vsel %vm225, %v10175, 0
      %v11252 = vsel %vm225, %v10176, 0
      %v11255 = vsel %vm225, %v10177, 0
      %v11258 = vsel %vm225, %v10178, 0
      %v11261 = vsel %vm225, %v10179, 0
      %v11264 = vsel %vm225, %v10180, 0
      %v11267 = vsel %vm225, %v10181, 0
      %v11270 = vsel %vm225, %v10182, 0
      %v11273 = vsel %vm225, %v10183, 0
      %v11276 = vsel %vm225, %v10184, 0
      %v11279 = vsel %vm225, %v10185, 0
      %v11282 = vsel %vm225, %v10186, 0
      %v11285 = vsel %vm225, %v10187, 0
      %v11288 = vsel %vm225, %v10188, 0
      %11290 = vmatprep.subr.mxu0 0.0
      %11291 = vmatpush1.msra.mxu0 %v11150
      %11292 = vmatprep.subr.mxu0 0.0
      %11293 = vmatpush1.msra.mxu0 %v11151
      %11294 = vmatprep.subr.mxu0 0.0
      %11295 = vmatpush1.msra.mxu0 %v11152
      %11296 = vmatprep.subr.mxu0 0.0
      %11297 = vmatpush1.msra.mxu0 %v11153
      %11298 = vmatprep.subr.mxu0 0.0
      %11299 = vmatpush1.msra.mxu0 %v11154
      %11300 = vmatprep.subr.mxu0 0.0
      %11301 = vmatpush1.msra.mxu0 %v11155
      %11302 = vmatprep.subr.mxu0 0.0
      %11303 = vmatpush1.msra.mxu0 %v11156
      %11304 = vmatprep.subr.mxu0 0.0
      %11305 = vmatpush1.msra.mxu0 %v11157
      %11306 = vmatprep.subr.mxu0 0.0
      %11307 = vmatpush1.msra.mxu0 %v11158
      %11308 = vmatprep.subr.mxu0 0.0
      %11309 = vmatpush1.msra.mxu0 %v11159
      %11310 = vmatprep.subr.mxu0 0.0
      %11311 = vmatpush1.msra.mxu0 %v11160
      %11312 = vmatprep.subr.mxu0 0.0
      %11313 = vmatpush1.msra.mxu0 %v11161
      %11314 = vmatprep.subr.mxu0 0.0
      %11315 = vmatpush1.msra.mxu0 %v11162
      %11316 = vmatprep.subr.mxu0 0.0
      %11317 = vmatpush1.msra.mxu0 %v11163
      %11318 = vmatprep.subr.mxu0 0.0
      %11319 = vmatpush1.msra.mxu0 %v11164
      %11320 = vmatprep.subr.mxu0 0.0
      %11321 = vmatpush1.msra.mxu0 %v11165
      %11322 = vmatprep.subr.mxu0 0.0
      %11323 = vmatpush1.msra.mxu0 %v11166
      %11324 = vmatprep.subr.mxu0 0.0
      %11325 = vmatpush1.msra.mxu0 %v11167
      %11326 = vmatprep.subr.mxu0 0.0
      %11327 = vmatpush1.msra.mxu0 %v11168
      %11328 = vmatprep.subr.mxu0 0.0
      %11329 = vmatpush1.msra.mxu0 %v11169
      %11330 = vmatprep.subr.mxu0 0.0
      %11331 = vmatpush1.msra.mxu0 %v11170
      %11332 = vmatprep.subr.mxu0 0.0
      %11333 = vmatpush1.msra.mxu0 %v11171
      %11334 = vmatprep.subr.mxu0 0.0
      %11335 = vmatpush1.msra.mxu0 %v11172
      %11336 = vmatprep.subr.mxu0 0.0
      %11337 = vmatpush1.msra.mxu0 %v11173
      %11338 = vmatprep.subr.mxu0 0.0
      %11339 = vmatpush1.msra.mxu0 %v11174
      %11340 = vmatprep.subr.mxu0 0.0
      %11341 = vmatpush1.msra.mxu0 %v11175
      %11342 = vmatprep.subr.mxu0 0.0
      %11343 = vmatpush1.msra.mxu0 %v11176
      %11344 = vmatprep.subr.mxu0 0.0
      %11345 = vmatpush1.msra.mxu0 %v11177
      %11346 = vmatprep.subr.mxu0 0.0
      %11347 = vmatpush1.msra.mxu0 %v11178
      %11348 = vmatprep.subr.mxu0 0.0
      %11349 = vmatpush1.msra.mxu0 %v11179
      %11350 = vmatprep.subr.mxu0 0.0
      %11351 = vmatpush1.msra.mxu0 %v11180
      %11352 = vmatprep.subr.mxu0 0.0
      %11353 = vmatpush1.msra.mxu0 %v11181
      %11354 = vmatprep.mubr.f32.mxu0 %v11117
      %11355 = vmatmul.mubr.f32.gmra.mrb[0].mxu0 %v11021
      %v11356 = vpop.f32.mrb[0].mxu0
      %v11357 = vadd.f32 %v11192, %v11356
      %v11358 = vpop.f32.mrb[0].mxu0
      %11359 = vmatprep.mubr.f32.mxu0 %v11118
      %11360 = vmatmul.mubr.f32.gmra.mrb[0].mxu0 %v11022
      %v11361 = vpop.f32.mrb[0].mxu0
      %v11362 = vadd.f32 %v11192, %v11361
      %v11363 = vpop.f32.mrb[0].mxu0
      %11364 = vmatprep.mubr.f32.mxu0 %v11119
      %11365 = vmatmul.mubr.f32.gmra.mrb[0].mxu0 %v11023
      %v11366 = vpop.f32.mrb[0].mxu0
      %v11367 = vadd.f32 %v11192, %v11366
      %v11368 = vpop.f32.mrb[0].mxu0
      %11369 = vmatprep.mubr.f32.mxu0 %v11120
      %11370 = vmatmul.mubr.f32.gmra.mrb[0].mxu0 %v11024
      %v11371 = vpop.f32.mrb[0].mxu0
      %v11372 = vadd.f32 %v11192, %v11371
      %v11373 = vpop.f32.mrb[0].mxu0
      %11374 = vmatprep.mubr.f32.mxu0 %v11121
      %11375 = vmatmul.mubr.f32.gmra.mrb[0].mxu0 %v11025
      %v11376 = vpop.f32.mrb[0].mxu0
      %v11377 = vadd.f32 %v11192, %v11376
      %v11378 = vpop.f32.mrb[0].mxu0
      %11379 = vmatprep.mubr.f32.mxu0 %v11122
      %11380 = vmatmul.mubr.f32.gmra.mrb[0].mxu0 %v11026
      %v11381 = vpop.f32.mrb[0].mxu0
      %v11382 = vadd.f32 %v11192, %v11381
      %v11383 = vpop.f32.mrb[0].mxu0
      %11384 = vmatprep.mubr.f32.mxu0 %v11123
      %11385 = vmatmul.mubr.f32.gmra.mrb[0].mxu0 %v11027
      %v11386 = vpop.f32.mrb[0].mxu0
      %v11387 = vadd.f32 %v11192, %v11386
      %v11388 = vpop.f32.mrb[0].mxu0
      %11389 = vmatprep.mubr.f32.mxu0 %v11124
      %11390 = vmatmul.mubr.f32.gmra.mrb[0].mxu0 %v11028
      %v11391 = vpop.f32.mrb[0].mxu0
      %v11392 = vadd.f32 %v11192, %v11391
      %v11393 = vpop.f32.mrb[0].mxu0
      %11394 = vmatprep.mubr.f32.mxu0 %v11125
      %11395 = vmatmul.mubr.f32.gmra.mrb[0].mxu0 %v11029
      %v11396 = vpop.f32.mrb[0].mxu0
      %v11397 = vadd.f32 %v11192, %v11396
      %v11398 = vpop.f32.mrb[0].mxu0
      %11399 = vmatprep.mubr.f32.mxu0 %v11126
      %11400 = vmatmul.mubr.f32.gmra.mrb[0].mxu0 %v11030
      %v11401 = vpop.f32.mrb[0].mxu0
      %v11402 = vadd.f32 %v11192, %v11401
      %v11403 = vpop.f32.mrb[0].mxu0
      %11404 = vmatprep.mubr.f32.mxu0 %v11127
      %11405 = vmatmul.mubr.f32.gmra.mrb[0].mxu0 %v11031
      %v11406 = vpop.f32.mrb[0].mxu0
      %v11407 = vadd.f32 %v11192, %v11406
      %v11408 = vpop.f32.mrb[0].mxu0
      %11409 = vmatprep.mubr.f32.mxu0 %v11128
      %11410 = vmatmul.mubr.f32.gmra.mrb[0].mxu0 %v11032
      %v11411 = vpop.f32.mrb[0].mxu0
      %v11412 = vadd.f32 %v11192, %v11411
      %v11413 = vpop.f32.mrb[0].mxu0
      %11414 = vmatprep.mubr.f32.mxu0 %v11129
      %11415 = vmatmul.mubr.f32.gmra.mrb[0].mxu0 %v11033
      %v11416 = vpop.f32.mrb[0].mxu0
      %v11417 = vadd.f32 %v11192, %v11416
      %v11418 = vpop.f32.mrb[0].mxu0
      %11419 = vmatprep.mubr.f32.mxu0 %v11130
      %11420 = vmatmul.mubr.f32.gmra.mrb[0].mxu0 %v11034
      %v11421 = vpop.f32.mrb[0].mxu0
      %v11422 = vadd.f32 %v11192, %v11421
      %v11423 = vpop.f32.mrb[0].mxu0
      %11424 = vmatprep.mubr.f32.mxu0 %v11131
      %11425 = vmatmul.mubr.f32.gmra.mrb[0].mxu0 %v11035
      %v11426 = vpop.f32.mrb[0].mxu0
      %v11427 = vadd.f32 %v11192, %v11426
      %v11428 = vpop.f32.mrb[0].mxu0
      %11429 = vmatprep.mubr.f32.mxu0 %v11132
      %11430 = vmatmul.mubr.f32.gmra.mrb[0].mxu0 %v11036
      %v11431 = vpop.f32.mrb[0].mxu0
      %v11432 = vadd.f32 %v11192, %v11431
      %v11433 = vpop.f32.mrb[0].mxu0
      %11434 = vmatprep.mubr.f32.mxu0 %v11133
      %11435 = vmatmul.mubr.f32.gmra.mrb[0].mxu0 %v11037
      %v11436 = vpop.f32.mrb[0].mxu0
      %v11437 = vadd.f32 %v11192, %v11436
      %v11438 = vpop.f32.mrb[0].mxu0
      %11439 = vmatprep.mubr.f32.mxu0 %v11134
      %11440 = vmatmul.mubr.f32.gmra.mrb[0].mxu0 %v11038
      %v11441 = vpop.f32.mrb[0].mxu0
      %v11442 = vadd.f32 %v11192, %v11441
      %v11443 = vpop.f32.mrb[0].mxu0
      %11444 = vmatprep.mubr.f32.mxu0 %v11135
      %11445 = vmatmul.mubr.f32.gmra.mrb[0].mxu0 %v11039
      %v11446 = vpop.f32.mrb[0].mxu0
      %v11447 = vadd.f32 %v11192, %v11446
      %v11448 = vpop.f32.mrb[0].mxu0
      %11449 = vmatprep.mubr.f32.mxu0 %v11136
      %11450 = vmatmul.mubr.f32.gmra.mrb[0].mxu0 %v11040
      %v11451 = vpop.f32.mrb[0].mxu0
      %v11452 = vadd.f32 %v11192, %v11451
      %v11453 = vpop.f32.mrb[0].mxu0
      %11454 = vmatprep.mubr.f32.mxu0 %v11137
      %11455 = vmatmul.mubr.f32.gmra.mrb[0].mxu0 %v11041
      %v11456 = vpop.f32.mrb[0].mxu0
      %v11457 = vadd.f32 %v11192, %v11456
      %v11458 = vpop.f32.mrb[0].mxu0
      %11459 = vmatprep.mubr.f32.mxu0 %v11138
      %11460 = vmatmul.mubr.f32.gmra.mrb[0].mxu0 %v11042
      %v11461 = vpop.f32.mrb[0].mxu0
      %v11462 = vadd.f32 %v11192, %v11461
      %v11463 = vpop.f32.mrb[0].mxu0
      %11464 = vmatprep.mubr.f32.mxu0 %v11139
      %11465 = vmatmul.mubr.f32.gmra.mrb[0].mxu0 %v11043
      %v11466 = vpop.f32.mrb[0].mxu0
      %v11467 = vadd.f32 %v11192, %v11466
      %v11468 = vpop.f32.mrb[0].mxu0
      %11469 = vmatprep.mubr.f32.mxu0 %v11140
      %11470 = vmatmul.mubr.f32.gmra.mrb[0].mxu0 %v11044
      %v11471 = vpop.f32.mrb[0].mxu0
      %v11472 = vadd.f32 %v11192, %v11471
      %v11473 = vpop.f32.mrb[0].mxu0
      %11474 = vmatprep.mubr.f32.mxu0 %v11141
      %11475 = vmatmul.mubr.f32.gmra.mrb[0].mxu0 %v11045
      %v11476 = vpop.f32.mrb[0].mxu0
      %v11477 = vadd.f32 %v11192, %v11476
      %v11478 = vpop.f32.mrb[0].mxu0
      %11479 = vmatprep.mubr.f32.mxu0 %v11142
      %11480 = vmatmul.mubr.f32.gmra.mrb[0].mxu0 %v11046
      %v11481 = vpop.f32.mrb[0].mxu0
      %v11482 = vadd.f32 %v11192, %v11481
      %v11483 = vpop.f32.mrb[0].mxu0
      %11484 = vmatprep.mubr.f32.mxu0 %v11143
      %11485 = vmatmul.mubr.f32.gmra.mrb[0].mxu0 %v11047
      %v11486 = vpop.f32.mrb[0].mxu0
      %v11487 = vadd.f32 %v11192, %v11486
      %v11488 = vpop.f32.mrb[0].mxu0
      %11489 = vmatprep.mubr.f32.mxu0 %v11144
      %11490 = vmatmul.mubr.f32.gmra.mrb[0].mxu0 %v11048
      %v11491 = vpop.f32.mrb[0].mxu0
      %v11492 = vadd.f32 %v11192, %v11491
      %v11493 = vpop.f32.mrb[0].mxu0
      %11494 = vmatprep.mubr.f32.mxu0 %v11145
      %11495 = vmatmul.mubr.f32.gmra.mrb[0].mxu0 %v11049
      %v11496 = vpop.f32.mrb[0].mxu0
      %v11497 = vadd.f32 %v11192, %v11496
      %v11498 = vpop.f32.mrb[0].mxu0
      %11499 = vmatprep.mubr.f32.mxu0 %v11146
      %11500 = vmatmul.mubr.f32.gmra.mrb[0].mxu0 %v11050
      %v11501 = vpop.f32.mrb[0].mxu0
      %v11502 = vadd.f32 %v11192, %v11501
      %v11503 = vpop.f32.mrb[0].mxu0
      %11504 = vmatprep.mubr.f32.mxu0 %v11147
      %11505 = vmatmul.mubr.f32.gmra.mrb[0].mxu0 %v11051
      %v11506 = vpop.f32.mrb[0].mxu0
      %v11507 = vadd.f32 %v11192, %v11506
      %v11508 = vpop.f32.mrb[0].mxu0
      %11509 = vmatprep.mubr.f32.mxu0 %v11148
      %11510 = vmatmul.mubr.f32.gmra.mrb[0].mxu0 %v11052
      %v11511 = vpop.f32.mrb[0].mxu0
      %v11512 = vadd.f32 %v11192, %v11511
      %v11513 = vpop.f32.mrb[0].mxu0
      %11514 = vdwg.mxu0
      %11515 = vmatprep.subr.mxu0 0.0
      %11516 = vmatpush1.msra.mxu0 %v11182
      %11517 = vmatprep.subr.mxu0 0.0
      %11518 = vmatpush1.msra.mxu0 %v11183
      %11519 = vmatprep.subr.mxu0 0.0
      %11520 = vmatpush1.msra.mxu0 %v11184
      %11521 = vmatprep.subr.mxu0 0.0
      %11522 = vmatpush1.msra.mxu0 %v11185
      %11523 = vmatprep.subr.mxu0 0.0
      %11524 = vmatpush1.msra.mxu0 0.0
      %11525 = vmatprep.subr.mxu0 0.0
      %11526 = vmatpush1.msra.mxu0 0.0
      %11527 = vmatprep.subr.mxu0 0.0
      %11528 = vmatpush1.msra.mxu0 0.0
      %11529 = vmatprep.subr.mxu0 0.0
      %11530 = vmatpush1.msra.mxu0 0.0
      %11531 = vmatprep.subr.mxu0 0.0
      %11532 = vmatpush1.msra.mxu0 0.0
      %11533 = vmatprep.subr.mxu0 0.0
      %11534 = vmatpush1.msra.mxu0 0.0
      %11535 = vmatprep.subr.mxu0 0.0
      %11536 = vmatpush1.msra.mxu0 0.0
      %11537 = vmatprep.subr.mxu0 0.0
      %11538 = vmatpush1.msra.mxu0 0.0
      %11539 = vmatprep.subr.mxu0 0.0
      %11540 = vmatpush1.msra.mxu0 0.0
      %11541 = vmatprep.subr.mxu0 0.0
      %11542 = vmatpush1.msra.mxu0 0.0
      %11543 = vmatprep.subr.mxu0 0.0
      %11544 = vmatpush1.msra.mxu0 0.0
      %11545 = vmatprep.subr.mxu0 0.0
      %11546 = vmatpush1.msra.mxu0 0.0
      %11547 = vmatprep.subr.mxu0 0.0
      %11548 = vmatpush1.msra.mxu0 0.0
      %11549 = vmatprep.subr.mxu0 0.0
      %11550 = vmatpush1.msra.mxu0 0.0
      %11551 = vmatprep.subr.mxu0 0.0
      %11552 = vmatpush1.msra.mxu0 0.0
      %11553 = vmatprep.subr.mxu0 0.0
      %11554 = vmatpush1.msra.mxu0 0.0
      %11555 = vmatprep.subr.mxu0 0.0
      %11556 = vmatpush1.msra.mxu0 0.0
      %11557 = vmatprep.subr.mxu0 0.0
      %11558 = vmatpush1.msra.mxu0 0.0
      %11559 = vmatprep.subr.mxu0 0.0
      %11560 = vmatpush1.msra.mxu0 0.0
      %11561 = vmatprep.subr.mxu0 0.0
      %11562 = vmatpush1.msra.mxu0 0.0
      %11563 = vmatprep.subr.mxu0 0.0
      %11564 = vmatpush1.msra.mxu0 0.0
      %11565 = vmatprep.subr.mxu0 0.0
      %11566 = vmatpush1.msra.mxu0 0.0
      %11567 = vmatprep.subr.mxu0 0.0
      %11568 = vmatpush1.msra.mxu0 0.0
      %11569 = vmatprep.subr.mxu0 0.0
      %11570 = vmatpush1.msra.mxu0 0.0
      %11571 = vmatprep.subr.mxu0 0.0
      %11572 = vmatpush1.msra.mxu0 0.0
      %11573 = vmatprep.subr.mxu0 0.0
      %11574 = vmatpush1.msra.mxu0 0.0
      %11575 = vmatprep.subr.mxu0 0.0
      %11576 = vmatpush1.msra.mxu0 0.0
      %11577 = vmatprep.subr.mxu0 0.0
      %11578 = vmatpush1.msra.mxu0 0.0
      %11579 = vmatprep.mubr.f32.mxu0 0.0
      %11580 = vmatmul.mubr.f32.gmra.mrb[0].mxu0 %v11195
      %v11581 = vpop.f32.mrb[0].mxu0
      %v11582 = vadd.f32 %v11357, %v11581
      %v11583 = vpop.f32.mrb[0].mxu0
      %11584 = vmatprep.mubr.f32.mxu0 0.0
      %11585 = vmatmul.mubr.f32.gmra.mrb[0].mxu0 %v11198
      %v11586 = vpop.f32.mrb[0].mxu0
      %v11587 = vadd.f32 %v11362, %v11586
      %v11588 = vpop.f32.mrb[0].mxu0
      %11589 = vmatprep.mubr.f32.mxu0 0.0
      %11590 = vmatmul.mubr.f32.gmra.mrb[0].mxu0 %v11201
      %v11591 = vpop.f32.mrb[0].mxu0
      %v11592 = vadd.f32 %v11367, %v11591
      %v11593 = vpop.f32.mrb[0].mxu0
      %11594 = vmatprep.mubr.f32.mxu0 0.0
      %11595 = vmatmul.mubr.f32.gmra.mrb[0].mxu0 %v11204
      %v11596 = vpop.f32.mrb[0].mxu0
      %v11597 = vadd.f32 %v11372, %v11596
      %v11598 = vpop.f32.mrb[0].mxu0
      %11599 = vmatprep.mubr.f32.mxu0 0.0
      %11600 = vmatmul.mubr.f32.gmra.mrb[0].mxu0 %v11207
      %v11601 = vpop.f32.mrb[0].mxu0
      %v11602 = vadd.f32 %v11377, %v11601
      %v11603 = vpop.f32.mrb[0].mxu0
      %11604 = vmatprep.mubr.f32.mxu0 0.0
      %11605 = vmatmul.mubr.f32.gmra.mrb[0].mxu0 %v11210
      %v11606 = vpop.f32.mrb[0].mxu0
      %v11607 = vadd.f32 %v11382, %v11606
      %v11608 = vpop.f32.mrb[0].mxu0
      %11609 = vmatprep.mubr.f32.mxu0 0.0
      %11610 = vmatmul.mubr.f32.gmra.mrb[0].mxu0 %v11213
      %v11611 = vpop.f32.mrb[0].mxu0
      %v11612 = vadd.f32 %v11387, %v11611
      %v11613 = vpop.f32.mrb[0].mxu0
      %11614 = vmatprep.mubr.f32.mxu0 0.0
      %11615 = vmatmul.mubr.f32.gmra.mrb[0].mxu0 %v11216
      %v11616 = vpop.f32.mrb[0].mxu0
      %v11617 = vadd.f32 %v11392, %v11616
      %v11618 = vpop.f32.mrb[0].mxu0
      %11619 = vmatprep.mubr.f32.mxu0 0.0
      %11620 = vmatmul.mubr.f32.gmra.mrb[0].mxu0 %v11219
      %v11621 = vpop.f32.mrb[0].mxu0
      %v11622 = vadd.f32 %v11397, %v11621
      %v11623 = vpop.f32.mrb[0].mxu0
      %11624 = vmatprep.mubr.f32.mxu0 0.0
      %11625 = vmatmul.mubr.f32.gmra.mrb[0].mxu0 %v11222
      %v11626 = vpop.f32.mrb[0].mxu0
      %v11627 = vadd.f32 %v11402, %v11626
      %v11628 = vpop.f32.mrb[0].mxu0
      %11629 = vmatprep.mubr.f32.mxu0 0.0
      %11630 = vmatmul.mubr.f32.gmra.mrb[0].mxu0 %v11225
      %v11631 = vpop.f32.mrb[0].mxu0
      %v11632 = vadd.f32 %v11407, %v11631
      %v11633 = vpop.f32.mrb[0].mxu0
      %11634 = vmatprep.mubr.f32.mxu0 0.0
      %11635 = vmatmul.mubr.f32.gmra.mrb[0].mxu0 %v11228
      %v11636 = vpop.f32.mrb[0].mxu0
      %v11637 = vadd.f32 %v11412, %v11636
      %v11638 = vpop.f32.mrb[0].mxu0
      %11639 = vmatprep.mubr.f32.mxu0 0.0
      %11640 = vmatmul.mubr.f32.gmra.mrb[0].mxu0 %v11231
      %v11641 = vpop.f32.mrb[0].mxu0
      %v11642 = vadd.f32 %v11417, %v11641
      %v11643 = vpop.f32.mrb[0].mxu0
      %11644 = vmatprep.mubr.f32.mxu0 0.0
      %11645 = vmatmul.mubr.f32.gmra.mrb[0].mxu0 %v11234
      %v11646 = vpop.f32.mrb[0].mxu0
      %v11647 = vadd.f32 %v11422, %v11646
      %v11648 = vpop.f32.mrb[0].mxu0
      %11649 = vmatprep.mubr.f32.mxu0 0.0
      %11650 = vmatmul.mubr.f32.gmra.mrb[0].mxu0 %v11237
      %v11651 = vpop.f32.mrb[0].mxu0
      %v11652 = vadd.f32 %v11427, %v11651
      %v11653 = vpop.f32.mrb[0].mxu0
      %11654 = vmatprep.mubr.f32.mxu0 0.0
      %11655 = vmatmul.mubr.f32.gmra.mrb[0].mxu0 %v11240
      %v11656 = vpop.f32.mrb[0].mxu0
      %v11657 = vadd.f32 %v11432, %v11656
      %v11658 = vpop.f32.mrb[0].mxu0
      %11659 = vmatprep.mubr.f32.mxu0 0.0
      %11660 = vmatmul.mubr.f32.gmra.mrb[0].mxu0 %v11243
      %v11661 = vpop.f32.mrb[0].mxu0
      %v11662 = vadd.f32 %v11437, %v11661
      %v11663 = vpop.f32.mrb[0].mxu0
      %11664 = vmatprep.mubr.f32.mxu0 0.0
      %11665 = vmatmul.mubr.f32.gmra.mrb[0].mxu0 %v11246
      %v11666 = vpop.f32.mrb[0].mxu0
      %v11667 = vadd.f32 %v11442, %v11666
      %v11668 = vpop.f32.mrb[0].mxu0
      %11669 = vmatprep.mubr.f32.mxu0 0.0
      %11670 = vmatmul.mubr.f32.gmra.mrb[0].mxu0 %v11249
      %v11671 = vpop.f32.mrb[0].mxu0
      %v11672 = vadd.f32 %v11447, %v11671
      %v11673 = vpop.f32.mrb[0].mxu0
      %11674 = vmatprep.mubr.f32.mxu0 0.0
      %11675 = vmatmul.mubr.f32.gmra.mrb[0].mxu0 %v11252
      %v11676 = vpop.f32.mrb[0].mxu0
      %v11677 = vadd.f32 %v11452, %v11676
      %v11678 = vpop.f32.mrb[0].mxu0
      %11679 = vmatprep.mubr.f32.mxu0 0.0
      %11680 = vmatmul.mubr.f32.gmra.mrb[0].mxu0 %v11255
      %v11681 = vpop.f32.mrb[0].mxu0
      %v11682 = vadd.f32 %v11457, %v11681
      %v11683 = vpop.f32.mrb[0].mxu0
      %11684 = vmatprep.mubr.f32.mxu0 0.0
      %11685 = vmatmul.mubr.f32.gmra.mrb[0].mxu0 %v11258
      %v11686 = vpop.f32.mrb[0].mxu0
      %v11687 = vadd.f32 %v11462, %v11686
      %v11688 = vpop.f32.mrb[0].mxu0
      %11689 = vmatprep.mubr.f32.mxu0 0.0
      %11690 = vmatmul.mubr.f32.gmra.mrb[0].mxu0 %v11261
      %v11691 = vpop.f32.mrb[0].mxu0
      %v11692 = vadd.f32 %v11467, %v11691
      %v11693 = vpop.f32.mrb[0].mxu0
      %11694 = vmatprep.mubr.f32.mxu0 0.0
      %11695 = vmatmul.mubr.f32.gmra.mrb[0].mxu0 %v11264
      %v11696 = vpop.f32.mrb[0].mxu0
      %v11697 = vadd.f32 %v11472, %v11696
      %v11698 = vpop.f32.mrb[0].mxu0
      %11699 = vmatprep.mubr.f32.mxu0 0.0
      %11700 = vmatmul.mubr.f32.gmra.mrb[0].mxu0 %v11267
      %v11701 = vpop.f32.mrb[0].mxu0
      %v11702 = vadd.f32 %v11477, %v11701
      %v11703 = vpop.f32.mrb[0].mxu0
      %11704 = vmatprep.mubr.f32.mxu0 0.0
      %11705 = vmatmul.mubr.f32.gmra.mrb[0].mxu0 %v11270
      %v11706 = vpop.f32.mrb[0].mxu0
      %v11707 = vadd.f32 %v11482, %v11706
      %v11708 = vpop.f32.mrb[0].mxu0
      %11709 = vmatprep.mubr.f32.mxu0 0.0
      %11710 = vmatmul.mubr.f32.gmra.mrb[0].mxu0 %v11273
      %v11711 = vpop.f32.mrb[0].mxu0
      %v11712 = vadd.f32 %v11487, %v11711
      %v11713 = vpop.f32.mrb[0].mxu0
      %11714 = vmatprep.mubr.f32.mxu0 0.0
      %11715 = vmatmul.mubr.f32.gmra.mrb[0].mxu0 %v11276
      %v11716 = vpop.f32.mrb[0].mxu0
      %v11717 = vadd.f32 %v11492, %v11716
      %v11718 = vpop.f32.mrb[0].mxu0
      %11719 = vmatprep.mubr.f32.mxu0 0.0
      %11720 = vmatmul.mubr.f32.gmra.mrb[0].mxu0 %v11279
      %v11721 = vpop.f32.mrb[0].mxu0
      %v11722 = vadd.f32 %v11497, %v11721
      %v11723 = vpop.f32.mrb[0].mxu0
      %11724 = vmatprep.mubr.f32.mxu0 0.0
      %11725 = vmatmul.mubr.f32.gmra.mrb[0].mxu0 %v11282
      %v11726 = vpop.f32.mrb[0].mxu0
      %v11727 = vadd.f32 %v11502, %v11726
      %v11728 = vpop.f32.mrb[0].mxu0
      %11729 = vmatprep.mubr.f32.mxu0 0.0
      %11730 = vmatmul.mubr.f32.gmra.mrb[0].mxu0 %v11285
      %v11731 = vpop.f32.mrb[0].mxu0
      %v11732 = vadd.f32 %v11507, %v11731
      %v11733 = vpop.f32.mrb[0].mxu0
      %11734 = vmatprep.mubr.f32.mxu0 0.0
      %11735 = vmatmul.mubr.f32.gmra.mrb[0].mxu0 %v11288
      %v11736 = vpop.f32.mrb[0].mxu0
      %v11737 = vadd.f32 %v11512, %v11736
      %v11738 = vpop.f32.mrb[0].mxu0
      %11739 = vdwg.mxu0
      %v11740 = vld [vmem:[%s4] sm:$0x1]
      %v11742 = vlaneseq
      %v11743 = vshrl.u32 %v11742, 7
      %v11744 = vsub.s32 0, %v11743
      %v11745 = vrot.slane %v11740, %v11744
      %v11747 = vadd.f32 %v11582, %v11745
      %v11748 = vadd.f32 %v11587, %v11745
      %v11749 = vadd.f32 %v11592, %v11745
      %v11750 = vadd.f32 %v11597, %v11745
      %v11751 = vadd.f32 %v11602, %v11745
      %v11752 = vadd.f32 %v11607, %v11745
      %v11753 = vadd.f32 %v11612, %v11745
      %v11754 = vadd.f32 %v11617, %v11745
      %v11755 = vadd.f32 %v11622, %v11745
      %v11756 = vadd.f32 %v11627, %v11745
      %v11757 = vadd.f32 %v11632, %v11745
      %v11758 = vadd.f32 %v11637, %v11745
      %v11759 = vadd.f32 %v11642, %v11745
      %v11760 = vadd.f32 %v11647, %v11745
      %v11761 = vadd.f32 %v11652, %v11745
      %v11762 = vadd.f32 %v11657, %v11745
      %v11763 = vadd.f32 %v11662, %v11745
      %v11764 = vadd.f32 %v11667, %v11745
      %v11765 = vadd.f32 %v11672, %v11745
      %v11766 = vadd.f32 %v11677, %v11745
      %v11767 = vadd.f32 %v11682, %v11745
      %v11768 = vadd.f32 %v11687, %v11745
      %v11769 = vadd.f32 %v11692, %v11745
      %v11770 = vadd.f32 %v11697, %v11745
      %v11771 = vadd.f32 %v11702, %v11745
      %v11772 = vadd.f32 %v11707, %v11745
      %v11773 = vadd.f32 %v11712, %v11745
      %v11774 = vadd.f32 %v11717, %v11745
      %v11775 = vadd.f32 %v11722, %v11745
      %v11776 = vadd.f32 %v11727, %v11745
      %v11777 = vadd.f32 %v11732, %v11745
      %v11778 = vadd.f32 %v11737, %v11745
      %v11779 = vadd.f32 %v11747, %v281
      %v11780 = vadd.f32 %v11748, %v282
      %v11781 = vadd.f32 %v11749, %v283
      %v11782 = vadd.f32 %v11750, %v284
      %v11783 = vadd.f32 %v11751, %v285
      %v11784 = vadd.f32 %v11752, %v286
      %v11785 = vadd.f32 %v11753, %v287
      %v11786 = vadd.f32 %v11754, %v288
      %v11787 = vadd.f32 %v11755, %v289
      %v11788 = vadd.f32 %v11756, %v290
      %v11789 = vadd.f32 %v11757, %v291
      %v11790 = vadd.f32 %v11758, %v292
      %v11791 = vadd.f32 %v11759, %v293
      %v11792 = vadd.f32 %v11760, %v294
      %v11793 = vadd.f32 %v11761, %v295
      %v11794 = vadd.f32 %v11762, %v296
      %v11795 = vadd.f32 %v11763, %v297
      %v11796 = vadd.f32 %v11764, %v298
      %v11797 = vadd.f32 %v11765, %v299
      %v11798 = vadd.f32 %v11766, %v300
      %v11799 = vadd.f32 %v11767, %v301
      %v11800 = vadd.f32 %v11768, %v302
      %v11801 = vadd.f32 %v11769, %v303
      %v11802 = vadd.f32 %v11770, %v304
      %v11803 = vadd.f32 %v11771, %v305
      %v11804 = vadd.f32 %v11772, %v306
      %v11805 = vadd.f32 %v11773, %v307
      %v11806 = vadd.f32 %v11774, %v308
      %v11807 = vadd.f32 %v11775, %v309
      %v11808 = vadd.f32 %v11776, %v310
      %v11809 = vadd.f32 %v11777, %v311
      %v11810 = vadd.f32 %v11778, %v312
      %vm11811 = vcmask 23552
      %11812 = vst.msk [vmem:[%s224] sm:$0xff] %vm11811, %v11779
      %11813 = vst.msk [vmem:[%s224 + $0x8] sm:$0xff] %vm11811, %v11780
      %11814 = vst.msk [vmem:[%s224 + $0x10] sm:$0xff] %vm11811, %v11781
      %11815 = vst.msk [vmem:[%s224 + $0x18] sm:$0xff] %vm11811, %v11782
      %11816 = vst.msk [vmem:[%s224 + $0x20] sm:$0xff] %vm11811, %v11783
      %11817 = vst.msk [vmem:[%s224 + $0x28] sm:$0xff] %vm11811, %v11784
      %11818 = vst.msk [vmem:[%s224 + $0x30] sm:$0xff] %vm11811, %v11785
      %11819 = vst.msk [vmem:[%s224 + $0x38] sm:$0xff] %vm11811, %v11786
      %11820 = vst.msk [vmem:[%s224 + $0x40] sm:$0xff] %vm11811, %v11787
      %11821 = vst.msk [vmem:[%s224 + $0x48] sm:$0xff] %vm11811, %v11788
      %11822 = vst.msk [vmem:[%s224 + $0x50] sm:$0xff] %vm11811, %v11789
      %11823 = vst.msk [vmem:[%s224 + $0x58] sm:$0xff] %vm11811, %v11790
      %11824 = vst.msk [vmem:[%s224 + $0x60] sm:$0xff] %vm11811, %v11791
      %11825 = vst.msk [vmem:[%s224 + $0x68] sm:$0xff] %vm11811, %v11792
      %11826 = vst.msk [vmem:[%s224 + $0x70] sm:$0xff] %vm11811, %v11793
      %11827 = vst.msk [vmem:[%s224 + $0x78] sm:$0xff] %vm11811, %v11794
      %11828 = vst.msk [vmem:[%s224 + $0x80] sm:$0xff] %vm11811, %v11795
      %11829 = vst.msk [vmem:[%s224 + $0x88] sm:$0xff] %vm11811, %v11796
      %11830 = vst.msk [vmem:[%s224 + $0x90] sm:$0xff] %vm11811, %v11797
      %11831 = vst.msk [vmem:[%s224 + $0x98] sm:$0xff] %vm11811, %v11798
      %11832 = vst.msk [vmem:[%s224 + $0xa0] sm:$0xff] %vm11811, %v11799
      %11833 = vst.msk [vmem:[%s224 + $0xa8] sm:$0xff] %vm11811, %v11800
      %11834 = vst.msk [vmem:[%s224 + $0xb0] sm:$0xff] %vm11811, %v11801
      %11835 = vst.msk [vmem:[%s224 + $0xb8] sm:$0xff] %vm11811, %v11802
      %11836 = vst.msk [vmem:[%s224 + $0xc0] sm:$0xff] %vm11811, %v11803
      %11837 = vst.msk [vmem:[%s224 + $0xc8] sm:$0xff] %vm11811, %v11804
      %11838 = vst.msk [vmem:[%s224 + $0xd0] sm:$0xff] %vm11811, %v11805
      %11839 = vst.msk [vmem:[%s224 + $0xd8] sm:$0xff] %vm11811, %v11806
      %11840 = vst.msk [vmem:[%s224 + $0xe0] sm:$0xff] %vm11811, %v11807
      %11841 = vst.msk [vmem:[%s224 + $0xe8] sm:$0xff] %vm11811, %v11808
      %11842 = vst.msk [vmem:[%s224 + $0xf0] sm:$0xff] %vm11811, %v11809
      %11843 = vst.msk [vmem:[%s224 + $0xf8] sm:$0xff] %vm11811, %v11810
      %p11844 = scmp.lt.s32.totalorder %s16, 1
      %s11845 = scalar_select %p11844, %s16, 1
      %s11846 = smul.addr %s11845, 32
      %s11847 = smul.addr %s11846, 8
      %s11848 = scalar_lea.vmem %s5, %s11847
      // Predicated region
      $region41: #{cnn5layer_forward.1} parent=39 // pred_check
        %p11849 = pneg %p144
      $region42: #{cnn5layer_forward.1} parent=39 // pred_check_branch
        %11851 = sbr.rel (%p11849) target = $region44
      $region43: #{cnn5layer_forward.1} parent=39 // pred_region
        _
      $region44: #{cnn5layer_forward.1} parent=39 // pred_fallthru
        _
    $region40: #{cnn5layer_forward.1} parent=5 // pred_fallthru
      _
    %p11852 = scmp.le.s32.totalorder 2, %s11
    // Predicated region
    $region45: #{cnn5layer_forward.1} parent=5 // pred_check
      %p11853 = pneg %p11852
    $region46: #{cnn5layer_forward.1} parent=5 // pred_check_branch
      %11855 = sbr.rel (%p11853) target = $region48
    $region47: #{cnn5layer_forward.1} parent=5 // pred_region
      %s11856 = ssub.s32 %s11, 2
      // Predicated region
      $region49: #{cnn5layer_forward.1} parent=47 // pred_check
        %p11857 = pneg %p150
      $region50: #{cnn5layer_forward.1} parent=47 // pred_check_branch
        %11859 = sbr.rel (%p11857) target = $region52
      $region51: #{cnn5layer_forward.1} parent=47 // pred_region
        %p11860 = scmp.lt.s32.totalorder %s17, 1
        %s11861 = scalar_select %p11860, %s17, 1
        %s11862 = smul.addr %s11861, 32
        %s11863 = smul.addr %s11862, 8
        %s11864 = scalar_lea.vmem %s5, %s11863
      $region52: #{cnn5layer_forward.1} parent=47 // pred_fallthru
        _
    $region48: #{cnn5layer_forward.1} parent=5 // pred_fallthru
      _
  $region6: #{cnn5layer_forward.1} parent=0 // loop_footer
    %s15 = sadd.s32 1, %s11
  $region7: #{cnn5layer_forward.1} parent=0 // loop_footer_branch
    %10 = sbr.rel target = $region3
  $region8: #{cnn5layer_forward.1} parent=0 // loop_exit
    _

</llo_original>
